<compile_context>
chip_gen: v5e
topology: v5e:2x2
jax: 0.10.0
libtpu: 0.0.40
codegen_flags: <defaults>
</compile_context>

<pallas_src>
import math

import numpy as np
import jax
import jax.numpy as jnp
from jax.experimental import pallas as pl
from jax.experimental.pallas import tpu as pltpu

FEATURE_OUTPUT = 288


# ------------------------------ elementwise ---------------------------------

def _elu(x):
    # ELU(alpha=1): x if x > 0 else exp(x) - 1
    return jnp.where(x > 0, x, jnp.exp(jnp.minimum(x, 0.0)) - 1.0)


def _sigmoid(x):
    # sigmoid(x) = 0.5*(tanh(x/2)+1): one EUP tanh, no divide, no overflow risk.
    return 0.5 * (jnp.tanh(0.5 * x) + 1.0)


# ------------------------- the single fused kernel ---------------------------

def _critic_kernel(
        x0_ref,                                            # (B*(48+1), 48*Cin) padded input rows
        m0_ref, cb0_ref, s0_ref, k0_ref,                   # conv0: M (3,K,N), bias (1,N), S (3,Ro,Ri), pad-row mask (Ro,1)
        m1_ref, cb1_ref, s1_ref, k1_ref,                   # conv1
        m2_ref, cb2_ref, s2_ref, k2_ref,                   # conv2
        m3_ref, cb3_ref, s3_ref,                           # conv3 (no pad rows in its output)
        fcw_ref, fcb_ref,                                  # fc: per-feature-row weights (3,96,256), bias
        wih_ref, whh_ref, lb_ref,                          # LSTM: x-proj (256,4H), recurrent (H,4H), fused bias
        exw_ref, exb_ref,                                  # extra_layer
        hdw_ref, hdb_ref,                                  # concatenated critic heads (256, 2A)
        h0_ref, c0_ref,                                    # initial hidden state (1,H) each
        v_ref, hT_ref, cT_ref,                             # outputs
        a1_scr, a2_scr, a3_scr):                           # VMEM activation scratch (layers 1..3 inputs)

    def conv_layer(x, m_ref, b_ref, s_ref, mask_ref):
        # Y = mask * ELU( sum_i (S_i @ X) @ M_i + b )
        #   S_i folds the stride-2 row (H) gather + zero row-padding,
        #   M_i folds the 3 column (W) taps, left/right zero padding and the
        #   channel contraction.  Output lane order = wo*Cout + co, which is exactly
        #   the lane order the next layer's M expects -> no relayout between layers.
        acc = None
        for i in range(3):
            rows = jnp.dot(s_ref[i], x, preferred_element_type=jnp.float32)
            term = jnp.dot(rows, m_ref[i], preferred_element_type=jnp.float32)
            acc = term if acc is None else acc + term
        y = _elu(acc + b_ref[...])
        if mask_ref is not None:
            y = y * mask_ref[...]        # zero out the per-sample padding rows
        return y

    # ---- CNN feature extractor: 4 x [conv(k3,s2,p1) + ELU], all in VMEM ----
    a1_scr[...] = conv_layer(x0_ref[...], m0_ref, cb0_ref, s0_ref, k0_ref)   # (B*25, 768)
    a2_scr[...] = conv_layer(a1_scr[...], m1_ref, cb1_ref, s1_ref, k1_ref)   # (B*13, 384)
    a3_scr[...] = conv_layer(a2_scr[...], m2_ref, cb2_ref, s2_ref, k2_ref)   # (B*7, 192)
    y3 = conv_layer(a3_scr[...], m3_ref, cb3_ref, s3_ref, None)              # (3*B, 96), rows h-major

    T = v_ref.shape[0]           # LSTM sequence length == CNN batch (torch: x.view(-1,1,256))
    H = h0_ref.shape[1]

    # ---- fc: Linear(288,256)+ELU.  The torch NCHW flatten (c*9+h*3+w) is folded
    # into fcw_ref's row permutation, so it is just 3 matmuls over the h rows. ----
    fc_pre = None
    for hr in range(3):
        t = jnp.dot(y3[hr * T:(hr + 1) * T, :], fcw_ref[hr],
                    preferred_element_type=jnp.float32)
        fc_pre = t if fc_pre is None else fc_pre + t
    fc_out = _elu(fc_pre + fcb_ref[...])                                      # (T, 256)

    # ---- LSTM: input projection hoisted out of the recurrence (+ fused bias) ----
    gates_x = jnp.dot(fc_out, wih_ref[...],
                      preferred_element_type=jnp.float32) + lb_ref[...]       # (T, 4H)

    h = h0_ref[...]                                                           # (1, H)
    c = c0_ref[...]                                                           # (1, H)
    hs = []
    for t in range(T):           # statically unrolled; per-step work is (1,H)x(H,4H) + gates
        g = gates_x[t:t + 1, :] + jnp.dot(h, whh_ref[...],
                                          preferred_element_type=jnp.float32)  # (1, 4H)
        sig = _sigmoid(g)        # full-vreg EUP ops, sliced afterwards
        tah = jnp.tanh(g)
        i_g = sig[:, 0:H]        # torch gate order: i, f, g, o
        f_g = sig[:, H:2 * H]
        g_g = tah[:, 2 * H:3 * H]
        o_g = sig[:, 3 * H:4 * H]
        c = f_g * c + i_g * g_g
        h = o_g * jnp.tanh(c)
        hs.append(h)             # kept in vregs; no scratch stores on the serial path
    hT_ref[...] = h
    cT_ref[...] = c

    hs_all = jnp.concatenate(hs, axis=0)                                      # (T, H)

    # extra_layer computed ONCE (torch applies identical weights/input twice), then
    # both critic heads as a single concatenated (256, 2A) matmul.
    extra = _elu(jnp.dot(hs_all, exw_ref[...],
                         preferred_element_type=jnp.float32) + exb_ref[...])  # (T, 256)
    v_ref[...] = jnp.dot(extra, hdw_ref[...],
                         preferred_element_type=jnp.float32) + hdb_ref[...]   # (T, 2A)


# ------------------------------- init ----------------------------------------

def init_params(key, c_in, hidden_size, action_size, batch, spatial=48):
    """Builds kernel-ready (folded) parameters and the raw torch-layout weights
    (the latter only for the pure-JAX reference check)."""
    assert spatial == 48 and FEATURE_OUTPUT == 288
    gain = math.sqrt(2.0)
    ks = jax.random.split(key, 12)

    def orth(k, shape):
        return np.asarray(jax.nn.initializers.orthogonal(scale=gain)(k, shape, jnp.float32))

    params, raw = {}, {}
    chans = [c_in, 32, 32, 32]
    hin = spatial
    for l in range(4):
        cin, cout = chans[l], 32
        # torch orthogonal_ operates on the flattened (cout, cin*9) view.
        w4 = orth(ks[l], (cout, cin * 9)).reshape(cout, cin, 3, 3)
        bias = np.zeros((cout,), np.float32)
        raw[f"conv{l}_w"] = jnp.asarray(w4)
        raw[f"conv{l}_b"] = jnp.asarray(bias)

        win = hin
        ho = (hin - 1) // 2 + 1
        wo = (win - 1) // 2 + 1

        # M_i: fold W-taps (incl. left/right zero padding) + channel contraction.
        # input lane k = w*cin + ci, output lane n = wo*cout + co.
        m = np.zeros((3, win * cin, wo * cout), np.float32)
        for i in range(3):
            for wo_i in range(wo):
                for j in range(3):
                    w = 2 * wo_i + j - 1
                    if 0 <= w < win:
                        m[i, w * cin:(w + 1) * cin,
                          wo_i * cout:(wo_i + 1) * cout] = w4[:, :, i, j].T

        # S_i: 0/1 row-selection folding the stride-2 H gather.  Input rows are
        # b*(hin+1)+t with t=0 the zero pad row (top conv padding).
        rin = batch * (hin + 1)
        if l < 3:
            # output rows b*(ho+1)+1+r, row b*(ho+1) is the next layer's zero pad row.
            rout = batch * (ho + 1)
            s = np.zeros((3, rout, rin), np.float32)
            mask = np.ones((rout, 1), np.float32)
            for b in range(batch):
                mask[b * (ho + 1), 0] = 0.0
                for i in range(3):
                    for r in range(ho):
                        s[i, b * (ho + 1) + 1 + r, b * (hin + 1) + 2 * r + i] = 1.0
            params[f"mask{l}"] = jnp.asarray(mask)
        else:
            # last conv: h-major rows (r*batch + b) so the fc can slice contiguously per h.
            rout = ho * batch
            s = np.zeros((3, rout, rin), np.float32)
            for b in range(batch):
                for i in range(3):
                    for r in range(ho):
                        s[i, r * batch + b, b * (hin + 1) + 2 * r + i] = 1.0

        params[f"m{l}"] = jnp.asarray(m)
        params[f"s{l}"] = jnp.asarray(s)
        params[f"cb{l}"] = jnp.asarray(np.tile(bias, wo).reshape(1, wo * cout))
        hin = ho

    # fc(288 -> 256): per-h weight slabs with rows permuted so the torch NCHW flatten
    # (index c*9 + h*3 + w) is folded into the weight layout (kernel rows are (w,c)).
    fc_w = orth(ks[4], (256, FEATURE_OUTPUT))
    fcw_h = np.zeros((3, 3 * 32, 256), np.float32)
    for h in range(3):
        for w in range(3):
            for c in range(32):
                fcw_h[h, w * 32 + c, :] = fc_w[:, c * 9 + h * 3 + w]
    params["fc_wh"] = jnp.asarray(fcw_h)
    params["fc_b"] = jnp.zeros((1, 256), jnp.float32)
    raw["fc_w"] = jnp.asarray(fc_w)
    raw["fc_b"] = jnp.zeros((256,), jnp.float32)

    Hh = hidden_size
    bound = 1.0 / math.sqrt(Hh)
    w_ih = jax.random.uniform(ks[5], (4 * Hh, 256), jnp.float32, -bound, bound)
    w_hh = jax.random.uniform(ks[6], (4 * Hh, Hh), jnp.float32, -bound, bound)
    b_ih = jax.random.uniform(ks[7], (4 * Hh,), jnp.float32, -bound, bound)
    b_hh = jax.random.uniform(ks[8], (4 * Hh,), jnp.float32, -bound, bound)
    params["lstm_wihT"] = w_ih.T                      # (256, 4H), torch gate order i,f,g,o
    params["lstm_whhT"] = w_hh.T                      # (H, 4H)
    params["lstm_b"] = (b_ih + b_hh).reshape(1, 4 * Hh)
    raw.update(lstm_w_ih=w_ih, lstm_w_hh=w_hh, lstm_b_ih=b_ih, lstm_b_hh=b_hh)

    extra_w = orth(ks[9], (256, Hh))
    params["extra_wT"] = jnp.asarray(extra_w.T)       # (H, 256)
    params["extra_b"] = jnp.zeros((1, 256), jnp.float32)
    raw["extra_w"] = jnp.asarray(extra_w)
    raw["extra_b"] = jnp.zeros((256,), jnp.float32)

    ce_w = orth(ks[10], (action_size, 256))
    ci_w = orth(ks[11], (action_size, 256))
    params["heads_wT"] = jnp.asarray(np.concatenate([ce_w, ci_w], axis=0).T)  # (256, 2A): [ext|int]
    params["heads_b"] = jnp.zeros((1, 2 * action_size), jnp.float32)
    raw["ce_w"] = jnp.asarray(ce_w)
    raw["ce_b"] = jnp.zeros((action_size,), jnp.float32)
    raw["ci_w"] = jnp.asarray(ci_w)
    raw["ci_b"] = jnp.zeros((action_size,), jnp.float32)
    return params, raw


# ----------------------------- forward wrapper --------------------------------

def critic_lstm_forward(params, state, hidden):
    """state: (B, C, 48, 48) NCHW; hidden: (h0, c0) each (1, 1, hidden_size).
    Returns (value_ext, value_int, new_hidden) exactly like the torch module."""
    B, C, Hs, Ws = state.shape
    Hd = hidden[0].shape[-1]
    A2 = params["heads_b"].shape[1]

    # Only remaining XLA glue: one relayout of the raw NCHW input into
    # (one row per image row, lanes ordered w*C + c) with a single zero pad row
    # per sample (the conv's top padding).  Everything else is inside the kernel.
    x0 = jnp.transpose(state.astype(jnp.float32), (0, 2, 3, 1)).reshape(B, Hs, Ws * C)
    x0 = jnp.pad(x0, ((0, 0), (1, 0), (0, 0))).reshape(B * (Hs + 1), Ws * C)

    # TODO(synk): use_action_as_input / use_role_as_input one-hot concat is
    # host-side numpy in the original module and is disabled in this config.

    args = (x0,
            params["m0"], params["cb0"], params["s0"], params["mask0"],
            params["m1"], params["cb1"], params["s1"], params["mask1"],
            params["m2"], params["cb2"], params["s2"], params["mask2"],
            params["m3"], params["cb3"], params["s3"],
            params["fc_wh"], params["fc_b"],
            params["lstm_wihT"], params["lstm_whhT"], params["lstm_b"],
            params["extra_wT"], params["extra_b"],
            params["heads_wT"], params["heads_b"],
            hidden[0].reshape(1, Hd), hidden[1].reshape(1, Hd))

    vmem_spec = pl.BlockSpec(memory_space=pltpu.MemorySpace.VMEM)
    # No grid: one invocation, whole arrays resident in VMEM (~8 MiB total, fits every
    # generation).  TODO(synk): at production batch, grid the conv stage over rows with
    # dimension_semantics=("parallel",) to use both v7x TensorCores.
    v, hT, cT = pl.pallas_call(
        _critic_kernel,
        out_shape=(jax.ShapeDtypeStruct((B, A2), jnp.float32),
                   jax.ShapeDtypeStruct((1, Hd), jnp.float32),
                   jax.ShapeDtypeStruct((1, Hd), jnp.float32)),
        in_specs=[vmem_spec] * len(args),
        out_specs=(vmem_spec, vmem_spec, vmem_spec),
        scratch_shapes=[pltpu.VMEM((B * 25, 768), jnp.float32),   # conv0 out / conv1 in
                        pltpu.VMEM((B * 13, 384), jnp.float32),   # conv1 out / conv2 in
                        pltpu.VMEM((B * 7, 192), jnp.float32)],   # conv2 out / conv3 in
        compiler_params=pltpu.CompilerParams(vmem_limit_bytes=48 * 1024 * 1024),
        cost_estimate=pl.CostEstimate(flops=110_000_000, transcendentals=60_000,
                                      bytes_accessed=8_000_000),
    )(*args)

    A = A2 // 2
    v_ext = v[:, :A]
    v_int = v[:, A:]
    if A == 1:   # torch: (B, 1, A).squeeze(1).squeeze(1)
        v_ext = v_ext[:, 0]
        v_int = v_int[:, 0]
    return v_ext, v_int, (hT.reshape(1, 1, Hd), cT.reshape(1, 1, Hd))


# --------------------------- pure-JAX reference --------------------------------

def reference_forward(raw, state, hidden):
    hp = jax.lax.Precision.HIGHEST
    x = state.astype(jnp.float32)
    for l in range(4):
        x = jax.lax.conv_general_dilated(
            x, raw[f"conv{l}_w"], window_strides=(2, 2), padding=((1, 1), (1, 1)),
            dimension_numbers=("NCHW", "OIHW", "NCHW"), precision=hp)
        x = _elu(x + raw[f"conv{l}_b"].reshape(1, -1, 1, 1))
    feat = x.reshape(x.shape[0], -1)
    fc = _elu(jnp.dot(feat, raw["fc_w"].T, precision=hp) + raw["fc_b"])
    H = raw["lstm_w_hh"].shape[1]
    h = hidden[0].reshape(1, H)
    c = hidden[1].reshape(1, H)
    outs = []
    for t in range(fc.shape[0]):
        g = (jnp.dot(fc[t:t + 1], raw["lstm_w_ih"].T, precision=hp) + raw["lstm_b_ih"]
             + jnp.dot(h, raw["lstm_w_hh"].T, precision=hp) + raw["lstm_b_hh"])
        i_g = jax.nn.sigmoid(g[:, :H])
        f_g = jax.nn.sigmoid(g[:, H:2 * H])
        g_g = jnp.tanh(g[:, 2 * H:3 * H])
        o_g = jax.nn.sigmoid(g[:, 3 * H:])
        c = f_g * c + i_g * g_g
        h = o_g * jnp.tanh(c)
        outs.append(h)
    hs = jnp.concatenate(outs, axis=0)
    extra = _elu(jnp.dot(hs, raw["extra_w"].T, precision=hp) + raw["extra_b"])
    v_ext = jnp.dot(extra, raw["ce_w"].T, precision=hp) + raw["ce_b"]
    v_int = jnp.dot(extra, raw["ci_w"].T, precision=hp) + raw["ci_b"]
    return v_ext[:, 0], v_int[:, 0], (h.reshape(1, 1, H), c.reshape(1, 1, H))


# --------------------------------- main ----------------------------------------

if __name__ == "__main__":
    key = jax.random.PRNGKey(0)
    B, C_IN, S = 2, 4, 48          # 48x48 spatial is forced by feature_output = 288
    HIDDEN = 32                    # small hidden_size config
    ACTION = 1                     # output_size

    params, raw = init_params(key, C_IN, HIDDEN, ACTION, batch=B, spatial=S)
    state = jax.random.normal(jax.random.fold_in(key, 123), (B, C_IN, S, S), jnp.float32)
    h0 = jnp.zeros((1, 1, HIDDEN), jnp.float32)
    c0 = jnp.zeros((1, 1, HIDDEN), jnp.float32)

    forward = jax.jit(critic_lstm_forward)
    v_ext, v_int, new_hidden = forward(params, state, (h0, c0))
    jax.block_until_ready((v_ext, v_int, new_hidden))

    assert v_ext.shape == (B,) and v_int.shape == (B,)
    assert new_hidden[0].shape == (1, 1, HIDDEN) and new_hidden[1].shape == (1, 1, HIDDEN)
    assert bool(jnp.all(jnp.isfinite(v_ext))) and bool(jnp.all(jnp.isfinite(v_int)))

    # Numerical check against a pure-JAX reference of the torch module.
    r_ext, r_int, r_hid = reference_forward(raw, state, (h0, c0))
    np.testing.assert_allclose(np.asarray(v_ext), np.asarray(r_ext), rtol=1e-2, atol=1e-2)
    np.testing.assert_allclose(np.asarray(v_int), np.asarray(r_int), rtol=1e-2, atol=1e-2)
    np.testing.assert_allclose(np.asarray(new_hidden[0]), np.asarray(r_hid[0]), rtol=1e-2, atol=1e-2)
    np.testing.assert_allclose(np.asarray(new_hidden[1]), np.asarray(r_hid[1]), rtol=1e-2, atol=1e-2)

    print("KERNEL_OK")
</pallas_src>

<mosaic_0001>
module attributes {stable_mosaic.version = 11 : i64} {
  func.func @_critic_kernel(%arg0: memref<98x192xf32, #tpu.memory_space<vmem>>, %arg1: memref<3x192x768xf32, #tpu.memory_space<vmem>>, %arg2: memref<1x768xf32, #tpu.memory_space<vmem>>, %arg3: memref<3x50x98xf32, #tpu.memory_space<vmem>>, %arg4: memref<50x1xf32, #tpu.memory_space<vmem>>, %arg5: memref<3x768x384xf32, #tpu.memory_space<vmem>>, %arg6: memref<1x384xf32, #tpu.memory_space<vmem>>, %arg7: memref<3x26x50xf32, #tpu.memory_space<vmem>>, %arg8: memref<26x1xf32, #tpu.memory_space<vmem>>, %arg9: memref<3x384x192xf32, #tpu.memory_space<vmem>>, %arg10: memref<1x192xf32, #tpu.memory_space<vmem>>, %arg11: memref<3x14x26xf32, #tpu.memory_space<vmem>>, %arg12: memref<14x1xf32, #tpu.memory_space<vmem>>, %arg13: memref<3x192x96xf32, #tpu.memory_space<vmem>>, %arg14: memref<1x96xf32, #tpu.memory_space<vmem>>, %arg15: memref<3x6x14xf32, #tpu.memory_space<vmem>>, %arg16: memref<3x96x256xf32, #tpu.memory_space<vmem>>, %arg17: memref<1x256xf32, #tpu.memory_space<vmem>>, %arg18: memref<256x128xf32, #tpu.memory_space<vmem>>, %arg19: memref<32x128xf32, #tpu.memory_space<vmem>>, %arg20: memref<1x128xf32, #tpu.memory_space<vmem>>, %arg21: memref<32x256xf32, #tpu.memory_space<vmem>>, %arg22: memref<1x256xf32, #tpu.memory_space<vmem>>, %arg23: memref<256x2xf32, #tpu.memory_space<vmem>>, %arg24: memref<1x2xf32, #tpu.memory_space<vmem>>, %arg25: memref<1x32xf32, #tpu.memory_space<vmem>>, %arg26: memref<1x32xf32, #tpu.memory_space<vmem>>, %arg27: memref<2x2xf32, #tpu.memory_space<vmem>>, %arg28: memref<1x32xf32, #tpu.memory_space<vmem>>, %arg29: memref<1x32xf32, #tpu.memory_space<vmem>>, %arg30: memref<50x768xf32, #tpu.memory_space<vmem>>, %arg31: memref<26x384xf32, #tpu.memory_space<vmem>>, %arg32: memref<14x192xf32, #tpu.memory_space<vmem>>) attributes {dimension_semantics = [], scalar_prefetch = 0 : i64, scratch_operands = 3 : i64, tpu.core_type = #tpu.core_type<tc>} {
    %c0 = arith.constant 0 : index
    %c0_0 = arith.constant 0 : index
    %0 = vector.load %arg0[%c0, %c0_0] : memref<98x192xf32, #tpu.memory_space<vmem>>, vector<98x192xf32>
    %c0_1 = arith.constant 0 : index
    %c0_2 = arith.constant 0 : index
    %c0_3 = arith.constant 0 : index
    %1 = vector.load %arg3[%c0_1, %c0_2, %c0_3] : memref<3x50x98xf32, #tpu.memory_space<vmem>>, vector<1x50x98xf32>
    %2 = vector.shape_cast %1 : vector<1x50x98xf32> to vector<50x98xf32>
    %cst = arith.constant dense<0.000000e+00> : vector<50x192xf32>
    %3 = tpu.matmul %2, %0, %cst {dimension_numbers = #tpu.dot_dimension_numbers<[1], [0], [0], [1], [0, 0, 1, 1], [], []>} : vector<50x98xf32>, vector<98x192xf32>, vector<50x192xf32> -> vector<50x192xf32>
    %c0_4 = arith.constant 0 : index
    %c0_5 = arith.constant 0 : index
    %c0_6 = arith.constant 0 : index
    %4 = vector.load %arg1[%c0_4, %c0_5, %c0_6] : memref<3x192x768xf32, #tpu.memory_space<vmem>>, vector<1x192x768xf32>
    %5 = vector.shape_cast %4 : vector<1x192x768xf32> to vector<192x768xf32>
    %cst_7 = arith.constant dense<0.000000e+00> : vector<50x768xf32>
    %6 = tpu.matmul %3, %5, %cst_7 {dimension_numbers = #tpu.dot_dimension_numbers<[1], [0], [0], [1], [0, 0, 1, 1], [], []>} : vector<50x192xf32>, vector<192x768xf32>, vector<50x768xf32> -> vector<50x768xf32>
    %c1 = arith.constant 1 : index
    %c0_8 = arith.constant 0 : index
    %c0_9 = arith.constant 0 : index
    %7 = vector.load %arg3[%c1, %c0_8, %c0_9] : memref<3x50x98xf32, #tpu.memory_space<vmem>>, vector<1x50x98xf32>
    %8 = vector.shape_cast %7 : vector<1x50x98xf32> to vector<50x98xf32>
    %cst_10 = arith.constant dense<0.000000e+00> : vector<50x192xf32>
    %9 = tpu.matmul %8, %0, %cst_10 {dimension_numbers = #tpu.dot_dimension_numbers<[1], [0], [0], [1], [0, 0, 1, 1], [], []>} : vector<50x98xf32>, vector<98x192xf32>, vector<50x192xf32> -> vector<50x192xf32>
    %c1_11 = arith.constant 1 : index
    %c0_12 = arith.constant 0 : index
    %c0_13 = arith.constant 0 : index
    %10 = vector.load %arg1[%c1_11, %c0_12, %c0_13] : memref<3x192x768xf32, #tpu.memory_space<vmem>>, vector<1x192x768xf32>
    %11 = vector.shape_cast %10 : vector<1x192x768xf32> to vector<192x768xf32>
    %cst_14 = arith.constant dense<0.000000e+00> : vector<50x768xf32>
    %12 = tpu.matmul %9, %11, %cst_14 {dimension_numbers = #tpu.dot_dimension_numbers<[1], [0], [0], [1], [0, 0, 1, 1], [], []>} : vector<50x192xf32>, vector<192x768xf32>, vector<50x768xf32> -> vector<50x768xf32>
    %13 = arith.addf %6, %12 : vector<50x768xf32>
    %c2 = arith.constant 2 : index
    %c0_15 = arith.constant 0 : index
    %c0_16 = arith.constant 0 : index
    %14 = vector.load %arg3[%c2, %c0_15, %c0_16] : memref<3x50x98xf32, #tpu.memory_space<vmem>>, vector<1x50x98xf32>
    %15 = vector.shape_cast %14 : vector<1x50x98xf32> to vector<50x98xf32>
    %cst_17 = arith.constant dense<0.000000e+00> : vector<50x192xf32>
    %16 = tpu.matmul %15, %0, %cst_17 {dimension_numbers = #tpu.dot_dimension_numbers<[1], [0], [0], [1], [0, 0, 1, 1], [], []>} : vector<50x98xf32>, vector<98x192xf32>, vector<50x192xf32> -> vector<50x192xf32>
    %c2_18 = arith.constant 2 : index
    %c0_19 = arith.constant 0 : index
    %c0_20 = arith.constant 0 : index
    %17 = vector.load %arg1[%c2_18, %c0_19, %c0_20] : memref<3x192x768xf32, #tpu.memory_space<vmem>>, vector<1x192x768xf32>
    %18 = vector.shape_cast %17 : vector<1x192x768xf32> to vector<192x768xf32>
    %cst_21 = arith.constant dense<0.000000e+00> : vector<50x768xf32>
    %19 = tpu.matmul %16, %18, %cst_21 {dimension_numbers = #tpu.dot_dimension_numbers<[1], [0], [0], [1], [0, 0, 1, 1], [], []>} : vector<50x192xf32>, vector<192x768xf32>, vector<50x768xf32> -> vector<50x768xf32>
    %20 = arith.addf %13, %19 : vector<50x768xf32>
    %c0_22 = arith.constant 0 : index
    %c0_23 = arith.constant 0 : index
    %21 = vector.load %arg2[%c0_22, %c0_23] : memref<1x768xf32, #tpu.memory_space<vmem>>, vector<1x768xf32>
    %22 = vector.broadcast %21 : vector<1x768xf32> to vector<50x768xf32>
    %23 = arith.addf %20, %22 : vector<50x768xf32>
    %cst_24 = arith.constant 0.000000e+00 : f32
    %24 = vector.broadcast %cst_24 : f32 to vector<50x768xf32>
    %25 = arith.cmpf ogt, %23, %24 : vector<50x768xf32>
    %cst_25 = arith.constant 0.000000e+00 : f32
    %26 = vector.broadcast %cst_25 : f32 to vector<50x768xf32>
    %27 = arith.minimumf %23, %26 : vector<50x768xf32>
    %28 = math.exp %27 : vector<50x768xf32>
    %cst_26 = arith.constant 1.000000e+00 : f32
    %29 = vector.broadcast %cst_26 : f32 to vector<50x768xf32>
    %30 = arith.subf %28, %29 : vector<50x768xf32>
    %31 = arith.select %25, %23, %30 : vector<50x768xi1>, vector<50x768xf32>
    %c0_27 = arith.constant 0 : index
    %c0_28 = arith.constant 0 : index
    %32 = vector.load %arg4[%c0_27, %c0_28] : memref<50x1xf32, #tpu.memory_space<vmem>>, vector<50x1xf32>
    %33 = vector.broadcast %32 : vector<50x1xf32> to vector<50x768xf32>
    %34 = arith.mulf %31, %33 : vector<50x768xf32>
    %c0_29 = arith.constant 0 : index
    %c0_30 = arith.constant 0 : index
    %35 = vector.load %arg30[%c0_29, %c0_30] : memref<50x768xf32, #tpu.memory_space<vmem>>, vector<50x768xf32>
    tpu.vector_store %arg30[%c0_29, %c0_30], %34 {strides = array<i32>} : memref<50x768xf32, #tpu.memory_space<vmem>>, vector<50x768xf32>,
    %c0_31 = arith.constant 0 : index
    %c0_32 = arith.constant 0 : index
    %36 = vector.load %arg30[%c0_31, %c0_32] : memref<50x768xf32, #tpu.memory_space<vmem>>, vector<50x768xf32>
    %c0_33 = arith.constant 0 : index
    %c0_34 = arith.constant 0 : index
    %c0_35 = arith.constant 0 : index
    %37 = vector.load %arg7[%c0_33, %c0_34, %c0_35] : memref<3x26x50xf32, #tpu.memory_space<vmem>>, vector<1x26x50xf32>
    %38 = vector.shape_cast %37 : vector<1x26x50xf32> to vector<26x50xf32>
    %cst_36 = arith.constant dense<0.000000e+00> : vector<26x768xf32>
    %39 = tpu.matmul %38, %36, %cst_36 {dimension_numbers = #tpu.dot_dimension_numbers<[1], [0], [0], [1], [0, 0, 1, 1], [], []>} : vector<26x50xf32>, vector<50x768xf32>, vector<26x768xf32> -> vector<26x768xf32>
    %c0_37 = arith.constant 0 : index
    %c0_38 = arith.constant 0 : index
    %c0_39 = arith.constant 0 : index
    %40 = vector.load %arg5[%c0_37, %c0_38, %c0_39] : memref<3x768x384xf32, #tpu.memory_space<vmem>>, vector<1x768x384xf32>
    %41 = vector.shape_cast %40 : vector<1x768x384xf32> to vector<768x384xf32>
    %cst_40 = arith.constant dense<0.000000e+00> : vector<26x384xf32>
    %42 = tpu.matmul %39, %41, %cst_40 {dimension_numbers = #tpu.dot_dimension_numbers<[1], [0], [0], [1], [0, 0, 1, 1], [], []>} : vector<26x768xf32>, vector<768x384xf32>, vector<26x384xf32> -> vector<26x384xf32>
    %c1_41 = arith.constant 1 : index
    %c0_42 = arith.constant 0 : index
    %c0_43 = arith.constant 0 : index
    %43 = vector.load %arg7[%c1_41, %c0_42, %c0_43] : memref<3x26x50xf32, #tpu.memory_space<vmem>>, vector<1x26x50xf32>
    %44 = vector.shape_cast %43 : vector<1x26x50xf32> to vector<26x50xf32>
    %cst_44 = arith.constant dense<0.000000e+00> : vector<26x768xf32>
    %45 = tpu.matmul %44, %36, %cst_44 {dimension_numbers = #tpu.dot_dimension_numbers<[1], [0], [0], [1], [0, 0, 1, 1], [], []>} : vector<26x50xf32>, vector<50x768xf32>, vector<26x768xf32> -> vector<26x768xf32>
    %c1_45 = arith.constant 1 : index
    %c0_46 = arith.constant 0 : index
    %c0_47 = arith.constant 0 : index
    %46 = vector.load %arg5[%c1_45, %c0_46, %c0_47] : memref<3x768x384xf32, #tpu.memory_space<vmem>>, vector<1x768x384xf32>
    %47 = vector.shape_cast %46 : vector<1x768x384xf32> to vector<768x384xf32>
    %cst_48 = arith.constant dense<0.000000e+00> : vector<26x384xf32>
    %48 = tpu.matmul %45, %47, %cst_48 {dimension_numbers = #tpu.dot_dimension_numbers<[1], [0], [0], [1], [0, 0, 1, 1], [], []>} : vector<26x768xf32>, vector<768x384xf32>, vector<26x384xf32> -> vector<26x384xf32>
    %49 = arith.addf %42, %48 : vector<26x384xf32>
    %c2_49 = arith.constant 2 : index
    %c0_50 = arith.constant 0 : index
    %c0_51 = arith.constant 0 : index
    %50 = vector.load %arg7[%c2_49, %c0_50, %c0_51] : memref<3x26x50xf32, #tpu.memory_space<vmem>>, vector<1x26x50xf32>
    %51 = vector.shape_cast %50 : vector<1x26x50xf32> to vector<26x50xf32>
    %cst_52 = arith.constant dense<0.000000e+00> : vector<26x768xf32>
    %52 = tpu.matmul %51, %36, %cst_52 {dimension_numbers = #tpu.dot_dimension_numbers<[1], [0], [0], [1], [0, 0, 1, 1], [], []>} : vector<26x50xf32>, vector<50x768xf32>, vector<26x768xf32> -> vector<26x768xf32>
    %c2_53 = arith.constant 2 : index
    %c0_54 = arith.constant 0 : index
    %c0_55 = arith.constant 0 : index
    %53 = vector.load %arg5[%c2_53, %c0_54, %c0_55] : memref<3x768x384xf32, #tpu.memory_space<vmem>>, vector<1x768x384xf32>
    %54 = vector.shape_cast %53 : vector<1x768x384xf32> to vector<768x384xf32>
    %cst_56 = arith.constant dense<0.000000e+00> : vector<26x384xf32>
    %55 = tpu.matmul %52, %54, %cst_56 {dimension_numbers = #tpu.dot_dimension_numbers<[1], [0], [0], [1], [0, 0, 1, 1], [], []>} : vector<26x768xf32>, vector<768x384xf32>, vector<26x384xf32> -> vector<26x384xf32>
    %56 = arith.addf %49, %55 : vector<26x384xf32>
    %c0_57 = arith.constant 0 : index
    %c0_58 = arith.constant 0 : index
    %57 = vector.load %arg6[%c0_57, %c0_58] : memref<1x384xf32, #tpu.memory_space<vmem>>, vector<1x384xf32>
    %58 = vector.broadcast %57 : vector<1x384xf32> to vector<26x384xf32>
    %59 = arith.addf %56, %58 : vector<26x384xf32>
    %cst_59 = arith.constant 0.000000e+00 : f32
    %60 = vector.broadcast %cst_59 : f32 to vector<26x384xf32>
    %61 = arith.cmpf ogt, %59, %60 : vector<26x384xf32>
    %cst_60 = arith.constant 0.000000e+00 : f32
    %62 = vector.broadcast %cst_60 : f32 to vector<26x384xf32>
    %63 = arith.minimumf %59, %62 : vector<26x384xf32>
    %64 = math.exp %63 : vector<26x384xf32>
    %cst_61 = arith.constant 1.000000e+00 : f32
    %65 = vector.broadcast %cst_61 : f32 to vector<26x384xf32>
    %66 = arith.subf %64, %65 : vector<26x384xf32>
    %67 = arith.select %61, %59, %66 : vector<26x384xi1>, vector<26x384xf32>
    %c0_62 = arith.constant 0 : index
    %c0_63 = arith.constant 0 : index
    %68 = vector.load %arg8[%c0_62, %c0_63] : memref<26x1xf32, #tpu.memory_space<vmem>>, vector<26x1xf32>
    %69 = vector.broadcast %68 : vector<26x1xf32> to vector<26x384xf32>
    %70 = arith.mulf %67, %69 : vector<26x384xf32>
    %c0_64 = arith.constant 0 : index
    %c0_65 = arith.constant 0 : index
    %71 = vector.load %arg31[%c0_64, %c0_65] : memref<26x384xf32, #tpu.memory_space<vmem>>, vector<26x384xf32>
    tpu.vector_store %arg31[%c0_64, %c0_65], %70 {strides = array<i32>} : memref<26x384xf32, #tpu.memory_space<vmem>>, vector<26x384xf32>,
    %c0_66 = arith.constant 0 : index
    %c0_67 = arith.constant 0 : index
    %72 = vector.load %arg31[%c0_66, %c0_67] : memref<26x384xf32, #tpu.memory_space<vmem>>, vector<26x384xf32>
    %c0_68 = arith.constant 0 : index
    %c0_69 = arith.constant 0 : index
    %c0_70 = arith.constant 0 : index
    %73 = vector.load %arg11[%c0_68, %c0_69, %c0_70] : memref<3x14x26xf32, #tpu.memory_space<vmem>>, vector<1x14x26xf32>
    %74 = vector.shape_cast %73 : vector<1x14x26xf32> to vector<14x26xf32>
    %cst_71 = arith.constant dense<0.000000e+00> : vector<14x384xf32>
    %75 = tpu.matmul %74, %72, %cst_71 {dimension_numbers = #tpu.dot_dimension_numbers<[1], [0], [0], [1], [0, 0, 1, 1], [], []>} : vector<14x26xf32>, vector<26x384xf32>, vector<14x384xf32> -> vector<14x384xf32>
    %c0_72 = arith.constant 0 : index
    %c0_73 = arith.constant 0 : index
    %c0_74 = arith.constant 0 : index
    %76 = vector.load %arg9[%c0_72, %c0_73, %c0_74] : memref<3x384x192xf32, #tpu.memory_space<vmem>>, vector<1x384x192xf32>
    %77 = vector.shape_cast %76 : vector<1x384x192xf32> to vector<384x192xf32>
    %cst_75 = arith.constant dense<0.000000e+00> : vector<14x192xf32>
    %78 = tpu.matmul %75, %77, %cst_75 {dimension_numbers = #tpu.dot_dimension_numbers<[1], [0], [0], [1], [0, 0, 1, 1], [], []>} : vector<14x384xf32>, vector<384x192xf32>, vector<14x192xf32> -> vector<14x192xf32>
    %c1_76 = arith.constant 1 : index
    %c0_77 = arith.constant 0 : index
    %c0_78 = arith.constant 0 : index
    %79 = vector.load %arg11[%c1_76, %c0_77, %c0_78] : memref<3x14x26xf32, #tpu.memory_space<vmem>>, vector<1x14x26xf32>
    %80 = vector.shape_cast %79 : vector<1x14x26xf32> to vector<14x26xf32>
    %cst_79 = arith.constant dense<0.000000e+00> : vector<14x384xf32>
    %81 = tpu.matmul %80, %72, %cst_79 {dimension_numbers = #tpu.dot_dimension_numbers<[1], [0], [0], [1], [0, 0, 1, 1], [], []>} : vector<14x26xf32>, vector<26x384xf32>, vector<14x384xf32> -> vector<14x384xf32>
    %c1_80 = arith.constant 1 : index
    %c0_81 = arith.constant 0 : index
    %c0_82 = arith.constant 0 : index
    %82 = vector.load %arg9[%c1_80, %c0_81, %c0_82] : memref<3x384x192xf32, #tpu.memory_space<vmem>>, vector<1x384x192xf32>
    %83 = vector.shape_cast %82 : vector<1x384x192xf32> to vector<384x192xf32>
    %cst_83 = arith.constant dense<0.000000e+00> : vector<14x192xf32>
    %84 = tpu.matmul %81, %83, %cst_83 {dimension_numbers = #tpu.dot_dimension_numbers<[1], [0], [0], [1], [0, 0, 1, 1], [], []>} : vector<14x384xf32>, vector<384x192xf32>, vector<14x192xf32> -> vector<14x192xf32>
    %85 = arith.addf %78, %84 : vector<14x192xf32>
    %c2_84 = arith.constant 2 : index
    %c0_85 = arith.constant 0 : index
    %c0_86 = arith.constant 0 : index
    %86 = vector.load %arg11[%c2_84, %c0_85, %c0_86] : memref<3x14x26xf32, #tpu.memory_space<vmem>>, vector<1x14x26xf32>
    %87 = vector.shape_cast %86 : vector<1x14x26xf32> to vector<14x26xf32>
    %cst_87 = arith.constant dense<0.000000e+00> : vector<14x384xf32>
    %88 = tpu.matmul %87, %72, %cst_87 {dimension_numbers = #tpu.dot_dimension_numbers<[1], [0], [0], [1], [0, 0, 1, 1], [], []>} : vector<14x26xf32>, vector<26x384xf32>, vector<14x384xf32> -> vector<14x384xf32>
    %c2_88 = arith.constant 2 : index
    %c0_89 = arith.constant 0 : index
    %c0_90 = arith.constant 0 : index
    %89 = vector.load %arg9[%c2_88, %c0_89, %c0_90] : memref<3x384x192xf32, #tpu.memory_space<vmem>>, vector<1x384x192xf32>
    %90 = vector.shape_cast %89 : vector<1x384x192xf32> to vector<384x192xf32>
    %cst_91 = arith.constant dense<0.000000e+00> : vector<14x192xf32>
    %91 = tpu.matmul %88, %90, %cst_91 {dimension_numbers = #tpu.dot_dimension_numbers<[1], [0], [0], [1], [0, 0, 1, 1], [], []>} : vector<14x384xf32>, vector<384x192xf32>, vector<14x192xf32> -> vector<14x192xf32>
    %92 = arith.addf %85, %91 : vector<14x192xf32>
    %c0_92 = arith.constant 0 : index
    %c0_93 = arith.constant 0 : index
    %93 = vector.load %arg10[%c0_92, %c0_93] : memref<1x192xf32, #tpu.memory_space<vmem>>, vector<1x192xf32>
    %94 = vector.broadcast %93 : vector<1x192xf32> to vector<14x192xf32>
    %95 = arith.addf %92, %94 : vector<14x192xf32>
    %cst_94 = arith.constant 0.000000e+00 : f32
    %96 = vector.broadcast %cst_94 : f32 to vector<14x192xf32>
    %97 = arith.cmpf ogt, %95, %96 : vector<14x192xf32>
    %cst_95 = arith.constant 0.000000e+00 : f32
    %98 = vector.broadcast %cst_95 : f32 to vector<14x192xf32>
    %99 = arith.minimumf %95, %98 : vector<14x192xf32>
    %100 = math.exp %99 : vector<14x192xf32>
    %cst_96 = arith.constant 1.000000e+00 : f32
    %101 = vector.broadcast %cst_96 : f32 to vector<14x192xf32>
    %102 = arith.subf %100, %101 : vector<14x192xf32>
    %103 = arith.select %97, %95, %102 : vector<14x192xi1>, vector<14x192xf32>
    %c0_97 = arith.constant 0 : index
    %c0_98 = arith.constant 0 : index
    %104 = vector.load %arg12[%c0_97, %c0_98] : memref<14x1xf32, #tpu.memory_space<vmem>>, vector<14x1xf32>
    %105 = vector.broadcast %104 : vector<14x1xf32> to vector<14x192xf32>
    %106 = arith.mulf %103, %105 : vector<14x192xf32>
    %c0_99 = arith.constant 0 : index
    %c0_100 = arith.constant 0 : index
    %107 = vector.load %arg32[%c0_99, %c0_100] : memref<14x192xf32, #tpu.memory_space<vmem>>, vector<14x192xf32>
    tpu.vector_store %arg32[%c0_99, %c0_100], %106 {strides = array<i32>} : memref<14x192xf32, #tpu.memory_space<vmem>>, vector<14x192xf32>,
    %c0_101 = arith.constant 0 : index
    %c0_102 = arith.constant 0 : index
    %108 = vector.load %arg32[%c0_101, %c0_102] : memref<14x192xf32, #tpu.memory_space<vmem>>, vector<14x192xf32>
    %c0_103 = arith.constant 0 : index
    %c0_104 = arith.constant 0 : index
    %c0_105 = arith.constant 0 : index
    %109 = vector.load %arg15[%c0_103, %c0_104, %c0_105] : memref<3x6x14xf32, #tpu.memory_space<vmem>>, vector<1x6x14xf32>
    %110 = vector.shape_cast %109 : vector<1x6x14xf32> to vector<6x14xf32>
    %cst_106 = arith.constant dense<0.000000e+00> : vector<6x192xf32>
    %111 = tpu.matmul %110, %108, %cst_106 {dimension_numbers = #tpu.dot_dimension_numbers<[1], [0], [0], [1], [0, 0, 1, 1], [], []>} : vector<6x14xf32>, vector<14x192xf32>, vector<6x192xf32> -> vector<6x192xf32>
    %c0_107 = arith.constant 0 : index
    %c0_108 = arith.constant 0 : index
    %c0_109 = arith.constant 0 : index
    %112 = vector.load %arg13[%c0_107, %c0_108, %c0_109] : memref<3x192x96xf32, #tpu.memory_space<vmem>>, vector<1x192x96xf32>
    %113 = vector.shape_cast %112 : vector<1x192x96xf32> to vector<192x96xf32>
    %cst_110 = arith.constant dense<0.000000e+00> : vector<6x96xf32>
    %114 = tpu.matmul %111, %113, %cst_110 {dimension_numbers = #tpu.dot_dimension_numbers<[1], [0], [0], [1], [0, 0, 1, 1], [], []>} : vector<6x192xf32>, vector<192x96xf32>, vector<6x96xf32> -> vector<6x96xf32>
    %c1_111 = arith.constant 1 : index
    %c0_112 = arith.constant 0 : index
    %c0_113 = arith.constant 0 : index
    %115 = vector.load %arg15[%c1_111, %c0_112, %c0_113] : memref<3x6x14xf32, #tpu.memory_space<vmem>>, vector<1x6x14xf32>
    %116 = vector.shape_cast %115 : vector<1x6x14xf32> to vector<6x14xf32>
    %cst_114 = arith.constant dense<0.000000e+00> : vector<6x192xf32>
    %117 = tpu.matmul %116, %108, %cst_114 {dimension_numbers = #tpu.dot_dimension_numbers<[1], [0], [0], [1], [0, 0, 1, 1], [], []>} : vector<6x14xf32>, vector<14x192xf32>, vector<6x192xf32> -> vector<6x192xf32>
    %c1_115 = arith.constant 1 : index
    %c0_116 = arith.constant 0 : index
    %c0_117 = arith.constant 0 : index
    %118 = vector.load %arg13[%c1_115, %c0_116, %c0_117] : memref<3x192x96xf32, #tpu.memory_space<vmem>>, vector<1x192x96xf32>
    %119 = vector.shape_cast %118 : vector<1x192x96xf32> to vector<192x96xf32>
    %cst_118 = arith.constant dense<0.000000e+00> : vector<6x96xf32>
    %120 = tpu.matmul %117, %119, %cst_118 {dimension_numbers = #tpu.dot_dimension_numbers<[1], [0], [0], [1], [0, 0, 1, 1], [], []>} : vector<6x192xf32>, vector<192x96xf32>, vector<6x96xf32> -> vector<6x96xf32>
    %121 = arith.addf %114, %120 : vector<6x96xf32>
    %c2_119 = arith.constant 2 : index
    %c0_120 = arith.constant 0 : index
    %c0_121 = arith.constant 0 : index
    %122 = vector.load %arg15[%c2_119, %c0_120, %c0_121] : memref<3x6x14xf32, #tpu.memory_space<vmem>>, vector<1x6x14xf32>
    %123 = vector.shape_cast %122 : vector<1x6x14xf32> to vector<6x14xf32>
    %cst_122 = arith.constant dense<0.000000e+00> : vector<6x192xf32>
    %124 = tpu.matmul %123, %108, %cst_122 {dimension_numbers = #tpu.dot_dimension_numbers<[1], [0], [0], [1], [0, 0, 1, 1], [], []>} : vector<6x14xf32>, vector<14x192xf32>, vector<6x192xf32> -> vector<6x192xf32>
    %c2_123 = arith.constant 2 : index
    %c0_124 = arith.constant 0 : index
    %c0_125 = arith.constant 0 : index
    %125 = vector.load %arg13[%c2_123, %c0_124, %c0_125] : memref<3x192x96xf32, #tpu.memory_space<vmem>>, vector<1x192x96xf32>
    %126 = vector.shape_cast %125 : vector<1x192x96xf32> to vector<192x96xf32>
    %cst_126 = arith.constant dense<0.000000e+00> : vector<6x96xf32>
    %127 = tpu.matmul %124, %126, %cst_126 {dimension_numbers = #tpu.dot_dimension_numbers<[1], [0], [0], [1], [0, 0, 1, 1], [], []>} : vector<6x192xf32>, vector<192x96xf32>, vector<6x96xf32> -> vector<6x96xf32>
    %128 = arith.addf %121, %127 : vector<6x96xf32>
    %c0_127 = arith.constant 0 : index
    %c0_128 = arith.constant 0 : index
    %129 = vector.load %arg14[%c0_127, %c0_128] : memref<1x96xf32, #tpu.memory_space<vmem>>, vector<1x96xf32>
    %130 = vector.broadcast %129 : vector<1x96xf32> to vector<6x96xf32>
    %131 = arith.addf %128, %130 : vector<6x96xf32>
    %cst_129 = arith.constant 0.000000e+00 : f32
    %132 = vector.broadcast %cst_129 : f32 to vector<6x96xf32>
    %133 = arith.cmpf ogt, %131, %132 : vector<6x96xf32>
    %cst_130 = arith.constant 0.000000e+00 : f32
    %134 = vector.broadcast %cst_130 : f32 to vector<6x96xf32>
    %135 = arith.minimumf %131, %134 : vector<6x96xf32>
    %136 = math.exp %135 : vector<6x96xf32>
    %cst_131 = arith.constant 1.000000e+00 : f32
    %137 = vector.broadcast %cst_131 : f32 to vector<6x96xf32>
    %138 = arith.subf %136, %137 : vector<6x96xf32>
    %139 = arith.select %133, %131, %138 : vector<6x96xi1>, vector<6x96xf32>
    %140 = vector.extract_strided_slice %139 {offsets = [0, 0], sizes = [2, 96], strides = [1, 1]} : vector<6x96xf32> to vector<2x96xf32>
    %c0_132 = arith.constant 0 : index
    %c0_133 = arith.constant 0 : index
    %c0_134 = arith.constant 0 : index
    %141 = vector.load %arg16[%c0_132, %c0_133, %c0_134] : memref<3x96x256xf32, #tpu.memory_space<vmem>>, vector<1x96x256xf32>
    %142 = vector.shape_cast %141 : vector<1x96x256xf32> to vector<96x256xf32>
    %cst_135 = arith.constant dense<0.000000e+00> : vector<2x256xf32>
    %143 = tpu.matmul %140, %142, %cst_135 {dimension_numbers = #tpu.dot_dimension_numbers<[1], [0], [0], [1], [0, 0, 1, 1], [], []>} : vector<2x96xf32>, vector<96x256xf32>, vector<2x256xf32> -> vector<2x256xf32>
    %144 = vector.extract_strided_slice %139 {offsets = [2, 0], sizes = [2, 96], strides = [1, 1]} : vector<6x96xf32> to vector<2x96xf32>
    %c1_136 = arith.constant 1 : index
    %c0_137 = arith.constant 0 : index
    %c0_138 = arith.constant 0 : index
    %145 = vector.load %arg16[%c1_136, %c0_137, %c0_138] : memref<3x96x256xf32, #tpu.memory_space<vmem>>, vector<1x96x256xf32>
    %146 = vector.shape_cast %145 : vector<1x96x256xf32> to vector<96x256xf32>
    %cst_139 = arith.constant dense<0.000000e+00> : vector<2x256xf32>
    %147 = tpu.matmul %144, %146, %cst_139 {dimension_numbers = #tpu.dot_dimension_numbers<[1], [0], [0], [1], [0, 0, 1, 1], [], []>} : vector<2x96xf32>, vector<96x256xf32>, vector<2x256xf32> -> vector<2x256xf32>
    %148 = arith.addf %143, %147 : vector<2x256xf32>
    %149 = vector.extract_strided_slice %139 {offsets = [4, 0], sizes = [2, 96], strides = [1, 1]} : vector<6x96xf32> to vector<2x96xf32>
    %c2_140 = arith.constant 2 : index
    %c0_141 = arith.constant 0 : index
    %c0_142 = arith.constant 0 : index
    %150 = vector.load %arg16[%c2_140, %c0_141, %c0_142] : memref<3x96x256xf32, #tpu.memory_space<vmem>>, vector<1x96x256xf32>
    %151 = vector.shape_cast %150 : vector<1x96x256xf32> to vector<96x256xf32>
    %cst_143 = arith.constant dense<0.000000e+00> : vector<2x256xf32>
    %152 = tpu.matmul %149, %151, %cst_143 {dimension_numbers = #tpu.dot_dimension_numbers<[1], [0], [0], [1], [0, 0, 1, 1], [], []>} : vector<2x96xf32>, vector<96x256xf32>, vector<2x256xf32> -> vector<2x256xf32>
    %153 = arith.addf %148, %152 : vector<2x256xf32>
    %c0_144 = arith.constant 0 : index
    %c0_145 = arith.constant 0 : index
    %154 = vector.load %arg17[%c0_144, %c0_145] : memref<1x256xf32, #tpu.memory_space<vmem>>, vector<1x256xf32>
    %155 = vector.broadcast %154 : vector<1x256xf32> to vector<2x256xf32>
    %156 = arith.addf %153, %155 : vector<2x256xf32>
    %cst_146 = arith.constant 0.000000e+00 : f32
    %157 = vector.broadcast %cst_146 : f32 to vector<2x256xf32>
    %158 = arith.cmpf ogt, %156, %157 : vector<2x256xf32>
    %cst_147 = arith.constant 0.000000e+00 : f32
    %159 = vector.broadcast %cst_147 : f32 to vector<2x256xf32>
    %160 = arith.minimumf %156, %159 : vector<2x256xf32>
    %161 = math.exp %160 : vector<2x256xf32>
    %cst_148 = arith.constant 1.000000e+00 : f32
    %162 = vector.broadcast %cst_148 : f32 to vector<2x256xf32>
    %163 = arith.subf %161, %162 : vector<2x256xf32>
    %164 = arith.select %158, %156, %163 : vector<2x256xi1>, vector<2x256xf32>
    %c0_149 = arith.constant 0 : index
    %c0_150 = arith.constant 0 : index
    %165 = vector.load %arg18[%c0_149, %c0_150] : memref<256x128xf32, #tpu.memory_space<vmem>>, vector<256x128xf32>
    %cst_151 = arith.constant dense<0.000000e+00> : vector<2x128xf32>
    %166 = tpu.matmul %164, %165, %cst_151 {dimension_numbers = #tpu.dot_dimension_numbers<[1], [0], [0], [1], [0, 0, 1, 1], [], []>} : vector<2x256xf32>, vector<256x128xf32>, vector<2x128xf32> -> vector<2x128xf32>
    %c0_152 = arith.constant 0 : index
    %c0_153 = arith.constant 0 : index
    %167 = vector.load %arg20[%c0_152, %c0_153] : memref<1x128xf32, #tpu.memory_space<vmem>>, vector<1x128xf32>
    %168 = vector.broadcast %167 : vector<1x128xf32> to vector<2x128xf32>
    %169 = arith.addf %166, %168 : vector<2x128xf32>
    %c0_154 = arith.constant 0 : index
    %c0_155 = arith.constant 0 : index
    %170 = vector.load %arg25[%c0_154, %c0_155] : memref<1x32xf32, #tpu.memory_space<vmem>>, vector<1x32xf32>
    %c0_156 = arith.constant 0 : index
    %c0_157 = arith.constant 0 : index
    %171 = vector.load %arg26[%c0_156, %c0_157] : memref<1x32xf32, #tpu.memory_space<vmem>>, vector<1x32xf32>
    %172 = vector.extract_strided_slice %169 {offsets = [0, 0], sizes = [1, 128], strides = [1, 1]} : vector<2x128xf32> to vector<1x128xf32>
    %c0_158 = arith.constant 0 : index
    %c0_159 = arith.constant 0 : index
    %173 = vector.load %arg19[%c0_158, %c0_159] : memref<32x128xf32, #tpu.memory_space<vmem>>, vector<32x128xf32>
    %cst_160 = arith.constant dense<0.000000e+00> : vector<1x128xf32>
    %174 = tpu.matmul %170, %173, %cst_160 {dimension_numbers = #tpu.dot_dimension_numbers<[1], [0], [0], [1], [0, 0, 1, 1], [], []>} : vector<1x32xf32>, vector<32x128xf32>, vector<1x128xf32> -> vector<1x128xf32>
    %175 = arith.addf %172, %174 : vector<1x128xf32>
    %cst_161 = arith.constant 5.000000e-01 : f32
    %176 = vector.broadcast %cst_161 : f32 to vector<1x128xf32>
    %177 = arith.mulf %176, %175 : vector<1x128xf32>
    %178 = math.tanh %177 : vector<1x128xf32>
    %cst_162 = arith.constant 1.000000e+00 : f32
    %179 = vector.broadcast %cst_162 : f32 to vector<1x128xf32>
    %180 = arith.addf %178, %179 : vector<1x128xf32>
    %cst_163 = arith.constant 5.000000e-01 : f32
    %181 = vector.broadcast %cst_163 : f32 to vector<1x128xf32>
    %182 = arith.mulf %181, %180 : vector<1x128xf32>
    %183 = math.tanh %175 : vector<1x128xf32>
    %184 = vector.extract_strided_slice %182 {offsets = [0, 0], sizes = [1, 32], strides = [1, 1]} : vector<1x128xf32> to vector<1x32xf32>
    %185 = vector.extract_strided_slice %182 {offsets = [0, 32], sizes = [1, 32], strides = [1, 1]} : vector<1x128xf32> to vector<1x32xf32>
    %186 = vector.extract_strided_slice %183 {offsets = [0, 64], sizes = [1, 32], strides = [1, 1]} : vector<1x128xf32> to vector<1x32xf32>
    %187 = vector.extract_strided_slice %182 {offsets = [0, 96], sizes = [1, 32], strides = [1, 1]} : vector<1x128xf32> to vector<1x32xf32>
    %188 = arith.mulf %185, %171 : vector<1x32xf32>
    %189 = arith.mulf %184, %186 : vector<1x32xf32>
    %190 = arith.addf %188, %189 : vector<1x32xf32>
    %191 = math.tanh %190 : vector<1x32xf32>
    %192 = arith.mulf %187, %191 : vector<1x32xf32>
    %193 = vector.extract_strided_slice %169 {offsets = [1, 0], sizes = [1, 128], strides = [1, 1]} : vector<2x128xf32> to vector<1x128xf32>
    %c0_164 = arith.constant 0 : index
    %c0_165 = arith.constant 0 : index
    %194 = vector.load %arg19[%c0_164, %c0_165] : memref<32x128xf32, #tpu.memory_space<vmem>>, vector<32x128xf32>
    %cst_166 = arith.constant dense<0.000000e+00> : vector<1x128xf32>
    %195 = tpu.matmul %192, %194, %cst_166 {dimension_numbers = #tpu.dot_dimension_numbers<[1], [0], [0], [1], [0, 0, 1, 1], [], []>} : vector<1x32xf32>, vector<32x128xf32>, vector<1x128xf32> -> vector<1x128xf32>
    %196 = arith.addf %193, %195 : vector<1x128xf32>
    %cst_167 = arith.constant 5.000000e-01 : f32
    %197 = vector.broadcast %cst_167 : f32 to vector<1x128xf32>
    %198 = arith.mulf %197, %196 : vector<1x128xf32>
    %199 = math.tanh %198 : vector<1x128xf32>
    %cst_168 = arith.constant 1.000000e+00 : f32
    %200 = vector.broadcast %cst_168 : f32 to vector<1x128xf32>
    %201 = arith.addf %199, %200 : vector<1x128xf32>
    %cst_169 = arith.constant 5.000000e-01 : f32
    %202 = vector.broadcast %cst_169 : f32 to vector<1x128xf32>
    %203 = arith.mulf %202, %201 : vector<1x128xf32>
    %204 = math.tanh %196 : vector<1x128xf32>
    %205 = vector.extract_strided_slice %203 {offsets = [0, 0], sizes = [1, 32], strides = [1, 1]} : vector<1x128xf32> to vector<1x32xf32>
    %206 = vector.extract_strided_slice %203 {offsets = [0, 32], sizes = [1, 32], strides = [1, 1]} : vector<1x128xf32> to vector<1x32xf32>
    %207 = vector.extract_strided_slice %204 {offsets = [0, 64], sizes = [1, 32], strides = [1, 1]} : vector<1x128xf32> to vector<1x32xf32>
    %208 = vector.extract_strided_slice %203 {offsets = [0, 96], sizes = [1, 32], strides = [1, 1]} : vector<1x128xf32> to vector<1x32xf32>
    %209 = arith.mulf %206, %190 : vector<1x32xf32>
    %210 = arith.mulf %205, %207 : vector<1x32xf32>
    %211 = arith.addf %209, %210 : vector<1x32xf32>
    %212 = math.tanh %211 : vector<1x32xf32>
    %213 = arith.mulf %208, %212 : vector<1x32xf32>
    %c0_170 = arith.constant 0 : index
    %c0_171 = arith.constant 0 : index
    %214 = vector.load %arg28[%c0_170, %c0_171] : memref<1x32xf32, #tpu.memory_space<vmem>>, vector<1x32xf32>
    tpu.vector_store %arg28[%c0_170, %c0_171], %213 {strides = array<i32>} : memref<1x32xf32, #tpu.memory_space<vmem>>, vector<1x32xf32>,
    %c0_172 = arith.constant 0 : index
    %c0_173 = arith.constant 0 : index
    %215 = vector.load %arg29[%c0_172, %c0_173] : memref<1x32xf32, #tpu.memory_space<vmem>>, vector<1x32xf32>
    tpu.vector_store %arg29[%c0_172, %c0_173], %211 {strides = array<i32>} : memref<1x32xf32, #tpu.memory_space<vmem>>, vector<1x32xf32>,
    %216 = tpu.concatenate %192, %213 in 0 : vector<1x32xf32>, vector<1x32xf32> -> vector<2x32xf32>
    %c0_174 = arith.constant 0 : index
    %c0_175 = arith.constant 0 : index
    %217 = vector.load %arg21[%c0_174, %c0_175] : memref<32x256xf32, #tpu.memory_space<vmem>>, vector<32x256xf32>
    %cst_176 = arith.constant dense<0.000000e+00> : vector<2x256xf32>
    %218 = tpu.matmul %216, %217, %cst_176 {dimension_numbers = #tpu.dot_dimension_numbers<[1], [0], [0], [1], [0, 0, 1, 1], [], []>} : vector<2x32xf32>, vector<32x256xf32>, vector<2x256xf32> -> vector<2x256xf32>
    %c0_177 = arith.constant 0 : index
    %c0_178 = arith.constant 0 : index
    %219 = vector.load %arg22[%c0_177, %c0_178] : memref<1x256xf32, #tpu.memory_space<vmem>>, vector<1x256xf32>
    %220 = vector.broadcast %219 : vector<1x256xf32> to vector<2x256xf32>
    %221 = arith.addf %218, %220 : vector<2x256xf32>
    %cst_179 = arith.constant 0.000000e+00 : f32
    %222 = vector.broadcast %cst_179 : f32 to vector<2x256xf32>
    %223 = arith.cmpf ogt, %221, %222 : vector<2x256xf32>
    %cst_180 = arith.constant 0.000000e+00 : f32
    %224 = vector.broadcast %cst_180 : f32 to vector<2x256xf32>
    %225 = arith.minimumf %221, %224 : vector<2x256xf32>
    %226 = math.exp %225 : vector<2x256xf32>
    %cst_181 = arith.constant 1.000000e+00 : f32
    %227 = vector.broadcast %cst_181 : f32 to vector<2x256xf32>
    %228 = arith.subf %226, %227 : vector<2x256xf32>
    %229 = arith.select %223, %221, %228 : vector<2x256xi1>, vector<2x256xf32>
    %c0_182 = arith.constant 0 : index
    %c0_183 = arith.constant 0 : index
    %230 = vector.load %arg23[%c0_182, %c0_183] : memref<256x2xf32, #tpu.memory_space<vmem>>, vector<256x2xf32>
    %cst_184 = arith.constant dense<0.000000e+00> : vector<2x2xf32>
    %231 = tpu.matmul %229, %230, %cst_184 {dimension_numbers = #tpu.dot_dimension_numbers<[1], [0], [0], [1], [0, 0, 1, 1], [], []>} : vector<2x256xf32>, vector<256x2xf32>, vector<2x2xf32> -> vector<2x2xf32>
    %c0_185 = arith.constant 0 : index
    %c0_186 = arith.constant 0 : index
    %232 = vector.load %arg24[%c0_185, %c0_186] : memref<1x2xf32, #tpu.memory_space<vmem>>, vector<1x2xf32>
    %233 = vector.broadcast %232 : vector<1x2xf32> to vector<2x2xf32>
    %234 = arith.addf %231, %233 : vector<2x2xf32>
    %c0_187 = arith.constant 0 : index
    %c0_188 = arith.constant 0 : index
    %235 = vector.load %arg27[%c0_187, %c0_188] : memref<2x2xf32, #tpu.memory_space<vmem>>, vector<2x2xf32>
    tpu.vector_store %arg27[%c0_187, %c0_188], %234 {strides = array<i32>} : memref<2x2xf32, #tpu.memory_space<vmem>>, vector<2x2xf32>,
    return
  }
}

</mosaic_0001>

<llo_original>
// kernel: critic_lstm_forward.1
$region0: #{critic_lstm_forward.1}
  #allocation0 [shape = 'u32[]', space=smem, size = 0x4, offset = 0x4, fixed_abs, tag = 'smem constant byte address 0x4 - core index']
  #allocation1 [shape = 'u32[72,128]{1,0:T(1,128)}', space=vmem, size = 0x9000, scoped, tag = 'internal scratch']
  #allocation2 [shape = 'f32[50,768]{1,0:T(8,128)}', space=vmem, size = 0x2a000, scoped, tag = 'scratch operand']
  #allocation3 [shape = 'f32[26,384]{1,0:T(8,128)}', space=vmem, size = 0xc000, scoped, tag = 'scratch operand']
  #allocation4 [shape = 'f32[14,192]{1,0:T(8,128)}', space=vmem, size = 0x4000, scoped, tag = 'scratch operand']
  %s0 = inlined_call_operand.smem [shape: u32[30], index: -1, kind: input, shape index: {}]
  %s1 = sld [smem:[%s0]]
  %s2 = scalar_lea.smem %s0, 1
  %s3 = sld [smem:[%s2]]
  %s4 = scalar_lea.smem %s0, 2
  %s5 = sld [smem:[%s4]]
  %s6 = scalar_lea.smem %s0, 3
  %s7 = sld [smem:[%s6]]
  %s8 = scalar_lea.smem %s0, 4
  %s9 = sld [smem:[%s8]]
  %s10 = scalar_lea.smem %s0, 5
  %s11 = sld [smem:[%s10]]
  %s12 = scalar_lea.smem %s0, 6
  %s13 = sld [smem:[%s12]]
  %s14 = scalar_lea.smem %s0, 7
  %s15 = sld [smem:[%s14]]
  %s16 = scalar_lea.smem %s0, 8
  %s17 = sld [smem:[%s16]]
  %s18 = scalar_lea.smem %s0, 9
  %s19 = sld [smem:[%s18]]
  %s20 = scalar_lea.smem %s0, 10
  %s21 = sld [smem:[%s20]]
  %s22 = scalar_lea.smem %s0, 11
  %s23 = sld [smem:[%s22]]
  %s24 = scalar_lea.smem %s0, 12
  %s25 = sld [smem:[%s24]]
  %s26 = scalar_lea.smem %s0, 13
  %s27 = sld [smem:[%s26]]
  %s28 = scalar_lea.smem %s0, 14
  %s29 = sld [smem:[%s28]]
  %s30 = scalar_lea.smem %s0, 15
  %s31 = sld [smem:[%s30]]
  %s32 = scalar_lea.smem %s0, 16
  %s33 = sld [smem:[%s32]]
  %s34 = scalar_lea.smem %s0, 17
  %s35 = sld [smem:[%s34]]
  %s36 = scalar_lea.smem %s0, 18
  %s37 = sld [smem:[%s36]]
  %s38 = scalar_lea.smem %s0, 19
  %s39 = sld [smem:[%s38]]
  %s40 = scalar_lea.smem %s0, 20
  %s41 = sld [smem:[%s40]]
  %s42 = scalar_lea.smem %s0, 21
  %s43 = sld [smem:[%s42]]
  %s44 = scalar_lea.smem %s0, 22
  %s45 = sld [smem:[%s44]]
  %s46 = scalar_lea.smem %s0, 23
  %s47 = sld [smem:[%s46]]
  %s48 = scalar_lea.smem %s0, 24
  %s49 = sld [smem:[%s48]]
  %s50 = scalar_lea.smem %s0, 25
  %s51 = sld [smem:[%s50]]
  %s52 = scalar_lea.smem %s0, 26
  %s53 = sld [smem:[%s52]]
  %s54 = scalar_lea.smem %s0, 27
  %s55 = sld [smem:[%s54]]
  %s56 = scalar_lea.smem %s0, 28
  %s57 = sld [smem:[%s56]]
  %s58 = scalar_lea.smem %s0, 29
  %s59 = sld [smem:[%s58]]
  %60 = xla_tuple %s55, %s57, %s59
  %s61 = sld [smem:[#allocation0]]
  $region186: #{critic_lstm_forward.1} parent=0
    _
  %s63 = ssub.s32 1, %s61
  %s64 = scalar_select 0, %s63, %s61
  $region1: #{critic_lstm_forward.1} parent=0
    #allocation5 [shape = 'u8[3072]{0}', space=vmem, size = 0xc00, scoped, tag = 'input window, operand 2, single buffered']
    #allocation6 [shape = 's32[1]{0}', space=sflag, size = 0x4, scoped, tag = 'scoped memory for critic_lstm_forward.1']
    #allocation7 [shape = 's32[1]{0}', space=sflag, size = 0x4, scoped, tag = 'scoped memory for critic_lstm_forward.1']
    #allocation8 [shape = 'u8[86016]{0}', space=vmem, size = 0x15000, scoped, tag = 'input window, operand 3, single buffered']
    #allocation9 [shape = 's32[1]{0}', space=sflag, size = 0x4, scoped, tag = 'scoped memory for critic_lstm_forward.1']
    #allocation10 [shape = 'u8[3538944]{0}', space=vmem, size = 0x360000, scoped, tag = 'input window, operand 5, single buffered']
    #allocation11 [shape = 'u8[1536]{0}', space=vmem, size = 0x800, scoped, tag = 'input window, operand 6, single buffered']
    #allocation12 [shape = 's32[1]{0}', space=sflag, size = 0x4, scoped, tag = 'scoped memory for critic_lstm_forward.1']
    #allocation13 [shape = 'u8[49152]{0}', space=vmem, size = 0xc000, scoped, tag = 'input window, operand 7, single buffered']
    #allocation14 [shape = 'u8[1024]{0}', space=vmem, size = 0x400, scoped, tag = 'input window, operand 10, single buffered']
    #allocation15 [shape = 's32[1]{0}', space=sflag, size = 0x4, scoped, tag = 'scoped memory for critic_lstm_forward.1']
    #allocation16 [shape = 'u8[24576]{0}', space=vmem, size = 0x6000, scoped, tag = 'input window, operand 11, single buffered']
    #allocation17 [shape = 'u8[1024]{0}', space=vmem, size = 0x400, scoped, tag = 'input window, operand 17, single buffered']
    #allocation18 [shape = 's32[1]{0}', space=sflag, size = 0x4, scoped, tag = 'scoped memory for critic_lstm_forward.1']
    #allocation19 [shape = 'u8[16384]{0}', space=vmem, size = 0x4000, scoped, tag = 'input window, operand 19, single buffered']
    #allocation20 [shape = 'u8[512]{0}', space=vmem, size = 0x400, scoped, tag = 'input window, operand 20, single buffered']
    #allocation21 [shape = 's32[1]{0}', space=sflag, size = 0x4, scoped, tag = 'scoped memory for critic_lstm_forward.1']
    #allocation22 [shape = 'u8[32768]{0}', space=vmem, size = 0x8000, scoped, tag = 'input window, operand 21, single buffered']
    #allocation23 [shape = 'u8[1024]{0}', space=vmem, size = 0x400, scoped, tag = 'input window, operand 22, single buffered']
    #allocation24 [shape = 's32[1]{0}', space=sflag, size = 0x4, scoped, tag = 'scoped memory for critic_lstm_forward.1']
    #allocation25 [shape = 'u8[512]{0}', space=vmem, size = 0x400, scoped, tag = 'input window, operand 24, single buffered']
    #allocation26 [shape = 'u8[512]{0}', space=vmem, size = 0x400, scoped, tag = 'output window, operand 1, single buffered']
    #allocation27 [shape = 'u8[512]{0}', space=vmem, size = 0x400, scoped, tag = 'output window, operand 2, single buffered']
    #allocation28 [shape = 's32[1]{0}', space=sflag, size = 0x4, scoped, tag = 'scoped memory for critic_lstm_forward.1']
    %65 = vsyncpa [#allocation6], 0
    %66 = vsyncpa [#allocation9], 0
    %67 = vsyncpa [#allocation12], 0
    %68 = vsyncpa [#allocation15], 0
    %69 = vsyncpa [#allocation18], 0
    %70 = vsyncpa [#allocation21], 0
    %71 = vsyncpa [#allocation24], 0
    %72 = vsyncpa [#allocation7], 0
    %73 = vsyncpa [#allocation28], 0
    // Predicated region
    $region2: #{critic_lstm_forward.1} parent=1 // pred_check
      _
    $region3: #{critic_lstm_forward.1} parent=1 // pred_check_branch
      %75 = sbr.rel (0) target = $region5
    $region4: #{critic_lstm_forward.1} parent=1 // pred_region
      _
    $region5: #{critic_lstm_forward.1} parent=1 // pred_fallthru
      _
    // Predicated region
    $region6: #{critic_lstm_forward.1} parent=1 // pred_check
      _
    $region7: #{critic_lstm_forward.1} parent=1 // pred_check_branch
      %77 = sbr.rel (0) target = $region9
    $region8: #{critic_lstm_forward.1} parent=1 // pred_region
      _
    $region9: #{critic_lstm_forward.1} parent=1 // pred_fallthru
      _
    // Predicated region
    $region10: #{critic_lstm_forward.1} parent=1 // pred_check
      _
    $region11: #{critic_lstm_forward.1} parent=1 // pred_check_branch
      %79 = sbr.rel (0) target = $region13
    $region12: #{critic_lstm_forward.1} parent=1 // pred_region
      %81 = vsyncadd [#allocation6], 0
      %s83 = sshll.u32 %s5, 4
      %s84 = int_to_ptr.hbm [resolvable:$true] %s83
      %s85 = sshll.u32 [#allocation5], 4
      %s86 = int_to_ptr.vmem [resolvable:$true] %s85
      %88 = dma.hbm_to_vmem [thread:$0]  %s84, 96, %s86, [#allocation6]
    $region13: #{critic_lstm_forward.1} parent=1 // pred_fallthru
      _
    // Predicated region
    $region14: #{critic_lstm_forward.1} parent=1 // pred_check
      _
    $region15: #{critic_lstm_forward.1} parent=1 // pred_check_branch
      %90 = sbr.rel (0) target = $region17
    $region16: #{critic_lstm_forward.1} parent=1 // pred_region
      %92 = vsyncadd [#allocation9], 0
      %s93 = sshll.u32 %s7, 4
      %s94 = int_to_ptr.hbm [resolvable:$true] %s93
      %s95 = sshll.u32 [#allocation8], 4
      %s96 = int_to_ptr.vmem [resolvable:$true] %s95
      %101 = dma.hbm_to_vmem [thread:$0]  %s94, 2688, %s96, [#allocation9], 128, 128, 8
    $region17: #{critic_lstm_forward.1} parent=1 // pred_fallthru
      _
    // Predicated region
    $region18: #{critic_lstm_forward.1} parent=1 // pred_check
      _
    $region19: #{critic_lstm_forward.1} parent=1 // pred_check_branch
      %103 = sbr.rel (0) target = $region21
    $region20: #{critic_lstm_forward.1} parent=1 // pred_region
      _
    $region21: #{critic_lstm_forward.1} parent=1 // pred_fallthru
      _
    // Predicated region
    $region22: #{critic_lstm_forward.1} parent=1 // pred_check
      _
    $region23: #{critic_lstm_forward.1} parent=1 // pred_check_branch
      %105 = sbr.rel (0) target = $region25
    $region24: #{critic_lstm_forward.1} parent=1 // pred_region
      %107 = vsyncadd [#allocation9], 0
      %s108 = sshll.u32 %s11, 4
      %s109 = int_to_ptr.hbm [resolvable:$true] %s108
      %s110 = sshll.u32 [#allocation10], 4
      %s111 = int_to_ptr.vmem [resolvable:$true] %s110
      %116 = dma.hbm_to_vmem [thread:$0]  %s109, 110592, %s111, [#allocation9], 384, 384, 24
    $region25: #{critic_lstm_forward.1} parent=1 // pred_fallthru
      _
    // Predicated region
    $region26: #{critic_lstm_forward.1} parent=1 // pred_check
      _
    $region27: #{critic_lstm_forward.1} parent=1 // pred_check_branch
      %118 = sbr.rel (0) target = $region29
    $region28: #{critic_lstm_forward.1} parent=1 // pred_region
      %120 = vsyncadd [#allocation12], 0
      %s122 = sshll.u32 %s13, 4
      %s123 = int_to_ptr.hbm [resolvable:$true] %s122
      %s124 = sshll.u32 [#allocation11], 4
      %s125 = int_to_ptr.vmem [resolvable:$true] %s124
      %127 = dma.hbm_to_vmem [thread:$0]  %s123, 48, %s125, [#allocation12]
    $region29: #{critic_lstm_forward.1} parent=1 // pred_fallthru
      _
    // Predicated region
    $region30: #{critic_lstm_forward.1} parent=1 // pred_check
      _
    $region31: #{critic_lstm_forward.1} parent=1 // pred_check_branch
      %129 = sbr.rel (0) target = $region33
    $region32: #{critic_lstm_forward.1} parent=1 // pred_region
      %131 = vsyncadd [#allocation12], 0
      %s132 = sshll.u32 %s15, 4
      %s133 = int_to_ptr.hbm [resolvable:$true] %s132
      %s134 = sshll.u32 [#allocation13], 4
      %s135 = int_to_ptr.vmem [resolvable:$true] %s134
      %140 = dma.hbm_to_vmem [thread:$0]  %s133, 1536, %s135, [#allocation12], 128, 128, 8
    $region33: #{critic_lstm_forward.1} parent=1 // pred_fallthru
      _
    // Predicated region
    $region34: #{critic_lstm_forward.1} parent=1 // pred_check
      _
    $region35: #{critic_lstm_forward.1} parent=1 // pred_check_branch
      %142 = sbr.rel (0) target = $region37
    $region36: #{critic_lstm_forward.1} parent=1 // pred_region
      _
    $region37: #{critic_lstm_forward.1} parent=1 // pred_fallthru
      _
    // Predicated region
    $region38: #{critic_lstm_forward.1} parent=1 // pred_check
      _
    $region39: #{critic_lstm_forward.1} parent=1 // pred_check_branch
      %144 = sbr.rel (0) target = $region41
    $region40: #{critic_lstm_forward.1} parent=1 // pred_region
      _
    $region41: #{critic_lstm_forward.1} parent=1 // pred_fallthru
      _
    // Predicated region
    $region42: #{critic_lstm_forward.1} parent=1 // pred_check
      _
    $region43: #{critic_lstm_forward.1} parent=1 // pred_check_branch
      %146 = sbr.rel (0) target = $region45
    $region44: #{critic_lstm_forward.1} parent=1 // pred_region
      %148 = vsyncadd [#allocation15], 0
      %s150 = sshll.u32 %s21, 4
      %s151 = int_to_ptr.hbm [resolvable:$true] %s150
      %s152 = sshll.u32 [#allocation14], 4
      %s153 = int_to_ptr.vmem [resolvable:$true] %s152
      %155 = dma.hbm_to_vmem [thread:$0]  %s151, 32, %s153, [#allocation15]
    $region45: #{critic_lstm_forward.1} parent=1 // pred_fallthru
      _
    // Predicated region
    $region46: #{critic_lstm_forward.1} parent=1 // pred_check
      _
    $region47: #{critic_lstm_forward.1} parent=1 // pred_check_branch
      %157 = sbr.rel (0) target = $region49
    $region48: #{critic_lstm_forward.1} parent=1 // pred_region
      %159 = vsyncadd [#allocation15], 0
      %s160 = sshll.u32 %s23, 4
      %s161 = int_to_ptr.hbm [resolvable:$true] %s160
      %s162 = sshll.u32 [#allocation16], 4
      %s163 = int_to_ptr.vmem [resolvable:$true] %s162
      %168 = dma.hbm_to_vmem [thread:$0]  %s161, 768, %s163, [#allocation15], 128, 128, 8
    $region49: #{critic_lstm_forward.1} parent=1 // pred_fallthru
      _
    // Predicated region
    $region50: #{critic_lstm_forward.1} parent=1 // pred_check
      _
    $region51: #{critic_lstm_forward.1} parent=1 // pred_check_branch
      %170 = sbr.rel (0) target = $region53
    $region52: #{critic_lstm_forward.1} parent=1 // pred_region
      _
    $region53: #{critic_lstm_forward.1} parent=1 // pred_fallthru
      _
    // Predicated region
    $region54: #{critic_lstm_forward.1} parent=1 // pred_check
      _
    $region55: #{critic_lstm_forward.1} parent=1 // pred_check_branch
      %172 = sbr.rel (0) target = $region57
    $region56: #{critic_lstm_forward.1} parent=1 // pred_region
      _
    $region57: #{critic_lstm_forward.1} parent=1 // pred_fallthru
      _
    // Predicated region
    $region58: #{critic_lstm_forward.1} parent=1 // pred_check
      _
    $region59: #{critic_lstm_forward.1} parent=1 // pred_check_branch
      %174 = sbr.rel (0) target = $region61
    $region60: #{critic_lstm_forward.1} parent=1 // pred_region
      _
    $region61: #{critic_lstm_forward.1} parent=1 // pred_fallthru
      _
    // Predicated region
    $region62: #{critic_lstm_forward.1} parent=1 // pred_check
      _
    $region63: #{critic_lstm_forward.1} parent=1 // pred_check_branch
      %176 = sbr.rel (0) target = $region65
    $region64: #{critic_lstm_forward.1} parent=1 // pred_region
      _
    $region65: #{critic_lstm_forward.1} parent=1 // pred_fallthru
      _
    // Predicated region
    $region66: #{critic_lstm_forward.1} parent=1 // pred_check
      _
    $region67: #{critic_lstm_forward.1} parent=1 // pred_check_branch
      %178 = sbr.rel (0) target = $region69
    $region68: #{critic_lstm_forward.1} parent=1 // pred_region
      _
    $region69: #{critic_lstm_forward.1} parent=1 // pred_fallthru
      _
    // Predicated region
    $region70: #{critic_lstm_forward.1} parent=1 // pred_check
      _
    $region71: #{critic_lstm_forward.1} parent=1 // pred_check_branch
      %180 = sbr.rel (0) target = $region73
    $region72: #{critic_lstm_forward.1} parent=1 // pred_region
      %182 = vsyncadd [#allocation18], 0
      %s184 = sshll.u32 %s35, 4
      %s185 = int_to_ptr.hbm [resolvable:$true] %s184
      %s186 = sshll.u32 [#allocation17], 4
      %s187 = int_to_ptr.vmem [resolvable:$true] %s186
      %189 = dma.hbm_to_vmem [thread:$0]  %s185, 32, %s187, [#allocation18]
    $region73: #{critic_lstm_forward.1} parent=1 // pred_fallthru
      _
    // Predicated region
    $region74: #{critic_lstm_forward.1} parent=1 // pred_check
      _
    $region75: #{critic_lstm_forward.1} parent=1 // pred_check_branch
      %191 = sbr.rel (0) target = $region77
    $region76: #{critic_lstm_forward.1} parent=1 // pred_region
      _
    $region77: #{critic_lstm_forward.1} parent=1 // pred_fallthru
      _
    // Predicated region
    $region78: #{critic_lstm_forward.1} parent=1 // pred_check
      _
    $region79: #{critic_lstm_forward.1} parent=1 // pred_check_branch
      %193 = sbr.rel (0) target = $region81
    $region80: #{critic_lstm_forward.1} parent=1 // pred_region
      %195 = vsyncadd [#allocation18], 0
      %s196 = sshll.u32 %s39, 4
      %s197 = int_to_ptr.hbm [resolvable:$true] %s196
      %s198 = sshll.u32 [#allocation19], 4
      %s199 = int_to_ptr.vmem [resolvable:$true] %s198
      %204 = dma.hbm_to_vmem [thread:$0]  %s197, 512, %s199, [#allocation18], 128, 128, 8
    $region81: #{critic_lstm_forward.1} parent=1 // pred_fallthru
      _
    // Predicated region
    $region82: #{critic_lstm_forward.1} parent=1 // pred_check
      _
    $region83: #{critic_lstm_forward.1} parent=1 // pred_check_branch
      %206 = sbr.rel (0) target = $region85
    $region84: #{critic_lstm_forward.1} parent=1 // pred_region
      %208 = vsyncadd [#allocation21], 0
      %s210 = sshll.u32 %s41, 4
      %s211 = int_to_ptr.hbm [resolvable:$true] %s210
      %s212 = sshll.u32 [#allocation20], 4
      %s213 = int_to_ptr.vmem [resolvable:$true] %s212
      %215 = dma.hbm_to_vmem [thread:$0]  %s211, 16, %s213, [#allocation21]
    $region85: #{critic_lstm_forward.1} parent=1 // pred_fallthru
      _
    // Predicated region
    $region86: #{critic_lstm_forward.1} parent=1 // pred_check
      _
    $region87: #{critic_lstm_forward.1} parent=1 // pred_check_branch
      %217 = sbr.rel (0) target = $region89
    $region88: #{critic_lstm_forward.1} parent=1 // pred_region
      %219 = vsyncadd [#allocation21], 0
      %s220 = sshll.u32 %s43, 4
      %s221 = int_to_ptr.hbm [resolvable:$true] %s220
      %s222 = sshll.u32 [#allocation22], 4
      %s223 = int_to_ptr.vmem [resolvable:$true] %s222
      %228 = dma.hbm_to_vmem [thread:$0]  %s221, 1024, %s223, [#allocation21], 256, 256, 16
    $region89: #{critic_lstm_forward.1} parent=1 // pred_fallthru
      _
    // Predicated region
    $region90: #{critic_lstm_forward.1} parent=1 // pred_check
      _
    $region91: #{critic_lstm_forward.1} parent=1 // pred_check_branch
      %230 = sbr.rel (0) target = $region93
    $region92: #{critic_lstm_forward.1} parent=1 // pred_region
      %232 = vsyncadd [#allocation24], 0
      %s234 = sshll.u32 %s45, 4
      %s235 = int_to_ptr.hbm [resolvable:$true] %s234
      %s236 = sshll.u32 [#allocation23], 4
      %s237 = int_to_ptr.vmem [resolvable:$true] %s236
      %239 = dma.hbm_to_vmem [thread:$0]  %s235, 32, %s237, [#allocation24]
    $region93: #{critic_lstm_forward.1} parent=1 // pred_fallthru
      _
    // Predicated region
    $region94: #{critic_lstm_forward.1} parent=1 // pred_check
      _
    $region95: #{critic_lstm_forward.1} parent=1 // pred_check_branch
      %241 = sbr.rel (0) target = $region97
    $region96: #{critic_lstm_forward.1} parent=1 // pred_region
      _
    $region97: #{critic_lstm_forward.1} parent=1 // pred_fallthru
      _
    // Predicated region
    $region98: #{critic_lstm_forward.1} parent=1 // pred_check
      _
    $region99: #{critic_lstm_forward.1} parent=1 // pred_check_branch
      %243 = sbr.rel (0) target = $region101
    $region100: #{critic_lstm_forward.1} parent=1 // pred_region
      %245 = vsyncadd [#allocation24], 0
      %s247 = sshll.u32 %s49, 4
      %s248 = int_to_ptr.hbm [resolvable:$true] %s247
      %s249 = sshll.u32 [#allocation25], 4
      %s250 = int_to_ptr.vmem [resolvable:$true] %s249
      %252 = dma.hbm_to_vmem [thread:$0]  %s248, 16, %s250, [#allocation24]
    $region101: #{critic_lstm_forward.1} parent=1 // pred_fallthru
      _
    // Predicated region
    $region102: #{critic_lstm_forward.1} parent=1 // pred_check
      _
    $region103: #{critic_lstm_forward.1} parent=1 // pred_check_branch
      %254 = sbr.rel (0) target = $region105
    $region104: #{critic_lstm_forward.1} parent=1 // pred_region
      _
    $region105: #{critic_lstm_forward.1} parent=1 // pred_fallthru
      _
    // Predicated region
    $region106: #{critic_lstm_forward.1} parent=1 // pred_check
      _
    $region107: #{critic_lstm_forward.1} parent=1 // pred_check_branch
      %256 = sbr.rel (0) target = $region109
    $region108: #{critic_lstm_forward.1} parent=1 // pred_region
      _
    $region109: #{critic_lstm_forward.1} parent=1 // pred_fallthru
      _
    // Predicated region
    $region110: #{critic_lstm_forward.1} parent=1 // pred_check
      _
    $region111: #{critic_lstm_forward.1} parent=1 // pred_check_branch
      %258 = sbr.rel (0) target = $region113
    $region112: #{critic_lstm_forward.1} parent=1 // pred_region
      %260 = dma.done [#allocation6], 96
    $region113: #{critic_lstm_forward.1} parent=1 // pred_fallthru
      _
    // Predicated region
    $region114: #{critic_lstm_forward.1} parent=1 // pred_check
      _
    $region115: #{critic_lstm_forward.1} parent=1 // pred_check_branch
      %262 = sbr.rel (0) target = $region117
    $region116: #{critic_lstm_forward.1} parent=1 // pred_region
      %264 = dma.done [#allocation9], 2688
    $region117: #{critic_lstm_forward.1} parent=1 // pred_fallthru
      _
    // Predicated region
    $region118: #{critic_lstm_forward.1} parent=1 // pred_check
      _
    $region119: #{critic_lstm_forward.1} parent=1 // pred_check_branch
      %266 = sbr.rel (0) target = $region121
    $region120: #{critic_lstm_forward.1} parent=1 // pred_region
      %268 = dma.done [#allocation9], 110592
    $region121: #{critic_lstm_forward.1} parent=1 // pred_fallthru
      _
    // Predicated region
    $region122: #{critic_lstm_forward.1} parent=1 // pred_check
      _
    $region123: #{critic_lstm_forward.1} parent=1 // pred_check_branch
      %270 = sbr.rel (0) target = $region125
    $region124: #{critic_lstm_forward.1} parent=1 // pred_region
      %272 = dma.done [#allocation12], 48
    $region125: #{critic_lstm_forward.1} parent=1 // pred_fallthru
      _
    // Predicated region
    $region126: #{critic_lstm_forward.1} parent=1 // pred_check
      _
    $region127: #{critic_lstm_forward.1} parent=1 // pred_check_branch
      %274 = sbr.rel (0) target = $region129
    $region128: #{critic_lstm_forward.1} parent=1 // pred_region
      %276 = dma.done [#allocation12], 1536
    $region129: #{critic_lstm_forward.1} parent=1 // pred_fallthru
      _
    // Predicated region
    $region130: #{critic_lstm_forward.1} parent=1 // pred_check
      _
    $region131: #{critic_lstm_forward.1} parent=1 // pred_check_branch
      %278 = sbr.rel (0) target = $region133
    $region132: #{critic_lstm_forward.1} parent=1 // pred_region
      %280 = dma.done [#allocation15], 32
    $region133: #{critic_lstm_forward.1} parent=1 // pred_fallthru
      _
    // Predicated region
    $region134: #{critic_lstm_forward.1} parent=1 // pred_check
      _
    $region135: #{critic_lstm_forward.1} parent=1 // pred_check_branch
      %282 = sbr.rel (0) target = $region137
    $region136: #{critic_lstm_forward.1} parent=1 // pred_region
      %284 = dma.done [#allocation15], 768
    $region137: #{critic_lstm_forward.1} parent=1 // pred_fallthru
      _
    // Predicated region
    $region138: #{critic_lstm_forward.1} parent=1 // pred_check
      _
    $region139: #{critic_lstm_forward.1} parent=1 // pred_check_branch
      %286 = sbr.rel (0) target = $region141
    $region140: #{critic_lstm_forward.1} parent=1 // pred_region
      %288 = dma.done [#allocation18], 32
    $region141: #{critic_lstm_forward.1} parent=1 // pred_fallthru
      _
    // Predicated region
    $region142: #{critic_lstm_forward.1} parent=1 // pred_check
      _
    $region143: #{critic_lstm_forward.1} parent=1 // pred_check_branch
      %290 = sbr.rel (0) target = $region145
    $region144: #{critic_lstm_forward.1} parent=1 // pred_region
      %292 = dma.done [#allocation18], 512
    $region145: #{critic_lstm_forward.1} parent=1 // pred_fallthru
      _
    // Predicated region
    $region146: #{critic_lstm_forward.1} parent=1 // pred_check
      _
    $region147: #{critic_lstm_forward.1} parent=1 // pred_check_branch
      %294 = sbr.rel (0) target = $region149
    $region148: #{critic_lstm_forward.1} parent=1 // pred_region
      %296 = dma.done [#allocation21], 16
    $region149: #{critic_lstm_forward.1} parent=1 // pred_fallthru
      _
    // Predicated region
    $region150: #{critic_lstm_forward.1} parent=1 // pred_check
      _
    $region151: #{critic_lstm_forward.1} parent=1 // pred_check_branch
      %298 = sbr.rel (0) target = $region153
    $region152: #{critic_lstm_forward.1} parent=1 // pred_region
      %300 = dma.done [#allocation21], 1024
    $region153: #{critic_lstm_forward.1} parent=1 // pred_fallthru
      _
    // Predicated region
    $region154: #{critic_lstm_forward.1} parent=1 // pred_check
      _
    $region155: #{critic_lstm_forward.1} parent=1 // pred_check_branch
      %302 = sbr.rel (0) target = $region157
    $region156: #{critic_lstm_forward.1} parent=1 // pred_region
      %304 = dma.done [#allocation24], 32
    $region157: #{critic_lstm_forward.1} parent=1 // pred_fallthru
      _
    // Predicated region
    $region158: #{critic_lstm_forward.1} parent=1 // pred_check
      _
    $region159: #{critic_lstm_forward.1} parent=1 // pred_check_branch
      %306 = sbr.rel (0) target = $region161
    $region160: #{critic_lstm_forward.1} parent=1 // pred_region
      %308 = dma.done [#allocation24], 16
    $region161: #{critic_lstm_forward.1} parent=1 // pred_fallthru
      _
    %v309 = vld [vmem:[%s1] sm:$0xff]
    %v310 = vld [vmem:[%s1 + $0x8] sm:$0xff]
    %v311 = vld [vmem:[%s1 + $0x10] sm:$0xff]
    %v312 = vld [vmem:[%s1 + $0x18] sm:$0xff]
    %v313 = vld [vmem:[%s1 + $0x20] sm:$0xff]
    %v314 = vld [vmem:[%s1 + $0x28] sm:$0xff]
    %v315 = vld [vmem:[%s1 + $0x30] sm:$0xff]
    %v316 = vld [vmem:[%s1 + $0x38] sm:$0xff]
    %v317 = vld [vmem:[%s1 + $0x40] sm:$0xff]
    %v318 = vld [vmem:[%s1 + $0x48] sm:$0xff]
    %v319 = vld [vmem:[%s1 + $0x50] sm:$0xff]
    %v320 = vld [vmem:[%s1 + $0x58] sm:$0xff]
    %v321 = vld [vmem:[%s1 + $0x60] sm:$0xff]
    %v322 = vld [vmem:[%s1 + $0x68] sm:$0xff]
    %v323 = vld [vmem:[%s1 + $0x70] sm:$0xff]
    %v324 = vld [vmem:[%s1 + $0x78] sm:$0xff]
    %v325 = vld [vmem:[%s1 + $0x80] sm:$0xff]
    %v326 = vld [vmem:[%s1 + $0x88] sm:$0xff]
    %v327 = vld [vmem:[%s1 + $0x90] sm:$0xff]
    %v328 = vld [vmem:[%s1 + $0x98] sm:$0xff]
    %v329 = vld [vmem:[%s1 + $0xa0] sm:$0xff]
    %v330 = vld [vmem:[%s1 + $0xa8] sm:$0xff]
    %v331 = vld [vmem:[%s1 + $0xb0] sm:$0xff]
    %v332 = vld [vmem:[%s1 + $0xb8] sm:$0xff]
    %v333 = vld [vmem:[%s1 + $0xc0] sm:$0x3]
    %v334 = vld [vmem:[%s1 + $0xc8] sm:$0x3]
    %v335 = vld [vmem:[#allocation8] sm:$0xff]
    %v336 = vld [vmem:[#allocation8 + $0x8] sm:$0xff]
    %v337 = vld [vmem:[#allocation8 + $0x10] sm:$0xff]
    %v338 = vld [vmem:[#allocation8 + $0x18] sm:$0xff]
    %v339 = vld [vmem:[#allocation8 + $0x20] sm:$0xff]
    %v340 = vld [vmem:[#allocation8 + $0x28] sm:$0xff]
    %v341 = vld [vmem:[#allocation8 + $0x30] sm:$0x3]
    %vm342 = vcmask 801792
    %v344 = vsel %vm342, %v335, 0
    %v347 = vsel %vm342, %v336, 0
    %v350 = vsel %vm342, %v337, 0
    %v353 = vsel %vm342, %v338, 0
    %v356 = vsel %vm342, %v339, 0
    %v359 = vsel %vm342, %v340, 0
    %v362 = vsel %vm342, %v341, 0
    %vm364 = vcmask 1041408
    %v366 = vsel %vm364, %v333, 0
    %v369 = vsel %vm364, %v334, 0
    %371 = vmatpush.msra.mxu0 0.0
    %372 = vmatpush.msra.mxu0 0.0
    %373 = vmatpush.msra.mxu0 0.0
    %374 = vmatpush.msra.mxu0 %v366
    %375 = vmatpush.msra.mxu0 %v331
    %376 = vmatpush.msra.mxu0 %v329
    %377 = vmatpush.msra.mxu0 %v327
    %378 = vmatpush.msra.mxu0 %v325
    %379 = vmatpush.msra.mxu0 %v323
    %380 = vmatpush.msra.mxu0 %v321
    %381 = vmatpush.msra.mxu0 %v319
    %382 = vmatpush.msra.mxu0 %v317
    %383 = vmatpush.msra.mxu0 %v315
    %384 = vmatpush.msra.mxu0 %v313
    %385 = vmatpush.msra.mxu0 %v311
    %386 = vmatpush.msra.mxu0 %v309
    %387 = vmatmul.f32.gmra.mxu0 %v344
    %v388 = vpop.f32.mrf.mxu0
    %v389 = vadd.f32 0.0, %v388
    %390 = vmatmul.f32.gmra.mxu0 %v347
    %v391 = vpop.f32.mrf.mxu0
    %v392 = vadd.f32 0.0, %v391
    %393 = vmatmul.f32.gmra.mxu0 %v350
    %v394 = vpop.f32.mrf.mxu0
    %v395 = vadd.f32 0.0, %v394
    %396 = vmatmul.f32.gmra.mxu0 %v353
    %v397 = vpop.f32.mrf.mxu0
    %v398 = vadd.f32 0.0, %v397
    %399 = vmatmul.f32.gmra.mxu0 %v356
    %v400 = vpop.f32.mrf.mxu0
    %v401 = vadd.f32 0.0, %v400
    %402 = vmatmul.f32.gmra.mxu0 %v359
    %v403 = vpop.f32.mrf.mxu0
    %v404 = vadd.f32 0.0, %v403
    %405 = vmatmul.f32.gmra.mxu0 %v362
    %v406 = vpop.f32.mrf.mxu0
    %v407 = vadd.f32 0.0, %v406
    %408 = vdwg.mxu0
    %409 = vmatpush.msra.mxu0 0.0
    %410 = vmatpush.msra.mxu0 0.0
    %411 = vmatpush.msra.mxu0 0.0
    %412 = vmatpush.msra.mxu0 %v369
    %413 = vmatpush.msra.mxu0 %v332
    %414 = vmatpush.msra.mxu0 %v330
    %415 = vmatpush.msra.mxu0 %v328
    %416 = vmatpush.msra.mxu0 %v326
    %417 = vmatpush.msra.mxu0 %v324
    %418 = vmatpush.msra.mxu0 %v322
    %419 = vmatpush.msra.mxu0 %v320
    %420 = vmatpush.msra.mxu0 %v318
    %421 = vmatpush.msra.mxu0 %v316
    %422 = vmatpush.msra.mxu0 %v314
    %423 = vmatpush.msra.mxu0 %v312
    %424 = vmatpush.msra.mxu0 %v310
    %425 = vmatmul.f32.gmra.mxu0 %v344
    %v426 = vpop.f32.mrf.mxu0
    %v427 = vadd.f32 0.0, %v426
    %428 = vmatmul.f32.gmra.mxu0 %v347
    %v429 = vpop.f32.mrf.mxu0
    %v430 = vadd.f32 0.0, %v429
    %431 = vmatmul.f32.gmra.mxu0 %v350
    %v432 = vpop.f32.mrf.mxu0
    %v433 = vadd.f32 0.0, %v432
    %434 = vmatmul.f32.gmra.mxu0 %v353
    %v435 = vpop.f32.mrf.mxu0
    %v436 = vadd.f32 0.0, %v435
    %437 = vmatmul.f32.gmra.mxu0 %v356
    %v438 = vpop.f32.mrf.mxu0
    %v439 = vadd.f32 0.0, %v438
    %440 = vmatmul.f32.gmra.mxu0 %v359
    %v441 = vpop.f32.mrf.mxu0
    %v442 = vadd.f32 0.0, %v441
    %443 = vmatmul.f32.gmra.mxu0 %v362
    %v444 = vpop.f32.mrf.mxu0
    %v445 = vadd.f32 0.0, %v444
    %446 = vdwg.mxu0
    %v447 = vld [vmem:[%s3] sm:$0xff]
    %v448 = vld [vmem:[%s3 + $0x8] sm:$0xff]
    %v449 = vld [vmem:[%s3 + $0x10] sm:$0xff]
    %v450 = vld [vmem:[%s3 + $0x18] sm:$0xff]
    %v451 = vld [vmem:[%s3 + $0x20] sm:$0xff]
    %v452 = vld [vmem:[%s3 + $0x28] sm:$0xff]
    %v453 = vld [vmem:[%s3 + $0x30] sm:$0xff]
    %v454 = vld [vmem:[%s3 + $0x38] sm:$0xff]
    %v455 = vld [vmem:[%s3 + $0x40] sm:$0xff]
    %v456 = vld [vmem:[%s3 + $0x48] sm:$0xff]
    %v457 = vld [vmem:[%s3 + $0x50] sm:$0xff]
    %v458 = vld [vmem:[%s3 + $0x58] sm:$0xff]
    %v459 = vld [vmem:[%s3 + $0x60] sm:$0xff]
    %v460 = vld [vmem:[%s3 + $0x68] sm:$0xff]
    %v461 = vld [vmem:[%s3 + $0x70] sm:$0xff]
    %v462 = vld [vmem:[%s3 + $0x78] sm:$0xff]
    %v463 = vld [vmem:[%s3 + $0x80] sm:$0xff]
    %v464 = vld [vmem:[%s3 + $0x88] sm:$0xff]
    %v465 = vld [vmem:[%s3 + $0x90] sm:$0xff]
    %v466 = vld [vmem:[%s3 + $0x98] sm:$0xff]
    %v467 = vld [vmem:[%s3 + $0xa0] sm:$0xff]
    %v468 = vld [vmem:[%s3 + $0xa8] sm:$0xff]
    %v469 = vld [vmem:[%s3 + $0xb0] sm:$0xff]
    %v470 = vld [vmem:[%s3 + $0xb8] sm:$0xff]
    %v471 = vld [vmem:[%s3 + $0xc0] sm:$0xff]
    %v472 = vld [vmem:[%s3 + $0xc8] sm:$0xff]
    %v473 = vld [vmem:[%s3 + $0xd0] sm:$0xff]
    %v474 = vld [vmem:[%s3 + $0xd8] sm:$0xff]
    %v475 = vld [vmem:[%s3 + $0xe0] sm:$0xff]
    %v476 = vld [vmem:[%s3 + $0xe8] sm:$0xff]
    %v477 = vld [vmem:[%s3 + $0xf0] sm:$0xff]
    %v478 = vld [vmem:[%s3 + $0xf8] sm:$0xff]
    %v479 = vld [vmem:[%s3 + $0x100] sm:$0xff]
    %v480 = vld [vmem:[%s3 + $0x108] sm:$0xff]
    %v481 = vld [vmem:[%s3 + $0x110] sm:$0xff]
    %v482 = vld [vmem:[%s3 + $0x118] sm:$0xff]
    %v483 = vld [vmem:[%s3 + $0x120] sm:$0xff]
    %v484 = vld [vmem:[%s3 + $0x128] sm:$0xff]
    %v485 = vld [vmem:[%s3 + $0x130] sm:$0xff]
    %v486 = vld [vmem:[%s3 + $0x138] sm:$0xff]
    %v487 = vld [vmem:[%s3 + $0x140] sm:$0xff]
    %v488 = vld [vmem:[%s3 + $0x148] sm:$0xff]
    %v489 = vld [vmem:[%s3 + $0x150] sm:$0xff]
    %v490 = vld [vmem:[%s3 + $0x158] sm:$0xff]
    %v491 = vld [vmem:[%s3 + $0x160] sm:$0xff]
    %v492 = vld [vmem:[%s3 + $0x168] sm:$0xff]
    %v493 = vld [vmem:[%s3 + $0x170] sm:$0xff]
    %v494 = vld [vmem:[%s3 + $0x178] sm:$0xff]
    %v495 = vld [vmem:[%s3 + $0x180] sm:$0xff]
    %v496 = vld [vmem:[%s3 + $0x188] sm:$0xff]
    %v497 = vld [vmem:[%s3 + $0x190] sm:$0xff]
    %v498 = vld [vmem:[%s3 + $0x198] sm:$0xff]
    %v499 = vld [vmem:[%s3 + $0x1a0] sm:$0xff]
    %v500 = vld [vmem:[%s3 + $0x1a8] sm:$0xff]
    %v501 = vld [vmem:[%s3 + $0x1b0] sm:$0xff]
    %v502 = vld [vmem:[%s3 + $0x1b8] sm:$0xff]
    %v503 = vld [vmem:[%s3 + $0x1c0] sm:$0xff]
    %v504 = vld [vmem:[%s3 + $0x1c8] sm:$0xff]
    %v505 = vld [vmem:[%s3 + $0x1d0] sm:$0xff]
    %v506 = vld [vmem:[%s3 + $0x1d8] sm:$0xff]
    %v507 = vld [vmem:[%s3 + $0x1e0] sm:$0xff]
    %v508 = vld [vmem:[%s3 + $0x1e8] sm:$0xff]
    %v509 = vld [vmem:[%s3 + $0x1f0] sm:$0xff]
    %v510 = vld [vmem:[%s3 + $0x1f8] sm:$0xff]
    %v511 = vld [vmem:[%s3 + $0x200] sm:$0xff]
    %v512 = vld [vmem:[%s3 + $0x208] sm:$0xff]
    %v513 = vld [vmem:[%s3 + $0x210] sm:$0xff]
    %v514 = vld [vmem:[%s3 + $0x218] sm:$0xff]
    %v515 = vld [vmem:[%s3 + $0x220] sm:$0xff]
    %v516 = vld [vmem:[%s3 + $0x228] sm:$0xff]
    %v517 = vld [vmem:[%s3 + $0x230] sm:$0xff]
    %v518 = vld [vmem:[%s3 + $0x238] sm:$0xff]
    %v519 = vld [vmem:[%s3 + $0x240] sm:$0xff]
    %v520 = vld [vmem:[%s3 + $0x248] sm:$0xff]
    %v521 = vld [vmem:[%s3 + $0x250] sm:$0xff]
    %v522 = vld [vmem:[%s3 + $0x258] sm:$0xff]
    %v523 = vld [vmem:[%s3 + $0x260] sm:$0xff]
    %v524 = vld [vmem:[%s3 + $0x268] sm:$0xff]
    %v525 = vld [vmem:[%s3 + $0x270] sm:$0xff]
    %v526 = vld [vmem:[%s3 + $0x278] sm:$0xff]
    %v527 = vld [vmem:[%s3 + $0x280] sm:$0xff]
    %v528 = vld [vmem:[%s3 + $0x288] sm:$0xff]
    %v529 = vld [vmem:[%s3 + $0x290] sm:$0xff]
    %v530 = vld [vmem:[%s3 + $0x298] sm:$0xff]
    %v531 = vld [vmem:[%s3 + $0x2a0] sm:$0xff]
    %v532 = vld [vmem:[%s3 + $0x2a8] sm:$0xff]
    %v533 = vld [vmem:[%s3 + $0x2b0] sm:$0xff]
    %v534 = vld [vmem:[%s3 + $0x2b8] sm:$0xff]
    %v535 = vld [vmem:[%s3 + $0x2c0] sm:$0xff]
    %v536 = vld [vmem:[%s3 + $0x2c8] sm:$0xff]
    %v537 = vld [vmem:[%s3 + $0x2d0] sm:$0xff]
    %v538 = vld [vmem:[%s3 + $0x2d8] sm:$0xff]
    %v539 = vld [vmem:[%s3 + $0x2e0] sm:$0xff]
    %v540 = vld [vmem:[%s3 + $0x2e8] sm:$0xff]
    %v541 = vld [vmem:[%s3 + $0x2f0] sm:$0xff]
    %v542 = vld [vmem:[%s3 + $0x2f8] sm:$0xff]
    %v543 = vld [vmem:[%s3 + $0x300] sm:$0xff]
    %v544 = vld [vmem:[%s3 + $0x308] sm:$0xff]
    %v545 = vld [vmem:[%s3 + $0x310] sm:$0xff]
    %v546 = vld [vmem:[%s3 + $0x318] sm:$0xff]
    %v547 = vld [vmem:[%s3 + $0x320] sm:$0xff]
    %v548 = vld [vmem:[%s3 + $0x328] sm:$0xff]
    %v549 = vld [vmem:[%s3 + $0x330] sm:$0xff]
    %v550 = vld [vmem:[%s3 + $0x338] sm:$0xff]
    %v551 = vld [vmem:[%s3 + $0x340] sm:$0xff]
    %v552 = vld [vmem:[%s3 + $0x348] sm:$0xff]
    %v553 = vld [vmem:[%s3 + $0x350] sm:$0xff]
    %v554 = vld [vmem:[%s3 + $0x358] sm:$0xff]
    %v555 = vld [vmem:[%s3 + $0x360] sm:$0xff]
    %v556 = vld [vmem:[%s3 + $0x368] sm:$0xff]
    %v557 = vld [vmem:[%s3 + $0x370] sm:$0xff]
    %v558 = vld [vmem:[%s3 + $0x378] sm:$0xff]
    %v559 = vld [vmem:[%s3 + $0x380] sm:$0xff]
    %v560 = vld [vmem:[%s3 + $0x388] sm:$0xff]
    %v561 = vld [vmem:[%s3 + $0x390] sm:$0xff]
    %v562 = vld [vmem:[%s3 + $0x398] sm:$0xff]
    %v563 = vld [vmem:[%s3 + $0x3a0] sm:$0xff]
    %v564 = vld [vmem:[%s3 + $0x3a8] sm:$0xff]
    %v565 = vld [vmem:[%s3 + $0x3b0] sm:$0xff]
    %v566 = vld [vmem:[%s3 + $0x3b8] sm:$0xff]
    %v567 = vld [vmem:[%s3 + $0x3c0] sm:$0xff]
    %v568 = vld [vmem:[%s3 + $0x3c8] sm:$0xff]
    %v569 = vld [vmem:[%s3 + $0x3d0] sm:$0xff]
    %v570 = vld [vmem:[%s3 + $0x3d8] sm:$0xff]
    %v571 = vld [vmem:[%s3 + $0x3e0] sm:$0xff]
    %v572 = vld [vmem:[%s3 + $0x3e8] sm:$0xff]
    %v573 = vld [vmem:[%s3 + $0x3f0] sm:$0xff]
    %v574 = vld [vmem:[%s3 + $0x3f8] sm:$0xff]
    %v575 = vld [vmem:[%s3 + $0x400] sm:$0xff]
    %v576 = vld [vmem:[%s3 + $0x408] sm:$0xff]
    %v577 = vld [vmem:[%s3 + $0x410] sm:$0xff]
    %v578 = vld [vmem:[%s3 + $0x418] sm:$0xff]
    %v579 = vld [vmem:[%s3 + $0x420] sm:$0xff]
    %v580 = vld [vmem:[%s3 + $0x428] sm:$0xff]
    %v581 = vld [vmem:[%s3 + $0x430] sm:$0xff]
    %v582 = vld [vmem:[%s3 + $0x438] sm:$0xff]
    %v583 = vld [vmem:[%s3 + $0x440] sm:$0xff]
    %v584 = vld [vmem:[%s3 + $0x448] sm:$0xff]
    %v585 = vld [vmem:[%s3 + $0x450] sm:$0xff]
    %v586 = vld [vmem:[%s3 + $0x458] sm:$0xff]
    %v587 = vld [vmem:[%s3 + $0x460] sm:$0xff]
    %v588 = vld [vmem:[%s3 + $0x468] sm:$0xff]
    %v589 = vld [vmem:[%s3 + $0x470] sm:$0xff]
    %v590 = vld [vmem:[%s3 + $0x478] sm:$0xff]
    %s591 = scalar_lea.vmem [#allocation8], 56
    %v592 = vld [vmem:[%s591] sm:$0xff]
    %v593 = vld [vmem:[%s591 + $0x8] sm:$0xff]
    %v594 = vld [vmem:[%s591 + $0x10] sm:$0xff]
    %v595 = vld [vmem:[%s591 + $0x18] sm:$0xff]
    %v596 = vld [vmem:[%s591 + $0x20] sm:$0xff]
    %v597 = vld [vmem:[%s591 + $0x28] sm:$0xff]
    %v598 = vld [vmem:[%s591 + $0x30] sm:$0x3]
    %v600 = vsel %vm342, %v592, 0
    %v603 = vsel %vm342, %v593, 0
    %v606 = vsel %vm342, %v594, 0
    %v609 = vsel %vm342, %v595, 0
    %v612 = vsel %vm342, %v596, 0
    %v615 = vsel %vm342, %v597, 0
    %v618 = vsel %vm342, %v598, 0
    %620 = vmatpush.msra.mxu0 0.0
    %621 = vmatpush.msra.mxu0 0.0
    %622 = vmatpush.msra.mxu0 0.0
    %623 = vmatpush.msra.mxu0 %v366
    %624 = vmatpush.msra.mxu0 %v331
    %625 = vmatpush.msra.mxu0 %v329
    %626 = vmatpush.msra.mxu0 %v327
    %627 = vmatpush.msra.mxu0 %v325
    %628 = vmatpush.msra.mxu0 %v323
    %629 = vmatpush.msra.mxu0 %v321
    %630 = vmatpush.msra.mxu0 %v319
    %631 = vmatpush.msra.mxu0 %v317
    %632 = vmatpush.msra.mxu0 %v315
    %633 = vmatpush.msra.mxu0 %v313
    %634 = vmatpush.msra.mxu0 %v311
    %635 = vmatpush.msra.mxu0 %v309
    %636 = vmatmul.f32.gmra.mxu0 %v600
    %v637 = vpop.f32.mrf.mxu0
    %v638 = vadd.f32 0.0, %v637
    %639 = vmatmul.f32.gmra.mxu0 %v603
    %v640 = vpop.f32.mrf.mxu0
    %v641 = vadd.f32 0.0, %v640
    %642 = vmatmul.f32.gmra.mxu0 %v606
    %v643 = vpop.f32.mrf.mxu0
    %v644 = vadd.f32 0.0, %v643
    %645 = vmatmul.f32.gmra.mxu0 %v609
    %v646 = vpop.f32.mrf.mxu0
    %v647 = vadd.f32 0.0, %v646
    %648 = vmatmul.f32.gmra.mxu0 %v612
    %v649 = vpop.f32.mrf.mxu0
    %v650 = vadd.f32 0.0, %v649
    %651 = vmatmul.f32.gmra.mxu0 %v615
    %v652 = vpop.f32.mrf.mxu0
    %v653 = vadd.f32 0.0, %v652
    %654 = vmatmul.f32.gmra.mxu0 %v618
    %v655 = vpop.f32.mrf.mxu0
    %v656 = vadd.f32 0.0, %v655
    %657 = vdwg.mxu0
    %658 = vmatpush.msra.mxu0 0.0
    %659 = vmatpush.msra.mxu0 0.0
    %660 = vmatpush.msra.mxu0 0.0
    %661 = vmatpush.msra.mxu0 %v369
    %662 = vmatpush.msra.mxu0 %v332
    %663 = vmatpush.msra.mxu0 %v330
    %664 = vmatpush.msra.mxu0 %v328
    %665 = vmatpush.msra.mxu0 %v326
    %666 = vmatpush.msra.mxu0 %v324
    %667 = vmatpush.msra.mxu0 %v322
    %668 = vmatpush.msra.mxu0 %v320
    %669 = vmatpush.msra.mxu0 %v318
    %670 = vmatpush.msra.mxu0 %v316
    %671 = vmatpush.msra.mxu0 %v314
    %672 = vmatpush.msra.mxu0 %v312
    %673 = vmatpush.msra.mxu0 %v310
    %674 = vmatmul.f32.gmra.mxu0 %v600
    %v675 = vpop.f32.mrf.mxu0
    %v676 = vadd.f32 0.0, %v675
    %677 = vmatmul.f32.gmra.mxu0 %v603
    %v678 = vpop.f32.mrf.mxu0
    %v679 = vadd.f32 0.0, %v678
    %680 = vmatmul.f32.gmra.mxu0 %v606
    %v681 = vpop.f32.mrf.mxu0
    %v682 = vadd.f32 0.0, %v681
    %683 = vmatmul.f32.gmra.mxu0 %v609
    %v684 = vpop.f32.mrf.mxu0
    %v685 = vadd.f32 0.0, %v684
    %686 = vmatmul.f32.gmra.mxu0 %v612
    %v687 = vpop.f32.mrf.mxu0
    %v688 = vadd.f32 0.0, %v687
    %689 = vmatmul.f32.gmra.mxu0 %v615
    %v690 = vpop.f32.mrf.mxu0
    %v691 = vadd.f32 0.0, %v690
    %692 = vmatmul.f32.gmra.mxu0 %v618
    %v693 = vpop.f32.mrf.mxu0
    %v694 = vadd.f32 0.0, %v693
    %695 = vdwg.mxu0
    %s696 = scalar_lea.vmem %s3, 1152
    %v697 = vld [vmem:[%s696] sm:$0xff]
    %v698 = vld [vmem:[%s696 + $0x8] sm:$0xff]
    %v699 = vld [vmem:[%s696 + $0x10] sm:$0xff]
    %v700 = vld [vmem:[%s696 + $0x18] sm:$0xff]
    %v701 = vld [vmem:[%s696 + $0x20] sm:$0xff]
    %v702 = vld [vmem:[%s696 + $0x28] sm:$0xff]
    %v703 = vld [vmem:[%s696 + $0x30] sm:$0xff]
    %v704 = vld [vmem:[%s696 + $0x38] sm:$0xff]
    %v705 = vld [vmem:[%s696 + $0x40] sm:$0xff]
    %v706 = vld [vmem:[%s696 + $0x48] sm:$0xff]
    %v707 = vld [vmem:[%s696 + $0x50] sm:$0xff]
    %v708 = vld [vmem:[%s696 + $0x58] sm:$0xff]
    %v709 = vld [vmem:[%s696 + $0x60] sm:$0xff]
    %v710 = vld [vmem:[%s696 + $0x68] sm:$0xff]
    %v711 = vld [vmem:[%s696 + $0x70] sm:$0xff]
    %v712 = vld [vmem:[%s696 + $0x78] sm:$0xff]
    %v713 = vld [vmem:[%s696 + $0x80] sm:$0xff]
    %v714 = vld [vmem:[%s696 + $0x88] sm:$0xff]
    %v715 = vld [vmem:[%s696 + $0x90] sm:$0xff]
    %v716 = vld [vmem:[%s696 + $0x98] sm:$0xff]
    %v717 = vld [vmem:[%s696 + $0xa0] sm:$0xff]
    %v718 = vld [vmem:[%s696 + $0xa8] sm:$0xff]
    %v719 = vld [vmem:[%s696 + $0xb0] sm:$0xff]
    %v720 = vld [vmem:[%s696 + $0xb8] sm:$0xff]
    %v721 = vld [vmem:[%s696 + $0xc0] sm:$0xff]
    %v722 = vld [vmem:[%s696 + $0xc8] sm:$0xff]
    %v723 = vld [vmem:[%s696 + $0xd0] sm:$0xff]
    %v724 = vld [vmem:[%s696 + $0xd8] sm:$0xff]
    %v725 = vld [vmem:[%s696 + $0xe0] sm:$0xff]
    %v726 = vld [vmem:[%s696 + $0xe8] sm:$0xff]
    %v727 = vld [vmem:[%s696 + $0xf0] sm:$0xff]
    %v728 = vld [vmem:[%s696 + $0xf8] sm:$0xff]
    %v729 = vld [vmem:[%s696 + $0x100] sm:$0xff]
    %v730 = vld [vmem:[%s696 + $0x108] sm:$0xff]
    %v731 = vld [vmem:[%s696 + $0x110] sm:$0xff]
    %v732 = vld [vmem:[%s696 + $0x118] sm:$0xff]
    %v733 = vld [vmem:[%s696 + $0x120] sm:$0xff]
    %v734 = vld [vmem:[%s696 + $0x128] sm:$0xff]
    %v735 = vld [vmem:[%s696 + $0x130] sm:$0xff]
    %v736 = vld [vmem:[%s696 + $0x138] sm:$0xff]
    %v737 = vld [vmem:[%s696 + $0x140] sm:$0xff]
    %v738 = vld [vmem:[%s696 + $0x148] sm:$0xff]
    %v739 = vld [vmem:[%s696 + $0x150] sm:$0xff]
    %v740 = vld [vmem:[%s696 + $0x158] sm:$0xff]
    %v741 = vld [vmem:[%s696 + $0x160] sm:$0xff]
    %v742 = vld [vmem:[%s696 + $0x168] sm:$0xff]
    %v743 = vld [vmem:[%s696 + $0x170] sm:$0xff]
    %v744 = vld [vmem:[%s696 + $0x178] sm:$0xff]
    %v745 = vld [vmem:[%s696 + $0x180] sm:$0xff]
    %v746 = vld [vmem:[%s696 + $0x188] sm:$0xff]
    %v747 = vld [vmem:[%s696 + $0x190] sm:$0xff]
    %v748 = vld [vmem:[%s696 + $0x198] sm:$0xff]
    %v749 = vld [vmem:[%s696 + $0x1a0] sm:$0xff]
    %v750 = vld [vmem:[%s696 + $0x1a8] sm:$0xff]
    %v751 = vld [vmem:[%s696 + $0x1b0] sm:$0xff]
    %v752 = vld [vmem:[%s696 + $0x1b8] sm:$0xff]
    %v753 = vld [vmem:[%s696 + $0x1c0] sm:$0xff]
    %v754 = vld [vmem:[%s696 + $0x1c8] sm:$0xff]
    %v755 = vld [vmem:[%s696 + $0x1d0] sm:$0xff]
    %v756 = vld [vmem:[%s696 + $0x1d8] sm:$0xff]
    %v757 = vld [vmem:[%s696 + $0x1e0] sm:$0xff]
    %v758 = vld [vmem:[%s696 + $0x1e8] sm:$0xff]
    %v759 = vld [vmem:[%s696 + $0x1f0] sm:$0xff]
    %v760 = vld [vmem:[%s696 + $0x1f8] sm:$0xff]
    %v761 = vld [vmem:[%s696 + $0x200] sm:$0xff]
    %v762 = vld [vmem:[%s696 + $0x208] sm:$0xff]
    %v763 = vld [vmem:[%s696 + $0x210] sm:$0xff]
    %v764 = vld [vmem:[%s696 + $0x218] sm:$0xff]
    %v765 = vld [vmem:[%s696 + $0x220] sm:$0xff]
    %v766 = vld [vmem:[%s696 + $0x228] sm:$0xff]
    %v767 = vld [vmem:[%s696 + $0x230] sm:$0xff]
    %v768 = vld [vmem:[%s696 + $0x238] sm:$0xff]
    %v769 = vld [vmem:[%s696 + $0x240] sm:$0xff]
    %v770 = vld [vmem:[%s696 + $0x248] sm:$0xff]
    %v771 = vld [vmem:[%s696 + $0x250] sm:$0xff]
    %v772 = vld [vmem:[%s696 + $0x258] sm:$0xff]
    %v773 = vld [vmem:[%s696 + $0x260] sm:$0xff]
    %v774 = vld [vmem:[%s696 + $0x268] sm:$0xff]
    %v775 = vld [vmem:[%s696 + $0x270] sm:$0xff]
    %v776 = vld [vmem:[%s696 + $0x278] sm:$0xff]
    %v777 = vld [vmem:[%s696 + $0x280] sm:$0xff]
    %v778 = vld [vmem:[%s696 + $0x288] sm:$0xff]
    %v779 = vld [vmem:[%s696 + $0x290] sm:$0xff]
    %v780 = vld [vmem:[%s696 + $0x298] sm:$0xff]
    %v781 = vld [vmem:[%s696 + $0x2a0] sm:$0xff]
    %v782 = vld [vmem:[%s696 + $0x2a8] sm:$0xff]
    %v783 = vld [vmem:[%s696 + $0x2b0] sm:$0xff]
    %v784 = vld [vmem:[%s696 + $0x2b8] sm:$0xff]
    %v785 = vld [vmem:[%s696 + $0x2c0] sm:$0xff]
    %v786 = vld [vmem:[%s696 + $0x2c8] sm:$0xff]
    %v787 = vld [vmem:[%s696 + $0x2d0] sm:$0xff]
    %v788 = vld [vmem:[%s696 + $0x2d8] sm:$0xff]
    %v789 = vld [vmem:[%s696 + $0x2e0] sm:$0xff]
    %v790 = vld [vmem:[%s696 + $0x2e8] sm:$0xff]
    %v791 = vld [vmem:[%s696 + $0x2f0] sm:$0xff]
    %v792 = vld [vmem:[%s696 + $0x2f8] sm:$0xff]
    %v793 = vld [vmem:[%s696 + $0x300] sm:$0xff]
    %v794 = vld [vmem:[%s696 + $0x308] sm:$0xff]
    %v795 = vld [vmem:[%s696 + $0x310] sm:$0xff]
    %v796 = vld [vmem:[%s696 + $0x318] sm:$0xff]
    %v797 = vld [vmem:[%s696 + $0x320] sm:$0xff]
    %v798 = vld [vmem:[%s696 + $0x328] sm:$0xff]
    %v799 = vld [vmem:[%s696 + $0x330] sm:$0xff]
    %v800 = vld [vmem:[%s696 + $0x338] sm:$0xff]
    %v801 = vld [vmem:[%s696 + $0x340] sm:$0xff]
    %v802 = vld [vmem:[%s696 + $0x348] sm:$0xff]
    %v803 = vld [vmem:[%s696 + $0x350] sm:$0xff]
    %v804 = vld [vmem:[%s696 + $0x358] sm:$0xff]
    %v805 = vld [vmem:[%s696 + $0x360] sm:$0xff]
    %v806 = vld [vmem:[%s696 + $0x368] sm:$0xff]
    %v807 = vld [vmem:[%s696 + $0x370] sm:$0xff]
    %v808 = vld [vmem:[%s696 + $0x378] sm:$0xff]
    %v809 = vld [vmem:[%s696 + $0x380] sm:$0xff]
    %v810 = vld [vmem:[%s696 + $0x388] sm:$0xff]
    %v811 = vld [vmem:[%s696 + $0x390] sm:$0xff]
    %v812 = vld [vmem:[%s696 + $0x398] sm:$0xff]
    %v813 = vld [vmem:[%s696 + $0x3a0] sm:$0xff]
    %v814 = vld [vmem:[%s696 + $0x3a8] sm:$0xff]
    %v815 = vld [vmem:[%s696 + $0x3b0] sm:$0xff]
    %v816 = vld [vmem:[%s696 + $0x3b8] sm:$0xff]
    %v817 = vld [vmem:[%s696 + $0x3c0] sm:$0xff]
    %v818 = vld [vmem:[%s696 + $0x3c8] sm:$0xff]
    %v819 = vld [vmem:[%s696 + $0x3d0] sm:$0xff]
    %v820 = vld [vmem:[%s696 + $0x3d8] sm:$0xff]
    %v821 = vld [vmem:[%s696 + $0x3e0] sm:$0xff]
    %v822 = vld [vmem:[%s696 + $0x3e8] sm:$0xff]
    %v823 = vld [vmem:[%s696 + $0x3f0] sm:$0xff]
    %v824 = vld [vmem:[%s696 + $0x3f8] sm:$0xff]
    %v825 = vld [vmem:[%s696 + $0x400] sm:$0xff]
    %v826 = vld [vmem:[%s696 + $0x408] sm:$0xff]
    %v827 = vld [vmem:[%s696 + $0x410] sm:$0xff]
    %v828 = vld [vmem:[%s696 + $0x418] sm:$0xff]
    %v829 = vld [vmem:[%s696 + $0x420] sm:$0xff]
    %v830 = vld [vmem:[%s696 + $0x428] sm:$0xff]
    %v831 = vld [vmem:[%s696 + $0x430] sm:$0xff]
    %v832 = vld [vmem:[%s696 + $0x438] sm:$0xff]
    %v833 = vld [vmem:[%s696 + $0x440] sm:$0xff]
    %v834 = vld [vmem:[%s696 + $0x448] sm:$0xff]
    %v835 = vld [vmem:[%s696 + $0x450] sm:$0xff]
    %v836 = vld [vmem:[%s696 + $0x458] sm:$0xff]
    %v837 = vld [vmem:[%s696 + $0x460] sm:$0xff]
    %v838 = vld [vmem:[%s696 + $0x468] sm:$0xff]
    %v839 = vld [vmem:[%s696 + $0x470] sm:$0xff]
    %v840 = vld [vmem:[%s696 + $0x478] sm:$0xff]
    %vm841 = vcmask 523264
    %v843 = vsel %vm841, %v676, 0
    %v846 = vsel %vm841, %v679, 0
    %v849 = vsel %vm841, %v682, 0
    %v852 = vsel %vm841, %v685, 0
    %v855 = vsel %vm841, %v688, 0
    %v858 = vsel %vm841, %v691, 0
    %v861 = vsel %vm841, %v694, 0
    %863 = vmatpush.msra.mxu0 %v787
    %864 = vmatpush.msra.mxu0 %v781
    %865 = vmatpush.msra.mxu0 %v775
    %866 = vmatpush.msra.mxu0 %v769
    %867 = vmatpush.msra.mxu0 %v763
    %868 = vmatpush.msra.mxu0 %v757
    %869 = vmatpush.msra.mxu0 %v751
    %870 = vmatpush.msra.mxu0 %v745
    %871 = vmatpush.msra.mxu0 %v739
    %872 = vmatpush.msra.mxu0 %v733
    %873 = vmatpush.msra.mxu0 %v727
    %874 = vmatpush.msra.mxu0 %v721
    %875 = vmatpush.msra.mxu0 %v715
    %876 = vmatpush.msra.mxu0 %v709
    %877 = vmatpush.msra.mxu0 %v703
    %878 = vmatpush.msra.mxu0 %v697
    %879 = vmatmul.f32.gmra.mxu0 %v638
    %v880 = vpop.f32.mrf.mxu0
    %v881 = vadd.f32 0.0, %v880
    %882 = vmatmul.f32.gmra.mxu0 %v641
    %v883 = vpop.f32.mrf.mxu0
    %v884 = vadd.f32 0.0, %v883
    %885 = vmatmul.f32.gmra.mxu0 %v644
    %v886 = vpop.f32.mrf.mxu0
    %v887 = vadd.f32 0.0, %v886
    %888 = vmatmul.f32.gmra.mxu0 %v647
    %v889 = vpop.f32.mrf.mxu0
    %v890 = vadd.f32 0.0, %v889
    %891 = vmatmul.f32.gmra.mxu0 %v650
    %v892 = vpop.f32.mrf.mxu0
    %v893 = vadd.f32 0.0, %v892
    %894 = vmatmul.f32.gmra.mxu0 %v653
    %v895 = vpop.f32.mrf.mxu0
    %v896 = vadd.f32 0.0, %v895
    %897 = vmatmul.f32.gmra.mxu0 %v656
    %v898 = vpop.f32.mrf.mxu0
    %v899 = vadd.f32 0.0, %v898
    %900 = vdwg.mxu0
    %901 = vmatpush.msra.mxu0 0.0
    %902 = vmatpush.msra.mxu0 0.0
    %903 = vmatpush.msra.mxu0 0.0
    %904 = vmatpush.msra.mxu0 0.0
    %905 = vmatpush.msra.mxu0 0.0
    %906 = vmatpush.msra.mxu0 0.0
    %907 = vmatpush.msra.mxu0 0.0
    %908 = vmatpush.msra.mxu0 0.0
    %909 = vmatpush.msra.mxu0 %v835
    %910 = vmatpush.msra.mxu0 %v829
    %911 = vmatpush.msra.mxu0 %v823
    %912 = vmatpush.msra.mxu0 %v817
    %913 = vmatpush.msra.mxu0 %v811
    %914 = vmatpush.msra.mxu0 %v805
    %915 = vmatpush.msra.mxu0 %v799
    %916 = vmatpush.msra.mxu0 %v793
    %917 = vmatmul.f32.gmra.mxu0 %v843
    %v918 = vpop.f32.mrf.mxu0
    %v919 = vadd.f32 %v881, %v918
    %920 = vmatmul.f32.gmra.mxu0 %v846
    %v921 = vpop.f32.mrf.mxu0
    %v922 = vadd.f32 %v884, %v921
    %923 = vmatmul.f32.gmra.mxu0 %v849
    %v924 = vpop.f32.mrf.mxu0
    %v925 = vadd.f32 %v887, %v924
    %926 = vmatmul.f32.gmra.mxu0 %v852
    %v927 = vpop.f32.mrf.mxu0
    %v928 = vadd.f32 %v890, %v927
    %929 = vmatmul.f32.gmra.mxu0 %v855
    %v930 = vpop.f32.mrf.mxu0
    %v931 = vadd.f32 %v893, %v930
    %932 = vmatmul.f32.gmra.mxu0 %v858
    %v933 = vpop.f32.mrf.mxu0
    %v934 = vadd.f32 %v896, %v933
    %935 = vmatmul.f32.gmra.mxu0 %v861
    %v936 = vpop.f32.mrf.mxu0
    %v937 = vadd.f32 %v899, %v936
    %938 = vdwg.mxu0
    %939 = vmatpush.msra.mxu0 %v788
    %940 = vmatpush.msra.mxu0 %v782
    %941 = vmatpush.msra.mxu0 %v776
    %942 = vmatpush.msra.mxu0 %v770
    %943 = vmatpush.msra.mxu0 %v764
    %944 = vmatpush.msra.mxu0 %v758
    %945 = vmatpush.msra.mxu0 %v752
    %946 = vmatpush.msra.mxu0 %v746
    %947 = vmatpush.msra.mxu0 %v740
    %948 = vmatpush.msra.mxu0 %v734
    %949 = vmatpush.msra.mxu0 %v728
    %950 = vmatpush.msra.mxu0 %v722
    %951 = vmatpush.msra.mxu0 %v716
    %952 = vmatpush.msra.mxu0 %v710
    %953 = vmatpush.msra.mxu0 %v704
    %954 = vmatpush.msra.mxu0 %v698
    %955 = vmatmul.f32.gmra.mxu0 %v638
    %v956 = vpop.f32.mrf.mxu0
    %v957 = vadd.f32 0.0, %v956
    %958 = vmatmul.f32.gmra.mxu0 %v641
    %v959 = vpop.f32.mrf.mxu0
    %v960 = vadd.f32 0.0, %v959
    %961 = vmatmul.f32.gmra.mxu0 %v644
    %v962 = vpop.f32.mrf.mxu0
    %v963 = vadd.f32 0.0, %v962
    %964 = vmatmul.f32.gmra.mxu0 %v647
    %v965 = vpop.f32.mrf.mxu0
    %v966 = vadd.f32 0.0, %v965
    %967 = vmatmul.f32.gmra.mxu0 %v650
    %v968 = vpop.f32.mrf.mxu0
    %v969 = vadd.f32 0.0, %v968
    %970 = vmatmul.f32.gmra.mxu0 %v653
    %v971 = vpop.f32.mrf.mxu0
    %v972 = vadd.f32 0.0, %v971
    %973 = vmatmul.f32.gmra.mxu0 %v656
    %v974 = vpop.f32.mrf.mxu0
    %v975 = vadd.f32 0.0, %v974
    %976 = vdwg.mxu0
    %977 = vmatpush.msra.mxu0 0.0
    %978 = vmatpush.msra.mxu0 0.0
    %979 = vmatpush.msra.mxu0 0.0
    %980 = vmatpush.msra.mxu0 0.0
    %981 = vmatpush.msra.mxu0 0.0
    %982 = vmatpush.msra.mxu0 0.0
    %983 = vmatpush.msra.mxu0 0.0
    %984 = vmatpush.msra.mxu0 0.0
    %985 = vmatpush.msra.mxu0 %v836
    %986 = vmatpush.msra.mxu0 %v830
    %987 = vmatpush.msra.mxu0 %v824
    %988 = vmatpush.msra.mxu0 %v818
    %989 = vmatpush.msra.mxu0 %v812
    %990 = vmatpush.msra.mxu0 %v806
    %991 = vmatpush.msra.mxu0 %v800
    %992 = vmatpush.msra.mxu0 %v794
    %993 = vmatmul.f32.gmra.mxu0 %v843
    %v994 = vpop.f32.mrf.mxu0
    %v995 = vadd.f32 %v957, %v994
    %996 = vmatmul.f32.gmra.mxu0 %v846
    %v997 = vpop.f32.mrf.mxu0
    %v998 = vadd.f32 %v960, %v997
    %999 = vmatmul.f32.gmra.mxu0 %v849
    %v1000 = vpop.f32.mrf.mxu0
    %v1001 = vadd.f32 %v963, %v1000
    %1002 = vmatmul.f32.gmra.mxu0 %v852
    %v1003 = vpop.f32.mrf.mxu0
    %v1004 = vadd.f32 %v966, %v1003
    %1005 = vmatmul.f32.gmra.mxu0 %v855
    %v1006 = vpop.f32.mrf.mxu0
    %v1007 = vadd.f32 %v969, %v1006
    %1008 = vmatmul.f32.gmra.mxu0 %v858
    %v1009 = vpop.f32.mrf.mxu0
    %v1010 = vadd.f32 %v972, %v1009
    %1011 = vmatmul.f32.gmra.mxu0 %v861
    %v1012 = vpop.f32.mrf.mxu0
    %v1013 = vadd.f32 %v975, %v1012
    %1014 = vdwg.mxu0
    %1015 = vmatpush.msra.mxu0 %v789
    %1016 = vmatpush.msra.mxu0 %v783
    %1017 = vmatpush.msra.mxu0 %v777
    %1018 = vmatpush.msra.mxu0 %v771
    %1019 = vmatpush.msra.mxu0 %v765
    %1020 = vmatpush.msra.mxu0 %v759
    %1021 = vmatpush.msra.mxu0 %v753
    %1022 = vmatpush.msra.mxu0 %v747
    %1023 = vmatpush.msra.mxu0 %v741
    %1024 = vmatpush.msra.mxu0 %v735
    %1025 = vmatpush.msra.mxu0 %v729
    %1026 = vmatpush.msra.mxu0 %v723
    %1027 = vmatpush.msra.mxu0 %v717
    %1028 = vmatpush.msra.mxu0 %v711
    %1029 = vmatpush.msra.mxu0 %v705
    %1030 = vmatpush.msra.mxu0 %v699
    %1031 = vmatmul.f32.gmra.mxu0 %v638
    %v1032 = vpop.f32.mrf.mxu0
    %v1033 = vadd.f32 0.0, %v1032
    %1034 = vmatmul.f32.gmra.mxu0 %v641
    %v1035 = vpop.f32.mrf.mxu0
    %v1036 = vadd.f32 0.0, %v1035
    %1037 = vmatmul.f32.gmra.mxu0 %v644
    %v1038 = vpop.f32.mrf.mxu0
    %v1039 = vadd.f32 0.0, %v1038
    %1040 = vmatmul.f32.gmra.mxu0 %v647
    %v1041 = vpop.f32.mrf.mxu0
    %v1042 = vadd.f32 0.0, %v1041
    %1043 = vmatmul.f32.gmra.mxu0 %v650
    %v1044 = vpop.f32.mrf.mxu0
    %v1045 = vadd.f32 0.0, %v1044
    %1046 = vmatmul.f32.gmra.mxu0 %v653
    %v1047 = vpop.f32.mrf.mxu0
    %v1048 = vadd.f32 0.0, %v1047
    %1049 = vmatmul.f32.gmra.mxu0 %v656
    %v1050 = vpop.f32.mrf.mxu0
    %v1051 = vadd.f32 0.0, %v1050
    %1052 = vdwg.mxu0
    %1053 = vmatpush.msra.mxu0 0.0
    %1054 = vmatpush.msra.mxu0 0.0
    %1055 = vmatpush.msra.mxu0 0.0
    %1056 = vmatpush.msra.mxu0 0.0
    %1057 = vmatpush.msra.mxu0 0.0
    %1058 = vmatpush.msra.mxu0 0.0
    %1059 = vmatpush.msra.mxu0 0.0
    %1060 = vmatpush.msra.mxu0 0.0
    %1061 = vmatpush.msra.mxu0 %v837
    %1062 = vmatpush.msra.mxu0 %v831
    %1063 = vmatpush.msra.mxu0 %v825
    %1064 = vmatpush.msra.mxu0 %v819
    %1065 = vmatpush.msra.mxu0 %v813
    %1066 = vmatpush.msra.mxu0 %v807
    %1067 = vmatpush.msra.mxu0 %v801
    %1068 = vmatpush.msra.mxu0 %v795
    %1069 = vmatmul.f32.gmra.mxu0 %v843
    %v1070 = vpop.f32.mrf.mxu0
    %v1071 = vadd.f32 %v1033, %v1070
    %1072 = vmatmul.f32.gmra.mxu0 %v846
    %v1073 = vpop.f32.mrf.mxu0
    %v1074 = vadd.f32 %v1036, %v1073
    %1075 = vmatmul.f32.gmra.mxu0 %v849
    %v1076 = vpop.f32.mrf.mxu0
    %v1077 = vadd.f32 %v1039, %v1076
    %1078 = vmatmul.f32.gmra.mxu0 %v852
    %v1079 = vpop.f32.mrf.mxu0
    %v1080 = vadd.f32 %v1042, %v1079
    %1081 = vmatmul.f32.gmra.mxu0 %v855
    %v1082 = vpop.f32.mrf.mxu0
    %v1083 = vadd.f32 %v1045, %v1082
    %1084 = vmatmul.f32.gmra.mxu0 %v858
    %v1085 = vpop.f32.mrf.mxu0
    %v1086 = vadd.f32 %v1048, %v1085
    %1087 = vmatmul.f32.gmra.mxu0 %v861
    %v1088 = vpop.f32.mrf.mxu0
    %v1089 = vadd.f32 %v1051, %v1088
    %1090 = vdwg.mxu0
    %1091 = vmatpush.msra.mxu0 %v790
    %1092 = vmatpush.msra.mxu0 %v784
    %1093 = vmatpush.msra.mxu0 %v778
    %1094 = vmatpush.msra.mxu0 %v772
    %1095 = vmatpush.msra.mxu0 %v766
    %1096 = vmatpush.msra.mxu0 %v760
    %1097 = vmatpush.msra.mxu0 %v754
    %1098 = vmatpush.msra.mxu0 %v748
    %1099 = vmatpush.msra.mxu0 %v742
    %1100 = vmatpush.msra.mxu0 %v736
    %1101 = vmatpush.msra.mxu0 %v730
    %1102 = vmatpush.msra.mxu0 %v724
    %1103 = vmatpush.msra.mxu0 %v718
    %1104 = vmatpush.msra.mxu0 %v712
    %1105 = vmatpush.msra.mxu0 %v706
    %1106 = vmatpush.msra.mxu0 %v700
    %1107 = vmatmul.f32.gmra.mxu0 %v638
    %v1108 = vpop.f32.mrf.mxu0
    %v1109 = vadd.f32 0.0, %v1108
    %1110 = vmatmul.f32.gmra.mxu0 %v641
    %v1111 = vpop.f32.mrf.mxu0
    %v1112 = vadd.f32 0.0, %v1111
    %1113 = vmatmul.f32.gmra.mxu0 %v644
    %v1114 = vpop.f32.mrf.mxu0
    %v1115 = vadd.f32 0.0, %v1114
    %1116 = vmatmul.f32.gmra.mxu0 %v647
    %v1117 = vpop.f32.mrf.mxu0
    %v1118 = vadd.f32 0.0, %v1117
    %1119 = vmatmul.f32.gmra.mxu0 %v650
    %v1120 = vpop.f32.mrf.mxu0
    %v1121 = vadd.f32 0.0, %v1120
    %1122 = vmatmul.f32.gmra.mxu0 %v653
    %v1123 = vpop.f32.mrf.mxu0
    %v1124 = vadd.f32 0.0, %v1123
    %1125 = vmatmul.f32.gmra.mxu0 %v656
    %v1126 = vpop.f32.mrf.mxu0
    %v1127 = vadd.f32 0.0, %v1126
    %1128 = vdwg.mxu0
    %1129 = vmatpush.msra.mxu0 0.0
    %1130 = vmatpush.msra.mxu0 0.0
    %1131 = vmatpush.msra.mxu0 0.0
    %1132 = vmatpush.msra.mxu0 0.0
    %1133 = vmatpush.msra.mxu0 0.0
    %1134 = vmatpush.msra.mxu0 0.0
    %1135 = vmatpush.msra.mxu0 0.0
    %1136 = vmatpush.msra.mxu0 0.0
    %1137 = vmatpush.msra.mxu0 %v838
    %1138 = vmatpush.msra.mxu0 %v832
    %1139 = vmatpush.msra.mxu0 %v826
    %1140 = vmatpush.msra.mxu0 %v820
    %1141 = vmatpush.msra.mxu0 %v814
    %1142 = vmatpush.msra.mxu0 %v808
    %1143 = vmatpush.msra.mxu0 %v802
    %1144 = vmatpush.msra.mxu0 %v796
    %1145 = vmatmul.f32.gmra.mxu0 %v843
    %v1146 = vpop.f32.mrf.mxu0
    %v1147 = vadd.f32 %v1109, %v1146
    %1148 = vmatmul.f32.gmra.mxu0 %v846
    %v1149 = vpop.f32.mrf.mxu0
    %v1150 = vadd.f32 %v1112, %v1149
    %1151 = vmatmul.f32.gmra.mxu0 %v849
    %v1152 = vpop.f32.mrf.mxu0
    %v1153 = vadd.f32 %v1115, %v1152
    %1154 = vmatmul.f32.gmra.mxu0 %v852
    %v1155 = vpop.f32.mrf.mxu0
    %v1156 = vadd.f32 %v1118, %v1155
    %1157 = vmatmul.f32.gmra.mxu0 %v855
    %v1158 = vpop.f32.mrf.mxu0
    %v1159 = vadd.f32 %v1121, %v1158
    %1160 = vmatmul.f32.gmra.mxu0 %v858
    %v1161 = vpop.f32.mrf.mxu0
    %v1162 = vadd.f32 %v1124, %v1161
    %1163 = vmatmul.f32.gmra.mxu0 %v861
    %v1164 = vpop.f32.mrf.mxu0
    %v1165 = vadd.f32 %v1127, %v1164
    %1166 = vdwg.mxu0
    %1167 = vmatpush.msra.mxu0 %v791
    %1168 = vmatpush.msra.mxu0 %v785
    %1169 = vmatpush.msra.mxu0 %v779
    %1170 = vmatpush.msra.mxu0 %v773
    %1171 = vmatpush.msra.mxu0 %v767
    %1172 = vmatpush.msra.mxu0 %v761
    %1173 = vmatpush.msra.mxu0 %v755
    %1174 = vmatpush.msra.mxu0 %v749
    %1175 = vmatpush.msra.mxu0 %v743
    %1176 = vmatpush.msra.mxu0 %v737
    %1177 = vmatpush.msra.mxu0 %v731
    %1178 = vmatpush.msra.mxu0 %v725
    %1179 = vmatpush.msra.mxu0 %v719
    %1180 = vmatpush.msra.mxu0 %v713
    %1181 = vmatpush.msra.mxu0 %v707
    %1182 = vmatpush.msra.mxu0 %v701
    %1183 = vmatmul.f32.gmra.mxu0 %v638
    %v1184 = vpop.f32.mrf.mxu0
    %v1185 = vadd.f32 0.0, %v1184
    %1186 = vmatmul.f32.gmra.mxu0 %v641
    %v1187 = vpop.f32.mrf.mxu0
    %v1188 = vadd.f32 0.0, %v1187
    %1189 = vmatmul.f32.gmra.mxu0 %v644
    %v1190 = vpop.f32.mrf.mxu0
    %v1191 = vadd.f32 0.0, %v1190
    %1192 = vmatmul.f32.gmra.mxu0 %v647
    %v1193 = vpop.f32.mrf.mxu0
    %v1194 = vadd.f32 0.0, %v1193
    %1195 = vmatmul.f32.gmra.mxu0 %v650
    %v1196 = vpop.f32.mrf.mxu0
    %v1197 = vadd.f32 0.0, %v1196
    %1198 = vmatmul.f32.gmra.mxu0 %v653
    %v1199 = vpop.f32.mrf.mxu0
    %v1200 = vadd.f32 0.0, %v1199
    %1201 = vmatmul.f32.gmra.mxu0 %v656
    %v1202 = vpop.f32.mrf.mxu0
    %v1203 = vadd.f32 0.0, %v1202
    %1204 = vdwg.mxu0
    %1205 = vmatpush.msra.mxu0 0.0
    %1206 = vmatpush.msra.mxu0 0.0
    %1207 = vmatpush.msra.mxu0 0.0
    %1208 = vmatpush.msra.mxu0 0.0
    %1209 = vmatpush.msra.mxu0 0.0
    %1210 = vmatpush.msra.mxu0 0.0
    %1211 = vmatpush.msra.mxu0 0.0
    %1212 = vmatpush.msra.mxu0 0.0
    %1213 = vmatpush.msra.mxu0 %v839
    %1214 = vmatpush.msra.mxu0 %v833
    %1215 = vmatpush.msra.mxu0 %v827
    %1216 = vmatpush.msra.mxu0 %v821
    %1217 = vmatpush.msra.mxu0 %v815
    %1218 = vmatpush.msra.mxu0 %v809
    %1219 = vmatpush.msra.mxu0 %v803
    %1220 = vmatpush.msra.mxu0 %v797
    %1221 = vmatmul.f32.gmra.mxu0 %v843
    %v1222 = vpop.f32.mrf.mxu0
    %v1223 = vadd.f32 %v1185, %v1222
    %1224 = vmatmul.f32.gmra.mxu0 %v846
    %v1225 = vpop.f32.mrf.mxu0
    %v1226 = vadd.f32 %v1188, %v1225
    %1227 = vmatmul.f32.gmra.mxu0 %v849
    %v1228 = vpop.f32.mrf.mxu0
    %v1229 = vadd.f32 %v1191, %v1228
    %1230 = vmatmul.f32.gmra.mxu0 %v852
    %v1231 = vpop.f32.mrf.mxu0
    %v1232 = vadd.f32 %v1194, %v1231
    %1233 = vmatmul.f32.gmra.mxu0 %v855
    %v1234 = vpop.f32.mrf.mxu0
    %v1235 = vadd.f32 %v1197, %v1234
    %1236 = vmatmul.f32.gmra.mxu0 %v858
    %v1237 = vpop.f32.mrf.mxu0
    %v1238 = vadd.f32 %v1200, %v1237
    %1239 = vmatmul.f32.gmra.mxu0 %v861
    %v1240 = vpop.f32.mrf.mxu0
    %v1241 = vadd.f32 %v1203, %v1240
    %1242 = vdwg.mxu0
    %1243 = vmatpush.msra.mxu0 %v792
    %1244 = vmatpush.msra.mxu0 %v786
    %1245 = vmatpush.msra.mxu0 %v780
    %1246 = vmatpush.msra.mxu0 %v774
    %1247 = vmatpush.msra.mxu0 %v768
    %1248 = vmatpush.msra.mxu0 %v762
    %1249 = vmatpush.msra.mxu0 %v756
    %1250 = vmatpush.msra.mxu0 %v750
    %1251 = vmatpush.msra.mxu0 %v744
    %1252 = vmatpush.msra.mxu0 %v738
    %1253 = vmatpush.msra.mxu0 %v732
    %1254 = vmatpush.msra.mxu0 %v726
    %1255 = vmatpush.msra.mxu0 %v720
    %1256 = vmatpush.msra.mxu0 %v714
    %1257 = vmatpush.msra.mxu0 %v708
    %1258 = vmatpush.msra.mxu0 %v702
    %1259 = vmatmul.f32.gmra.mxu0 %v638
    %v1260 = vpop.f32.mrf.mxu0
    %v1261 = vadd.f32 0.0, %v1260
    %1262 = vmatmul.f32.gmra.mxu0 %v641
    %v1263 = vpop.f32.mrf.mxu0
    %v1264 = vadd.f32 0.0, %v1263
    %1265 = vmatmul.f32.gmra.mxu0 %v644
    %v1266 = vpop.f32.mrf.mxu0
    %v1267 = vadd.f32 0.0, %v1266
    %1268 = vmatmul.f32.gmra.mxu0 %v647
    %v1269 = vpop.f32.mrf.mxu0
    %v1270 = vadd.f32 0.0, %v1269
    %1271 = vmatmul.f32.gmra.mxu0 %v650
    %v1272 = vpop.f32.mrf.mxu0
    %v1273 = vadd.f32 0.0, %v1272
    %1274 = vmatmul.f32.gmra.mxu0 %v653
    %v1275 = vpop.f32.mrf.mxu0
    %v1276 = vadd.f32 0.0, %v1275
    %1277 = vmatmul.f32.gmra.mxu0 %v656
    %v1278 = vpop.f32.mrf.mxu0
    %v1279 = vadd.f32 0.0, %v1278
    %1280 = vdwg.mxu0
    %1281 = vmatpush.msra.mxu0 0.0
    %1282 = vmatpush.msra.mxu0 0.0
    %1283 = vmatpush.msra.mxu0 0.0
    %1284 = vmatpush.msra.mxu0 0.0
    %1285 = vmatpush.msra.mxu0 0.0
    %1286 = vmatpush.msra.mxu0 0.0
    %1287 = vmatpush.msra.mxu0 0.0
    %1288 = vmatpush.msra.mxu0 0.0
    %1289 = vmatpush.msra.mxu0 %v840
    %1290 = vmatpush.msra.mxu0 %v834
    %1291 = vmatpush.msra.mxu0 %v828
    %1292 = vmatpush.msra.mxu0 %v822
    %1293 = vmatpush.msra.mxu0 %v816
    %1294 = vmatpush.msra.mxu0 %v810
    %1295 = vmatpush.msra.mxu0 %v804
    %1296 = vmatpush.msra.mxu0 %v798
    %1297 = vmatmul.f32.gmra.mxu0 %v843
    %v1298 = vpop.f32.mrf.mxu0
    %v1299 = vadd.f32 %v1261, %v1298
    %1300 = vmatmul.f32.gmra.mxu0 %v846
    %v1301 = vpop.f32.mrf.mxu0
    %v1302 = vadd.f32 %v1264, %v1301
    %1303 = vmatmul.f32.gmra.mxu0 %v849
    %v1304 = vpop.f32.mrf.mxu0
    %v1305 = vadd.f32 %v1267, %v1304
    %1306 = vmatmul.f32.gmra.mxu0 %v852
    %v1307 = vpop.f32.mrf.mxu0
    %v1308 = vadd.f32 %v1270, %v1307
    %1309 = vmatmul.f32.gmra.mxu0 %v855
    %v1310 = vpop.f32.mrf.mxu0
    %v1311 = vadd.f32 %v1273, %v1310
    %1312 = vmatmul.f32.gmra.mxu0 %v858
    %v1313 = vpop.f32.mrf.mxu0
    %v1314 = vadd.f32 %v1276, %v1313
    %1315 = vmatmul.f32.gmra.mxu0 %v861
    %v1316 = vpop.f32.mrf.mxu0
    %v1317 = vadd.f32 %v1279, %v1316
    %1318 = vdwg.mxu0
    %v1320 = vsel %vm841, %v427, 0
    %v1323 = vsel %vm841, %v430, 0
    %v1326 = vsel %vm841, %v433, 0
    %v1329 = vsel %vm841, %v436, 0
    %v1332 = vsel %vm841, %v439, 0
    %v1335 = vsel %vm841, %v442, 0
    %v1338 = vsel %vm841, %v445, 0
    %1340 = vmatpush.msra.mxu0 %v537
    %1341 = vmatpush.msra.mxu0 %v531
    %1342 = vmatpush.msra.mxu0 %v525
    %1343 = vmatpush.msra.mxu0 %v519
    %1344 = vmatpush.msra.mxu0 %v513
    %1345 = vmatpush.msra.mxu0 %v507
    %1346 = vmatpush.msra.mxu0 %v501
    %1347 = vmatpush.msra.mxu0 %v495
    %1348 = vmatpush.msra.mxu0 %v489
    %1349 = vmatpush.msra.mxu0 %v483
    %1350 = vmatpush.msra.mxu0 %v477
    %1351 = vmatpush.msra.mxu0 %v471
    %1352 = vmatpush.msra.mxu0 %v465
    %1353 = vmatpush.msra.mxu0 %v459
    %1354 = vmatpush.msra.mxu0 %v453
    %1355 = vmatpush.msra.mxu0 %v447
    %1356 = vmatmul.f32.gmra.mxu0 %v389
    %v1357 = vpop.f32.mrf.mxu0
    %v1358 = vadd.f32 %v919, %v1357
    %1359 = vmatmul.f32.gmra.mxu0 %v392
    %v1360 = vpop.f32.mrf.mxu0
    %v1361 = vadd.f32 %v922, %v1360
    %1362 = vmatmul.f32.gmra.mxu0 %v395
    %v1363 = vpop.f32.mrf.mxu0
    %v1364 = vadd.f32 %v925, %v1363
    %1365 = vmatmul.f32.gmra.mxu0 %v398
    %v1366 = vpop.f32.mrf.mxu0
    %v1367 = vadd.f32 %v928, %v1366
    %1368 = vmatmul.f32.gmra.mxu0 %v401
    %v1369 = vpop.f32.mrf.mxu0
    %v1370 = vadd.f32 %v931, %v1369
    %1371 = vmatmul.f32.gmra.mxu0 %v404
    %v1372 = vpop.f32.mrf.mxu0
    %v1373 = vadd.f32 %v934, %v1372
    %1374 = vmatmul.f32.gmra.mxu0 %v407
    %v1375 = vpop.f32.mrf.mxu0
    %v1376 = vadd.f32 %v937, %v1375
    %1377 = vdwg.mxu0
    %1378 = vmatpush.msra.mxu0 0.0
    %1379 = vmatpush.msra.mxu0 0.0
    %1380 = vmatpush.msra.mxu0 0.0
    %1381 = vmatpush.msra.mxu0 0.0
    %1382 = vmatpush.msra.mxu0 0.0
    %1383 = vmatpush.msra.mxu0 0.0
    %1384 = vmatpush.msra.mxu0 0.0
    %1385 = vmatpush.msra.mxu0 0.0
    %1386 = vmatpush.msra.mxu0 %v585
    %1387 = vmatpush.msra.mxu0 %v579
    %1388 = vmatpush.msra.mxu0 %v573
    %1389 = vmatpush.msra.mxu0 %v567
    %1390 = vmatpush.msra.mxu0 %v561
    %1391 = vmatpush.msra.mxu0 %v555
    %1392 = vmatpush.msra.mxu0 %v549
    %1393 = vmatpush.msra.mxu0 %v543
    %1394 = vmatmul.f32.gmra.mxu0 %v1320
    %v1395 = vpop.f32.mrf.mxu0
    %v1396 = vadd.f32 %v1358, %v1395
    %1397 = vmatmul.f32.gmra.mxu0 %v1323
    %v1398 = vpop.f32.mrf.mxu0
    %v1399 = vadd.f32 %v1361, %v1398
    %1400 = vmatmul.f32.gmra.mxu0 %v1326
    %v1401 = vpop.f32.mrf.mxu0
    %v1402 = vadd.f32 %v1364, %v1401
    %1403 = vmatmul.f32.gmra.mxu0 %v1329
    %v1404 = vpop.f32.mrf.mxu0
    %v1405 = vadd.f32 %v1367, %v1404
    %1406 = vmatmul.f32.gmra.mxu0 %v1332
    %v1407 = vpop.f32.mrf.mxu0
    %v1408 = vadd.f32 %v1370, %v1407
    %1409 = vmatmul.f32.gmra.mxu0 %v1335
    %v1410 = vpop.f32.mrf.mxu0
    %v1411 = vadd.f32 %v1373, %v1410
    %1412 = vmatmul.f32.gmra.mxu0 %v1338
    %v1413 = vpop.f32.mrf.mxu0
    %v1414 = vadd.f32 %v1376, %v1413
    %1415 = vdwg.mxu0
    %1416 = vmatpush.msra.mxu0 %v538
    %1417 = vmatpush.msra.mxu0 %v532
    %1418 = vmatpush.msra.mxu0 %v526
    %1419 = vmatpush.msra.mxu0 %v520
    %1420 = vmatpush.msra.mxu0 %v514
    %1421 = vmatpush.msra.mxu0 %v508
    %1422 = vmatpush.msra.mxu0 %v502
    %1423 = vmatpush.msra.mxu0 %v496
    %1424 = vmatpush.msra.mxu0 %v490
    %1425 = vmatpush.msra.mxu0 %v484
    %1426 = vmatpush.msra.mxu0 %v478
    %1427 = vmatpush.msra.mxu0 %v472
    %1428 = vmatpush.msra.mxu0 %v466
    %1429 = vmatpush.msra.mxu0 %v460
    %1430 = vmatpush.msra.mxu0 %v454
    %1431 = vmatpush.msra.mxu0 %v448
    %1432 = vmatmul.f32.gmra.mxu0 %v389
    %v1433 = vpop.f32.mrf.mxu0
    %v1434 = vadd.f32 %v995, %v1433
    %1435 = vmatmul.f32.gmra.mxu0 %v392
    %v1436 = vpop.f32.mrf.mxu0
    %v1437 = vadd.f32 %v998, %v1436
    %1438 = vmatmul.f32.gmra.mxu0 %v395
    %v1439 = vpop.f32.mrf.mxu0
    %v1440 = vadd.f32 %v1001, %v1439
    %1441 = vmatmul.f32.gmra.mxu0 %v398
    %v1442 = vpop.f32.mrf.mxu0
    %v1443 = vadd.f32 %v1004, %v1442
    %1444 = vmatmul.f32.gmra.mxu0 %v401
    %v1445 = vpop.f32.mrf.mxu0
    %v1446 = vadd.f32 %v1007, %v1445
    %1447 = vmatmul.f32.gmra.mxu0 %v404
    %v1448 = vpop.f32.mrf.mxu0
    %v1449 = vadd.f32 %v1010, %v1448
    %1450 = vmatmul.f32.gmra.mxu0 %v407
    %v1451 = vpop.f32.mrf.mxu0
    %v1452 = vadd.f32 %v1013, %v1451
    %1453 = vdwg.mxu0
    %1454 = vmatpush.msra.mxu0 0.0
    %1455 = vmatpush.msra.mxu0 0.0
    %1456 = vmatpush.msra.mxu0 0.0
    %1457 = vmatpush.msra.mxu0 0.0
    %1458 = vmatpush.msra.mxu0 0.0
    %1459 = vmatpush.msra.mxu0 0.0
    %1460 = vmatpush.msra.mxu0 0.0
    %1461 = vmatpush.msra.mxu0 0.0
    %1462 = vmatpush.msra.mxu0 %v586
    %1463 = vmatpush.msra.mxu0 %v580
    %1464 = vmatpush.msra.mxu0 %v574
    %1465 = vmatpush.msra.mxu0 %v568
    %1466 = vmatpush.msra.mxu0 %v562
    %1467 = vmatpush.msra.mxu0 %v556
    %1468 = vmatpush.msra.mxu0 %v550
    %1469 = vmatpush.msra.mxu0 %v544
    %1470 = vmatmul.f32.gmra.mxu0 %v1320
    %v1471 = vpop.f32.mrf.mxu0
    %v1472 = vadd.f32 %v1434, %v1471
    %1473 = vmatmul.f32.gmra.mxu0 %v1323
    %v1474 = vpop.f32.mrf.mxu0
    %v1475 = vadd.f32 %v1437, %v1474
    %1476 = vmatmul.f32.gmra.mxu0 %v1326
    %v1477 = vpop.f32.mrf.mxu0
    %v1478 = vadd.f32 %v1440, %v1477
    %1479 = vmatmul.f32.gmra.mxu0 %v1329
    %v1480 = vpop.f32.mrf.mxu0
    %v1481 = vadd.f32 %v1443, %v1480
    %1482 = vmatmul.f32.gmra.mxu0 %v1332
    %v1483 = vpop.f32.mrf.mxu0
    %v1484 = vadd.f32 %v1446, %v1483
    %1485 = vmatmul.f32.gmra.mxu0 %v1335
    %v1486 = vpop.f32.mrf.mxu0
    %v1487 = vadd.f32 %v1449, %v1486
    %1488 = vmatmul.f32.gmra.mxu0 %v1338
    %v1489 = vpop.f32.mrf.mxu0
    %v1490 = vadd.f32 %v1452, %v1489
    %1491 = vdwg.mxu0
    %1492 = vmatpush.msra.mxu0 %v539
    %1493 = vmatpush.msra.mxu0 %v533
    %1494 = vmatpush.msra.mxu0 %v527
    %1495 = vmatpush.msra.mxu0 %v521
    %1496 = vmatpush.msra.mxu0 %v515
    %1497 = vmatpush.msra.mxu0 %v509
    %1498 = vmatpush.msra.mxu0 %v503
    %1499 = vmatpush.msra.mxu0 %v497
    %1500 = vmatpush.msra.mxu0 %v491
    %1501 = vmatpush.msra.mxu0 %v485
    %1502 = vmatpush.msra.mxu0 %v479
    %1503 = vmatpush.msra.mxu0 %v473
    %1504 = vmatpush.msra.mxu0 %v467
    %1505 = vmatpush.msra.mxu0 %v461
    %1506 = vmatpush.msra.mxu0 %v455
    %1507 = vmatpush.msra.mxu0 %v449
    %1508 = vmatmul.f32.gmra.mxu0 %v389
    %v1509 = vpop.f32.mrf.mxu0
    %v1510 = vadd.f32 %v1071, %v1509
    %1511 = vmatmul.f32.gmra.mxu0 %v392
    %v1512 = vpop.f32.mrf.mxu0
    %v1513 = vadd.f32 %v1074, %v1512
    %1514 = vmatmul.f32.gmra.mxu0 %v395
    %v1515 = vpop.f32.mrf.mxu0
    %v1516 = vadd.f32 %v1077, %v1515
    %1517 = vmatmul.f32.gmra.mxu0 %v398
    %v1518 = vpop.f32.mrf.mxu0
    %v1519 = vadd.f32 %v1080, %v1518
    %1520 = vmatmul.f32.gmra.mxu0 %v401
    %v1521 = vpop.f32.mrf.mxu0
    %v1522 = vadd.f32 %v1083, %v1521
    %1523 = vmatmul.f32.gmra.mxu0 %v404
    %v1524 = vpop.f32.mrf.mxu0
    %v1525 = vadd.f32 %v1086, %v1524
    %1526 = vmatmul.f32.gmra.mxu0 %v407
    %v1527 = vpop.f32.mrf.mxu0
    %v1528 = vadd.f32 %v1089, %v1527
    %1529 = vdwg.mxu0
    %1530 = vmatpush.msra.mxu0 0.0
    %1531 = vmatpush.msra.mxu0 0.0
    %1532 = vmatpush.msra.mxu0 0.0
    %1533 = vmatpush.msra.mxu0 0.0
    %1534 = vmatpush.msra.mxu0 0.0
    %1535 = vmatpush.msra.mxu0 0.0
    %1536 = vmatpush.msra.mxu0 0.0
    %1537 = vmatpush.msra.mxu0 0.0
    %1538 = vmatpush.msra.mxu0 %v587
    %1539 = vmatpush.msra.mxu0 %v581
    %1540 = vmatpush.msra.mxu0 %v575
    %1541 = vmatpush.msra.mxu0 %v569
    %1542 = vmatpush.msra.mxu0 %v563
    %1543 = vmatpush.msra.mxu0 %v557
    %1544 = vmatpush.msra.mxu0 %v551
    %1545 = vmatpush.msra.mxu0 %v545
    %1546 = vmatmul.f32.gmra.mxu0 %v1320
    %v1547 = vpop.f32.mrf.mxu0
    %v1548 = vadd.f32 %v1510, %v1547
    %1549 = vmatmul.f32.gmra.mxu0 %v1323
    %v1550 = vpop.f32.mrf.mxu0
    %v1551 = vadd.f32 %v1513, %v1550
    %1552 = vmatmul.f32.gmra.mxu0 %v1326
    %v1553 = vpop.f32.mrf.mxu0
    %v1554 = vadd.f32 %v1516, %v1553
    %1555 = vmatmul.f32.gmra.mxu0 %v1329
    %v1556 = vpop.f32.mrf.mxu0
    %v1557 = vadd.f32 %v1519, %v1556
    %1558 = vmatmul.f32.gmra.mxu0 %v1332
    %v1559 = vpop.f32.mrf.mxu0
    %v1560 = vadd.f32 %v1522, %v1559
    %1561 = vmatmul.f32.gmra.mxu0 %v1335
    %v1562 = vpop.f32.mrf.mxu0
    %v1563 = vadd.f32 %v1525, %v1562
    %1564 = vmatmul.f32.gmra.mxu0 %v1338
    %v1565 = vpop.f32.mrf.mxu0
    %v1566 = vadd.f32 %v1528, %v1565
    %1567 = vdwg.mxu0
    %1568 = vmatpush.msra.mxu0 %v540
    %1569 = vmatpush.msra.mxu0 %v534
    %1570 = vmatpush.msra.mxu0 %v528
    %1571 = vmatpush.msra.mxu0 %v522
    %1572 = vmatpush.msra.mxu0 %v516
    %1573 = vmatpush.msra.mxu0 %v510
    %1574 = vmatpush.msra.mxu0 %v504
    %1575 = vmatpush.msra.mxu0 %v498
    %1576 = vmatpush.msra.mxu0 %v492
    %1577 = vmatpush.msra.mxu0 %v486
    %1578 = vmatpush.msra.mxu0 %v480
    %1579 = vmatpush.msra.mxu0 %v474
    %1580 = vmatpush.msra.mxu0 %v468
    %1581 = vmatpush.msra.mxu0 %v462
    %1582 = vmatpush.msra.mxu0 %v456
    %1583 = vmatpush.msra.mxu0 %v450
    %1584 = vmatmul.f32.gmra.mxu0 %v389
    %v1585 = vpop.f32.mrf.mxu0
    %v1586 = vadd.f32 %v1147, %v1585
    %1587 = vmatmul.f32.gmra.mxu0 %v392
    %v1588 = vpop.f32.mrf.mxu0
    %v1589 = vadd.f32 %v1150, %v1588
    %1590 = vmatmul.f32.gmra.mxu0 %v395
    %v1591 = vpop.f32.mrf.mxu0
    %v1592 = vadd.f32 %v1153, %v1591
    %1593 = vmatmul.f32.gmra.mxu0 %v398
    %v1594 = vpop.f32.mrf.mxu0
    %v1595 = vadd.f32 %v1156, %v1594
    %1596 = vmatmul.f32.gmra.mxu0 %v401
    %v1597 = vpop.f32.mrf.mxu0
    %v1598 = vadd.f32 %v1159, %v1597
    %1599 = vmatmul.f32.gmra.mxu0 %v404
    %v1600 = vpop.f32.mrf.mxu0
    %v1601 = vadd.f32 %v1162, %v1600
    %1602 = vmatmul.f32.gmra.mxu0 %v407
    %v1603 = vpop.f32.mrf.mxu0
    %v1604 = vadd.f32 %v1165, %v1603
    %1605 = vdwg.mxu0
    %1606 = vmatpush.msra.mxu0 0.0
    %1607 = vmatpush.msra.mxu0 0.0
    %1608 = vmatpush.msra.mxu0 0.0
    %1609 = vmatpush.msra.mxu0 0.0
    %1610 = vmatpush.msra.mxu0 0.0
    %1611 = vmatpush.msra.mxu0 0.0
    %1612 = vmatpush.msra.mxu0 0.0
    %1613 = vmatpush.msra.mxu0 0.0
    %1614 = vmatpush.msra.mxu0 %v588
    %1615 = vmatpush.msra.mxu0 %v582
    %1616 = vmatpush.msra.mxu0 %v576
    %1617 = vmatpush.msra.mxu0 %v570
    %1618 = vmatpush.msra.mxu0 %v564
    %1619 = vmatpush.msra.mxu0 %v558
    %1620 = vmatpush.msra.mxu0 %v552
    %1621 = vmatpush.msra.mxu0 %v546
    %1622 = vmatmul.f32.gmra.mxu0 %v1320
    %v1623 = vpop.f32.mrf.mxu0
    %v1624 = vadd.f32 %v1586, %v1623
    %1625 = vmatmul.f32.gmra.mxu0 %v1323
    %v1626 = vpop.f32.mrf.mxu0
    %v1627 = vadd.f32 %v1589, %v1626
    %1628 = vmatmul.f32.gmra.mxu0 %v1326
    %v1629 = vpop.f32.mrf.mxu0
    %v1630 = vadd.f32 %v1592, %v1629
    %1631 = vmatmul.f32.gmra.mxu0 %v1329
    %v1632 = vpop.f32.mrf.mxu0
    %v1633 = vadd.f32 %v1595, %v1632
    %1634 = vmatmul.f32.gmra.mxu0 %v1332
    %v1635 = vpop.f32.mrf.mxu0
    %v1636 = vadd.f32 %v1598, %v1635
    %1637 = vmatmul.f32.gmra.mxu0 %v1335
    %v1638 = vpop.f32.mrf.mxu0
    %v1639 = vadd.f32 %v1601, %v1638
    %1640 = vmatmul.f32.gmra.mxu0 %v1338
    %v1641 = vpop.f32.mrf.mxu0
    %v1642 = vadd.f32 %v1604, %v1641
    %1643 = vdwg.mxu0
    %1644 = vmatpush.msra.mxu0 %v541
    %1645 = vmatpush.msra.mxu0 %v535
    %1646 = vmatpush.msra.mxu0 %v529
    %1647 = vmatpush.msra.mxu0 %v523
    %1648 = vmatpush.msra.mxu0 %v517
    %1649 = vmatpush.msra.mxu0 %v511
    %1650 = vmatpush.msra.mxu0 %v505
    %1651 = vmatpush.msra.mxu0 %v499
    %1652 = vmatpush.msra.mxu0 %v493
    %1653 = vmatpush.msra.mxu0 %v487
    %1654 = vmatpush.msra.mxu0 %v481
    %1655 = vmatpush.msra.mxu0 %v475
    %1656 = vmatpush.msra.mxu0 %v469
    %1657 = vmatpush.msra.mxu0 %v463
    %1658 = vmatpush.msra.mxu0 %v457
    %1659 = vmatpush.msra.mxu0 %v451
    %1660 = vmatmul.f32.gmra.mxu0 %v389
    %v1661 = vpop.f32.mrf.mxu0
    %v1662 = vadd.f32 %v1223, %v1661
    %1663 = vmatmul.f32.gmra.mxu0 %v392
    %v1664 = vpop.f32.mrf.mxu0
    %v1665 = vadd.f32 %v1226, %v1664
    %1666 = vmatmul.f32.gmra.mxu0 %v395
    %v1667 = vpop.f32.mrf.mxu0
    %v1668 = vadd.f32 %v1229, %v1667
    %1669 = vmatmul.f32.gmra.mxu0 %v398
    %v1670 = vpop.f32.mrf.mxu0
    %v1671 = vadd.f32 %v1232, %v1670
    %1672 = vmatmul.f32.gmra.mxu0 %v401
    %v1673 = vpop.f32.mrf.mxu0
    %v1674 = vadd.f32 %v1235, %v1673
    %1675 = vmatmul.f32.gmra.mxu0 %v404
    %v1676 = vpop.f32.mrf.mxu0
    %v1677 = vadd.f32 %v1238, %v1676
    %1678 = vmatmul.f32.gmra.mxu0 %v407
    %v1679 = vpop.f32.mrf.mxu0
    %v1680 = vadd.f32 %v1241, %v1679
    %1681 = vdwg.mxu0
    %1682 = vmatpush.msra.mxu0 0.0
    %1683 = vmatpush.msra.mxu0 0.0
    %1684 = vmatpush.msra.mxu0 0.0
    %1685 = vmatpush.msra.mxu0 0.0
    %1686 = vmatpush.msra.mxu0 0.0
    %1687 = vmatpush.msra.mxu0 0.0
    %1688 = vmatpush.msra.mxu0 0.0
    %1689 = vmatpush.msra.mxu0 0.0
    %1690 = vmatpush.msra.mxu0 %v589
    %1691 = vmatpush.msra.mxu0 %v583
    %1692 = vmatpush.msra.mxu0 %v577
    %1693 = vmatpush.msra.mxu0 %v571
    %1694 = vmatpush.msra.mxu0 %v565
    %1695 = vmatpush.msra.mxu0 %v559
    %1696 = vmatpush.msra.mxu0 %v553
    %1697 = vmatpush.msra.mxu0 %v547
    %1698 = vmatmul.f32.gmra.mxu0 %v1320
    %v1699 = vpop.f32.mrf.mxu0
    %v1700 = vadd.f32 %v1662, %v1699
    %1701 = vmatmul.f32.gmra.mxu0 %v1323
    %v1702 = vpop.f32.mrf.mxu0
    %v1703 = vadd.f32 %v1665, %v1702
    %1704 = vmatmul.f32.gmra.mxu0 %v1326
    %v1705 = vpop.f32.mrf.mxu0
    %v1706 = vadd.f32 %v1668, %v1705
    %1707 = vmatmul.f32.gmra.mxu0 %v1329
    %v1708 = vpop.f32.mrf.mxu0
    %v1709 = vadd.f32 %v1671, %v1708
    %1710 = vmatmul.f32.gmra.mxu0 %v1332
    %v1711 = vpop.f32.mrf.mxu0
    %v1712 = vadd.f32 %v1674, %v1711
    %1713 = vmatmul.f32.gmra.mxu0 %v1335
    %v1714 = vpop.f32.mrf.mxu0
    %v1715 = vadd.f32 %v1677, %v1714
    %1716 = vmatmul.f32.gmra.mxu0 %v1338
    %v1717 = vpop.f32.mrf.mxu0
    %v1718 = vadd.f32 %v1680, %v1717
    %1719 = vdwg.mxu0
    %1720 = vmatpush.msra.mxu0 %v542
    %1721 = vmatpush.msra.mxu0 %v536
    %1722 = vmatpush.msra.mxu0 %v530
    %1723 = vmatpush.msra.mxu0 %v524
    %1724 = vmatpush.msra.mxu0 %v518
    %1725 = vmatpush.msra.mxu0 %v512
    %1726 = vmatpush.msra.mxu0 %v506
    %1727 = vmatpush.msra.mxu0 %v500
    %1728 = vmatpush.msra.mxu0 %v494
    %1729 = vmatpush.msra.mxu0 %v488
    %1730 = vmatpush.msra.mxu0 %v482
    %1731 = vmatpush.msra.mxu0 %v476
    %1732 = vmatpush.msra.mxu0 %v470
    %1733 = vmatpush.msra.mxu0 %v464
    %1734 = vmatpush.msra.mxu0 %v458
    %1735 = vmatpush.msra.mxu0 %v452
    %1736 = vmatmul.f32.gmra.mxu0 %v389
    %v1737 = vpop.f32.mrf.mxu0
    %v1738 = vadd.f32 %v1299, %v1737
    %1739 = vmatmul.f32.gmra.mxu0 %v392
    %v1740 = vpop.f32.mrf.mxu0
    %v1741 = vadd.f32 %v1302, %v1740
    %1742 = vmatmul.f32.gmra.mxu0 %v395
    %v1743 = vpop.f32.mrf.mxu0
    %v1744 = vadd.f32 %v1305, %v1743
    %1745 = vmatmul.f32.gmra.mxu0 %v398
    %v1746 = vpop.f32.mrf.mxu0
    %v1747 = vadd.f32 %v1308, %v1746
    %1748 = vmatmul.f32.gmra.mxu0 %v401
    %v1749 = vpop.f32.mrf.mxu0
    %v1750 = vadd.f32 %v1311, %v1749
    %1751 = vmatmul.f32.gmra.mxu0 %v404
    %v1752 = vpop.f32.mrf.mxu0
    %v1753 = vadd.f32 %v1314, %v1752
    %1754 = vmatmul.f32.gmra.mxu0 %v407
    %v1755 = vpop.f32.mrf.mxu0
    %v1756 = vadd.f32 %v1317, %v1755
    %1757 = vdwg.mxu0
    %1758 = vmatpush.msra.mxu0 0.0
    %1759 = vmatpush.msra.mxu0 0.0
    %1760 = vmatpush.msra.mxu0 0.0
    %1761 = vmatpush.msra.mxu0 0.0
    %1762 = vmatpush.msra.mxu0 0.0
    %1763 = vmatpush.msra.mxu0 0.0
    %1764 = vmatpush.msra.mxu0 0.0
    %1765 = vmatpush.msra.mxu0 0.0
    %1766 = vmatpush.msra.mxu0 %v590
    %1767 = vmatpush.msra.mxu0 %v584
    %1768 = vmatpush.msra.mxu0 %v578
    %1769 = vmatpush.msra.mxu0 %v572
    %1770 = vmatpush.msra.mxu0 %v566
    %1771 = vmatpush.msra.mxu0 %v560
    %1772 = vmatpush.msra.mxu0 %v554
    %1773 = vmatpush.msra.mxu0 %v548
    %1774 = vmatmul.f32.gmra.mxu0 %v1320
    %v1775 = vpop.f32.mrf.mxu0
    %v1776 = vadd.f32 %v1738, %v1775
    %1777 = vmatmul.f32.gmra.mxu0 %v1323
    %v1778 = vpop.f32.mrf.mxu0
    %v1779 = vadd.f32 %v1741, %v1778
    %1780 = vmatmul.f32.gmra.mxu0 %v1326
    %v1781 = vpop.f32.mrf.mxu0
    %v1782 = vadd.f32 %v1744, %v1781
    %1783 = vmatmul.f32.gmra.mxu0 %v1329
    %v1784 = vpop.f32.mrf.mxu0
    %v1785 = vadd.f32 %v1747, %v1784
    %1786 = vmatmul.f32.gmra.mxu0 %v1332
    %v1787 = vpop.f32.mrf.mxu0
    %v1788 = vadd.f32 %v1750, %v1787
    %1789 = vmatmul.f32.gmra.mxu0 %v1335
    %v1790 = vpop.f32.mrf.mxu0
    %v1791 = vadd.f32 %v1753, %v1790
    %1792 = vmatmul.f32.gmra.mxu0 %v1338
    %v1793 = vpop.f32.mrf.mxu0
    %v1794 = vadd.f32 %v1756, %v1793
    %1795 = vdwg.mxu0
    %s1796 = scalar_lea.vmem [#allocation8], 112
    %v1797 = vld [vmem:[%s1796] sm:$0xff]
    %v1798 = vld [vmem:[%s1796 + $0x8] sm:$0xff]
    %v1799 = vld [vmem:[%s1796 + $0x10] sm:$0xff]
    %v1800 = vld [vmem:[%s1796 + $0x18] sm:$0xff]
    %v1801 = vld [vmem:[%s1796 + $0x20] sm:$0xff]
    %v1802 = vld [vmem:[%s1796 + $0x28] sm:$0xff]
    %v1803 = vld [vmem:[%s1796 + $0x30] sm:$0x3]
    %v1805 = vsel %vm342, %v1797, 0
    %v1808 = vsel %vm342, %v1798, 0
    %v1811 = vsel %vm342, %v1799, 0
    %v1814 = vsel %vm342, %v1800, 0
    %v1817 = vsel %vm342, %v1801, 0
    %v1820 = vsel %vm342, %v1802, 0
    %v1823 = vsel %vm342, %v1803, 0
    %1825 = vmatpush.msra.mxu0 0.0
    %1826 = vmatpush.msra.mxu0 0.0
    %1827 = vmatpush.msra.mxu0 0.0
    %1828 = vmatpush.msra.mxu0 %v366
    %1829 = vmatpush.msra.mxu0 %v331
    %1830 = vmatpush.msra.mxu0 %v329
    %1831 = vmatpush.msra.mxu0 %v327
    %1832 = vmatpush.msra.mxu0 %v325
    %1833 = vmatpush.msra.mxu0 %v323
    %1834 = vmatpush.msra.mxu0 %v321
    %1835 = vmatpush.msra.mxu0 %v319
    %1836 = vmatpush.msra.mxu0 %v317
    %1837 = vmatpush.msra.mxu0 %v315
    %1838 = vmatpush.msra.mxu0 %v313
    %1839 = vmatpush.msra.mxu0 %v311
    %1840 = vmatpush.msra.mxu0 %v309
    %1841 = vmatmul.f32.gmra.mxu0 %v1805
    %v1842 = vpop.f32.mrf.mxu0
    %v1843 = vadd.f32 0.0, %v1842
    %1844 = vmatmul.f32.gmra.mxu0 %v1808
    %v1845 = vpop.f32.mrf.mxu0
    %v1846 = vadd.f32 0.0, %v1845
    %1847 = vmatmul.f32.gmra.mxu0 %v1811
    %v1848 = vpop.f32.mrf.mxu0
    %v1849 = vadd.f32 0.0, %v1848
    %1850 = vmatmul.f32.gmra.mxu0 %v1814
    %v1851 = vpop.f32.mrf.mxu0
    %v1852 = vadd.f32 0.0, %v1851
    %1853 = vmatmul.f32.gmra.mxu0 %v1817
    %v1854 = vpop.f32.mrf.mxu0
    %v1855 = vadd.f32 0.0, %v1854
    %1856 = vmatmul.f32.gmra.mxu0 %v1820
    %v1857 = vpop.f32.mrf.mxu0
    %v1858 = vadd.f32 0.0, %v1857
    %1859 = vmatmul.f32.gmra.mxu0 %v1823
    %v1860 = vpop.f32.mrf.mxu0
    %v1861 = vadd.f32 0.0, %v1860
    %1862 = vdwg.mxu0
    %1863 = vmatpush.msra.mxu0 0.0
    %1864 = vmatpush.msra.mxu0 0.0
    %1865 = vmatpush.msra.mxu0 0.0
    %1866 = vmatpush.msra.mxu0 %v369
    %1867 = vmatpush.msra.mxu0 %v332
    %1868 = vmatpush.msra.mxu0 %v330
    %1869 = vmatpush.msra.mxu0 %v328
    %1870 = vmatpush.msra.mxu0 %v326
    %1871 = vmatpush.msra.mxu0 %v324
    %1872 = vmatpush.msra.mxu0 %v322
    %1873 = vmatpush.msra.mxu0 %v320
    %1874 = vmatpush.msra.mxu0 %v318
    %1875 = vmatpush.msra.mxu0 %v316
    %1876 = vmatpush.msra.mxu0 %v314
    %1877 = vmatpush.msra.mxu0 %v312
    %1878 = vmatpush.msra.mxu0 %v310
    %1879 = vmatmul.f32.gmra.mxu0 %v1805
    %v1880 = vpop.f32.mrf.mxu0
    %v1881 = vadd.f32 0.0, %v1880
    %1882 = vmatmul.f32.gmra.mxu0 %v1808
    %v1883 = vpop.f32.mrf.mxu0
    %v1884 = vadd.f32 0.0, %v1883
    %1885 = vmatmul.f32.gmra.mxu0 %v1811
    %v1886 = vpop.f32.mrf.mxu0
    %v1887 = vadd.f32 0.0, %v1886
    %1888 = vmatmul.f32.gmra.mxu0 %v1814
    %v1889 = vpop.f32.mrf.mxu0
    %v1890 = vadd.f32 0.0, %v1889
    %1891 = vmatmul.f32.gmra.mxu0 %v1817
    %v1892 = vpop.f32.mrf.mxu0
    %v1893 = vadd.f32 0.0, %v1892
    %1894 = vmatmul.f32.gmra.mxu0 %v1820
    %v1895 = vpop.f32.mrf.mxu0
    %v1896 = vadd.f32 0.0, %v1895
    %1897 = vmatmul.f32.gmra.mxu0 %v1823
    %v1898 = vpop.f32.mrf.mxu0
    %v1899 = vadd.f32 0.0, %v1898
    %1900 = vdwg.mxu0
    %s1901 = scalar_lea.vmem %s3, 2304
    %v1902 = vld [vmem:[%s1901] sm:$0xff]
    %v1903 = vld [vmem:[%s1901 + $0x8] sm:$0xff]
    %v1904 = vld [vmem:[%s1901 + $0x10] sm:$0xff]
    %v1905 = vld [vmem:[%s1901 + $0x18] sm:$0xff]
    %v1906 = vld [vmem:[%s1901 + $0x20] sm:$0xff]
    %v1907 = vld [vmem:[%s1901 + $0x28] sm:$0xff]
    %v1908 = vld [vmem:[%s1901 + $0x30] sm:$0xff]
    %v1909 = vld [vmem:[%s1901 + $0x38] sm:$0xff]
    %v1910 = vld [vmem:[%s1901 + $0x40] sm:$0xff]
    %v1911 = vld [vmem:[%s1901 + $0x48] sm:$0xff]
    %v1912 = vld [vmem:[%s1901 + $0x50] sm:$0xff]
    %v1913 = vld [vmem:[%s1901 + $0x58] sm:$0xff]
    %v1914 = vld [vmem:[%s1901 + $0x60] sm:$0xff]
    %v1915 = vld [vmem:[%s1901 + $0x68] sm:$0xff]
    %v1916 = vld [vmem:[%s1901 + $0x70] sm:$0xff]
    %v1917 = vld [vmem:[%s1901 + $0x78] sm:$0xff]
    %v1918 = vld [vmem:[%s1901 + $0x80] sm:$0xff]
    %v1919 = vld [vmem:[%s1901 + $0x88] sm:$0xff]
    %v1920 = vld [vmem:[%s1901 + $0x90] sm:$0xff]
    %v1921 = vld [vmem:[%s1901 + $0x98] sm:$0xff]
    %v1922 = vld [vmem:[%s1901 + $0xa0] sm:$0xff]
    %v1923 = vld [vmem:[%s1901 + $0xa8] sm:$0xff]
    %v1924 = vld [vmem:[%s1901 + $0xb0] sm:$0xff]
    %v1925 = vld [vmem:[%s1901 + $0xb8] sm:$0xff]
    %v1926 = vld [vmem:[%s1901 + $0xc0] sm:$0xff]
    %v1927 = vld [vmem:[%s1901 + $0xc8] sm:$0xff]
    %v1928 = vld [vmem:[%s1901 + $0xd0] sm:$0xff]
    %v1929 = vld [vmem:[%s1901 + $0xd8] sm:$0xff]
    %v1930 = vld [vmem:[%s1901 + $0xe0] sm:$0xff]
    %v1931 = vld [vmem:[%s1901 + $0xe8] sm:$0xff]
    %v1932 = vld [vmem:[%s1901 + $0xf0] sm:$0xff]
    %v1933 = vld [vmem:[%s1901 + $0xf8] sm:$0xff]
    %v1934 = vld [vmem:[%s1901 + $0x100] sm:$0xff]
    %v1935 = vld [vmem:[%s1901 + $0x108] sm:$0xff]
    %v1936 = vld [vmem:[%s1901 + $0x110] sm:$0xff]
    %v1937 = vld [vmem:[%s1901 + $0x118] sm:$0xff]
    %v1938 = vld [vmem:[%s1901 + $0x120] sm:$0xff]
    %v1939 = vld [vmem:[%s1901 + $0x128] sm:$0xff]
    %v1940 = vld [vmem:[%s1901 + $0x130] sm:$0xff]
    %v1941 = vld [vmem:[%s1901 + $0x138] sm:$0xff]
    %v1942 = vld [vmem:[%s1901 + $0x140] sm:$0xff]
    %v1943 = vld [vmem:[%s1901 + $0x148] sm:$0xff]
    %v1944 = vld [vmem:[%s1901 + $0x150] sm:$0xff]
    %v1945 = vld [vmem:[%s1901 + $0x158] sm:$0xff]
    %v1946 = vld [vmem:[%s1901 + $0x160] sm:$0xff]
    %v1947 = vld [vmem:[%s1901 + $0x168] sm:$0xff]
    %v1948 = vld [vmem:[%s1901 + $0x170] sm:$0xff]
    %v1949 = vld [vmem:[%s1901 + $0x178] sm:$0xff]
    %v1950 = vld [vmem:[%s1901 + $0x180] sm:$0xff]
    %v1951 = vld [vmem:[%s1901 + $0x188] sm:$0xff]
    %v1952 = vld [vmem:[%s1901 + $0x190] sm:$0xff]
    %v1953 = vld [vmem:[%s1901 + $0x198] sm:$0xff]
    %v1954 = vld [vmem:[%s1901 + $0x1a0] sm:$0xff]
    %v1955 = vld [vmem:[%s1901 + $0x1a8] sm:$0xff]
    %v1956 = vld [vmem:[%s1901 + $0x1b0] sm:$0xff]
    %v1957 = vld [vmem:[%s1901 + $0x1b8] sm:$0xff]
    %v1958 = vld [vmem:[%s1901 + $0x1c0] sm:$0xff]
    %v1959 = vld [vmem:[%s1901 + $0x1c8] sm:$0xff]
    %v1960 = vld [vmem:[%s1901 + $0x1d0] sm:$0xff]
    %v1961 = vld [vmem:[%s1901 + $0x1d8] sm:$0xff]
    %v1962 = vld [vmem:[%s1901 + $0x1e0] sm:$0xff]
    %v1963 = vld [vmem:[%s1901 + $0x1e8] sm:$0xff]
    %v1964 = vld [vmem:[%s1901 + $0x1f0] sm:$0xff]
    %v1965 = vld [vmem:[%s1901 + $0x1f8] sm:$0xff]
    %v1966 = vld [vmem:[%s1901 + $0x200] sm:$0xff]
    %v1967 = vld [vmem:[%s1901 + $0x208] sm:$0xff]
    %v1968 = vld [vmem:[%s1901 + $0x210] sm:$0xff]
    %v1969 = vld [vmem:[%s1901 + $0x218] sm:$0xff]
    %v1970 = vld [vmem:[%s1901 + $0x220] sm:$0xff]
    %v1971 = vld [vmem:[%s1901 + $0x228] sm:$0xff]
    %v1972 = vld [vmem:[%s1901 + $0x230] sm:$0xff]
    %v1973 = vld [vmem:[%s1901 + $0x238] sm:$0xff]
    %v1974 = vld [vmem:[%s1901 + $0x240] sm:$0xff]
    %v1975 = vld [vmem:[%s1901 + $0x248] sm:$0xff]
    %v1976 = vld [vmem:[%s1901 + $0x250] sm:$0xff]
    %v1977 = vld [vmem:[%s1901 + $0x258] sm:$0xff]
    %v1978 = vld [vmem:[%s1901 + $0x260] sm:$0xff]
    %v1979 = vld [vmem:[%s1901 + $0x268] sm:$0xff]
    %v1980 = vld [vmem:[%s1901 + $0x270] sm:$0xff]
    %v1981 = vld [vmem:[%s1901 + $0x278] sm:$0xff]
    %v1982 = vld [vmem:[%s1901 + $0x280] sm:$0xff]
    %v1983 = vld [vmem:[%s1901 + $0x288] sm:$0xff]
    %v1984 = vld [vmem:[%s1901 + $0x290] sm:$0xff]
    %v1985 = vld [vmem:[%s1901 + $0x298] sm:$0xff]
    %v1986 = vld [vmem:[%s1901 + $0x2a0] sm:$0xff]
    %v1987 = vld [vmem:[%s1901 + $0x2a8] sm:$0xff]
    %v1988 = vld [vmem:[%s1901 + $0x2b0] sm:$0xff]
    %v1989 = vld [vmem:[%s1901 + $0x2b8] sm:$0xff]
    %v1990 = vld [vmem:[%s1901 + $0x2c0] sm:$0xff]
    %v1991 = vld [vmem:[%s1901 + $0x2c8] sm:$0xff]
    %v1992 = vld [vmem:[%s1901 + $0x2d0] sm:$0xff]
    %v1993 = vld [vmem:[%s1901 + $0x2d8] sm:$0xff]
    %v1994 = vld [vmem:[%s1901 + $0x2e0] sm:$0xff]
    %v1995 = vld [vmem:[%s1901 + $0x2e8] sm:$0xff]
    %v1996 = vld [vmem:[%s1901 + $0x2f0] sm:$0xff]
    %v1997 = vld [vmem:[%s1901 + $0x2f8] sm:$0xff]
    %v1998 = vld [vmem:[%s1901 + $0x300] sm:$0xff]
    %v1999 = vld [vmem:[%s1901 + $0x308] sm:$0xff]
    %v2000 = vld [vmem:[%s1901 + $0x310] sm:$0xff]
    %v2001 = vld [vmem:[%s1901 + $0x318] sm:$0xff]
    %v2002 = vld [vmem:[%s1901 + $0x320] sm:$0xff]
    %v2003 = vld [vmem:[%s1901 + $0x328] sm:$0xff]
    %v2004 = vld [vmem:[%s1901 + $0x330] sm:$0xff]
    %v2005 = vld [vmem:[%s1901 + $0x338] sm:$0xff]
    %v2006 = vld [vmem:[%s1901 + $0x340] sm:$0xff]
    %v2007 = vld [vmem:[%s1901 + $0x348] sm:$0xff]
    %v2008 = vld [vmem:[%s1901 + $0x350] sm:$0xff]
    %v2009 = vld [vmem:[%s1901 + $0x358] sm:$0xff]
    %v2010 = vld [vmem:[%s1901 + $0x360] sm:$0xff]
    %v2011 = vld [vmem:[%s1901 + $0x368] sm:$0xff]
    %v2012 = vld [vmem:[%s1901 + $0x370] sm:$0xff]
    %v2013 = vld [vmem:[%s1901 + $0x378] sm:$0xff]
    %v2014 = vld [vmem:[%s1901 + $0x380] sm:$0xff]
    %v2015 = vld [vmem:[%s1901 + $0x388] sm:$0xff]
    %v2016 = vld [vmem:[%s1901 + $0x390] sm:$0xff]
    %v2017 = vld [vmem:[%s1901 + $0x398] sm:$0xff]
    %v2018 = vld [vmem:[%s1901 + $0x3a0] sm:$0xff]
    %v2019 = vld [vmem:[%s1901 + $0x3a8] sm:$0xff]
    %v2020 = vld [vmem:[%s1901 + $0x3b0] sm:$0xff]
    %v2021 = vld [vmem:[%s1901 + $0x3b8] sm:$0xff]
    %v2022 = vld [vmem:[%s1901 + $0x3c0] sm:$0xff]
    %v2023 = vld [vmem:[%s1901 + $0x3c8] sm:$0xff]
    %v2024 = vld [vmem:[%s1901 + $0x3d0] sm:$0xff]
    %v2025 = vld [vmem:[%s1901 + $0x3d8] sm:$0xff]
    %v2026 = vld [vmem:[%s1901 + $0x3e0] sm:$0xff]
    %v2027 = vld [vmem:[%s1901 + $0x3e8] sm:$0xff]
    %v2028 = vld [vmem:[%s1901 + $0x3f0] sm:$0xff]
    %v2029 = vld [vmem:[%s1901 + $0x3f8] sm:$0xff]
    %v2030 = vld [vmem:[%s1901 + $0x400] sm:$0xff]
    %v2031 = vld [vmem:[%s1901 + $0x408] sm:$0xff]
    %v2032 = vld [vmem:[%s1901 + $0x410] sm:$0xff]
    %v2033 = vld [vmem:[%s1901 + $0x418] sm:$0xff]
    %v2034 = vld [vmem:[%s1901 + $0x420] sm:$0xff]
    %v2035 = vld [vmem:[%s1901 + $0x428] sm:$0xff]
    %v2036 = vld [vmem:[%s1901 + $0x430] sm:$0xff]
    %v2037 = vld [vmem:[%s1901 + $0x438] sm:$0xff]
    %v2038 = vld [vmem:[%s1901 + $0x440] sm:$0xff]
    %v2039 = vld [vmem:[%s1901 + $0x448] sm:$0xff]
    %v2040 = vld [vmem:[%s1901 + $0x450] sm:$0xff]
    %v2041 = vld [vmem:[%s1901 + $0x458] sm:$0xff]
    %v2042 = vld [vmem:[%s1901 + $0x460] sm:$0xff]
    %v2043 = vld [vmem:[%s1901 + $0x468] sm:$0xff]
    %v2044 = vld [vmem:[%s1901 + $0x470] sm:$0xff]
    %v2045 = vld [vmem:[%s1901 + $0x478] sm:$0xff]
    %v2047 = vsel %vm841, %v1881, 0
    %v2050 = vsel %vm841, %v1884, 0
    %v2053 = vsel %vm841, %v1887, 0
    %v2056 = vsel %vm841, %v1890, 0
    %v2059 = vsel %vm841, %v1893, 0
    %v2062 = vsel %vm841, %v1896, 0
    %v2065 = vsel %vm841, %v1899, 0
    %2067 = vmatpush.msra.mxu0 %v1992
    %2068 = vmatpush.msra.mxu0 %v1986
    %2069 = vmatpush.msra.mxu0 %v1980
    %2070 = vmatpush.msra.mxu0 %v1974
    %2071 = vmatpush.msra.mxu0 %v1968
    %2072 = vmatpush.msra.mxu0 %v1962
    %2073 = vmatpush.msra.mxu0 %v1956
    %2074 = vmatpush.msra.mxu0 %v1950
    %2075 = vmatpush.msra.mxu0 %v1944
    %2076 = vmatpush.msra.mxu0 %v1938
    %2077 = vmatpush.msra.mxu0 %v1932
    %2078 = vmatpush.msra.mxu0 %v1926
    %2079 = vmatpush.msra.mxu0 %v1920
    %2080 = vmatpush.msra.mxu0 %v1914
    %2081 = vmatpush.msra.mxu0 %v1908
    %2082 = vmatpush.msra.mxu0 %v1902
    %2083 = vmatmul.f32.gmra.mxu0 %v1843
    %v2084 = vpop.f32.mrf.mxu0
    %v2085 = vadd.f32 0.0, %v2084
    %2086 = vmatmul.f32.gmra.mxu0 %v1846
    %v2087 = vpop.f32.mrf.mxu0
    %v2088 = vadd.f32 0.0, %v2087
    %2089 = vmatmul.f32.gmra.mxu0 %v1849
    %v2090 = vpop.f32.mrf.mxu0
    %v2091 = vadd.f32 0.0, %v2090
    %2092 = vmatmul.f32.gmra.mxu0 %v1852
    %v2093 = vpop.f32.mrf.mxu0
    %v2094 = vadd.f32 0.0, %v2093
    %2095 = vmatmul.f32.gmra.mxu0 %v1855
    %v2096 = vpop.f32.mrf.mxu0
    %v2097 = vadd.f32 0.0, %v2096
    %2098 = vmatmul.f32.gmra.mxu0 %v1858
    %v2099 = vpop.f32.mrf.mxu0
    %v2100 = vadd.f32 0.0, %v2099
    %2101 = vmatmul.f32.gmra.mxu0 %v1861
    %v2102 = vpop.f32.mrf.mxu0
    %v2103 = vadd.f32 0.0, %v2102
    %2104 = vdwg.mxu0
    %2105 = vmatpush.msra.mxu0 0.0
    %2106 = vmatpush.msra.mxu0 0.0
    %2107 = vmatpush.msra.mxu0 0.0
    %2108 = vmatpush.msra.mxu0 0.0
    %2109 = vmatpush.msra.mxu0 0.0
    %2110 = vmatpush.msra.mxu0 0.0
    %2111 = vmatpush.msra.mxu0 0.0
    %2112 = vmatpush.msra.mxu0 0.0
    %2113 = vmatpush.msra.mxu0 %v2040
    %2114 = vmatpush.msra.mxu0 %v2034
    %2115 = vmatpush.msra.mxu0 %v2028
    %2116 = vmatpush.msra.mxu0 %v2022
    %2117 = vmatpush.msra.mxu0 %v2016
    %2118 = vmatpush.msra.mxu0 %v2010
    %2119 = vmatpush.msra.mxu0 %v2004
    %2120 = vmatpush.msra.mxu0 %v1998
    %2121 = vmatmul.f32.gmra.mxu0 %v2047
    %v2122 = vpop.f32.mrf.mxu0
    %v2123 = vadd.f32 %v2085, %v2122
    %2124 = vmatmul.f32.gmra.mxu0 %v2050
    %v2125 = vpop.f32.mrf.mxu0
    %v2126 = vadd.f32 %v2088, %v2125
    %2127 = vmatmul.f32.gmra.mxu0 %v2053
    %v2128 = vpop.f32.mrf.mxu0
    %v2129 = vadd.f32 %v2091, %v2128
    %2130 = vmatmul.f32.gmra.mxu0 %v2056
    %v2131 = vpop.f32.mrf.mxu0
    %v2132 = vadd.f32 %v2094, %v2131
    %2133 = vmatmul.f32.gmra.mxu0 %v2059
    %v2134 = vpop.f32.mrf.mxu0
    %v2135 = vadd.f32 %v2097, %v2134
    %2136 = vmatmul.f32.gmra.mxu0 %v2062
    %v2137 = vpop.f32.mrf.mxu0
    %v2138 = vadd.f32 %v2100, %v2137
    %2139 = vmatmul.f32.gmra.mxu0 %v2065
    %v2140 = vpop.f32.mrf.mxu0
    %v2141 = vadd.f32 %v2103, %v2140
    %2142 = vdwg.mxu0
    %2143 = vmatpush.msra.mxu0 %v1993
    %2144 = vmatpush.msra.mxu0 %v1987
    %2145 = vmatpush.msra.mxu0 %v1981
    %2146 = vmatpush.msra.mxu0 %v1975
    %2147 = vmatpush.msra.mxu0 %v1969
    %2148 = vmatpush.msra.mxu0 %v1963
    %2149 = vmatpush.msra.mxu0 %v1957
    %2150 = vmatpush.msra.mxu0 %v1951
    %2151 = vmatpush.msra.mxu0 %v1945
    %2152 = vmatpush.msra.mxu0 %v1939
    %2153 = vmatpush.msra.mxu0 %v1933
    %2154 = vmatpush.msra.mxu0 %v1927
    %2155 = vmatpush.msra.mxu0 %v1921
    %2156 = vmatpush.msra.mxu0 %v1915
    %2157 = vmatpush.msra.mxu0 %v1909
    %2158 = vmatpush.msra.mxu0 %v1903
    %2159 = vmatmul.f32.gmra.mxu0 %v1843
    %v2160 = vpop.f32.mrf.mxu0
    %v2161 = vadd.f32 0.0, %v2160
    %2162 = vmatmul.f32.gmra.mxu0 %v1846
    %v2163 = vpop.f32.mrf.mxu0
    %v2164 = vadd.f32 0.0, %v2163
    %2165 = vmatmul.f32.gmra.mxu0 %v1849
    %v2166 = vpop.f32.mrf.mxu0
    %v2167 = vadd.f32 0.0, %v2166
    %2168 = vmatmul.f32.gmra.mxu0 %v1852
    %v2169 = vpop.f32.mrf.mxu0
    %v2170 = vadd.f32 0.0, %v2169
    %2171 = vmatmul.f32.gmra.mxu0 %v1855
    %v2172 = vpop.f32.mrf.mxu0
    %v2173 = vadd.f32 0.0, %v2172
    %2174 = vmatmul.f32.gmra.mxu0 %v1858
    %v2175 = vpop.f32.mrf.mxu0
    %v2176 = vadd.f32 0.0, %v2175
    %2177 = vmatmul.f32.gmra.mxu0 %v1861
    %v2178 = vpop.f32.mrf.mxu0
    %v2179 = vadd.f32 0.0, %v2178
    %2180 = vdwg.mxu0
    %2181 = vmatpush.msra.mxu0 0.0
    %2182 = vmatpush.msra.mxu0 0.0
    %2183 = vmatpush.msra.mxu0 0.0
    %2184 = vmatpush.msra.mxu0 0.0
    %2185 = vmatpush.msra.mxu0 0.0
    %2186 = vmatpush.msra.mxu0 0.0
    %2187 = vmatpush.msra.mxu0 0.0
    %2188 = vmatpush.msra.mxu0 0.0
    %2189 = vmatpush.msra.mxu0 %v2041
    %2190 = vmatpush.msra.mxu0 %v2035
    %2191 = vmatpush.msra.mxu0 %v2029
    %2192 = vmatpush.msra.mxu0 %v2023
    %2193 = vmatpush.msra.mxu0 %v2017
    %2194 = vmatpush.msra.mxu0 %v2011
    %2195 = vmatpush.msra.mxu0 %v2005
    %2196 = vmatpush.msra.mxu0 %v1999
    %2197 = vmatmul.f32.gmra.mxu0 %v2047
    %v2198 = vpop.f32.mrf.mxu0
    %v2199 = vadd.f32 %v2161, %v2198
    %2200 = vmatmul.f32.gmra.mxu0 %v2050
    %v2201 = vpop.f32.mrf.mxu0
    %v2202 = vadd.f32 %v2164, %v2201
    %2203 = vmatmul.f32.gmra.mxu0 %v2053
    %v2204 = vpop.f32.mrf.mxu0
    %v2205 = vadd.f32 %v2167, %v2204
    %2206 = vmatmul.f32.gmra.mxu0 %v2056
    %v2207 = vpop.f32.mrf.mxu0
    %v2208 = vadd.f32 %v2170, %v2207
    %2209 = vmatmul.f32.gmra.mxu0 %v2059
    %v2210 = vpop.f32.mrf.mxu0
    %v2211 = vadd.f32 %v2173, %v2210
    %2212 = vmatmul.f32.gmra.mxu0 %v2062
    %v2213 = vpop.f32.mrf.mxu0
    %v2214 = vadd.f32 %v2176, %v2213
    %2215 = vmatmul.f32.gmra.mxu0 %v2065
    %v2216 = vpop.f32.mrf.mxu0
    %v2217 = vadd.f32 %v2179, %v2216
    %2218 = vdwg.mxu0
    %2219 = vmatpush.msra.mxu0 %v1994
    %2220 = vmatpush.msra.mxu0 %v1988
    %2221 = vmatpush.msra.mxu0 %v1982
    %2222 = vmatpush.msra.mxu0 %v1976
    %2223 = vmatpush.msra.mxu0 %v1970
    %2224 = vmatpush.msra.mxu0 %v1964
    %2225 = vmatpush.msra.mxu0 %v1958
    %2226 = vmatpush.msra.mxu0 %v1952
    %2227 = vmatpush.msra.mxu0 %v1946
    %2228 = vmatpush.msra.mxu0 %v1940
    %2229 = vmatpush.msra.mxu0 %v1934
    %2230 = vmatpush.msra.mxu0 %v1928
    %2231 = vmatpush.msra.mxu0 %v1922
    %2232 = vmatpush.msra.mxu0 %v1916
    %2233 = vmatpush.msra.mxu0 %v1910
    %2234 = vmatpush.msra.mxu0 %v1904
    %2235 = vmatmul.f32.gmra.mxu0 %v1843
    %v2236 = vpop.f32.mrf.mxu0
    %v2237 = vadd.f32 0.0, %v2236
    %2238 = vmatmul.f32.gmra.mxu0 %v1846
    %v2239 = vpop.f32.mrf.mxu0
    %v2240 = vadd.f32 0.0, %v2239
    %2241 = vmatmul.f32.gmra.mxu0 %v1849
    %v2242 = vpop.f32.mrf.mxu0
    %v2243 = vadd.f32 0.0, %v2242
    %2244 = vmatmul.f32.gmra.mxu0 %v1852
    %v2245 = vpop.f32.mrf.mxu0
    %v2246 = vadd.f32 0.0, %v2245
    %2247 = vmatmul.f32.gmra.mxu0 %v1855
    %v2248 = vpop.f32.mrf.mxu0
    %v2249 = vadd.f32 0.0, %v2248
    %2250 = vmatmul.f32.gmra.mxu0 %v1858
    %v2251 = vpop.f32.mrf.mxu0
    %v2252 = vadd.f32 0.0, %v2251
    %2253 = vmatmul.f32.gmra.mxu0 %v1861
    %v2254 = vpop.f32.mrf.mxu0
    %v2255 = vadd.f32 0.0, %v2254
    %2256 = vdwg.mxu0
    %2257 = vmatpush.msra.mxu0 0.0
    %2258 = vmatpush.msra.mxu0 0.0
    %2259 = vmatpush.msra.mxu0 0.0
    %2260 = vmatpush.msra.mxu0 0.0
    %2261 = vmatpush.msra.mxu0 0.0
    %2262 = vmatpush.msra.mxu0 0.0
    %2263 = vmatpush.msra.mxu0 0.0
    %2264 = vmatpush.msra.mxu0 0.0
    %2265 = vmatpush.msra.mxu0 %v2042
    %2266 = vmatpush.msra.mxu0 %v2036
    %2267 = vmatpush.msra.mxu0 %v2030
    %2268 = vmatpush.msra.mxu0 %v2024
    %2269 = vmatpush.msra.mxu0 %v2018
    %2270 = vmatpush.msra.mxu0 %v2012
    %2271 = vmatpush.msra.mxu0 %v2006
    %2272 = vmatpush.msra.mxu0 %v2000
    %2273 = vmatmul.f32.gmra.mxu0 %v2047
    %v2274 = vpop.f32.mrf.mxu0
    %v2275 = vadd.f32 %v2237, %v2274
    %2276 = vmatmul.f32.gmra.mxu0 %v2050
    %v2277 = vpop.f32.mrf.mxu0
    %v2278 = vadd.f32 %v2240, %v2277
    %2279 = vmatmul.f32.gmra.mxu0 %v2053
    %v2280 = vpop.f32.mrf.mxu0
    %v2281 = vadd.f32 %v2243, %v2280
    %2282 = vmatmul.f32.gmra.mxu0 %v2056
    %v2283 = vpop.f32.mrf.mxu0
    %v2284 = vadd.f32 %v2246, %v2283
    %2285 = vmatmul.f32.gmra.mxu0 %v2059
    %v2286 = vpop.f32.mrf.mxu0
    %v2287 = vadd.f32 %v2249, %v2286
    %2288 = vmatmul.f32.gmra.mxu0 %v2062
    %v2289 = vpop.f32.mrf.mxu0
    %v2290 = vadd.f32 %v2252, %v2289
    %2291 = vmatmul.f32.gmra.mxu0 %v2065
    %v2292 = vpop.f32.mrf.mxu0
    %v2293 = vadd.f32 %v2255, %v2292
    %2294 = vdwg.mxu0
    %2295 = vmatpush.msra.mxu0 %v1995
    %2296 = vmatpush.msra.mxu0 %v1989
    %2297 = vmatpush.msra.mxu0 %v1983
    %2298 = vmatpush.msra.mxu0 %v1977
    %2299 = vmatpush.msra.mxu0 %v1971
    %2300 = vmatpush.msra.mxu0 %v1965
    %2301 = vmatpush.msra.mxu0 %v1959
    %2302 = vmatpush.msra.mxu0 %v1953
    %2303 = vmatpush.msra.mxu0 %v1947
    %2304 = vmatpush.msra.mxu0 %v1941
    %2305 = vmatpush.msra.mxu0 %v1935
    %2306 = vmatpush.msra.mxu0 %v1929
    %2307 = vmatpush.msra.mxu0 %v1923
    %2308 = vmatpush.msra.mxu0 %v1917
    %2309 = vmatpush.msra.mxu0 %v1911
    %2310 = vmatpush.msra.mxu0 %v1905
    %2311 = vmatmul.f32.gmra.mxu0 %v1843
    %v2312 = vpop.f32.mrf.mxu0
    %v2313 = vadd.f32 0.0, %v2312
    %2314 = vmatmul.f32.gmra.mxu0 %v1846
    %v2315 = vpop.f32.mrf.mxu0
    %v2316 = vadd.f32 0.0, %v2315
    %2317 = vmatmul.f32.gmra.mxu0 %v1849
    %v2318 = vpop.f32.mrf.mxu0
    %v2319 = vadd.f32 0.0, %v2318
    %2320 = vmatmul.f32.gmra.mxu0 %v1852
    %v2321 = vpop.f32.mrf.mxu0
    %v2322 = vadd.f32 0.0, %v2321
    %2323 = vmatmul.f32.gmra.mxu0 %v1855
    %v2324 = vpop.f32.mrf.mxu0
    %v2325 = vadd.f32 0.0, %v2324
    %2326 = vmatmul.f32.gmra.mxu0 %v1858
    %v2327 = vpop.f32.mrf.mxu0
    %v2328 = vadd.f32 0.0, %v2327
    %2329 = vmatmul.f32.gmra.mxu0 %v1861
    %v2330 = vpop.f32.mrf.mxu0
    %v2331 = vadd.f32 0.0, %v2330
    %2332 = vdwg.mxu0
    %2333 = vmatpush.msra.mxu0 0.0
    %2334 = vmatpush.msra.mxu0 0.0
    %2335 = vmatpush.msra.mxu0 0.0
    %2336 = vmatpush.msra.mxu0 0.0
    %2337 = vmatpush.msra.mxu0 0.0
    %2338 = vmatpush.msra.mxu0 0.0
    %2339 = vmatpush.msra.mxu0 0.0
    %2340 = vmatpush.msra.mxu0 0.0
    %2341 = vmatpush.msra.mxu0 %v2043
    %2342 = vmatpush.msra.mxu0 %v2037
    %2343 = vmatpush.msra.mxu0 %v2031
    %2344 = vmatpush.msra.mxu0 %v2025
    %2345 = vmatpush.msra.mxu0 %v2019
    %2346 = vmatpush.msra.mxu0 %v2013
    %2347 = vmatpush.msra.mxu0 %v2007
    %2348 = vmatpush.msra.mxu0 %v2001
    %2349 = vmatmul.f32.gmra.mxu0 %v2047
    %v2350 = vpop.f32.mrf.mxu0
    %v2351 = vadd.f32 %v2313, %v2350
    %2352 = vmatmul.f32.gmra.mxu0 %v2050
    %v2353 = vpop.f32.mrf.mxu0
    %v2354 = vadd.f32 %v2316, %v2353
    %2355 = vmatmul.f32.gmra.mxu0 %v2053
    %v2356 = vpop.f32.mrf.mxu0
    %v2357 = vadd.f32 %v2319, %v2356
    %2358 = vmatmul.f32.gmra.mxu0 %v2056
    %v2359 = vpop.f32.mrf.mxu0
    %v2360 = vadd.f32 %v2322, %v2359
    %2361 = vmatmul.f32.gmra.mxu0 %v2059
    %v2362 = vpop.f32.mrf.mxu0
    %v2363 = vadd.f32 %v2325, %v2362
    %2364 = vmatmul.f32.gmra.mxu0 %v2062
    %v2365 = vpop.f32.mrf.mxu0
    %v2366 = vadd.f32 %v2328, %v2365
    %2367 = vmatmul.f32.gmra.mxu0 %v2065
    %v2368 = vpop.f32.mrf.mxu0
    %v2369 = vadd.f32 %v2331, %v2368
    %2370 = vdwg.mxu0
    %2371 = vmatpush.msra.mxu0 %v1996
    %2372 = vmatpush.msra.mxu0 %v1990
    %2373 = vmatpush.msra.mxu0 %v1984
    %2374 = vmatpush.msra.mxu0 %v1978
    %2375 = vmatpush.msra.mxu0 %v1972
    %2376 = vmatpush.msra.mxu0 %v1966
    %2377 = vmatpush.msra.mxu0 %v1960
    %2378 = vmatpush.msra.mxu0 %v1954
    %2379 = vmatpush.msra.mxu0 %v1948
    %2380 = vmatpush.msra.mxu0 %v1942
    %2381 = vmatpush.msra.mxu0 %v1936
    %2382 = vmatpush.msra.mxu0 %v1930
    %2383 = vmatpush.msra.mxu0 %v1924
    %2384 = vmatpush.msra.mxu0 %v1918
    %2385 = vmatpush.msra.mxu0 %v1912
    %2386 = vmatpush.msra.mxu0 %v1906
    %2387 = vmatmul.f32.gmra.mxu0 %v1843
    %v2388 = vpop.f32.mrf.mxu0
    %v2389 = vadd.f32 0.0, %v2388
    %2390 = vmatmul.f32.gmra.mxu0 %v1846
    %v2391 = vpop.f32.mrf.mxu0
    %v2392 = vadd.f32 0.0, %v2391
    %2393 = vmatmul.f32.gmra.mxu0 %v1849
    %v2394 = vpop.f32.mrf.mxu0
    %v2395 = vadd.f32 0.0, %v2394
    %2396 = vmatmul.f32.gmra.mxu0 %v1852
    %v2397 = vpop.f32.mrf.mxu0
    %v2398 = vadd.f32 0.0, %v2397
    %2399 = vmatmul.f32.gmra.mxu0 %v1855
    %v2400 = vpop.f32.mrf.mxu0
    %v2401 = vadd.f32 0.0, %v2400
    %2402 = vmatmul.f32.gmra.mxu0 %v1858
    %v2403 = vpop.f32.mrf.mxu0
    %v2404 = vadd.f32 0.0, %v2403
    %2405 = vmatmul.f32.gmra.mxu0 %v1861
    %v2406 = vpop.f32.mrf.mxu0
    %v2407 = vadd.f32 0.0, %v2406
    %2408 = vdwg.mxu0
    %2409 = vmatpush.msra.mxu0 0.0
    %2410 = vmatpush.msra.mxu0 0.0
    %2411 = vmatpush.msra.mxu0 0.0
    %2412 = vmatpush.msra.mxu0 0.0
    %2413 = vmatpush.msra.mxu0 0.0
    %2414 = vmatpush.msra.mxu0 0.0
    %2415 = vmatpush.msra.mxu0 0.0
    %2416 = vmatpush.msra.mxu0 0.0
    %2417 = vmatpush.msra.mxu0 %v2044
    %2418 = vmatpush.msra.mxu0 %v2038
    %2419 = vmatpush.msra.mxu0 %v2032
    %2420 = vmatpush.msra.mxu0 %v2026
    %2421 = vmatpush.msra.mxu0 %v2020
    %2422 = vmatpush.msra.mxu0 %v2014
    %2423 = vmatpush.msra.mxu0 %v2008
    %2424 = vmatpush.msra.mxu0 %v2002
    %2425 = vmatmul.f32.gmra.mxu0 %v2047
    %v2426 = vpop.f32.mrf.mxu0
    %v2427 = vadd.f32 %v2389, %v2426
    %2428 = vmatmul.f32.gmra.mxu0 %v2050
    %v2429 = vpop.f32.mrf.mxu0
    %v2430 = vadd.f32 %v2392, %v2429
    %2431 = vmatmul.f32.gmra.mxu0 %v2053
    %v2432 = vpop.f32.mrf.mxu0
    %v2433 = vadd.f32 %v2395, %v2432
    %2434 = vmatmul.f32.gmra.mxu0 %v2056
    %v2435 = vpop.f32.mrf.mxu0
    %v2436 = vadd.f32 %v2398, %v2435
    %2437 = vmatmul.f32.gmra.mxu0 %v2059
    %v2438 = vpop.f32.mrf.mxu0
    %v2439 = vadd.f32 %v2401, %v2438
    %2440 = vmatmul.f32.gmra.mxu0 %v2062
    %v2441 = vpop.f32.mrf.mxu0
    %v2442 = vadd.f32 %v2404, %v2441
    %2443 = vmatmul.f32.gmra.mxu0 %v2065
    %v2444 = vpop.f32.mrf.mxu0
    %v2445 = vadd.f32 %v2407, %v2444
    %2446 = vdwg.mxu0
    %2447 = vmatpush.msra.mxu0 %v1997
    %2448 = vmatpush.msra.mxu0 %v1991
    %2449 = vmatpush.msra.mxu0 %v1985
    %2450 = vmatpush.msra.mxu0 %v1979
    %2451 = vmatpush.msra.mxu0 %v1973
    %2452 = vmatpush.msra.mxu0 %v1967
    %2453 = vmatpush.msra.mxu0 %v1961
    %2454 = vmatpush.msra.mxu0 %v1955
    %2455 = vmatpush.msra.mxu0 %v1949
    %2456 = vmatpush.msra.mxu0 %v1943
    %2457 = vmatpush.msra.mxu0 %v1937
    %2458 = vmatpush.msra.mxu0 %v1931
    %2459 = vmatpush.msra.mxu0 %v1925
    %2460 = vmatpush.msra.mxu0 %v1919
    %2461 = vmatpush.msra.mxu0 %v1913
    %2462 = vmatpush.msra.mxu0 %v1907
    %2463 = vmatmul.f32.gmra.mxu0 %v1843
    %v2464 = vpop.f32.mrf.mxu0
    %v2465 = vadd.f32 0.0, %v2464
    %2466 = vmatmul.f32.gmra.mxu0 %v1846
    %v2467 = vpop.f32.mrf.mxu0
    %v2468 = vadd.f32 0.0, %v2467
    %2469 = vmatmul.f32.gmra.mxu0 %v1849
    %v2470 = vpop.f32.mrf.mxu0
    %v2471 = vadd.f32 0.0, %v2470
    %2472 = vmatmul.f32.gmra.mxu0 %v1852
    %v2473 = vpop.f32.mrf.mxu0
    %v2474 = vadd.f32 0.0, %v2473
    %2475 = vmatmul.f32.gmra.mxu0 %v1855
    %v2476 = vpop.f32.mrf.mxu0
    %v2477 = vadd.f32 0.0, %v2476
    %2478 = vmatmul.f32.gmra.mxu0 %v1858
    %v2479 = vpop.f32.mrf.mxu0
    %v2480 = vadd.f32 0.0, %v2479
    %2481 = vmatmul.f32.gmra.mxu0 %v1861
    %v2482 = vpop.f32.mrf.mxu0
    %v2483 = vadd.f32 0.0, %v2482
    %2484 = vdwg.mxu0
    %2485 = vmatpush.msra.mxu0 0.0
    %2486 = vmatpush.msra.mxu0 0.0
    %2487 = vmatpush.msra.mxu0 0.0
    %2488 = vmatpush.msra.mxu0 0.0
    %2489 = vmatpush.msra.mxu0 0.0
    %2490 = vmatpush.msra.mxu0 0.0
    %2491 = vmatpush.msra.mxu0 0.0
    %2492 = vmatpush.msra.mxu0 0.0
    %2493 = vmatpush.msra.mxu0 %v2045
    %2494 = vmatpush.msra.mxu0 %v2039
    %2495 = vmatpush.msra.mxu0 %v2033
    %2496 = vmatpush.msra.mxu0 %v2027
    %2497 = vmatpush.msra.mxu0 %v2021
    %2498 = vmatpush.msra.mxu0 %v2015
    %2499 = vmatpush.msra.mxu0 %v2009
    %2500 = vmatpush.msra.mxu0 %v2003
    %2501 = vmatmul.f32.gmra.mxu0 %v2047
    %v2502 = vpop.f32.mrf.mxu0
    %v2503 = vadd.f32 %v2465, %v2502
    %2504 = vmatmul.f32.gmra.mxu0 %v2050
    %v2505 = vpop.f32.mrf.mxu0
    %v2506 = vadd.f32 %v2468, %v2505
    %2507 = vmatmul.f32.gmra.mxu0 %v2053
    %v2508 = vpop.f32.mrf.mxu0
    %v2509 = vadd.f32 %v2471, %v2508
    %2510 = vmatmul.f32.gmra.mxu0 %v2056
    %v2511 = vpop.f32.mrf.mxu0
    %v2512 = vadd.f32 %v2474, %v2511
    %2513 = vmatmul.f32.gmra.mxu0 %v2059
    %v2514 = vpop.f32.mrf.mxu0
    %v2515 = vadd.f32 %v2477, %v2514
    %2516 = vmatmul.f32.gmra.mxu0 %v2062
    %v2517 = vpop.f32.mrf.mxu0
    %v2518 = vadd.f32 %v2480, %v2517
    %2519 = vmatmul.f32.gmra.mxu0 %v2065
    %v2520 = vpop.f32.mrf.mxu0
    %v2521 = vadd.f32 %v2483, %v2520
    %2522 = vdwg.mxu0
    %v2523 = vadd.f32 %v1396, %v2123
    %v2524 = vadd.f32 %v1472, %v2199
    %v2525 = vadd.f32 %v1548, %v2275
    %v2526 = vadd.f32 %v1624, %v2351
    %v2527 = vadd.f32 %v1700, %v2427
    %v2528 = vadd.f32 %v1776, %v2503
    %v2529 = vadd.f32 %v1399, %v2126
    %v2530 = vadd.f32 %v1475, %v2202
    %v2531 = vadd.f32 %v1551, %v2278
    %v2532 = vadd.f32 %v1627, %v2354
    %v2533 = vadd.f32 %v1703, %v2430
    %v2534 = vadd.f32 %v1779, %v2506
    %v2535 = vadd.f32 %v1402, %v2129
    %v2536 = vadd.f32 %v1478, %v2205
    %v2537 = vadd.f32 %v1554, %v2281
    %v2538 = vadd.f32 %v1630, %v2357
    %v2539 = vadd.f32 %v1706, %v2433
    %v2540 = vadd.f32 %v1782, %v2509
    %v2541 = vadd.f32 %v1405, %v2132
    %v2542 = vadd.f32 %v1481, %v2208
    %v2543 = vadd.f32 %v1557, %v2284
    %v2544 = vadd.f32 %v1633, %v2360
    %v2545 = vadd.f32 %v1709, %v2436
    %v2546 = vadd.f32 %v1785, %v2512
    %v2547 = vadd.f32 %v1408, %v2135
    %v2548 = vadd.f32 %v1484, %v2211
    %v2549 = vadd.f32 %v1560, %v2287
    %v2550 = vadd.f32 %v1636, %v2363
    %v2551 = vadd.f32 %v1712, %v2439
    %v2552 = vadd.f32 %v1788, %v2515
    %v2553 = vadd.f32 %v1411, %v2138
    %v2554 = vadd.f32 %v1487, %v2214
    %v2555 = vadd.f32 %v1563, %v2290
    %v2556 = vadd.f32 %v1639, %v2366
    %v2557 = vadd.f32 %v1715, %v2442
    %v2558 = vadd.f32 %v1791, %v2518
    %v2559 = vadd.f32 %v1414, %v2141
    %v2560 = vadd.f32 %v1490, %v2217
    %v2561 = vadd.f32 %v1566, %v2293
    %v2562 = vadd.f32 %v1642, %v2369
    %v2563 = vadd.f32 %v1718, %v2445
    %v2564 = vadd.f32 %v1794, %v2521
    %v2565 = vld [vmem:[#allocation5] sm:$0x3f]
    %v2567 = vperm.slane %v2565, 0
    %v2568 = vperm.slane %v2565, 1
    %v2569 = vperm.slane %v2565, 2
    %v2570 = vperm.slane %v2565, 3
    %v2571 = vperm.slane %v2565, 4
    %v2572 = vperm.slane %v2565, 5
    %v2579 = vadd.f32 %v2523, %v2567
    %v2580 = vadd.f32 %v2524, %v2568
    %v2581 = vadd.f32 %v2525, %v2569
    %v2582 = vadd.f32 %v2526, %v2570
    %v2583 = vadd.f32 %v2527, %v2571
    %v2584 = vadd.f32 %v2528, %v2572
    %v2585 = vadd.f32 %v2529, %v2567
    %v2586 = vadd.f32 %v2530, %v2568
    %v2587 = vadd.f32 %v2531, %v2569
    %v2588 = vadd.f32 %v2532, %v2570
    %v2589 = vadd.f32 %v2533, %v2571
    %v2590 = vadd.f32 %v2534, %v2572
    %v2591 = vadd.f32 %v2535, %v2567
    %v2592 = vadd.f32 %v2536, %v2568
    %v2593 = vadd.f32 %v2537, %v2569
    %v2594 = vadd.f32 %v2538, %v2570
    %v2595 = vadd.f32 %v2539, %v2571
    %v2596 = vadd.f32 %v2540, %v2572
    %v2597 = vadd.f32 %v2541, %v2567
    %v2598 = vadd.f32 %v2542, %v2568
    %v2599 = vadd.f32 %v2543, %v2569
    %v2600 = vadd.f32 %v2544, %v2570
    %v2601 = vadd.f32 %v2545, %v2571
    %v2602 = vadd.f32 %v2546, %v2572
    %v2603 = vadd.f32 %v2547, %v2567
    %v2604 = vadd.f32 %v2548, %v2568
    %v2605 = vadd.f32 %v2549, %v2569
    %v2606 = vadd.f32 %v2550, %v2570
    %v2607 = vadd.f32 %v2551, %v2571
    %v2608 = vadd.f32 %v2552, %v2572
    %v2609 = vadd.f32 %v2553, %v2567
    %v2610 = vadd.f32 %v2554, %v2568
    %v2611 = vadd.f32 %v2555, %v2569
    %v2612 = vadd.f32 %v2556, %v2570
    %v2613 = vadd.f32 %v2557, %v2571
    %v2614 = vadd.f32 %v2558, %v2572
    %v2615 = vadd.f32 %v2559, %v2567
    %v2616 = vadd.f32 %v2560, %v2568
    %v2617 = vadd.f32 %v2561, %v2569
    %v2618 = vadd.f32 %v2562, %v2570
    %v2619 = vadd.f32 %v2563, %v2571
    %v2620 = vadd.f32 %v2564, %v2572
    %vm2621 = vcmp.gt.f32.partialorder %v2579, 0.0
    %vm2622 = vcmp.gt.f32.partialorder %v2580, 0.0
    %vm2623 = vcmp.gt.f32.partialorder %v2581, 0.0
    %vm2624 = vcmp.gt.f32.partialorder %v2582, 0.0
    %vm2625 = vcmp.gt.f32.partialorder %v2583, 0.0
    %vm2626 = vcmp.gt.f32.partialorder %v2584, 0.0
    %vm2627 = vcmp.gt.f32.partialorder %v2585, 0.0
    %vm2628 = vcmp.gt.f32.partialorder %v2586, 0.0
    %vm2629 = vcmp.gt.f32.partialorder %v2587, 0.0
    %vm2630 = vcmp.gt.f32.partialorder %v2588, 0.0
    %vm2631 = vcmp.gt.f32.partialorder %v2589, 0.0
    %vm2632 = vcmp.gt.f32.partialorder %v2590, 0.0
    %vm2633 = vcmp.gt.f32.partialorder %v2591, 0.0
    %vm2634 = vcmp.gt.f32.partialorder %v2592, 0.0
    %vm2635 = vcmp.gt.f32.partialorder %v2593, 0.0
    %vm2636 = vcmp.gt.f32.partialorder %v2594, 0.0
    %vm2637 = vcmp.gt.f32.partialorder %v2595, 0.0
    %vm2638 = vcmp.gt.f32.partialorder %v2596, 0.0
    %vm2639 = vcmp.gt.f32.partialorder %v2597, 0.0
    %vm2640 = vcmp.gt.f32.partialorder %v2598, 0.0
    %vm2641 = vcmp.gt.f32.partialorder %v2599, 0.0
    %vm2642 = vcmp.gt.f32.partialorder %v2600, 0.0
    %vm2643 = vcmp.gt.f32.partialorder %v2601, 0.0
    %vm2644 = vcmp.gt.f32.partialorder %v2602, 0.0
    %vm2645 = vcmp.gt.f32.partialorder %v2603, 0.0
    %vm2646 = vcmp.gt.f32.partialorder %v2604, 0.0
    %vm2647 = vcmp.gt.f32.partialorder %v2605, 0.0
    %vm2648 = vcmp.gt.f32.partialorder %v2606, 0.0
    %vm2649 = vcmp.gt.f32.partialorder %v2607, 0.0
    %vm2650 = vcmp.gt.f32.partialorder %v2608, 0.0
    %vm2651 = vcmp.gt.f32.partialorder %v2609, 0.0
    %vm2652 = vcmp.gt.f32.partialorder %v2610, 0.0
    %vm2653 = vcmp.gt.f32.partialorder %v2611, 0.0
    %vm2654 = vcmp.gt.f32.partialorder %v2612, 0.0
    %vm2655 = vcmp.gt.f32.partialorder %v2613, 0.0
    %vm2656 = vcmp.gt.f32.partialorder %v2614, 0.0
    %vm2657 = vcmp.gt.f32.partialorder %v2615, 0.0
    %vm2658 = vcmp.gt.f32.partialorder %v2616, 0.0
    %vm2659 = vcmp.gt.f32.partialorder %v2617, 0.0
    %vm2660 = vcmp.gt.f32.partialorder %v2618, 0.0
    %vm2661 = vcmp.gt.f32.partialorder %v2619, 0.0
    %vm2662 = vcmp.gt.f32.partialorder %v2620, 0.0
    %v2663 = vmin.f32 %v2579, 0.0
    %v2664 = vmin.f32 %v2580, 0.0
    %v2665 = vmin.f32 %v2581, 0.0
    %v2666 = vmin.f32 %v2582, 0.0
    %v2667 = vmin.f32 %v2583, 0.0
    %v2668 = vmin.f32 %v2584, 0.0
    %v2669 = vmin.f32 %v2585, 0.0
    %v2670 = vmin.f32 %v2586, 0.0
    %v2671 = vmin.f32 %v2587, 0.0
    %v2672 = vmin.f32 %v2588, 0.0
    %v2673 = vmin.f32 %v2589, 0.0
    %v2674 = vmin.f32 %v2590, 0.0
    %v2675 = vmin.f32 %v2591, 0.0
    %v2676 = vmin.f32 %v2592, 0.0
    %v2677 = vmin.f32 %v2593, 0.0
    %v2678 = vmin.f32 %v2594, 0.0
    %v2679 = vmin.f32 %v2595, 0.0
    %v2680 = vmin.f32 %v2596, 0.0
    %v2681 = vmin.f32 %v2597, 0.0
    %v2682 = vmin.f32 %v2598, 0.0
    %v2683 = vmin.f32 %v2599, 0.0
    %v2684 = vmin.f32 %v2600, 0.0
    %v2685 = vmin.f32 %v2601, 0.0
    %v2686 = vmin.f32 %v2602, 0.0
    %v2687 = vmin.f32 %v2603, 0.0
    %v2688 = vmin.f32 %v2604, 0.0
    %v2689 = vmin.f32 %v2605, 0.0
    %v2690 = vmin.f32 %v2606, 0.0
    %v2691 = vmin.f32 %v2607, 0.0
    %v2692 = vmin.f32 %v2608, 0.0
    %v2693 = vmin.f32 %v2609, 0.0
    %v2694 = vmin.f32 %v2610, 0.0
    %v2695 = vmin.f32 %v2611, 0.0
    %v2696 = vmin.f32 %v2612, 0.0
    %v2697 = vmin.f32 %v2613, 0.0
    %v2698 = vmin.f32 %v2614, 0.0
    %v2699 = vmin.f32 %v2615, 0.0
    %v2700 = vmin.f32 %v2616, 0.0
    %v2701 = vmin.f32 %v2617, 0.0
    %v2702 = vmin.f32 %v2618, 0.0
    %v2703 = vmin.f32 %v2619, 0.0
    %v2704 = vmin.f32 %v2620, 0.0
    %v2705 = vmul.f32 %v2663, 1.442695
    %v2706 = vpow.pop %v2705
    %v2707 = vmul.f32 %v2664, 1.442695
    %v2708 = vpow.pop %v2707
    %v2709 = vmul.f32 %v2665, 1.442695
    %v2710 = vpow.pop %v2709
    %v2711 = vmul.f32 %v2666, 1.442695
    %v2712 = vpow.pop %v2711
    %v2713 = vmul.f32 %v2667, 1.442695
    %v2714 = vpow.pop %v2713
    %v2715 = vmul.f32 %v2668, 1.442695
    %v2716 = vpow.pop %v2715
    %v2717 = vmul.f32 %v2669, 1.442695
    %v2718 = vpow.pop %v2717
    %v2719 = vmul.f32 %v2670, 1.442695
    %v2720 = vpow.pop %v2719
    %v2721 = vmul.f32 %v2671, 1.442695
    %v2722 = vpow.pop %v2721
    %v2723 = vmul.f32 %v2672, 1.442695
    %v2724 = vpow.pop %v2723
    %v2725 = vmul.f32 %v2673, 1.442695
    %v2726 = vpow.pop %v2725
    %v2727 = vmul.f32 %v2674, 1.442695
    %v2728 = vpow.pop %v2727
    %v2729 = vmul.f32 %v2675, 1.442695
    %v2730 = vpow.pop %v2729
    %v2731 = vmul.f32 %v2676, 1.442695
    %v2732 = vpow.pop %v2731
    %v2733 = vmul.f32 %v2677, 1.442695
    %v2734 = vpow.pop %v2733
    %v2735 = vmul.f32 %v2678, 1.442695
    %v2736 = vpow.pop %v2735
    %v2737 = vmul.f32 %v2679, 1.442695
    %v2738 = vpow.pop %v2737
    %v2739 = vmul.f32 %v2680, 1.442695
    %v2740 = vpow.pop %v2739
    %v2741 = vmul.f32 %v2681, 1.442695
    %v2742 = vpow.pop %v2741
    %v2743 = vmul.f32 %v2682, 1.442695
    %v2744 = vpow.pop %v2743
    %v2745 = vmul.f32 %v2683, 1.442695
    %v2746 = vpow.pop %v2745
    %v2747 = vmul.f32 %v2684, 1.442695
    %v2748 = vpow.pop %v2747
    %v2749 = vmul.f32 %v2685, 1.442695
    %v2750 = vpow.pop %v2749
    %v2751 = vmul.f32 %v2686, 1.442695
    %v2752 = vpow.pop %v2751
    %v2753 = vmul.f32 %v2687, 1.442695
    %v2754 = vpow.pop %v2753
    %v2755 = vmul.f32 %v2688, 1.442695
    %v2756 = vpow.pop %v2755
    %v2757 = vmul.f32 %v2689, 1.442695
    %v2758 = vpow.pop %v2757
    %v2759 = vmul.f32 %v2690, 1.442695
    %v2760 = vpow.pop %v2759
    %v2761 = vmul.f32 %v2691, 1.442695
    %v2762 = vpow.pop %v2761
    %v2763 = vmul.f32 %v2692, 1.442695
    %v2764 = vpow.pop %v2763
    %v2765 = vmul.f32 %v2693, 1.442695
    %v2766 = vpow.pop %v2765
    %v2767 = vmul.f32 %v2694, 1.442695
    %v2768 = vpow.pop %v2767
    %v2769 = vmul.f32 %v2695, 1.442695
    %v2770 = vpow.pop %v2769
    %v2771 = vmul.f32 %v2696, 1.442695
    %v2772 = vpow.pop %v2771
    %v2773 = vmul.f32 %v2697, 1.442695
    %v2774 = vpow.pop %v2773
    %v2775 = vmul.f32 %v2698, 1.442695
    %v2776 = vpow.pop %v2775
    %v2777 = vmul.f32 %v2699, 1.442695
    %v2778 = vpow.pop %v2777
    %v2779 = vmul.f32 %v2700, 1.442695
    %v2780 = vpow.pop %v2779
    %v2781 = vmul.f32 %v2701, 1.442695
    %v2782 = vpow.pop %v2781
    %v2783 = vmul.f32 %v2702, 1.442695
    %v2784 = vpow.pop %v2783
    %v2785 = vmul.f32 %v2703, 1.442695
    %v2786 = vpow.pop %v2785
    %v2787 = vmul.f32 %v2704, 1.442695
    %v2788 = vpow.pop %v2787
    %v2789 = vsub.f32 %v2706, 1.0
    %v2790 = vsub.f32 %v2708, 1.0
    %v2791 = vsub.f32 %v2710, 1.0
    %v2792 = vsub.f32 %v2712, 1.0
    %v2793 = vsub.f32 %v2714, 1.0
    %v2794 = vsub.f32 %v2716, 1.0
    %v2795 = vsub.f32 %v2718, 1.0
    %v2796 = vsub.f32 %v2720, 1.0
    %v2797 = vsub.f32 %v2722, 1.0
    %v2798 = vsub.f32 %v2724, 1.0
    %v2799 = vsub.f32 %v2726, 1.0
    %v2800 = vsub.f32 %v2728, 1.0
    %v2801 = vsub.f32 %v2730, 1.0
    %v2802 = vsub.f32 %v2732, 1.0
    %v2803 = vsub.f32 %v2734, 1.0
    %v2804 = vsub.f32 %v2736, 1.0
    %v2805 = vsub.f32 %v2738, 1.0
    %v2806 = vsub.f32 %v2740, 1.0
    %v2807 = vsub.f32 %v2742, 1.0
    %v2808 = vsub.f32 %v2744, 1.0
    %v2809 = vsub.f32 %v2746, 1.0
    %v2810 = vsub.f32 %v2748, 1.0
    %v2811 = vsub.f32 %v2750, 1.0
    %v2812 = vsub.f32 %v2752, 1.0
    %v2813 = vsub.f32 %v2754, 1.0
    %v2814 = vsub.f32 %v2756, 1.0
    %v2815 = vsub.f32 %v2758, 1.0
    %v2816 = vsub.f32 %v2760, 1.0
    %v2817 = vsub.f32 %v2762, 1.0
    %v2818 = vsub.f32 %v2764, 1.0
    %v2819 = vsub.f32 %v2766, 1.0
    %v2820 = vsub.f32 %v2768, 1.0
    %v2821 = vsub.f32 %v2770, 1.0
    %v2822 = vsub.f32 %v2772, 1.0
    %v2823 = vsub.f32 %v2774, 1.0
    %v2824 = vsub.f32 %v2776, 1.0
    %v2825 = vsub.f32 %v2778, 1.0
    %v2826 = vsub.f32 %v2780, 1.0
    %v2827 = vsub.f32 %v2782, 1.0
    %v2828 = vsub.f32 %v2784, 1.0
    %v2829 = vsub.f32 %v2786, 1.0
    %v2830 = vsub.f32 %v2788, 1.0
    %v2831 = vsel %vm2621, %v2579, %v2789
    %v2832 = vsel %vm2622, %v2580, %v2790
    %v2833 = vsel %vm2623, %v2581, %v2791
    %v2834 = vsel %vm2624, %v2582, %v2792
    %v2835 = vsel %vm2625, %v2583, %v2793
    %v2836 = vsel %vm2626, %v2584, %v2794
    %v2837 = vsel %vm2627, %v2585, %v2795
    %v2838 = vsel %vm2628, %v2586, %v2796
    %v2839 = vsel %vm2629, %v2587, %v2797
    %v2840 = vsel %vm2630, %v2588, %v2798
    %v2841 = vsel %vm2631, %v2589, %v2799
    %v2842 = vsel %vm2632, %v2590, %v2800
    %v2843 = vsel %vm2633, %v2591, %v2801
    %v2844 = vsel %vm2634, %v2592, %v2802
    %v2845 = vsel %vm2635, %v2593, %v2803
    %v2846 = vsel %vm2636, %v2594, %v2804
    %v2847 = vsel %vm2637, %v2595, %v2805
    %v2848 = vsel %vm2638, %v2596, %v2806
    %v2849 = vsel %vm2639, %v2597, %v2807
    %v2850 = vsel %vm2640, %v2598, %v2808
    %v2851 = vsel %vm2641, %v2599, %v2809
    %v2852 = vsel %vm2642, %v2600, %v2810
    %v2853 = vsel %vm2643, %v2601, %v2811
    %v2854 = vsel %vm2644, %v2602, %v2812
    %v2855 = vsel %vm2645, %v2603, %v2813
    %v2856 = vsel %vm2646, %v2604, %v2814
    %v2857 = vsel %vm2647, %v2605, %v2815
    %v2858 = vsel %vm2648, %v2606, %v2816
    %v2859 = vsel %vm2649, %v2607, %v2817
    %v2860 = vsel %vm2650, %v2608, %v2818
    %v2861 = vsel %vm2651, %v2609, %v2819
    %v2862 = vsel %vm2652, %v2610, %v2820
    %v2863 = vsel %vm2653, %v2611, %v2821
    %v2864 = vsel %vm2654, %v2612, %v2822
    %v2865 = vsel %vm2655, %v2613, %v2823
    %v2866 = vsel %vm2656, %v2614, %v2824
    %v2867 = vsel %vm2657, %v2615, %v2825
    %v2868 = vsel %vm2658, %v2616, %v2826
    %v2869 = vsel %vm2659, %v2617, %v2827
    %v2870 = vsel %vm2660, %v2618, %v2828
    %v2871 = vsel %vm2661, %v2619, %v2829
    %v2872 = vsel %vm2662, %v2620, %v2830
    %v2873 = vld [vmem:[%s9] sm:$0xff]
    %v2874 = vld [vmem:[%s9 + $0x8] sm:$0xff]
    %v2875 = vld [vmem:[%s9 + $0x10] sm:$0xff]
    %v2876 = vld [vmem:[%s9 + $0x18] sm:$0xff]
    %v2877 = vld [vmem:[%s9 + $0x20] sm:$0xff]
    %v2878 = vld [vmem:[%s9 + $0x28] sm:$0xff]
    %v2879 = vld [vmem:[%s9 + $0x30] sm:$0x3]
    %2881 = vset.pattern.permute.xlu0 0
    %2882 = vperm.xlu0 %2881, %v2873
    %v2883 = vpop.permute.xlu0 %2882
    %2886 = vset.pattern.permute.xlu0 0
    %2887 = vperm.xlu0 %2886, %v2874
    %v2888 = vpop.permute.xlu0 %2887
    %2891 = vset.pattern.permute.xlu0 0
    %2892 = vperm.xlu0 %2891, %v2875
    %v2893 = vpop.permute.xlu0 %2892
    %2896 = vset.pattern.permute.xlu0 0
    %2897 = vperm.xlu0 %2896, %v2876
    %v2898 = vpop.permute.xlu0 %2897
    %2901 = vset.pattern.permute.xlu0 0
    %2902 = vperm.xlu0 %2901, %v2877
    %v2903 = vpop.permute.xlu0 %2902
    %2906 = vset.pattern.permute.xlu0 0
    %2907 = vperm.xlu0 %2906, %v2878
    %v2908 = vpop.permute.xlu0 %2907
    %2911 = vset.pattern.permute.xlu0 0
    %2912 = vperm.xlu0 %2911, %v2879
    %v2913 = vpop.permute.xlu0 %2912
    %v2915 = vmul.f32 %v2831, %v2883
    %v2916 = vmul.f32 %v2832, %v2883
    %v2917 = vmul.f32 %v2833, %v2883
    %v2918 = vmul.f32 %v2834, %v2883
    %v2919 = vmul.f32 %v2835, %v2883
    %v2920 = vmul.f32 %v2836, %v2883
    %v2921 = vmul.f32 %v2837, %v2888
    %v2922 = vmul.f32 %v2838, %v2888
    %v2923 = vmul.f32 %v2839, %v2888
    %v2924 = vmul.f32 %v2840, %v2888
    %v2925 = vmul.f32 %v2841, %v2888
    %v2926 = vmul.f32 %v2842, %v2888
    %v2927 = vmul.f32 %v2843, %v2893
    %v2928 = vmul.f32 %v2844, %v2893
    %v2929 = vmul.f32 %v2845, %v2893
    %v2930 = vmul.f32 %v2846, %v2893
    %v2931 = vmul.f32 %v2847, %v2893
    %v2932 = vmul.f32 %v2848, %v2893
    %v2933 = vmul.f32 %v2849, %v2898
    %v2934 = vmul.f32 %v2850, %v2898
    %v2935 = vmul.f32 %v2851, %v2898
    %v2936 = vmul.f32 %v2852, %v2898
    %v2937 = vmul.f32 %v2853, %v2898
    %v2938 = vmul.f32 %v2854, %v2898
    %v2939 = vmul.f32 %v2855, %v2903
    %v2940 = vmul.f32 %v2856, %v2903
    %v2941 = vmul.f32 %v2857, %v2903
    %v2942 = vmul.f32 %v2858, %v2903
    %v2943 = vmul.f32 %v2859, %v2903
    %v2944 = vmul.f32 %v2860, %v2903
    %v2945 = vmul.f32 %v2861, %v2908
    %v2946 = vmul.f32 %v2862, %v2908
    %v2947 = vmul.f32 %v2863, %v2908
    %v2948 = vmul.f32 %v2864, %v2908
    %v2949 = vmul.f32 %v2865, %v2908
    %v2950 = vmul.f32 %v2866, %v2908
    %v2951 = vmul.f32 %v2867, %v2913
    %v2952 = vmul.f32 %v2868, %v2913
    %v2953 = vmul.f32 %v2869, %v2913
    %v2954 = vmul.f32 %v2870, %v2913
    %v2955 = vmul.f32 %v2871, %v2913
    %v2956 = vmul.f32 %v2872, %v2913
    %2957 = vst [vmem:[#allocation2] sm:$0xff] %v2915
    %2958 = vst [vmem:[#allocation2 + $0x8] sm:$0xff] %v2916
    %2959 = vst [vmem:[#allocation2 + $0x10] sm:$0xff] %v2917
    %2960 = vst [vmem:[#allocation2 + $0x18] sm:$0xff] %v2918
    %2961 = vst [vmem:[#allocation2 + $0x20] sm:$0xff] %v2919
    %2962 = vst [vmem:[#allocation2 + $0x28] sm:$0xff] %v2920
    %2963 = vst [vmem:[#allocation2 + $0x30] sm:$0xff] %v2921
    %2964 = vst [vmem:[#allocation2 + $0x38] sm:$0xff] %v2922
    %2965 = vst [vmem:[#allocation2 + $0x40] sm:$0xff] %v2923
    %2966 = vst [vmem:[#allocation2 + $0x48] sm:$0xff] %v2924
    %2967 = vst [vmem:[#allocation2 + $0x50] sm:$0xff] %v2925
    %2968 = vst [vmem:[#allocation2 + $0x58] sm:$0xff] %v2926
    %2969 = vst [vmem:[#allocation2 + $0x60] sm:$0xff] %v2927
    %2970 = vst [vmem:[#allocation2 + $0x68] sm:$0xff] %v2928
    %2971 = vst [vmem:[#allocation2 + $0x70] sm:$0xff] %v2929
    %2972 = vst [vmem:[#allocation2 + $0x78] sm:$0xff] %v2930
    %2973 = vst [vmem:[#allocation2 + $0x80] sm:$0xff] %v2931
    %2974 = vst [vmem:[#allocation2 + $0x88] sm:$0xff] %v2932
    %2975 = vst [vmem:[#allocation2 + $0x90] sm:$0xff] %v2933
    %2976 = vst [vmem:[#allocation2 + $0x98] sm:$0xff] %v2934
    %2977 = vst [vmem:[#allocation2 + $0xa0] sm:$0xff] %v2935
    %2978 = vst [vmem:[#allocation2 + $0xa8] sm:$0xff] %v2936
    %2979 = vst [vmem:[#allocation2 + $0xb0] sm:$0xff] %v2937
    %2980 = vst [vmem:[#allocation2 + $0xb8] sm:$0xff] %v2938
    %2981 = vst [vmem:[#allocation2 + $0xc0] sm:$0xff] %v2939
    %2982 = vst [vmem:[#allocation2 + $0xc8] sm:$0xff] %v2940
    %2983 = vst [vmem:[#allocation2 + $0xd0] sm:$0xff] %v2941
    %2984 = vst [vmem:[#allocation2 + $0xd8] sm:$0xff] %v2942
    %2985 = vst [vmem:[#allocation2 + $0xe0] sm:$0xff] %v2943
    %2986 = vst [vmem:[#allocation2 + $0xe8] sm:$0xff] %v2944
    %2987 = vst [vmem:[#allocation2 + $0xf0] sm:$0xff] %v2945
    %2988 = vst [vmem:[#allocation2 + $0xf8] sm:$0xff] %v2946
    %2989 = vst [vmem:[#allocation2 + $0x100] sm:$0xff] %v2947
    %2990 = vst [vmem:[#allocation2 + $0x108] sm:$0xff] %v2948
    %2991 = vst [vmem:[#allocation2 + $0x110] sm:$0xff] %v2949
    %2992 = vst [vmem:[#allocation2 + $0x118] sm:$0xff] %v2950
    %2993 = vst [vmem:[#allocation2 + $0x120] sm:$0x3] %v2951
    %2994 = vst [vmem:[#allocation2 + $0x128] sm:$0x3] %v2952
    %2995 = vst [vmem:[#allocation2 + $0x130] sm:$0x3] %v2953
    %2996 = vst [vmem:[#allocation2 + $0x138] sm:$0x3] %v2954
    %2997 = vst [vmem:[#allocation2 + $0x140] sm:$0x3] %v2955
    %2998 = vst [vmem:[#allocation2 + $0x148] sm:$0x3] %v2956
    %v2999 = vld [vmem:[#allocation2] sm:$0xff]
    %v3000 = vld [vmem:[#allocation2 + $0x8] sm:$0xff]
    %v3001 = vld [vmem:[#allocation2 + $0x10] sm:$0xff]
    %v3002 = vld [vmem:[#allocation2 + $0x18] sm:$0xff]
    %v3003 = vld [vmem:[#allocation2 + $0x20] sm:$0xff]
    %v3004 = vld [vmem:[#allocation2 + $0x28] sm:$0xff]
    %v3005 = vld [vmem:[#allocation2 + $0x30] sm:$0xff]
    %v3006 = vld [vmem:[#allocation2 + $0x38] sm:$0xff]
    %v3007 = vld [vmem:[#allocation2 + $0x40] sm:$0xff]
    %v3008 = vld [vmem:[#allocation2 + $0x48] sm:$0xff]
    %v3009 = vld [vmem:[#allocation2 + $0x50] sm:$0xff]
    %v3010 = vld [vmem:[#allocation2 + $0x58] sm:$0xff]
    %v3011 = vld [vmem:[#allocation2 + $0x60] sm:$0xff]
    %v3012 = vld [vmem:[#allocation2 + $0x68] sm:$0xff]
    %v3013 = vld [vmem:[#allocation2 + $0x70] sm:$0xff]
    %v3014 = vld [vmem:[#allocation2 + $0x78] sm:$0xff]
    %v3015 = vld [vmem:[#allocation2 + $0x80] sm:$0xff]
    %v3016 = vld [vmem:[#allocation2 + $0x88] sm:$0xff]
    %v3017 = vld [vmem:[#allocation2 + $0x90] sm:$0xff]
    %v3018 = vld [vmem:[#allocation2 + $0x98] sm:$0xff]
    %v3019 = vld [vmem:[#allocation2 + $0xa0] sm:$0xff]
    %v3020 = vld [vmem:[#allocation2 + $0xa8] sm:$0xff]
    %v3021 = vld [vmem:[#allocation2 + $0xb0] sm:$0xff]
    %v3022 = vld [vmem:[#allocation2 + $0xb8] sm:$0xff]
    %v3023 = vld [vmem:[#allocation2 + $0xc0] sm:$0xff]
    %v3024 = vld [vmem:[#allocation2 + $0xc8] sm:$0xff]
    %v3025 = vld [vmem:[#allocation2 + $0xd0] sm:$0xff]
    %v3026 = vld [vmem:[#allocation2 + $0xd8] sm:$0xff]
    %v3027 = vld [vmem:[#allocation2 + $0xe0] sm:$0xff]
    %v3028 = vld [vmem:[#allocation2 + $0xe8] sm:$0xff]
    %v3029 = vld [vmem:[#allocation2 + $0xf0] sm:$0xff]
    %v3030 = vld [vmem:[#allocation2 + $0xf8] sm:$0xff]
    %v3031 = vld [vmem:[#allocation2 + $0x100] sm:$0xff]
    %v3032 = vld [vmem:[#allocation2 + $0x108] sm:$0xff]
    %v3033 = vld [vmem:[#allocation2 + $0x110] sm:$0xff]
    %v3034 = vld [vmem:[#allocation2 + $0x118] sm:$0xff]
    %v3035 = vld [vmem:[#allocation2 + $0x120] sm:$0x3]
    %v3036 = vld [vmem:[#allocation2 + $0x128] sm:$0x3]
    %v3037 = vld [vmem:[#allocation2 + $0x130] sm:$0x3]
    %v3038 = vld [vmem:[#allocation2 + $0x138] sm:$0x3]
    %v3039 = vld [vmem:[#allocation2 + $0x140] sm:$0x3]
    %v3040 = vld [vmem:[#allocation2 + $0x148] sm:$0x3]
    %v3041 = vld [vmem:[#allocation13] sm:$0xff]
    %v3042 = vld [vmem:[#allocation13 + $0x8] sm:$0xff]
    %v3043 = vld [vmem:[#allocation13 + $0x10] sm:$0xff]
    %v3044 = vld [vmem:[#allocation13 + $0x18] sm:$0x3]
    %vm3045 = vcmask 408576
    %v3047 = vsel %vm3045, %v3041, 0
    %v3050 = vsel %vm3045, %v3042, 0
    %v3053 = vsel %vm3045, %v3043, 0
    %v3056 = vsel %vm3045, %v3044, 0
    %v3059 = vsel %vm364, %v3035, 0
    %v3062 = vsel %vm364, %v3036, 0
    %v3065 = vsel %vm364, %v3037, 0
    %v3068 = vsel %vm364, %v3038, 0
    %v3071 = vsel %vm364, %v3039, 0
    %v3074 = vsel %vm364, %v3040, 0
    %3076 = vmatpush.msra.mxu0 0.0
    %3077 = vmatpush.msra.mxu0 0.0
    %3078 = vmatpush.msra.mxu0 0.0
    %3079 = vmatpush.msra.mxu0 0.0
    %3080 = vmatpush.msra.mxu0 0.0
    %3081 = vmatpush.msra.mxu0 0.0
    %3082 = vmatpush.msra.mxu0 0.0
    %3083 = vmatpush.msra.mxu0 0.0
    %3084 = vmatpush.msra.mxu0 0.0
    %3085 = vmatpush.msra.mxu0 %v3059
    %3086 = vmatpush.msra.mxu0 %v3029
    %3087 = vmatpush.msra.mxu0 %v3023
    %3088 = vmatpush.msra.mxu0 %v3017
    %3089 = vmatpush.msra.mxu0 %v3011
    %3090 = vmatpush.msra.mxu0 %v3005
    %3091 = vmatpush.msra.mxu0 %v2999
    %3092 = vmatmul.f32.gmra.mxu0 %v3047
    %v3093 = vpop.f32.mrf.mxu0
    %v3094 = vadd.f32 0.0, %v3093
    %3095 = vmatmul.f32.gmra.mxu0 %v3050
    %v3096 = vpop.f32.mrf.mxu0
    %v3097 = vadd.f32 0.0, %v3096
    %3098 = vmatmul.f32.gmra.mxu0 %v3053
    %v3099 = vpop.f32.mrf.mxu0
    %v3100 = vadd.f32 0.0, %v3099
    %3101 = vmatmul.f32.gmra.mxu0 %v3056
    %v3102 = vpop.f32.mrf.mxu0
    %v3103 = vadd.f32 0.0, %v3102
    %3104 = vdwg.mxu0
    %3105 = vmatpush.msra.mxu0 0.0
    %3106 = vmatpush.msra.mxu0 0.0
    %3107 = vmatpush.msra.mxu0 0.0
    %3108 = vmatpush.msra.mxu0 0.0
    %3109 = vmatpush.msra.mxu0 0.0
    %3110 = vmatpush.msra.mxu0 0.0
    %3111 = vmatpush.msra.mxu0 0.0
    %3112 = vmatpush.msra.mxu0 0.0
    %3113 = vmatpush.msra.mxu0 0.0
    %3114 = vmatpush.msra.mxu0 %v3062
    %3115 = vmatpush.msra.mxu0 %v3030
    %3116 = vmatpush.msra.mxu0 %v3024
    %3117 = vmatpush.msra.mxu0 %v3018
    %3118 = vmatpush.msra.mxu0 %v3012
    %3119 = vmatpush.msra.mxu0 %v3006
    %3120 = vmatpush.msra.mxu0 %v3000
    %3121 = vmatmul.f32.gmra.mxu0 %v3047
    %v3122 = vpop.f32.mrf.mxu0
    %v3123 = vadd.f32 0.0, %v3122
    %3124 = vmatmul.f32.gmra.mxu0 %v3050
    %v3125 = vpop.f32.mrf.mxu0
    %v3126 = vadd.f32 0.0, %v3125
    %3127 = vmatmul.f32.gmra.mxu0 %v3053
    %v3128 = vpop.f32.mrf.mxu0
    %v3129 = vadd.f32 0.0, %v3128
    %3130 = vmatmul.f32.gmra.mxu0 %v3056
    %v3131 = vpop.f32.mrf.mxu0
    %v3132 = vadd.f32 0.0, %v3131
    %3133 = vdwg.mxu0
    %3134 = vmatpush.msra.mxu0 0.0
    %3135 = vmatpush.msra.mxu0 0.0
    %3136 = vmatpush.msra.mxu0 0.0
    %3137 = vmatpush.msra.mxu0 0.0
    %3138 = vmatpush.msra.mxu0 0.0
    %3139 = vmatpush.msra.mxu0 0.0
    %3140 = vmatpush.msra.mxu0 0.0
    %3141 = vmatpush.msra.mxu0 0.0
    %3142 = vmatpush.msra.mxu0 0.0
    %3143 = vmatpush.msra.mxu0 %v3065
    %3144 = vmatpush.msra.mxu0 %v3031
    %3145 = vmatpush.msra.mxu0 %v3025
    %3146 = vmatpush.msra.mxu0 %v3019
    %3147 = vmatpush.msra.mxu0 %v3013
    %3148 = vmatpush.msra.mxu0 %v3007
    %3149 = vmatpush.msra.mxu0 %v3001
    %3150 = vmatmul.f32.gmra.mxu0 %v3047
    %v3151 = vpop.f32.mrf.mxu0
    %v3152 = vadd.f32 0.0, %v3151
    %3153 = vmatmul.f32.gmra.mxu0 %v3050
    %v3154 = vpop.f32.mrf.mxu0
    %v3155 = vadd.f32 0.0, %v3154
    %3156 = vmatmul.f32.gmra.mxu0 %v3053
    %v3157 = vpop.f32.mrf.mxu0
    %v3158 = vadd.f32 0.0, %v3157
    %3159 = vmatmul.f32.gmra.mxu0 %v3056
    %v3160 = vpop.f32.mrf.mxu0
    %v3161 = vadd.f32 0.0, %v3160
    %3162 = vdwg.mxu0
    %3163 = vmatpush.msra.mxu0 0.0
    %3164 = vmatpush.msra.mxu0 0.0
    %3165 = vmatpush.msra.mxu0 0.0
    %3166 = vmatpush.msra.mxu0 0.0
    %3167 = vmatpush.msra.mxu0 0.0
    %3168 = vmatpush.msra.mxu0 0.0
    %3169 = vmatpush.msra.mxu0 0.0
    %3170 = vmatpush.msra.mxu0 0.0
    %3171 = vmatpush.msra.mxu0 0.0
    %3172 = vmatpush.msra.mxu0 %v3068
    %3173 = vmatpush.msra.mxu0 %v3032
    %3174 = vmatpush.msra.mxu0 %v3026
    %3175 = vmatpush.msra.mxu0 %v3020
    %3176 = vmatpush.msra.mxu0 %v3014
    %3177 = vmatpush.msra.mxu0 %v3008
    %3178 = vmatpush.msra.mxu0 %v3002
    %3179 = vmatmul.f32.gmra.mxu0 %v3047
    %v3180 = vpop.f32.mrf.mxu0
    %v3181 = vadd.f32 0.0, %v3180
    %3182 = vmatmul.f32.gmra.mxu0 %v3050
    %v3183 = vpop.f32.mrf.mxu0
    %v3184 = vadd.f32 0.0, %v3183
    %3185 = vmatmul.f32.gmra.mxu0 %v3053
    %v3186 = vpop.f32.mrf.mxu0
    %v3187 = vadd.f32 0.0, %v3186
    %3188 = vmatmul.f32.gmra.mxu0 %v3056
    %v3189 = vpop.f32.mrf.mxu0
    %v3190 = vadd.f32 0.0, %v3189
    %3191 = vdwg.mxu0
    %3192 = vmatpush.msra.mxu0 0.0
    %3193 = vmatpush.msra.mxu0 0.0
    %3194 = vmatpush.msra.mxu0 0.0
    %3195 = vmatpush.msra.mxu0 0.0
    %3196 = vmatpush.msra.mxu0 0.0
    %3197 = vmatpush.msra.mxu0 0.0
    %3198 = vmatpush.msra.mxu0 0.0
    %3199 = vmatpush.msra.mxu0 0.0
    %3200 = vmatpush.msra.mxu0 0.0
    %3201 = vmatpush.msra.mxu0 %v3071
    %3202 = vmatpush.msra.mxu0 %v3033
    %3203 = vmatpush.msra.mxu0 %v3027
    %3204 = vmatpush.msra.mxu0 %v3021
    %3205 = vmatpush.msra.mxu0 %v3015
    %3206 = vmatpush.msra.mxu0 %v3009
    %3207 = vmatpush.msra.mxu0 %v3003
    %3208 = vmatmul.f32.gmra.mxu0 %v3047
    %v3209 = vpop.f32.mrf.mxu0
    %v3210 = vadd.f32 0.0, %v3209
    %3211 = vmatmul.f32.gmra.mxu0 %v3050
    %v3212 = vpop.f32.mrf.mxu0
    %v3213 = vadd.f32 0.0, %v3212
    %3214 = vmatmul.f32.gmra.mxu0 %v3053
    %v3215 = vpop.f32.mrf.mxu0
    %v3216 = vadd.f32 0.0, %v3215
    %3217 = vmatmul.f32.gmra.mxu0 %v3056
    %v3218 = vpop.f32.mrf.mxu0
    %v3219 = vadd.f32 0.0, %v3218
    %3220 = vdwg.mxu0
    %3221 = vmatpush.msra.mxu0 0.0
    %3222 = vmatpush.msra.mxu0 0.0
    %3223 = vmatpush.msra.mxu0 0.0
    %3224 = vmatpush.msra.mxu0 0.0
    %3225 = vmatpush.msra.mxu0 0.0
    %3226 = vmatpush.msra.mxu0 0.0
    %3227 = vmatpush.msra.mxu0 0.0
    %3228 = vmatpush.msra.mxu0 0.0
    %3229 = vmatpush.msra.mxu0 0.0
    %3230 = vmatpush.msra.mxu0 %v3074
    %3231 = vmatpush.msra.mxu0 %v3034
    %3232 = vmatpush.msra.mxu0 %v3028
    %3233 = vmatpush.msra.mxu0 %v3022
    %3234 = vmatpush.msra.mxu0 %v3016
    %3235 = vmatpush.msra.mxu0 %v3010
    %3236 = vmatpush.msra.mxu0 %v3004
    %3237 = vmatmul.f32.gmra.mxu0 %v3047
    %v3238 = vpop.f32.mrf.mxu0
    %v3239 = vadd.f32 0.0, %v3238
    %3240 = vmatmul.f32.gmra.mxu0 %v3050
    %v3241 = vpop.f32.mrf.mxu0
    %v3242 = vadd.f32 0.0, %v3241
    %3243 = vmatmul.f32.gmra.mxu0 %v3053
    %v3244 = vpop.f32.mrf.mxu0
    %v3245 = vadd.f32 0.0, %v3244
    %3246 = vmatmul.f32.gmra.mxu0 %v3056
    %v3247 = vpop.f32.mrf.mxu0
    %v3248 = vadd.f32 0.0, %v3247
    %3249 = vdwg.mxu0
    %v3250 = vld [vmem:[#allocation10] sm:$0xff]
    %v3251 = vld [vmem:[#allocation10 + $0x8] sm:$0xff]
    %v3252 = vld [vmem:[#allocation10 + $0x10] sm:$0xff]
    %v3253 = vld [vmem:[#allocation10 + $0x18] sm:$0xff]
    %v3254 = vld [vmem:[#allocation10 + $0x20] sm:$0xff]
    %v3255 = vld [vmem:[#allocation10 + $0x28] sm:$0xff]
    %v3256 = vld [vmem:[#allocation10 + $0x30] sm:$0xff]
    %v3257 = vld [vmem:[#allocation10 + $0x38] sm:$0xff]
    %v3258 = vld [vmem:[#allocation10 + $0x40] sm:$0xff]
    %v3259 = vld [vmem:[#allocation10 + $0x48] sm:$0xff]
    %v3260 = vld [vmem:[#allocation10 + $0x50] sm:$0xff]
    %v3261 = vld [vmem:[#allocation10 + $0x58] sm:$0xff]
    %v3262 = vld [vmem:[#allocation10 + $0x60] sm:$0xff]
    %v3263 = vld [vmem:[#allocation10 + $0x68] sm:$0xff]
    %v3264 = vld [vmem:[#allocation10 + $0x70] sm:$0xff]
    %v3265 = vld [vmem:[#allocation10 + $0x78] sm:$0xff]
    %v3266 = vld [vmem:[#allocation10 + $0x80] sm:$0xff]
    %v3267 = vld [vmem:[#allocation10 + $0x88] sm:$0xff]
    %v3268 = vld [vmem:[#allocation10 + $0x90] sm:$0xff]
    %v3269 = vld [vmem:[#allocation10 + $0x98] sm:$0xff]
    %v3270 = vld [vmem:[#allocation10 + $0xa0] sm:$0xff]
    %v3271 = vld [vmem:[#allocation10 + $0xa8] sm:$0xff]
    %v3272 = vld [vmem:[#allocation10 + $0xb0] sm:$0xff]
    %v3273 = vld [vmem:[#allocation10 + $0xb8] sm:$0xff]
    %v3274 = vld [vmem:[#allocation10 + $0xc0] sm:$0xff]
    %v3275 = vld [vmem:[#allocation10 + $0xc8] sm:$0xff]
    %v3276 = vld [vmem:[#allocation10 + $0xd0] sm:$0xff]
    %v3277 = vld [vmem:[#allocation10 + $0xd8] sm:$0xff]
    %v3278 = vld [vmem:[#allocation10 + $0xe0] sm:$0xff]
    %v3279 = vld [vmem:[#allocation10 + $0xe8] sm:$0xff]
    %v3280 = vld [vmem:[#allocation10 + $0xf0] sm:$0xff]
    %v3281 = vld [vmem:[#allocation10 + $0xf8] sm:$0xff]
    %v3282 = vld [vmem:[#allocation10 + $0x100] sm:$0xff]
    %v3283 = vld [vmem:[#allocation10 + $0x108] sm:$0xff]
    %v3284 = vld [vmem:[#allocation10 + $0x110] sm:$0xff]
    %v3285 = vld [vmem:[#allocation10 + $0x118] sm:$0xff]
    %v3286 = vld [vmem:[#allocation10 + $0x120] sm:$0xff]
    %v3287 = vld [vmem:[#allocation10 + $0x128] sm:$0xff]
    %v3288 = vld [vmem:[#allocation10 + $0x130] sm:$0xff]
    %v3289 = vld [vmem:[#allocation10 + $0x138] sm:$0xff]
    %v3290 = vld [vmem:[#allocation10 + $0x140] sm:$0xff]
    %v3291 = vld [vmem:[#allocation10 + $0x148] sm:$0xff]
    %v3292 = vld [vmem:[#allocation10 + $0x150] sm:$0xff]
    %v3293 = vld [vmem:[#allocation10 + $0x158] sm:$0xff]
    %v3294 = vld [vmem:[#allocation10 + $0x160] sm:$0xff]
    %v3295 = vld [vmem:[#allocation10 + $0x168] sm:$0xff]
    %v3296 = vld [vmem:[#allocation10 + $0x170] sm:$0xff]
    %v3297 = vld [vmem:[#allocation10 + $0x178] sm:$0xff]
    %v3298 = vld [vmem:[#allocation10 + $0x180] sm:$0xff]
    %v3299 = vld [vmem:[#allocation10 + $0x188] sm:$0xff]
    %v3300 = vld [vmem:[#allocation10 + $0x190] sm:$0xff]
    %v3301 = vld [vmem:[#allocation10 + $0x198] sm:$0xff]
    %v3302 = vld [vmem:[#allocation10 + $0x1a0] sm:$0xff]
    %v3303 = vld [vmem:[#allocation10 + $0x1a8] sm:$0xff]
    %v3304 = vld [vmem:[#allocation10 + $0x1b0] sm:$0xff]
    %v3305 = vld [vmem:[#allocation10 + $0x1b8] sm:$0xff]
    %v3306 = vld [vmem:[#allocation10 + $0x1c0] sm:$0xff]
    %v3307 = vld [vmem:[#allocation10 + $0x1c8] sm:$0xff]
    %v3308 = vld [vmem:[#allocation10 + $0x1d0] sm:$0xff]
    %v3309 = vld [vmem:[#allocation10 + $0x1d8] sm:$0xff]
    %v3310 = vld [vmem:[#allocation10 + $0x1e0] sm:$0xff]
    %v3311 = vld [vmem:[#allocation10 + $0x1e8] sm:$0xff]
    %v3312 = vld [vmem:[#allocation10 + $0x1f0] sm:$0xff]
    %v3313 = vld [vmem:[#allocation10 + $0x1f8] sm:$0xff]
    %v3314 = vld [vmem:[#allocation10 + $0x200] sm:$0xff]
    %v3315 = vld [vmem:[#allocation10 + $0x208] sm:$0xff]
    %v3316 = vld [vmem:[#allocation10 + $0x210] sm:$0xff]
    %v3317 = vld [vmem:[#allocation10 + $0x218] sm:$0xff]
    %v3318 = vld [vmem:[#allocation10 + $0x220] sm:$0xff]
    %v3319 = vld [vmem:[#allocation10 + $0x228] sm:$0xff]
    %v3320 = vld [vmem:[#allocation10 + $0x230] sm:$0xff]
    %v3321 = vld [vmem:[#allocation10 + $0x238] sm:$0xff]
    %v3322 = vld [vmem:[#allocation10 + $0x240] sm:$0xff]
    %v3323 = vld [vmem:[#allocation10 + $0x248] sm:$0xff]
    %v3324 = vld [vmem:[#allocation10 + $0x250] sm:$0xff]
    %v3325 = vld [vmem:[#allocation10 + $0x258] sm:$0xff]
    %v3326 = vld [vmem:[#allocation10 + $0x260] sm:$0xff]
    %v3327 = vld [vmem:[#allocation10 + $0x268] sm:$0xff]
    %v3328 = vld [vmem:[#allocation10 + $0x270] sm:$0xff]
    %v3329 = vld [vmem:[#allocation10 + $0x278] sm:$0xff]
    %v3330 = vld [vmem:[#allocation10 + $0x280] sm:$0xff]
    %v3331 = vld [vmem:[#allocation10 + $0x288] sm:$0xff]
    %v3332 = vld [vmem:[#allocation10 + $0x290] sm:$0xff]
    %v3333 = vld [vmem:[#allocation10 + $0x298] sm:$0xff]
    %v3334 = vld [vmem:[#allocation10 + $0x2a0] sm:$0xff]
    %v3335 = vld [vmem:[#allocation10 + $0x2a8] sm:$0xff]
    %v3336 = vld [vmem:[#allocation10 + $0x2b0] sm:$0xff]
    %v3337 = vld [vmem:[#allocation10 + $0x2b8] sm:$0xff]
    %v3338 = vld [vmem:[#allocation10 + $0x2c0] sm:$0xff]
    %v3339 = vld [vmem:[#allocation10 + $0x2c8] sm:$0xff]
    %v3340 = vld [vmem:[#allocation10 + $0x2d0] sm:$0xff]
    %v3341 = vld [vmem:[#allocation10 + $0x2d8] sm:$0xff]
    %v3342 = vld [vmem:[#allocation10 + $0x2e0] sm:$0xff]
    %v3343 = vld [vmem:[#allocation10 + $0x2e8] sm:$0xff]
    %v3344 = vld [vmem:[#allocation10 + $0x2f0] sm:$0xff]
    %v3345 = vld [vmem:[#allocation10 + $0x2f8] sm:$0xff]
    %v3346 = vld [vmem:[#allocation10 + $0x300] sm:$0xff]
    %v3347 = vld [vmem:[#allocation10 + $0x308] sm:$0xff]
    %v3348 = vld [vmem:[#allocation10 + $0x310] sm:$0xff]
    %v3349 = vld [vmem:[#allocation10 + $0x318] sm:$0xff]
    %v3350 = vld [vmem:[#allocation10 + $0x320] sm:$0xff]
    %v3351 = vld [vmem:[#allocation10 + $0x328] sm:$0xff]
    %v3352 = vld [vmem:[#allocation10 + $0x330] sm:$0xff]
    %v3353 = vld [vmem:[#allocation10 + $0x338] sm:$0xff]
    %v3354 = vld [vmem:[#allocation10 + $0x340] sm:$0xff]
    %v3355 = vld [vmem:[#allocation10 + $0x348] sm:$0xff]
    %v3356 = vld [vmem:[#allocation10 + $0x350] sm:$0xff]
    %v3357 = vld [vmem:[#allocation10 + $0x358] sm:$0xff]
    %v3358 = vld [vmem:[#allocation10 + $0x360] sm:$0xff]
    %v3359 = vld [vmem:[#allocation10 + $0x368] sm:$0xff]
    %v3360 = vld [vmem:[#allocation10 + $0x370] sm:$0xff]
    %v3361 = vld [vmem:[#allocation10 + $0x378] sm:$0xff]
    %v3362 = vld [vmem:[#allocation10 + $0x380] sm:$0xff]
    %v3363 = vld [vmem:[#allocation10 + $0x388] sm:$0xff]
    %v3364 = vld [vmem:[#allocation10 + $0x390] sm:$0xff]
    %v3365 = vld [vmem:[#allocation10 + $0x398] sm:$0xff]
    %v3366 = vld [vmem:[#allocation10 + $0x3a0] sm:$0xff]
    %v3367 = vld [vmem:[#allocation10 + $0x3a8] sm:$0xff]
    %v3368 = vld [vmem:[#allocation10 + $0x3b0] sm:$0xff]
    %v3369 = vld [vmem:[#allocation10 + $0x3b8] sm:$0xff]
    %v3370 = vld [vmem:[#allocation10 + $0x3c0] sm:$0xff]
    %v3371 = vld [vmem:[#allocation10 + $0x3c8] sm:$0xff]
    %v3372 = vld [vmem:[#allocation10 + $0x3d0] sm:$0xff]
    %v3373 = vld [vmem:[#allocation10 + $0x3d8] sm:$0xff]
    %v3374 = vld [vmem:[#allocation10 + $0x3e0] sm:$0xff]
    %v3375 = vld [vmem:[#allocation10 + $0x3e8] sm:$0xff]
    %v3376 = vld [vmem:[#allocation10 + $0x3f0] sm:$0xff]
    %v3377 = vld [vmem:[#allocation10 + $0x3f8] sm:$0xff]
    %v3378 = vld [vmem:[#allocation10 + $0x400] sm:$0xff]
    %v3379 = vld [vmem:[#allocation10 + $0x408] sm:$0xff]
    %v3380 = vld [vmem:[#allocation10 + $0x410] sm:$0xff]
    %v3381 = vld [vmem:[#allocation10 + $0x418] sm:$0xff]
    %v3382 = vld [vmem:[#allocation10 + $0x420] sm:$0xff]
    %v3383 = vld [vmem:[#allocation10 + $0x428] sm:$0xff]
    %v3384 = vld [vmem:[#allocation10 + $0x430] sm:$0xff]
    %v3385 = vld [vmem:[#allocation10 + $0x438] sm:$0xff]
    %v3386 = vld [vmem:[#allocation10 + $0x440] sm:$0xff]
    %v3387 = vld [vmem:[#allocation10 + $0x448] sm:$0xff]
    %v3388 = vld [vmem:[#allocation10 + $0x450] sm:$0xff]
    %v3389 = vld [vmem:[#allocation10 + $0x458] sm:$0xff]
    %v3390 = vld [vmem:[#allocation10 + $0x460] sm:$0xff]
    %v3391 = vld [vmem:[#allocation10 + $0x468] sm:$0xff]
    %v3392 = vld [vmem:[#allocation10 + $0x470] sm:$0xff]
    %v3393 = vld [vmem:[#allocation10 + $0x478] sm:$0xff]
    %v3394 = vld [vmem:[#allocation10 + $0x480] sm:$0xff]
    %v3395 = vld [vmem:[#allocation10 + $0x488] sm:$0xff]
    %v3396 = vld [vmem:[#allocation10 + $0x490] sm:$0xff]
    %v3397 = vld [vmem:[#allocation10 + $0x498] sm:$0xff]
    %v3398 = vld [vmem:[#allocation10 + $0x4a0] sm:$0xff]
    %v3399 = vld [vmem:[#allocation10 + $0x4a8] sm:$0xff]
    %v3400 = vld [vmem:[#allocation10 + $0x4b0] sm:$0xff]
    %v3401 = vld [vmem:[#allocation10 + $0x4b8] sm:$0xff]
    %v3402 = vld [vmem:[#allocation10 + $0x4c0] sm:$0xff]
    %v3403 = vld [vmem:[#allocation10 + $0x4c8] sm:$0xff]
    %v3404 = vld [vmem:[#allocation10 + $0x4d0] sm:$0xff]
    %v3405 = vld [vmem:[#allocation10 + $0x4d8] sm:$0xff]
    %v3406 = vld [vmem:[#allocation10 + $0x4e0] sm:$0xff]
    %v3407 = vld [vmem:[#allocation10 + $0x4e8] sm:$0xff]
    %v3408 = vld [vmem:[#allocation10 + $0x4f0] sm:$0xff]
    %v3409 = vld [vmem:[#allocation10 + $0x4f8] sm:$0xff]
    %v3410 = vld [vmem:[#allocation10 + $0x500] sm:$0xff]
    %v3411 = vld [vmem:[#allocation10 + $0x508] sm:$0xff]
    %v3412 = vld [vmem:[#allocation10 + $0x510] sm:$0xff]
    %v3413 = vld [vmem:[#allocation10 + $0x518] sm:$0xff]
    %v3414 = vld [vmem:[#allocation10 + $0x520] sm:$0xff]
    %v3415 = vld [vmem:[#allocation10 + $0x528] sm:$0xff]
    %v3416 = vld [vmem:[#allocation10 + $0x530] sm:$0xff]
    %v3417 = vld [vmem:[#allocation10 + $0x538] sm:$0xff]
    %v3418 = vld [vmem:[#allocation10 + $0x540] sm:$0xff]
    %v3419 = vld [vmem:[#allocation10 + $0x548] sm:$0xff]
    %v3420 = vld [vmem:[#allocation10 + $0x550] sm:$0xff]
    %v3421 = vld [vmem:[#allocation10 + $0x558] sm:$0xff]
    %v3422 = vld [vmem:[#allocation10 + $0x560] sm:$0xff]
    %v3423 = vld [vmem:[#allocation10 + $0x568] sm:$0xff]
    %v3424 = vld [vmem:[#allocation10 + $0x570] sm:$0xff]
    %v3425 = vld [vmem:[#allocation10 + $0x578] sm:$0xff]
    %v3426 = vld [vmem:[#allocation10 + $0x580] sm:$0xff]
    %v3427 = vld [vmem:[#allocation10 + $0x588] sm:$0xff]
    %v3428 = vld [vmem:[#allocation10 + $0x590] sm:$0xff]
    %v3429 = vld [vmem:[#allocation10 + $0x598] sm:$0xff]
    %v3430 = vld [vmem:[#allocation10 + $0x5a0] sm:$0xff]
    %v3431 = vld [vmem:[#allocation10 + $0x5a8] sm:$0xff]
    %v3432 = vld [vmem:[#allocation10 + $0x5b0] sm:$0xff]
    %v3433 = vld [vmem:[#allocation10 + $0x5b8] sm:$0xff]
    %v3434 = vld [vmem:[#allocation10 + $0x5c0] sm:$0xff]
    %v3435 = vld [vmem:[#allocation10 + $0x5c8] sm:$0xff]
    %v3436 = vld [vmem:[#allocation10 + $0x5d0] sm:$0xff]
    %v3437 = vld [vmem:[#allocation10 + $0x5d8] sm:$0xff]
    %v3438 = vld [vmem:[#allocation10 + $0x5e0] sm:$0xff]
    %v3439 = vld [vmem:[#allocation10 + $0x5e8] sm:$0xff]
    %v3440 = vld [vmem:[#allocation10 + $0x5f0] sm:$0xff]
    %v3441 = vld [vmem:[#allocation10 + $0x5f8] sm:$0xff]
    %v3442 = vld [vmem:[#allocation10 + $0x600] sm:$0xff]
    %v3443 = vld [vmem:[#allocation10 + $0x608] sm:$0xff]
    %v3444 = vld [vmem:[#allocation10 + $0x610] sm:$0xff]
    %v3445 = vld [vmem:[#allocation10 + $0x618] sm:$0xff]
    %v3446 = vld [vmem:[#allocation10 + $0x620] sm:$0xff]
    %v3447 = vld [vmem:[#allocation10 + $0x628] sm:$0xff]
    %v3448 = vld [vmem:[#allocation10 + $0x630] sm:$0xff]
    %v3449 = vld [vmem:[#allocation10 + $0x638] sm:$0xff]
    %v3450 = vld [vmem:[#allocation10 + $0x640] sm:$0xff]
    %v3451 = vld [vmem:[#allocation10 + $0x648] sm:$0xff]
    %v3452 = vld [vmem:[#allocation10 + $0x650] sm:$0xff]
    %v3453 = vld [vmem:[#allocation10 + $0x658] sm:$0xff]
    %v3454 = vld [vmem:[#allocation10 + $0x660] sm:$0xff]
    %v3455 = vld [vmem:[#allocation10 + $0x668] sm:$0xff]
    %v3456 = vld [vmem:[#allocation10 + $0x670] sm:$0xff]
    %v3457 = vld [vmem:[#allocation10 + $0x678] sm:$0xff]
    %v3458 = vld [vmem:[#allocation10 + $0x680] sm:$0xff]
    %v3459 = vld [vmem:[#allocation10 + $0x688] sm:$0xff]
    %v3460 = vld [vmem:[#allocation10 + $0x690] sm:$0xff]
    %v3461 = vld [vmem:[#allocation10 + $0x698] sm:$0xff]
    %v3462 = vld [vmem:[#allocation10 + $0x6a0] sm:$0xff]
    %v3463 = vld [vmem:[#allocation10 + $0x6a8] sm:$0xff]
    %v3464 = vld [vmem:[#allocation10 + $0x6b0] sm:$0xff]
    %v3465 = vld [vmem:[#allocation10 + $0x6b8] sm:$0xff]
    %v3466 = vld [vmem:[#allocation10 + $0x6c0] sm:$0xff]
    %v3467 = vld [vmem:[#allocation10 + $0x6c8] sm:$0xff]
    %v3468 = vld [vmem:[#allocation10 + $0x6d0] sm:$0xff]
    %v3469 = vld [vmem:[#allocation10 + $0x6d8] sm:$0xff]
    %v3470 = vld [vmem:[#allocation10 + $0x6e0] sm:$0xff]
    %v3471 = vld [vmem:[#allocation10 + $0x6e8] sm:$0xff]
    %v3472 = vld [vmem:[#allocation10 + $0x6f0] sm:$0xff]
    %v3473 = vld [vmem:[#allocation10 + $0x6f8] sm:$0xff]
    %v3474 = vld [vmem:[#allocation10 + $0x700] sm:$0xff]
    %v3475 = vld [vmem:[#allocation10 + $0x708] sm:$0xff]
    %v3476 = vld [vmem:[#allocation10 + $0x710] sm:$0xff]
    %v3477 = vld [vmem:[#allocation10 + $0x718] sm:$0xff]
    %v3478 = vld [vmem:[#allocation10 + $0x720] sm:$0xff]
    %v3479 = vld [vmem:[#allocation10 + $0x728] sm:$0xff]
    %v3480 = vld [vmem:[#allocation10 + $0x730] sm:$0xff]
    %v3481 = vld [vmem:[#allocation10 + $0x738] sm:$0xff]
    %v3482 = vld [vmem:[#allocation10 + $0x740] sm:$0xff]
    %v3483 = vld [vmem:[#allocation10 + $0x748] sm:$0xff]
    %v3484 = vld [vmem:[#allocation10 + $0x750] sm:$0xff]
    %v3485 = vld [vmem:[#allocation10 + $0x758] sm:$0xff]
    %v3486 = vld [vmem:[#allocation10 + $0x760] sm:$0xff]
    %v3487 = vld [vmem:[#allocation10 + $0x768] sm:$0xff]
    %v3488 = vld [vmem:[#allocation10 + $0x770] sm:$0xff]
    %v3489 = vld [vmem:[#allocation10 + $0x778] sm:$0xff]
    %v3490 = vld [vmem:[#allocation10 + $0x780] sm:$0xff]
    %v3491 = vld [vmem:[#allocation10 + $0x788] sm:$0xff]
    %v3492 = vld [vmem:[#allocation10 + $0x790] sm:$0xff]
    %v3493 = vld [vmem:[#allocation10 + $0x798] sm:$0xff]
    %v3494 = vld [vmem:[#allocation10 + $0x7a0] sm:$0xff]
    %v3495 = vld [vmem:[#allocation10 + $0x7a8] sm:$0xff]
    %v3496 = vld [vmem:[#allocation10 + $0x7b0] sm:$0xff]
    %v3497 = vld [vmem:[#allocation10 + $0x7b8] sm:$0xff]
    %v3498 = vld [vmem:[#allocation10 + $0x7c0] sm:$0xff]
    %v3499 = vld [vmem:[#allocation10 + $0x7c8] sm:$0xff]
    %v3500 = vld [vmem:[#allocation10 + $0x7d0] sm:$0xff]
    %v3501 = vld [vmem:[#allocation10 + $0x7d8] sm:$0xff]
    %v3502 = vld [vmem:[#allocation10 + $0x7e0] sm:$0xff]
    %v3503 = vld [vmem:[#allocation10 + $0x7e8] sm:$0xff]
    %v3504 = vld [vmem:[#allocation10 + $0x7f0] sm:$0xff]
    %v3505 = vld [vmem:[#allocation10 + $0x7f8] sm:$0xff]
    %v3506 = vld [vmem:[#allocation10 + $0x800] sm:$0xff]
    %v3507 = vld [vmem:[#allocation10 + $0x808] sm:$0xff]
    %v3508 = vld [vmem:[#allocation10 + $0x810] sm:$0xff]
    %v3509 = vld [vmem:[#allocation10 + $0x818] sm:$0xff]
    %v3510 = vld [vmem:[#allocation10 + $0x820] sm:$0xff]
    %v3511 = vld [vmem:[#allocation10 + $0x828] sm:$0xff]
    %v3512 = vld [vmem:[#allocation10 + $0x830] sm:$0xff]
    %v3513 = vld [vmem:[#allocation10 + $0x838] sm:$0xff]
    %v3514 = vld [vmem:[#allocation10 + $0x840] sm:$0xff]
    %v3515 = vld [vmem:[#allocation10 + $0x848] sm:$0xff]
    %v3516 = vld [vmem:[#allocation10 + $0x850] sm:$0xff]
    %v3517 = vld [vmem:[#allocation10 + $0x858] sm:$0xff]
    %v3518 = vld [vmem:[#allocation10 + $0x860] sm:$0xff]
    %v3519 = vld [vmem:[#allocation10 + $0x868] sm:$0xff]
    %v3520 = vld [vmem:[#allocation10 + $0x870] sm:$0xff]
    %v3521 = vld [vmem:[#allocation10 + $0x878] sm:$0xff]
    %v3522 = vld [vmem:[#allocation10 + $0x880] sm:$0xff]
    %v3523 = vld [vmem:[#allocation10 + $0x888] sm:$0xff]
    %v3524 = vld [vmem:[#allocation10 + $0x890] sm:$0xff]
    %v3525 = vld [vmem:[#allocation10 + $0x898] sm:$0xff]
    %v3526 = vld [vmem:[#allocation10 + $0x8a0] sm:$0xff]
    %v3527 = vld [vmem:[#allocation10 + $0x8a8] sm:$0xff]
    %v3528 = vld [vmem:[#allocation10 + $0x8b0] sm:$0xff]
    %v3529 = vld [vmem:[#allocation10 + $0x8b8] sm:$0xff]
    %v3530 = vld [vmem:[#allocation10 + $0x8c0] sm:$0xff]
    %v3531 = vld [vmem:[#allocation10 + $0x8c8] sm:$0xff]
    %v3532 = vld [vmem:[#allocation10 + $0x8d0] sm:$0xff]
    %v3533 = vld [vmem:[#allocation10 + $0x8d8] sm:$0xff]
    %v3534 = vld [vmem:[#allocation10 + $0x8e0] sm:$0xff]
    %v3535 = vld [vmem:[#allocation10 + $0x8e8] sm:$0xff]
    %v3536 = vld [vmem:[#allocation10 + $0x8f0] sm:$0xff]
    %v3537 = vld [vmem:[#allocation10 + $0x8f8] sm:$0xff]
    %s3538 = scalar_lea.vmem [#allocation13], 32
    %v3539 = vld [vmem:[%s3538] sm:$0xff]
    %v3540 = vld [vmem:[%s3538 + $0x8] sm:$0xff]
    %v3541 = vld [vmem:[%s3538 + $0x10] sm:$0xff]
    %v3542 = vld [vmem:[%s3538 + $0x18] sm:$0x3]
    %v3544 = vsel %vm3045, %v3539, 0
    %v3547 = vsel %vm3045, %v3540, 0
    %v3550 = vsel %vm3045, %v3541, 0
    %v3553 = vsel %vm3045, %v3542, 0
    %3555 = vmatpush.msra.mxu0 0.0
    %3556 = vmatpush.msra.mxu0 0.0
    %3557 = vmatpush.msra.mxu0 0.0
    %3558 = vmatpush.msra.mxu0 0.0
    %3559 = vmatpush.msra.mxu0 0.0
    %3560 = vmatpush.msra.mxu0 0.0
    %3561 = vmatpush.msra.mxu0 0.0
    %3562 = vmatpush.msra.mxu0 0.0
    %3563 = vmatpush.msra.mxu0 0.0
    %3564 = vmatpush.msra.mxu0 %v3059
    %3565 = vmatpush.msra.mxu0 %v3029
    %3566 = vmatpush.msra.mxu0 %v3023
    %3567 = vmatpush.msra.mxu0 %v3017
    %3568 = vmatpush.msra.mxu0 %v3011
    %3569 = vmatpush.msra.mxu0 %v3005
    %3570 = vmatpush.msra.mxu0 %v2999
    %3571 = vmatmul.f32.gmra.mxu0 %v3544
    %v3572 = vpop.f32.mrf.mxu0
    %v3573 = vadd.f32 0.0, %v3572
    %3574 = vmatmul.f32.gmra.mxu0 %v3547
    %v3575 = vpop.f32.mrf.mxu0
    %v3576 = vadd.f32 0.0, %v3575
    %3577 = vmatmul.f32.gmra.mxu0 %v3550
    %v3578 = vpop.f32.mrf.mxu0
    %v3579 = vadd.f32 0.0, %v3578
    %3580 = vmatmul.f32.gmra.mxu0 %v3553
    %v3581 = vpop.f32.mrf.mxu0
    %v3582 = vadd.f32 0.0, %v3581
    %3583 = vdwg.mxu0
    %3584 = vmatpush.msra.mxu0 0.0
    %3585 = vmatpush.msra.mxu0 0.0
    %3586 = vmatpush.msra.mxu0 0.0
    %3587 = vmatpush.msra.mxu0 0.0
    %3588 = vmatpush.msra.mxu0 0.0
    %3589 = vmatpush.msra.mxu0 0.0
    %3590 = vmatpush.msra.mxu0 0.0
    %3591 = vmatpush.msra.mxu0 0.0
    %3592 = vmatpush.msra.mxu0 0.0
    %3593 = vmatpush.msra.mxu0 %v3062
    %3594 = vmatpush.msra.mxu0 %v3030
    %3595 = vmatpush.msra.mxu0 %v3024
    %3596 = vmatpush.msra.mxu0 %v3018
    %3597 = vmatpush.msra.mxu0 %v3012
    %3598 = vmatpush.msra.mxu0 %v3006
    %3599 = vmatpush.msra.mxu0 %v3000
    %3600 = vmatmul.f32.gmra.mxu0 %v3544
    %v3601 = vpop.f32.mrf.mxu0
    %v3602 = vadd.f32 0.0, %v3601
    %3603 = vmatmul.f32.gmra.mxu0 %v3547
    %v3604 = vpop.f32.mrf.mxu0
    %v3605 = vadd.f32 0.0, %v3604
    %3606 = vmatmul.f32.gmra.mxu0 %v3550
    %v3607 = vpop.f32.mrf.mxu0
    %v3608 = vadd.f32 0.0, %v3607
    %3609 = vmatmul.f32.gmra.mxu0 %v3553
    %v3610 = vpop.f32.mrf.mxu0
    %v3611 = vadd.f32 0.0, %v3610
    %3612 = vdwg.mxu0
    %3613 = vmatpush.msra.mxu0 0.0
    %3614 = vmatpush.msra.mxu0 0.0
    %3615 = vmatpush.msra.mxu0 0.0
    %3616 = vmatpush.msra.mxu0 0.0
    %3617 = vmatpush.msra.mxu0 0.0
    %3618 = vmatpush.msra.mxu0 0.0
    %3619 = vmatpush.msra.mxu0 0.0
    %3620 = vmatpush.msra.mxu0 0.0
    %3621 = vmatpush.msra.mxu0 0.0
    %3622 = vmatpush.msra.mxu0 %v3065
    %3623 = vmatpush.msra.mxu0 %v3031
    %3624 = vmatpush.msra.mxu0 %v3025
    %3625 = vmatpush.msra.mxu0 %v3019
    %3626 = vmatpush.msra.mxu0 %v3013
    %3627 = vmatpush.msra.mxu0 %v3007
    %3628 = vmatpush.msra.mxu0 %v3001
    %3629 = vmatmul.f32.gmra.mxu0 %v3544
    %v3630 = vpop.f32.mrf.mxu0
    %v3631 = vadd.f32 0.0, %v3630
    %3632 = vmatmul.f32.gmra.mxu0 %v3547
    %v3633 = vpop.f32.mrf.mxu0
    %v3634 = vadd.f32 0.0, %v3633
    %3635 = vmatmul.f32.gmra.mxu0 %v3550
    %v3636 = vpop.f32.mrf.mxu0
    %v3637 = vadd.f32 0.0, %v3636
    %3638 = vmatmul.f32.gmra.mxu0 %v3553
    %v3639 = vpop.f32.mrf.mxu0
    %v3640 = vadd.f32 0.0, %v3639
    %3641 = vdwg.mxu0
    %3642 = vmatpush.msra.mxu0 0.0
    %3643 = vmatpush.msra.mxu0 0.0
    %3644 = vmatpush.msra.mxu0 0.0
    %3645 = vmatpush.msra.mxu0 0.0
    %3646 = vmatpush.msra.mxu0 0.0
    %3647 = vmatpush.msra.mxu0 0.0
    %3648 = vmatpush.msra.mxu0 0.0
    %3649 = vmatpush.msra.mxu0 0.0
    %3650 = vmatpush.msra.mxu0 0.0
    %3651 = vmatpush.msra.mxu0 %v3068
    %3652 = vmatpush.msra.mxu0 %v3032
    %3653 = vmatpush.msra.mxu0 %v3026
    %3654 = vmatpush.msra.mxu0 %v3020
    %3655 = vmatpush.msra.mxu0 %v3014
    %3656 = vmatpush.msra.mxu0 %v3008
    %3657 = vmatpush.msra.mxu0 %v3002
    %3658 = vmatmul.f32.gmra.mxu0 %v3544
    %v3659 = vpop.f32.mrf.mxu0
    %v3660 = vadd.f32 0.0, %v3659
    %3661 = vmatmul.f32.gmra.mxu0 %v3547
    %v3662 = vpop.f32.mrf.mxu0
    %v3663 = vadd.f32 0.0, %v3662
    %3664 = vmatmul.f32.gmra.mxu0 %v3550
    %v3665 = vpop.f32.mrf.mxu0
    %v3666 = vadd.f32 0.0, %v3665
    %3667 = vmatmul.f32.gmra.mxu0 %v3553
    %v3668 = vpop.f32.mrf.mxu0
    %v3669 = vadd.f32 0.0, %v3668
    %3670 = vdwg.mxu0
    %3671 = vmatpush.msra.mxu0 0.0
    %3672 = vmatpush.msra.mxu0 0.0
    %3673 = vmatpush.msra.mxu0 0.0
    %3674 = vmatpush.msra.mxu0 0.0
    %3675 = vmatpush.msra.mxu0 0.0
    %3676 = vmatpush.msra.mxu0 0.0
    %3677 = vmatpush.msra.mxu0 0.0
    %3678 = vmatpush.msra.mxu0 0.0
    %3679 = vmatpush.msra.mxu0 0.0
    %3680 = vmatpush.msra.mxu0 %v3071
    %3681 = vmatpush.msra.mxu0 %v3033
    %3682 = vmatpush.msra.mxu0 %v3027
    %3683 = vmatpush.msra.mxu0 %v3021
    %3684 = vmatpush.msra.mxu0 %v3015
    %3685 = vmatpush.msra.mxu0 %v3009
    %3686 = vmatpush.msra.mxu0 %v3003
    %3687 = vmatmul.f32.gmra.mxu0 %v3544
    %v3688 = vpop.f32.mrf.mxu0
    %v3689 = vadd.f32 0.0, %v3688
    %3690 = vmatmul.f32.gmra.mxu0 %v3547
    %v3691 = vpop.f32.mrf.mxu0
    %v3692 = vadd.f32 0.0, %v3691
    %3693 = vmatmul.f32.gmra.mxu0 %v3550
    %v3694 = vpop.f32.mrf.mxu0
    %v3695 = vadd.f32 0.0, %v3694
    %3696 = vmatmul.f32.gmra.mxu0 %v3553
    %v3697 = vpop.f32.mrf.mxu0
    %v3698 = vadd.f32 0.0, %v3697
    %3699 = vdwg.mxu0
    %3700 = vmatpush.msra.mxu0 0.0
    %3701 = vmatpush.msra.mxu0 0.0
    %3702 = vmatpush.msra.mxu0 0.0
    %3703 = vmatpush.msra.mxu0 0.0
    %3704 = vmatpush.msra.mxu0 0.0
    %3705 = vmatpush.msra.mxu0 0.0
    %3706 = vmatpush.msra.mxu0 0.0
    %3707 = vmatpush.msra.mxu0 0.0
    %3708 = vmatpush.msra.mxu0 0.0
    %3709 = vmatpush.msra.mxu0 %v3074
    %3710 = vmatpush.msra.mxu0 %v3034
    %3711 = vmatpush.msra.mxu0 %v3028
    %3712 = vmatpush.msra.mxu0 %v3022
    %3713 = vmatpush.msra.mxu0 %v3016
    %3714 = vmatpush.msra.mxu0 %v3010
    %3715 = vmatpush.msra.mxu0 %v3004
    %3716 = vmatmul.f32.gmra.mxu0 %v3544
    %v3717 = vpop.f32.mrf.mxu0
    %v3718 = vadd.f32 0.0, %v3717
    %3719 = vmatmul.f32.gmra.mxu0 %v3547
    %v3720 = vpop.f32.mrf.mxu0
    %v3721 = vadd.f32 0.0, %v3720
    %3722 = vmatmul.f32.gmra.mxu0 %v3550
    %v3723 = vpop.f32.mrf.mxu0
    %v3724 = vadd.f32 0.0, %v3723
    %3725 = vmatmul.f32.gmra.mxu0 %v3553
    %v3726 = vpop.f32.mrf.mxu0
    %v3727 = vadd.f32 0.0, %v3726
    %3728 = vdwg.mxu0
    %s3729 = scalar_lea.vmem [#allocation10], 2304
    %v3730 = vld [vmem:[%s3729] sm:$0xff]
    %v3731 = vld [vmem:[%s3729 + $0x8] sm:$0xff]
    %v3732 = vld [vmem:[%s3729 + $0x10] sm:$0xff]
    %v3733 = vld [vmem:[%s3729 + $0x18] sm:$0xff]
    %v3734 = vld [vmem:[%s3729 + $0x20] sm:$0xff]
    %v3735 = vld [vmem:[%s3729 + $0x28] sm:$0xff]
    %v3736 = vld [vmem:[%s3729 + $0x30] sm:$0xff]
    %v3737 = vld [vmem:[%s3729 + $0x38] sm:$0xff]
    %v3738 = vld [vmem:[%s3729 + $0x40] sm:$0xff]
    %v3739 = vld [vmem:[%s3729 + $0x48] sm:$0xff]
    %v3740 = vld [vmem:[%s3729 + $0x50] sm:$0xff]
    %v3741 = vld [vmem:[%s3729 + $0x58] sm:$0xff]
    %v3742 = vld [vmem:[%s3729 + $0x60] sm:$0xff]
    %v3743 = vld [vmem:[%s3729 + $0x68] sm:$0xff]
    %v3744 = vld [vmem:[%s3729 + $0x70] sm:$0xff]
    %v3745 = vld [vmem:[%s3729 + $0x78] sm:$0xff]
    %v3746 = vld [vmem:[%s3729 + $0x80] sm:$0xff]
    %v3747 = vld [vmem:[%s3729 + $0x88] sm:$0xff]
    %v3748 = vld [vmem:[%s3729 + $0x90] sm:$0xff]
    %v3749 = vld [vmem:[%s3729 + $0x98] sm:$0xff]
    %v3750 = vld [vmem:[%s3729 + $0xa0] sm:$0xff]
    %v3751 = vld [vmem:[%s3729 + $0xa8] sm:$0xff]
    %v3752 = vld [vmem:[%s3729 + $0xb0] sm:$0xff]
    %v3753 = vld [vmem:[%s3729 + $0xb8] sm:$0xff]
    %v3754 = vld [vmem:[%s3729 + $0xc0] sm:$0xff]
    %v3755 = vld [vmem:[%s3729 + $0xc8] sm:$0xff]
    %v3756 = vld [vmem:[%s3729 + $0xd0] sm:$0xff]
    %v3757 = vld [vmem:[%s3729 + $0xd8] sm:$0xff]
    %v3758 = vld [vmem:[%s3729 + $0xe0] sm:$0xff]
    %v3759 = vld [vmem:[%s3729 + $0xe8] sm:$0xff]
    %v3760 = vld [vmem:[%s3729 + $0xf0] sm:$0xff]
    %v3761 = vld [vmem:[%s3729 + $0xf8] sm:$0xff]
    %v3762 = vld [vmem:[%s3729 + $0x100] sm:$0xff]
    %v3763 = vld [vmem:[%s3729 + $0x108] sm:$0xff]
    %v3764 = vld [vmem:[%s3729 + $0x110] sm:$0xff]
    %v3765 = vld [vmem:[%s3729 + $0x118] sm:$0xff]
    %v3766 = vld [vmem:[%s3729 + $0x120] sm:$0xff]
    %v3767 = vld [vmem:[%s3729 + $0x128] sm:$0xff]
    %v3768 = vld [vmem:[%s3729 + $0x130] sm:$0xff]
    %v3769 = vld [vmem:[%s3729 + $0x138] sm:$0xff]
    %v3770 = vld [vmem:[%s3729 + $0x140] sm:$0xff]
    %v3771 = vld [vmem:[%s3729 + $0x148] sm:$0xff]
    %v3772 = vld [vmem:[%s3729 + $0x150] sm:$0xff]
    %v3773 = vld [vmem:[%s3729 + $0x158] sm:$0xff]
    %v3774 = vld [vmem:[%s3729 + $0x160] sm:$0xff]
    %v3775 = vld [vmem:[%s3729 + $0x168] sm:$0xff]
    %v3776 = vld [vmem:[%s3729 + $0x170] sm:$0xff]
    %v3777 = vld [vmem:[%s3729 + $0x178] sm:$0xff]
    %v3778 = vld [vmem:[%s3729 + $0x180] sm:$0xff]
    %v3779 = vld [vmem:[%s3729 + $0x188] sm:$0xff]
    %v3780 = vld [vmem:[%s3729 + $0x190] sm:$0xff]
    %v3781 = vld [vmem:[%s3729 + $0x198] sm:$0xff]
    %v3782 = vld [vmem:[%s3729 + $0x1a0] sm:$0xff]
    %v3783 = vld [vmem:[%s3729 + $0x1a8] sm:$0xff]
    %v3784 = vld [vmem:[%s3729 + $0x1b0] sm:$0xff]
    %v3785 = vld [vmem:[%s3729 + $0x1b8] sm:$0xff]
    %v3786 = vld [vmem:[%s3729 + $0x1c0] sm:$0xff]
    %v3787 = vld [vmem:[%s3729 + $0x1c8] sm:$0xff]
    %v3788 = vld [vmem:[%s3729 + $0x1d0] sm:$0xff]
    %v3789 = vld [vmem:[%s3729 + $0x1d8] sm:$0xff]
    %v3790 = vld [vmem:[%s3729 + $0x1e0] sm:$0xff]
    %v3791 = vld [vmem:[%s3729 + $0x1e8] sm:$0xff]
    %v3792 = vld [vmem:[%s3729 + $0x1f0] sm:$0xff]
    %v3793 = vld [vmem:[%s3729 + $0x1f8] sm:$0xff]
    %v3794 = vld [vmem:[%s3729 + $0x200] sm:$0xff]
    %v3795 = vld [vmem:[%s3729 + $0x208] sm:$0xff]
    %v3796 = vld [vmem:[%s3729 + $0x210] sm:$0xff]
    %v3797 = vld [vmem:[%s3729 + $0x218] sm:$0xff]
    %v3798 = vld [vmem:[%s3729 + $0x220] sm:$0xff]
    %v3799 = vld [vmem:[%s3729 + $0x228] sm:$0xff]
    %v3800 = vld [vmem:[%s3729 + $0x230] sm:$0xff]
    %v3801 = vld [vmem:[%s3729 + $0x238] sm:$0xff]
    %v3802 = vld [vmem:[%s3729 + $0x240] sm:$0xff]
    %v3803 = vld [vmem:[%s3729 + $0x248] sm:$0xff]
    %v3804 = vld [vmem:[%s3729 + $0x250] sm:$0xff]
    %v3805 = vld [vmem:[%s3729 + $0x258] sm:$0xff]
    %v3806 = vld [vmem:[%s3729 + $0x260] sm:$0xff]
    %v3807 = vld [vmem:[%s3729 + $0x268] sm:$0xff]
    %v3808 = vld [vmem:[%s3729 + $0x270] sm:$0xff]
    %v3809 = vld [vmem:[%s3729 + $0x278] sm:$0xff]
    %v3810 = vld [vmem:[%s3729 + $0x280] sm:$0xff]
    %v3811 = vld [vmem:[%s3729 + $0x288] sm:$0xff]
    %v3812 = vld [vmem:[%s3729 + $0x290] sm:$0xff]
    %v3813 = vld [vmem:[%s3729 + $0x298] sm:$0xff]
    %v3814 = vld [vmem:[%s3729 + $0x2a0] sm:$0xff]
    %v3815 = vld [vmem:[%s3729 + $0x2a8] sm:$0xff]
    %v3816 = vld [vmem:[%s3729 + $0x2b0] sm:$0xff]
    %v3817 = vld [vmem:[%s3729 + $0x2b8] sm:$0xff]
    %v3818 = vld [vmem:[%s3729 + $0x2c0] sm:$0xff]
    %v3819 = vld [vmem:[%s3729 + $0x2c8] sm:$0xff]
    %v3820 = vld [vmem:[%s3729 + $0x2d0] sm:$0xff]
    %v3821 = vld [vmem:[%s3729 + $0x2d8] sm:$0xff]
    %v3822 = vld [vmem:[%s3729 + $0x2e0] sm:$0xff]
    %v3823 = vld [vmem:[%s3729 + $0x2e8] sm:$0xff]
    %v3824 = vld [vmem:[%s3729 + $0x2f0] sm:$0xff]
    %v3825 = vld [vmem:[%s3729 + $0x2f8] sm:$0xff]
    %v3826 = vld [vmem:[%s3729 + $0x300] sm:$0xff]
    %v3827 = vld [vmem:[%s3729 + $0x308] sm:$0xff]
    %v3828 = vld [vmem:[%s3729 + $0x310] sm:$0xff]
    %v3829 = vld [vmem:[%s3729 + $0x318] sm:$0xff]
    %v3830 = vld [vmem:[%s3729 + $0x320] sm:$0xff]
    %v3831 = vld [vmem:[%s3729 + $0x328] sm:$0xff]
    %v3832 = vld [vmem:[%s3729 + $0x330] sm:$0xff]
    %v3833 = vld [vmem:[%s3729 + $0x338] sm:$0xff]
    %v3834 = vld [vmem:[%s3729 + $0x340] sm:$0xff]
    %v3835 = vld [vmem:[%s3729 + $0x348] sm:$0xff]
    %v3836 = vld [vmem:[%s3729 + $0x350] sm:$0xff]
    %v3837 = vld [vmem:[%s3729 + $0x358] sm:$0xff]
    %v3838 = vld [vmem:[%s3729 + $0x360] sm:$0xff]
    %v3839 = vld [vmem:[%s3729 + $0x368] sm:$0xff]
    %v3840 = vld [vmem:[%s3729 + $0x370] sm:$0xff]
    %v3841 = vld [vmem:[%s3729 + $0x378] sm:$0xff]
    %v3842 = vld [vmem:[%s3729 + $0x380] sm:$0xff]
    %v3843 = vld [vmem:[%s3729 + $0x388] sm:$0xff]
    %v3844 = vld [vmem:[%s3729 + $0x390] sm:$0xff]
    %v3845 = vld [vmem:[%s3729 + $0x398] sm:$0xff]
    %v3846 = vld [vmem:[%s3729 + $0x3a0] sm:$0xff]
    %v3847 = vld [vmem:[%s3729 + $0x3a8] sm:$0xff]
    %v3848 = vld [vmem:[%s3729 + $0x3b0] sm:$0xff]
    %v3849 = vld [vmem:[%s3729 + $0x3b8] sm:$0xff]
    %v3850 = vld [vmem:[%s3729 + $0x3c0] sm:$0xff]
    %v3851 = vld [vmem:[%s3729 + $0x3c8] sm:$0xff]
    %v3852 = vld [vmem:[%s3729 + $0x3d0] sm:$0xff]
    %v3853 = vld [vmem:[%s3729 + $0x3d8] sm:$0xff]
    %v3854 = vld [vmem:[%s3729 + $0x3e0] sm:$0xff]
    %v3855 = vld [vmem:[%s3729 + $0x3e8] sm:$0xff]
    %v3856 = vld [vmem:[%s3729 + $0x3f0] sm:$0xff]
    %v3857 = vld [vmem:[%s3729 + $0x3f8] sm:$0xff]
    %v3858 = vld [vmem:[%s3729 + $0x400] sm:$0xff]
    %v3859 = vld [vmem:[%s3729 + $0x408] sm:$0xff]
    %v3860 = vld [vmem:[%s3729 + $0x410] sm:$0xff]
    %v3861 = vld [vmem:[%s3729 + $0x418] sm:$0xff]
    %v3862 = vld [vmem:[%s3729 + $0x420] sm:$0xff]
    %v3863 = vld [vmem:[%s3729 + $0x428] sm:$0xff]
    %v3864 = vld [vmem:[%s3729 + $0x430] sm:$0xff]
    %v3865 = vld [vmem:[%s3729 + $0x438] sm:$0xff]
    %v3866 = vld [vmem:[%s3729 + $0x440] sm:$0xff]
    %v3867 = vld [vmem:[%s3729 + $0x448] sm:$0xff]
    %v3868 = vld [vmem:[%s3729 + $0x450] sm:$0xff]
    %v3869 = vld [vmem:[%s3729 + $0x458] sm:$0xff]
    %v3870 = vld [vmem:[%s3729 + $0x460] sm:$0xff]
    %v3871 = vld [vmem:[%s3729 + $0x468] sm:$0xff]
    %v3872 = vld [vmem:[%s3729 + $0x470] sm:$0xff]
    %v3873 = vld [vmem:[%s3729 + $0x478] sm:$0xff]
    %v3874 = vld [vmem:[%s3729 + $0x480] sm:$0xff]
    %v3875 = vld [vmem:[%s3729 + $0x488] sm:$0xff]
    %v3876 = vld [vmem:[%s3729 + $0x490] sm:$0xff]
    %v3877 = vld [vmem:[%s3729 + $0x498] sm:$0xff]
    %v3878 = vld [vmem:[%s3729 + $0x4a0] sm:$0xff]
    %v3879 = vld [vmem:[%s3729 + $0x4a8] sm:$0xff]
    %v3880 = vld [vmem:[%s3729 + $0x4b0] sm:$0xff]
    %v3881 = vld [vmem:[%s3729 + $0x4b8] sm:$0xff]
    %v3882 = vld [vmem:[%s3729 + $0x4c0] sm:$0xff]
    %v3883 = vld [vmem:[%s3729 + $0x4c8] sm:$0xff]
    %v3884 = vld [vmem:[%s3729 + $0x4d0] sm:$0xff]
    %v3885 = vld [vmem:[%s3729 + $0x4d8] sm:$0xff]
    %v3886 = vld [vmem:[%s3729 + $0x4e0] sm:$0xff]
    %v3887 = vld [vmem:[%s3729 + $0x4e8] sm:$0xff]
    %v3888 = vld [vmem:[%s3729 + $0x4f0] sm:$0xff]
    %v3889 = vld [vmem:[%s3729 + $0x4f8] sm:$0xff]
    %v3890 = vld [vmem:[%s3729 + $0x500] sm:$0xff]
    %v3891 = vld [vmem:[%s3729 + $0x508] sm:$0xff]
    %v3892 = vld [vmem:[%s3729 + $0x510] sm:$0xff]
    %v3893 = vld [vmem:[%s3729 + $0x518] sm:$0xff]
    %v3894 = vld [vmem:[%s3729 + $0x520] sm:$0xff]
    %v3895 = vld [vmem:[%s3729 + $0x528] sm:$0xff]
    %v3896 = vld [vmem:[%s3729 + $0x530] sm:$0xff]
    %v3897 = vld [vmem:[%s3729 + $0x538] sm:$0xff]
    %v3898 = vld [vmem:[%s3729 + $0x540] sm:$0xff]
    %v3899 = vld [vmem:[%s3729 + $0x548] sm:$0xff]
    %v3900 = vld [vmem:[%s3729 + $0x550] sm:$0xff]
    %v3901 = vld [vmem:[%s3729 + $0x558] sm:$0xff]
    %v3902 = vld [vmem:[%s3729 + $0x560] sm:$0xff]
    %v3903 = vld [vmem:[%s3729 + $0x568] sm:$0xff]
    %v3904 = vld [vmem:[%s3729 + $0x570] sm:$0xff]
    %v3905 = vld [vmem:[%s3729 + $0x578] sm:$0xff]
    %v3906 = vld [vmem:[%s3729 + $0x580] sm:$0xff]
    %v3907 = vld [vmem:[%s3729 + $0x588] sm:$0xff]
    %v3908 = vld [vmem:[%s3729 + $0x590] sm:$0xff]
    %v3909 = vld [vmem:[%s3729 + $0x598] sm:$0xff]
    %v3910 = vld [vmem:[%s3729 + $0x5a0] sm:$0xff]
    %v3911 = vld [vmem:[%s3729 + $0x5a8] sm:$0xff]
    %v3912 = vld [vmem:[%s3729 + $0x5b0] sm:$0xff]
    %v3913 = vld [vmem:[%s3729 + $0x5b8] sm:$0xff]
    %v3914 = vld [vmem:[%s3729 + $0x5c0] sm:$0xff]
    %v3915 = vld [vmem:[%s3729 + $0x5c8] sm:$0xff]
    %v3916 = vld [vmem:[%s3729 + $0x5d0] sm:$0xff]
    %v3917 = vld [vmem:[%s3729 + $0x5d8] sm:$0xff]
    %v3918 = vld [vmem:[%s3729 + $0x5e0] sm:$0xff]
    %v3919 = vld [vmem:[%s3729 + $0x5e8] sm:$0xff]
    %v3920 = vld [vmem:[%s3729 + $0x5f0] sm:$0xff]
    %v3921 = vld [vmem:[%s3729 + $0x5f8] sm:$0xff]
    %v3922 = vld [vmem:[%s3729 + $0x600] sm:$0xff]
    %v3923 = vld [vmem:[%s3729 + $0x608] sm:$0xff]
    %v3924 = vld [vmem:[%s3729 + $0x610] sm:$0xff]
    %v3925 = vld [vmem:[%s3729 + $0x618] sm:$0xff]
    %v3926 = vld [vmem:[%s3729 + $0x620] sm:$0xff]
    %v3927 = vld [vmem:[%s3729 + $0x628] sm:$0xff]
    %v3928 = vld [vmem:[%s3729 + $0x630] sm:$0xff]
    %v3929 = vld [vmem:[%s3729 + $0x638] sm:$0xff]
    %v3930 = vld [vmem:[%s3729 + $0x640] sm:$0xff]
    %v3931 = vld [vmem:[%s3729 + $0x648] sm:$0xff]
    %v3932 = vld [vmem:[%s3729 + $0x650] sm:$0xff]
    %v3933 = vld [vmem:[%s3729 + $0x658] sm:$0xff]
    %v3934 = vld [vmem:[%s3729 + $0x660] sm:$0xff]
    %v3935 = vld [vmem:[%s3729 + $0x668] sm:$0xff]
    %v3936 = vld [vmem:[%s3729 + $0x670] sm:$0xff]
    %v3937 = vld [vmem:[%s3729 + $0x678] sm:$0xff]
    %v3938 = vld [vmem:[%s3729 + $0x680] sm:$0xff]
    %v3939 = vld [vmem:[%s3729 + $0x688] sm:$0xff]
    %v3940 = vld [vmem:[%s3729 + $0x690] sm:$0xff]
    %v3941 = vld [vmem:[%s3729 + $0x698] sm:$0xff]
    %v3942 = vld [vmem:[%s3729 + $0x6a0] sm:$0xff]
    %v3943 = vld [vmem:[%s3729 + $0x6a8] sm:$0xff]
    %v3944 = vld [vmem:[%s3729 + $0x6b0] sm:$0xff]
    %v3945 = vld [vmem:[%s3729 + $0x6b8] sm:$0xff]
    %v3946 = vld [vmem:[%s3729 + $0x6c0] sm:$0xff]
    %v3947 = vld [vmem:[%s3729 + $0x6c8] sm:$0xff]
    %v3948 = vld [vmem:[%s3729 + $0x6d0] sm:$0xff]
    %v3949 = vld [vmem:[%s3729 + $0x6d8] sm:$0xff]
    %v3950 = vld [vmem:[%s3729 + $0x6e0] sm:$0xff]
    %v3951 = vld [vmem:[%s3729 + $0x6e8] sm:$0xff]
    %v3952 = vld [vmem:[%s3729 + $0x6f0] sm:$0xff]
    %v3953 = vld [vmem:[%s3729 + $0x6f8] sm:$0xff]
    %v3954 = vld [vmem:[%s3729 + $0x700] sm:$0xff]
    %v3955 = vld [vmem:[%s3729 + $0x708] sm:$0xff]
    %v3956 = vld [vmem:[%s3729 + $0x710] sm:$0xff]
    %v3957 = vld [vmem:[%s3729 + $0x718] sm:$0xff]
    %v3958 = vld [vmem:[%s3729 + $0x720] sm:$0xff]
    %v3959 = vld [vmem:[%s3729 + $0x728] sm:$0xff]
    %v3960 = vld [vmem:[%s3729 + $0x730] sm:$0xff]
    %v3961 = vld [vmem:[%s3729 + $0x738] sm:$0xff]
    %v3962 = vld [vmem:[%s3729 + $0x740] sm:$0xff]
    %v3963 = vld [vmem:[%s3729 + $0x748] sm:$0xff]
    %v3964 = vld [vmem:[%s3729 + $0x750] sm:$0xff]
    %v3965 = vld [vmem:[%s3729 + $0x758] sm:$0xff]
    %v3966 = vld [vmem:[%s3729 + $0x760] sm:$0xff]
    %v3967 = vld [vmem:[%s3729 + $0x768] sm:$0xff]
    %v3968 = vld [vmem:[%s3729 + $0x770] sm:$0xff]
    %v3969 = vld [vmem:[%s3729 + $0x778] sm:$0xff]
    %v3970 = vld [vmem:[%s3729 + $0x780] sm:$0xff]
    %v3971 = vld [vmem:[%s3729 + $0x788] sm:$0xff]
    %v3972 = vld [vmem:[%s3729 + $0x790] sm:$0xff]
    %v3973 = vld [vmem:[%s3729 + $0x798] sm:$0xff]
    %v3974 = vld [vmem:[%s3729 + $0x7a0] sm:$0xff]
    %v3975 = vld [vmem:[%s3729 + $0x7a8] sm:$0xff]
    %v3976 = vld [vmem:[%s3729 + $0x7b0] sm:$0xff]
    %v3977 = vld [vmem:[%s3729 + $0x7b8] sm:$0xff]
    %v3978 = vld [vmem:[%s3729 + $0x7c0] sm:$0xff]
    %v3979 = vld [vmem:[%s3729 + $0x7c8] sm:$0xff]
    %v3980 = vld [vmem:[%s3729 + $0x7d0] sm:$0xff]
    %v3981 = vld [vmem:[%s3729 + $0x7d8] sm:$0xff]
    %v3982 = vld [vmem:[%s3729 + $0x7e0] sm:$0xff]
    %v3983 = vld [vmem:[%s3729 + $0x7e8] sm:$0xff]
    %v3984 = vld [vmem:[%s3729 + $0x7f0] sm:$0xff]
    %v3985 = vld [vmem:[%s3729 + $0x7f8] sm:$0xff]
    %v3986 = vld [vmem:[%s3729 + $0x800] sm:$0xff]
    %v3987 = vld [vmem:[%s3729 + $0x808] sm:$0xff]
    %v3988 = vld [vmem:[%s3729 + $0x810] sm:$0xff]
    %v3989 = vld [vmem:[%s3729 + $0x818] sm:$0xff]
    %v3990 = vld [vmem:[%s3729 + $0x820] sm:$0xff]
    %v3991 = vld [vmem:[%s3729 + $0x828] sm:$0xff]
    %v3992 = vld [vmem:[%s3729 + $0x830] sm:$0xff]
    %v3993 = vld [vmem:[%s3729 + $0x838] sm:$0xff]
    %v3994 = vld [vmem:[%s3729 + $0x840] sm:$0xff]
    %v3995 = vld [vmem:[%s3729 + $0x848] sm:$0xff]
    %v3996 = vld [vmem:[%s3729 + $0x850] sm:$0xff]
    %v3997 = vld [vmem:[%s3729 + $0x858] sm:$0xff]
    %v3998 = vld [vmem:[%s3729 + $0x860] sm:$0xff]
    %v3999 = vld [vmem:[%s3729 + $0x868] sm:$0xff]
    %v4000 = vld [vmem:[%s3729 + $0x870] sm:$0xff]
    %v4001 = vld [vmem:[%s3729 + $0x878] sm:$0xff]
    %v4002 = vld [vmem:[%s3729 + $0x880] sm:$0xff]
    %v4003 = vld [vmem:[%s3729 + $0x888] sm:$0xff]
    %v4004 = vld [vmem:[%s3729 + $0x890] sm:$0xff]
    %v4005 = vld [vmem:[%s3729 + $0x898] sm:$0xff]
    %v4006 = vld [vmem:[%s3729 + $0x8a0] sm:$0xff]
    %v4007 = vld [vmem:[%s3729 + $0x8a8] sm:$0xff]
    %v4008 = vld [vmem:[%s3729 + $0x8b0] sm:$0xff]
    %v4009 = vld [vmem:[%s3729 + $0x8b8] sm:$0xff]
    %v4010 = vld [vmem:[%s3729 + $0x8c0] sm:$0xff]
    %v4011 = vld [vmem:[%s3729 + $0x8c8] sm:$0xff]
    %v4012 = vld [vmem:[%s3729 + $0x8d0] sm:$0xff]
    %v4013 = vld [vmem:[%s3729 + $0x8d8] sm:$0xff]
    %v4014 = vld [vmem:[%s3729 + $0x8e0] sm:$0xff]
    %v4015 = vld [vmem:[%s3729 + $0x8e8] sm:$0xff]
    %v4016 = vld [vmem:[%s3729 + $0x8f0] sm:$0xff]
    %v4017 = vld [vmem:[%s3729 + $0x8f8] sm:$0xff]
    %4018 = vmatpush.msra.mxu0 %v3775
    %4019 = vmatpush.msra.mxu0 %v3772
    %4020 = vmatpush.msra.mxu0 %v3769
    %4021 = vmatpush.msra.mxu0 %v3766
    %4022 = vmatpush.msra.mxu0 %v3763
    %4023 = vmatpush.msra.mxu0 %v3760
    %4024 = vmatpush.msra.mxu0 %v3757
    %4025 = vmatpush.msra.mxu0 %v3754
    %4026 = vmatpush.msra.mxu0 %v3751
    %4027 = vmatpush.msra.mxu0 %v3748
    %4028 = vmatpush.msra.mxu0 %v3745
    %4029 = vmatpush.msra.mxu0 %v3742
    %4030 = vmatpush.msra.mxu0 %v3739
    %4031 = vmatpush.msra.mxu0 %v3736
    %4032 = vmatpush.msra.mxu0 %v3733
    %4033 = vmatpush.msra.mxu0 %v3730
    %4034 = vmatmul.f32.gmra.mxu0 %v3573
    %v4035 = vpop.f32.mrf.mxu0
    %v4036 = vadd.f32 0.0, %v4035
    %4037 = vmatmul.f32.gmra.mxu0 %v3576
    %v4038 = vpop.f32.mrf.mxu0
    %v4039 = vadd.f32 0.0, %v4038
    %4040 = vmatmul.f32.gmra.mxu0 %v3579
    %v4041 = vpop.f32.mrf.mxu0
    %v4042 = vadd.f32 0.0, %v4041
    %4043 = vmatmul.f32.gmra.mxu0 %v3582
    %v4044 = vpop.f32.mrf.mxu0
    %v4045 = vadd.f32 0.0, %v4044
    %4046 = vdwg.mxu0
    %4047 = vmatpush.msra.mxu0 %v3823
    %4048 = vmatpush.msra.mxu0 %v3820
    %4049 = vmatpush.msra.mxu0 %v3817
    %4050 = vmatpush.msra.mxu0 %v3814
    %4051 = vmatpush.msra.mxu0 %v3811
    %4052 = vmatpush.msra.mxu0 %v3808
    %4053 = vmatpush.msra.mxu0 %v3805
    %4054 = vmatpush.msra.mxu0 %v3802
    %4055 = vmatpush.msra.mxu0 %v3799
    %4056 = vmatpush.msra.mxu0 %v3796
    %4057 = vmatpush.msra.mxu0 %v3793
    %4058 = vmatpush.msra.mxu0 %v3790
    %4059 = vmatpush.msra.mxu0 %v3787
    %4060 = vmatpush.msra.mxu0 %v3784
    %4061 = vmatpush.msra.mxu0 %v3781
    %4062 = vmatpush.msra.mxu0 %v3778
    %4063 = vmatmul.f32.gmra.mxu0 %v3602
    %v4064 = vpop.f32.mrf.mxu0
    %v4065 = vadd.f32 %v4036, %v4064
    %4066 = vmatmul.f32.gmra.mxu0 %v3605
    %v4067 = vpop.f32.mrf.mxu0
    %v4068 = vadd.f32 %v4039, %v4067
    %4069 = vmatmul.f32.gmra.mxu0 %v3608
    %v4070 = vpop.f32.mrf.mxu0
    %v4071 = vadd.f32 %v4042, %v4070
    %4072 = vmatmul.f32.gmra.mxu0 %v3611
    %v4073 = vpop.f32.mrf.mxu0
    %v4074 = vadd.f32 %v4045, %v4073
    %4075 = vdwg.mxu0
    %4076 = vmatpush.msra.mxu0 %v3871
    %4077 = vmatpush.msra.mxu0 %v3868
    %4078 = vmatpush.msra.mxu0 %v3865
    %4079 = vmatpush.msra.mxu0 %v3862
    %4080 = vmatpush.msra.mxu0 %v3859
    %4081 = vmatpush.msra.mxu0 %v3856
    %4082 = vmatpush.msra.mxu0 %v3853
    %4083 = vmatpush.msra.mxu0 %v3850
    %4084 = vmatpush.msra.mxu0 %v3847
    %4085 = vmatpush.msra.mxu0 %v3844
    %4086 = vmatpush.msra.mxu0 %v3841
    %4087 = vmatpush.msra.mxu0 %v3838
    %4088 = vmatpush.msra.mxu0 %v3835
    %4089 = vmatpush.msra.mxu0 %v3832
    %4090 = vmatpush.msra.mxu0 %v3829
    %4091 = vmatpush.msra.mxu0 %v3826
    %4092 = vmatmul.f32.gmra.mxu0 %v3631
    %v4093 = vpop.f32.mrf.mxu0
    %v4094 = vadd.f32 %v4065, %v4093
    %4095 = vmatmul.f32.gmra.mxu0 %v3634
    %v4096 = vpop.f32.mrf.mxu0
    %v4097 = vadd.f32 %v4068, %v4096
    %4098 = vmatmul.f32.gmra.mxu0 %v3637
    %v4099 = vpop.f32.mrf.mxu0
    %v4100 = vadd.f32 %v4071, %v4099
    %4101 = vmatmul.f32.gmra.mxu0 %v3640
    %v4102 = vpop.f32.mrf.mxu0
    %v4103 = vadd.f32 %v4074, %v4102
    %4104 = vdwg.mxu0
    %4105 = vmatpush.msra.mxu0 %v3919
    %4106 = vmatpush.msra.mxu0 %v3916
    %4107 = vmatpush.msra.mxu0 %v3913
    %4108 = vmatpush.msra.mxu0 %v3910
    %4109 = vmatpush.msra.mxu0 %v3907
    %4110 = vmatpush.msra.mxu0 %v3904
    %4111 = vmatpush.msra.mxu0 %v3901
    %4112 = vmatpush.msra.mxu0 %v3898
    %4113 = vmatpush.msra.mxu0 %v3895
    %4114 = vmatpush.msra.mxu0 %v3892
    %4115 = vmatpush.msra.mxu0 %v3889
    %4116 = vmatpush.msra.mxu0 %v3886
    %4117 = vmatpush.msra.mxu0 %v3883
    %4118 = vmatpush.msra.mxu0 %v3880
    %4119 = vmatpush.msra.mxu0 %v3877
    %4120 = vmatpush.msra.mxu0 %v3874
    %4121 = vmatmul.f32.gmra.mxu0 %v3660
    %v4122 = vpop.f32.mrf.mxu0
    %v4123 = vadd.f32 %v4094, %v4122
    %4124 = vmatmul.f32.gmra.mxu0 %v3663
    %v4125 = vpop.f32.mrf.mxu0
    %v4126 = vadd.f32 %v4097, %v4125
    %4127 = vmatmul.f32.gmra.mxu0 %v3666
    %v4128 = vpop.f32.mrf.mxu0
    %v4129 = vadd.f32 %v4100, %v4128
    %4130 = vmatmul.f32.gmra.mxu0 %v3669
    %v4131 = vpop.f32.mrf.mxu0
    %v4132 = vadd.f32 %v4103, %v4131
    %4133 = vdwg.mxu0
    %4134 = vmatpush.msra.mxu0 %v3967
    %4135 = vmatpush.msra.mxu0 %v3964
    %4136 = vmatpush.msra.mxu0 %v3961
    %4137 = vmatpush.msra.mxu0 %v3958
    %4138 = vmatpush.msra.mxu0 %v3955
    %4139 = vmatpush.msra.mxu0 %v3952
    %4140 = vmatpush.msra.mxu0 %v3949
    %4141 = vmatpush.msra.mxu0 %v3946
    %4142 = vmatpush.msra.mxu0 %v3943
    %4143 = vmatpush.msra.mxu0 %v3940
    %4144 = vmatpush.msra.mxu0 %v3937
    %4145 = vmatpush.msra.mxu0 %v3934
    %4146 = vmatpush.msra.mxu0 %v3931
    %4147 = vmatpush.msra.mxu0 %v3928
    %4148 = vmatpush.msra.mxu0 %v3925
    %4149 = vmatpush.msra.mxu0 %v3922
    %4150 = vmatmul.f32.gmra.mxu0 %v3689
    %v4151 = vpop.f32.mrf.mxu0
    %v4152 = vadd.f32 %v4123, %v4151
    %4153 = vmatmul.f32.gmra.mxu0 %v3692
    %v4154 = vpop.f32.mrf.mxu0
    %v4155 = vadd.f32 %v4126, %v4154
    %4156 = vmatmul.f32.gmra.mxu0 %v3695
    %v4157 = vpop.f32.mrf.mxu0
    %v4158 = vadd.f32 %v4129, %v4157
    %4159 = vmatmul.f32.gmra.mxu0 %v3698
    %v4160 = vpop.f32.mrf.mxu0
    %v4161 = vadd.f32 %v4132, %v4160
    %4162 = vdwg.mxu0
    %4163 = vmatpush.msra.mxu0 %v4015
    %4164 = vmatpush.msra.mxu0 %v4012
    %4165 = vmatpush.msra.mxu0 %v4009
    %4166 = vmatpush.msra.mxu0 %v4006
    %4167 = vmatpush.msra.mxu0 %v4003
    %4168 = vmatpush.msra.mxu0 %v4000
    %4169 = vmatpush.msra.mxu0 %v3997
    %4170 = vmatpush.msra.mxu0 %v3994
    %4171 = vmatpush.msra.mxu0 %v3991
    %4172 = vmatpush.msra.mxu0 %v3988
    %4173 = vmatpush.msra.mxu0 %v3985
    %4174 = vmatpush.msra.mxu0 %v3982
    %4175 = vmatpush.msra.mxu0 %v3979
    %4176 = vmatpush.msra.mxu0 %v3976
    %4177 = vmatpush.msra.mxu0 %v3973
    %4178 = vmatpush.msra.mxu0 %v3970
    %4179 = vmatmul.f32.gmra.mxu0 %v3718
    %v4180 = vpop.f32.mrf.mxu0
    %v4181 = vadd.f32 %v4152, %v4180
    %4182 = vmatmul.f32.gmra.mxu0 %v3721
    %v4183 = vpop.f32.mrf.mxu0
    %v4184 = vadd.f32 %v4155, %v4183
    %4185 = vmatmul.f32.gmra.mxu0 %v3724
    %v4186 = vpop.f32.mrf.mxu0
    %v4187 = vadd.f32 %v4158, %v4186
    %4188 = vmatmul.f32.gmra.mxu0 %v3727
    %v4189 = vpop.f32.mrf.mxu0
    %v4190 = vadd.f32 %v4161, %v4189
    %4191 = vdwg.mxu0
    %4192 = vmatpush.msra.mxu0 %v3776
    %4193 = vmatpush.msra.mxu0 %v3773
    %4194 = vmatpush.msra.mxu0 %v3770
    %4195 = vmatpush.msra.mxu0 %v3767
    %4196 = vmatpush.msra.mxu0 %v3764
    %4197 = vmatpush.msra.mxu0 %v3761
    %4198 = vmatpush.msra.mxu0 %v3758
    %4199 = vmatpush.msra.mxu0 %v3755
    %4200 = vmatpush.msra.mxu0 %v3752
    %4201 = vmatpush.msra.mxu0 %v3749
    %4202 = vmatpush.msra.mxu0 %v3746
    %4203 = vmatpush.msra.mxu0 %v3743
    %4204 = vmatpush.msra.mxu0 %v3740
    %4205 = vmatpush.msra.mxu0 %v3737
    %4206 = vmatpush.msra.mxu0 %v3734
    %4207 = vmatpush.msra.mxu0 %v3731
    %4208 = vmatmul.f32.gmra.mxu0 %v3573
    %v4209 = vpop.f32.mrf.mxu0
    %v4210 = vadd.f32 0.0, %v4209
    %4211 = vmatmul.f32.gmra.mxu0 %v3576
    %v4212 = vpop.f32.mrf.mxu0
    %v4213 = vadd.f32 0.0, %v4212
    %4214 = vmatmul.f32.gmra.mxu0 %v3579
    %v4215 = vpop.f32.mrf.mxu0
    %v4216 = vadd.f32 0.0, %v4215
    %4217 = vmatmul.f32.gmra.mxu0 %v3582
    %v4218 = vpop.f32.mrf.mxu0
    %v4219 = vadd.f32 0.0, %v4218
    %4220 = vdwg.mxu0
    %4221 = vmatpush.msra.mxu0 %v3824
    %4222 = vmatpush.msra.mxu0 %v3821
    %4223 = vmatpush.msra.mxu0 %v3818
    %4224 = vmatpush.msra.mxu0 %v3815
    %4225 = vmatpush.msra.mxu0 %v3812
    %4226 = vmatpush.msra.mxu0 %v3809
    %4227 = vmatpush.msra.mxu0 %v3806
    %4228 = vmatpush.msra.mxu0 %v3803
    %4229 = vmatpush.msra.mxu0 %v3800
    %4230 = vmatpush.msra.mxu0 %v3797
    %4231 = vmatpush.msra.mxu0 %v3794
    %4232 = vmatpush.msra.mxu0 %v3791
    %4233 = vmatpush.msra.mxu0 %v3788
    %4234 = vmatpush.msra.mxu0 %v3785
    %4235 = vmatpush.msra.mxu0 %v3782
    %4236 = vmatpush.msra.mxu0 %v3779
    %4237 = vmatmul.f32.gmra.mxu0 %v3602
    %v4238 = vpop.f32.mrf.mxu0
    %v4239 = vadd.f32 %v4210, %v4238
    %4240 = vmatmul.f32.gmra.mxu0 %v3605
    %v4241 = vpop.f32.mrf.mxu0
    %v4242 = vadd.f32 %v4213, %v4241
    %4243 = vmatmul.f32.gmra.mxu0 %v3608
    %v4244 = vpop.f32.mrf.mxu0
    %v4245 = vadd.f32 %v4216, %v4244
    %4246 = vmatmul.f32.gmra.mxu0 %v3611
    %v4247 = vpop.f32.mrf.mxu0
    %v4248 = vadd.f32 %v4219, %v4247
    %4249 = vdwg.mxu0
    %4250 = vmatpush.msra.mxu0 %v3872
    %4251 = vmatpush.msra.mxu0 %v3869
    %4252 = vmatpush.msra.mxu0 %v3866
    %4253 = vmatpush.msra.mxu0 %v3863
    %4254 = vmatpush.msra.mxu0 %v3860
    %4255 = vmatpush.msra.mxu0 %v3857
    %4256 = vmatpush.msra.mxu0 %v3854
    %4257 = vmatpush.msra.mxu0 %v3851
    %4258 = vmatpush.msra.mxu0 %v3848
    %4259 = vmatpush.msra.mxu0 %v3845
    %4260 = vmatpush.msra.mxu0 %v3842
    %4261 = vmatpush.msra.mxu0 %v3839
    %4262 = vmatpush.msra.mxu0 %v3836
    %4263 = vmatpush.msra.mxu0 %v3833
    %4264 = vmatpush.msra.mxu0 %v3830
    %4265 = vmatpush.msra.mxu0 %v3827
    %4266 = vmatmul.f32.gmra.mxu0 %v3631
    %v4267 = vpop.f32.mrf.mxu0
    %v4268 = vadd.f32 %v4239, %v4267
    %4269 = vmatmul.f32.gmra.mxu0 %v3634
    %v4270 = vpop.f32.mrf.mxu0
    %v4271 = vadd.f32 %v4242, %v4270
    %4272 = vmatmul.f32.gmra.mxu0 %v3637
    %v4273 = vpop.f32.mrf.mxu0
    %v4274 = vadd.f32 %v4245, %v4273
    %4275 = vmatmul.f32.gmra.mxu0 %v3640
    %v4276 = vpop.f32.mrf.mxu0
    %v4277 = vadd.f32 %v4248, %v4276
    %4278 = vdwg.mxu0
    %4279 = vmatpush.msra.mxu0 %v3920
    %4280 = vmatpush.msra.mxu0 %v3917
    %4281 = vmatpush.msra.mxu0 %v3914
    %4282 = vmatpush.msra.mxu0 %v3911
    %4283 = vmatpush.msra.mxu0 %v3908
    %4284 = vmatpush.msra.mxu0 %v3905
    %4285 = vmatpush.msra.mxu0 %v3902
    %4286 = vmatpush.msra.mxu0 %v3899
    %4287 = vmatpush.msra.mxu0 %v3896
    %4288 = vmatpush.msra.mxu0 %v3893
    %4289 = vmatpush.msra.mxu0 %v3890
    %4290 = vmatpush.msra.mxu0 %v3887
    %4291 = vmatpush.msra.mxu0 %v3884
    %4292 = vmatpush.msra.mxu0 %v3881
    %4293 = vmatpush.msra.mxu0 %v3878
    %4294 = vmatpush.msra.mxu0 %v3875
    %4295 = vmatmul.f32.gmra.mxu0 %v3660
    %v4296 = vpop.f32.mrf.mxu0
    %v4297 = vadd.f32 %v4268, %v4296
    %4298 = vmatmul.f32.gmra.mxu0 %v3663
    %v4299 = vpop.f32.mrf.mxu0
    %v4300 = vadd.f32 %v4271, %v4299
    %4301 = vmatmul.f32.gmra.mxu0 %v3666
    %v4302 = vpop.f32.mrf.mxu0
    %v4303 = vadd.f32 %v4274, %v4302
    %4304 = vmatmul.f32.gmra.mxu0 %v3669
    %v4305 = vpop.f32.mrf.mxu0
    %v4306 = vadd.f32 %v4277, %v4305
    %4307 = vdwg.mxu0
    %4308 = vmatpush.msra.mxu0 %v3968
    %4309 = vmatpush.msra.mxu0 %v3965
    %4310 = vmatpush.msra.mxu0 %v3962
    %4311 = vmatpush.msra.mxu0 %v3959
    %4312 = vmatpush.msra.mxu0 %v3956
    %4313 = vmatpush.msra.mxu0 %v3953
    %4314 = vmatpush.msra.mxu0 %v3950
    %4315 = vmatpush.msra.mxu0 %v3947
    %4316 = vmatpush.msra.mxu0 %v3944
    %4317 = vmatpush.msra.mxu0 %v3941
    %4318 = vmatpush.msra.mxu0 %v3938
    %4319 = vmatpush.msra.mxu0 %v3935
    %4320 = vmatpush.msra.mxu0 %v3932
    %4321 = vmatpush.msra.mxu0 %v3929
    %4322 = vmatpush.msra.mxu0 %v3926
    %4323 = vmatpush.msra.mxu0 %v3923
    %4324 = vmatmul.f32.gmra.mxu0 %v3689
    %v4325 = vpop.f32.mrf.mxu0
    %v4326 = vadd.f32 %v4297, %v4325
    %4327 = vmatmul.f32.gmra.mxu0 %v3692
    %v4328 = vpop.f32.mrf.mxu0
    %v4329 = vadd.f32 %v4300, %v4328
    %4330 = vmatmul.f32.gmra.mxu0 %v3695
    %v4331 = vpop.f32.mrf.mxu0
    %v4332 = vadd.f32 %v4303, %v4331
    %4333 = vmatmul.f32.gmra.mxu0 %v3698
    %v4334 = vpop.f32.mrf.mxu0
    %v4335 = vadd.f32 %v4306, %v4334
    %4336 = vdwg.mxu0
    %4337 = vmatpush.msra.mxu0 %v4016
    %4338 = vmatpush.msra.mxu0 %v4013
    %4339 = vmatpush.msra.mxu0 %v4010
    %4340 = vmatpush.msra.mxu0 %v4007
    %4341 = vmatpush.msra.mxu0 %v4004
    %4342 = vmatpush.msra.mxu0 %v4001
    %4343 = vmatpush.msra.mxu0 %v3998
    %4344 = vmatpush.msra.mxu0 %v3995
    %4345 = vmatpush.msra.mxu0 %v3992
    %4346 = vmatpush.msra.mxu0 %v3989
    %4347 = vmatpush.msra.mxu0 %v3986
    %4348 = vmatpush.msra.mxu0 %v3983
    %4349 = vmatpush.msra.mxu0 %v3980
    %4350 = vmatpush.msra.mxu0 %v3977
    %4351 = vmatpush.msra.mxu0 %v3974
    %4352 = vmatpush.msra.mxu0 %v3971
    %4353 = vmatmul.f32.gmra.mxu0 %v3718
    %v4354 = vpop.f32.mrf.mxu0
    %v4355 = vadd.f32 %v4326, %v4354
    %4356 = vmatmul.f32.gmra.mxu0 %v3721
    %v4357 = vpop.f32.mrf.mxu0
    %v4358 = vadd.f32 %v4329, %v4357
    %4359 = vmatmul.f32.gmra.mxu0 %v3724
    %v4360 = vpop.f32.mrf.mxu0
    %v4361 = vadd.f32 %v4332, %v4360
    %4362 = vmatmul.f32.gmra.mxu0 %v3727
    %v4363 = vpop.f32.mrf.mxu0
    %v4364 = vadd.f32 %v4335, %v4363
    %4365 = vdwg.mxu0
    %4366 = vmatpush.msra.mxu0 %v3777
    %4367 = vmatpush.msra.mxu0 %v3774
    %4368 = vmatpush.msra.mxu0 %v3771
    %4369 = vmatpush.msra.mxu0 %v3768
    %4370 = vmatpush.msra.mxu0 %v3765
    %4371 = vmatpush.msra.mxu0 %v3762
    %4372 = vmatpush.msra.mxu0 %v3759
    %4373 = vmatpush.msra.mxu0 %v3756
    %4374 = vmatpush.msra.mxu0 %v3753
    %4375 = vmatpush.msra.mxu0 %v3750
    %4376 = vmatpush.msra.mxu0 %v3747
    %4377 = vmatpush.msra.mxu0 %v3744
    %4378 = vmatpush.msra.mxu0 %v3741
    %4379 = vmatpush.msra.mxu0 %v3738
    %4380 = vmatpush.msra.mxu0 %v3735
    %4381 = vmatpush.msra.mxu0 %v3732
    %4382 = vmatmul.f32.gmra.mxu0 %v3573
    %v4383 = vpop.f32.mrf.mxu0
    %v4384 = vadd.f32 0.0, %v4383
    %4385 = vmatmul.f32.gmra.mxu0 %v3576
    %v4386 = vpop.f32.mrf.mxu0
    %v4387 = vadd.f32 0.0, %v4386
    %4388 = vmatmul.f32.gmra.mxu0 %v3579
    %v4389 = vpop.f32.mrf.mxu0
    %v4390 = vadd.f32 0.0, %v4389
    %4391 = vmatmul.f32.gmra.mxu0 %v3582
    %v4392 = vpop.f32.mrf.mxu0
    %v4393 = vadd.f32 0.0, %v4392
    %4394 = vdwg.mxu0
    %4395 = vmatpush.msra.mxu0 %v3825
    %4396 = vmatpush.msra.mxu0 %v3822
    %4397 = vmatpush.msra.mxu0 %v3819
    %4398 = vmatpush.msra.mxu0 %v3816
    %4399 = vmatpush.msra.mxu0 %v3813
    %4400 = vmatpush.msra.mxu0 %v3810
    %4401 = vmatpush.msra.mxu0 %v3807
    %4402 = vmatpush.msra.mxu0 %v3804
    %4403 = vmatpush.msra.mxu0 %v3801
    %4404 = vmatpush.msra.mxu0 %v3798
    %4405 = vmatpush.msra.mxu0 %v3795
    %4406 = vmatpush.msra.mxu0 %v3792
    %4407 = vmatpush.msra.mxu0 %v3789
    %4408 = vmatpush.msra.mxu0 %v3786
    %4409 = vmatpush.msra.mxu0 %v3783
    %4410 = vmatpush.msra.mxu0 %v3780
    %4411 = vmatmul.f32.gmra.mxu0 %v3602
    %v4412 = vpop.f32.mrf.mxu0
    %v4413 = vadd.f32 %v4384, %v4412
    %4414 = vmatmul.f32.gmra.mxu0 %v3605
    %v4415 = vpop.f32.mrf.mxu0
    %v4416 = vadd.f32 %v4387, %v4415
    %4417 = vmatmul.f32.gmra.mxu0 %v3608
    %v4418 = vpop.f32.mrf.mxu0
    %v4419 = vadd.f32 %v4390, %v4418
    %4420 = vmatmul.f32.gmra.mxu0 %v3611
    %v4421 = vpop.f32.mrf.mxu0
    %v4422 = vadd.f32 %v4393, %v4421
    %4423 = vdwg.mxu0
    %4424 = vmatpush.msra.mxu0 %v3873
    %4425 = vmatpush.msra.mxu0 %v3870
    %4426 = vmatpush.msra.mxu0 %v3867
    %4427 = vmatpush.msra.mxu0 %v3864
    %4428 = vmatpush.msra.mxu0 %v3861
    %4429 = vmatpush.msra.mxu0 %v3858
    %4430 = vmatpush.msra.mxu0 %v3855
    %4431 = vmatpush.msra.mxu0 %v3852
    %4432 = vmatpush.msra.mxu0 %v3849
    %4433 = vmatpush.msra.mxu0 %v3846
    %4434 = vmatpush.msra.mxu0 %v3843
    %4435 = vmatpush.msra.mxu0 %v3840
    %4436 = vmatpush.msra.mxu0 %v3837
    %4437 = vmatpush.msra.mxu0 %v3834
    %4438 = vmatpush.msra.mxu0 %v3831
    %4439 = vmatpush.msra.mxu0 %v3828
    %4440 = vmatmul.f32.gmra.mxu0 %v3631
    %v4441 = vpop.f32.mrf.mxu0
    %v4442 = vadd.f32 %v4413, %v4441
    %4443 = vmatmul.f32.gmra.mxu0 %v3634
    %v4444 = vpop.f32.mrf.mxu0
    %v4445 = vadd.f32 %v4416, %v4444
    %4446 = vmatmul.f32.gmra.mxu0 %v3637
    %v4447 = vpop.f32.mrf.mxu0
    %v4448 = vadd.f32 %v4419, %v4447
    %4449 = vmatmul.f32.gmra.mxu0 %v3640
    %v4450 = vpop.f32.mrf.mxu0
    %v4451 = vadd.f32 %v4422, %v4450
    %4452 = vdwg.mxu0
    %4453 = vmatpush.msra.mxu0 %v3921
    %4454 = vmatpush.msra.mxu0 %v3918
    %4455 = vmatpush.msra.mxu0 %v3915
    %4456 = vmatpush.msra.mxu0 %v3912
    %4457 = vmatpush.msra.mxu0 %v3909
    %4458 = vmatpush.msra.mxu0 %v3906
    %4459 = vmatpush.msra.mxu0 %v3903
    %4460 = vmatpush.msra.mxu0 %v3900
    %4461 = vmatpush.msra.mxu0 %v3897
    %4462 = vmatpush.msra.mxu0 %v3894
    %4463 = vmatpush.msra.mxu0 %v3891
    %4464 = vmatpush.msra.mxu0 %v3888
    %4465 = vmatpush.msra.mxu0 %v3885
    %4466 = vmatpush.msra.mxu0 %v3882
    %4467 = vmatpush.msra.mxu0 %v3879
    %4468 = vmatpush.msra.mxu0 %v3876
    %4469 = vmatmul.f32.gmra.mxu0 %v3660
    %v4470 = vpop.f32.mrf.mxu0
    %v4471 = vadd.f32 %v4442, %v4470
    %4472 = vmatmul.f32.gmra.mxu0 %v3663
    %v4473 = vpop.f32.mrf.mxu0
    %v4474 = vadd.f32 %v4445, %v4473
    %4475 = vmatmul.f32.gmra.mxu0 %v3666
    %v4476 = vpop.f32.mrf.mxu0
    %v4477 = vadd.f32 %v4448, %v4476
    %4478 = vmatmul.f32.gmra.mxu0 %v3669
    %v4479 = vpop.f32.mrf.mxu0
    %v4480 = vadd.f32 %v4451, %v4479
    %4481 = vdwg.mxu0
    %4482 = vmatpush.msra.mxu0 %v3969
    %4483 = vmatpush.msra.mxu0 %v3966
    %4484 = vmatpush.msra.mxu0 %v3963
    %4485 = vmatpush.msra.mxu0 %v3960
    %4486 = vmatpush.msra.mxu0 %v3957
    %4487 = vmatpush.msra.mxu0 %v3954
    %4488 = vmatpush.msra.mxu0 %v3951
    %4489 = vmatpush.msra.mxu0 %v3948
    %4490 = vmatpush.msra.mxu0 %v3945
    %4491 = vmatpush.msra.mxu0 %v3942
    %4492 = vmatpush.msra.mxu0 %v3939
    %4493 = vmatpush.msra.mxu0 %v3936
    %4494 = vmatpush.msra.mxu0 %v3933
    %4495 = vmatpush.msra.mxu0 %v3930
    %4496 = vmatpush.msra.mxu0 %v3927
    %4497 = vmatpush.msra.mxu0 %v3924
    %4498 = vmatmul.f32.gmra.mxu0 %v3689
    %v4499 = vpop.f32.mrf.mxu0
    %v4500 = vadd.f32 %v4471, %v4499
    %4501 = vmatmul.f32.gmra.mxu0 %v3692
    %v4502 = vpop.f32.mrf.mxu0
    %v4503 = vadd.f32 %v4474, %v4502
    %4504 = vmatmul.f32.gmra.mxu0 %v3695
    %v4505 = vpop.f32.mrf.mxu0
    %v4506 = vadd.f32 %v4477, %v4505
    %4507 = vmatmul.f32.gmra.mxu0 %v3698
    %v4508 = vpop.f32.mrf.mxu0
    %v4509 = vadd.f32 %v4480, %v4508
    %4510 = vdwg.mxu0
    %4511 = vmatpush.msra.mxu0 %v4017
    %4512 = vmatpush.msra.mxu0 %v4014
    %4513 = vmatpush.msra.mxu0 %v4011
    %4514 = vmatpush.msra.mxu0 %v4008
    %4515 = vmatpush.msra.mxu0 %v4005
    %4516 = vmatpush.msra.mxu0 %v4002
    %4517 = vmatpush.msra.mxu0 %v3999
    %4518 = vmatpush.msra.mxu0 %v3996
    %4519 = vmatpush.msra.mxu0 %v3993
    %4520 = vmatpush.msra.mxu0 %v3990
    %4521 = vmatpush.msra.mxu0 %v3987
    %4522 = vmatpush.msra.mxu0 %v3984
    %4523 = vmatpush.msra.mxu0 %v3981
    %4524 = vmatpush.msra.mxu0 %v3978
    %4525 = vmatpush.msra.mxu0 %v3975
    %4526 = vmatpush.msra.mxu0 %v3972
    %4527 = vmatmul.f32.gmra.mxu0 %v3718
    %v4528 = vpop.f32.mrf.mxu0
    %v4529 = vadd.f32 %v4500, %v4528
    %4530 = vmatmul.f32.gmra.mxu0 %v3721
    %v4531 = vpop.f32.mrf.mxu0
    %v4532 = vadd.f32 %v4503, %v4531
    %4533 = vmatmul.f32.gmra.mxu0 %v3724
    %v4534 = vpop.f32.mrf.mxu0
    %v4535 = vadd.f32 %v4506, %v4534
    %4536 = vmatmul.f32.gmra.mxu0 %v3727
    %v4537 = vpop.f32.mrf.mxu0
    %v4538 = vadd.f32 %v4509, %v4537
    %4539 = vdwg.mxu0
    %4540 = vmatpush.msra.mxu0 %v3295
    %4541 = vmatpush.msra.mxu0 %v3292
    %4542 = vmatpush.msra.mxu0 %v3289
    %4543 = vmatpush.msra.mxu0 %v3286
    %4544 = vmatpush.msra.mxu0 %v3283
    %4545 = vmatpush.msra.mxu0 %v3280
    %4546 = vmatpush.msra.mxu0 %v3277
    %4547 = vmatpush.msra.mxu0 %v3274
    %4548 = vmatpush.msra.mxu0 %v3271
    %4549 = vmatpush.msra.mxu0 %v3268
    %4550 = vmatpush.msra.mxu0 %v3265
    %4551 = vmatpush.msra.mxu0 %v3262
    %4552 = vmatpush.msra.mxu0 %v3259
    %4553 = vmatpush.msra.mxu0 %v3256
    %4554 = vmatpush.msra.mxu0 %v3253
    %4555 = vmatpush.msra.mxu0 %v3250
    %4556 = vmatmul.f32.gmra.mxu0 %v3094
    %v4557 = vpop.f32.mrf.mxu0
    %v4558 = vadd.f32 %v4181, %v4557
    %4559 = vmatmul.f32.gmra.mxu0 %v3097
    %v4560 = vpop.f32.mrf.mxu0
    %v4561 = vadd.f32 %v4184, %v4560
    %4562 = vmatmul.f32.gmra.mxu0 %v3100
    %v4563 = vpop.f32.mrf.mxu0
    %v4564 = vadd.f32 %v4187, %v4563
    %4565 = vmatmul.f32.gmra.mxu0 %v3103
    %v4566 = vpop.f32.mrf.mxu0
    %v4567 = vadd.f32 %v4190, %v4566
    %4568 = vdwg.mxu0
    %4569 = vmatpush.msra.mxu0 %v3343
    %4570 = vmatpush.msra.mxu0 %v3340
    %4571 = vmatpush.msra.mxu0 %v3337
    %4572 = vmatpush.msra.mxu0 %v3334
    %4573 = vmatpush.msra.mxu0 %v3331
    %4574 = vmatpush.msra.mxu0 %v3328
    %4575 = vmatpush.msra.mxu0 %v3325
    %4576 = vmatpush.msra.mxu0 %v3322
    %4577 = vmatpush.msra.mxu0 %v3319
    %4578 = vmatpush.msra.mxu0 %v3316
    %4579 = vmatpush.msra.mxu0 %v3313
    %4580 = vmatpush.msra.mxu0 %v3310
    %4581 = vmatpush.msra.mxu0 %v3307
    %4582 = vmatpush.msra.mxu0 %v3304
    %4583 = vmatpush.msra.mxu0 %v3301
    %4584 = vmatpush.msra.mxu0 %v3298
    %4585 = vmatmul.f32.gmra.mxu0 %v3123
    %v4586 = vpop.f32.mrf.mxu0
    %v4587 = vadd.f32 %v4558, %v4586
    %4588 = vmatmul.f32.gmra.mxu0 %v3126
    %v4589 = vpop.f32.mrf.mxu0
    %v4590 = vadd.f32 %v4561, %v4589
    %4591 = vmatmul.f32.gmra.mxu0 %v3129
    %v4592 = vpop.f32.mrf.mxu0
    %v4593 = vadd.f32 %v4564, %v4592
    %4594 = vmatmul.f32.gmra.mxu0 %v3132
    %v4595 = vpop.f32.mrf.mxu0
    %v4596 = vadd.f32 %v4567, %v4595
    %4597 = vdwg.mxu0
    %4598 = vmatpush.msra.mxu0 %v3391
    %4599 = vmatpush.msra.mxu0 %v3388
    %4600 = vmatpush.msra.mxu0 %v3385
    %4601 = vmatpush.msra.mxu0 %v3382
    %4602 = vmatpush.msra.mxu0 %v3379
    %4603 = vmatpush.msra.mxu0 %v3376
    %4604 = vmatpush.msra.mxu0 %v3373
    %4605 = vmatpush.msra.mxu0 %v3370
    %4606 = vmatpush.msra.mxu0 %v3367
    %4607 = vmatpush.msra.mxu0 %v3364
    %4608 = vmatpush.msra.mxu0 %v3361
    %4609 = vmatpush.msra.mxu0 %v3358
    %4610 = vmatpush.msra.mxu0 %v3355
    %4611 = vmatpush.msra.mxu0 %v3352
    %4612 = vmatpush.msra.mxu0 %v3349
    %4613 = vmatpush.msra.mxu0 %v3346
    %4614 = vmatmul.f32.gmra.mxu0 %v3152
    %v4615 = vpop.f32.mrf.mxu0
    %v4616 = vadd.f32 %v4587, %v4615
    %4617 = vmatmul.f32.gmra.mxu0 %v3155
    %v4618 = vpop.f32.mrf.mxu0
    %v4619 = vadd.f32 %v4590, %v4618
    %4620 = vmatmul.f32.gmra.mxu0 %v3158
    %v4621 = vpop.f32.mrf.mxu0
    %v4622 = vadd.f32 %v4593, %v4621
    %4623 = vmatmul.f32.gmra.mxu0 %v3161
    %v4624 = vpop.f32.mrf.mxu0
    %v4625 = vadd.f32 %v4596, %v4624
    %4626 = vdwg.mxu0
    %4627 = vmatpush.msra.mxu0 %v3439
    %4628 = vmatpush.msra.mxu0 %v3436
    %4629 = vmatpush.msra.mxu0 %v3433
    %4630 = vmatpush.msra.mxu0 %v3430
    %4631 = vmatpush.msra.mxu0 %v3427
    %4632 = vmatpush.msra.mxu0 %v3424
    %4633 = vmatpush.msra.mxu0 %v3421
    %4634 = vmatpush.msra.mxu0 %v3418
    %4635 = vmatpush.msra.mxu0 %v3415
    %4636 = vmatpush.msra.mxu0 %v3412
    %4637 = vmatpush.msra.mxu0 %v3409
    %4638 = vmatpush.msra.mxu0 %v3406
    %4639 = vmatpush.msra.mxu0 %v3403
    %4640 = vmatpush.msra.mxu0 %v3400
    %4641 = vmatpush.msra.mxu0 %v3397
    %4642 = vmatpush.msra.mxu0 %v3394
    %4643 = vmatmul.f32.gmra.mxu0 %v3181
    %v4644 = vpop.f32.mrf.mxu0
    %v4645 = vadd.f32 %v4616, %v4644
    %4646 = vmatmul.f32.gmra.mxu0 %v3184
    %v4647 = vpop.f32.mrf.mxu0
    %v4648 = vadd.f32 %v4619, %v4647
    %4649 = vmatmul.f32.gmra.mxu0 %v3187
    %v4650 = vpop.f32.mrf.mxu0
    %v4651 = vadd.f32 %v4622, %v4650
    %4652 = vmatmul.f32.gmra.mxu0 %v3190
    %v4653 = vpop.f32.mrf.mxu0
    %v4654 = vadd.f32 %v4625, %v4653
    %4655 = vdwg.mxu0
    %4656 = vmatpush.msra.mxu0 %v3487
    %4657 = vmatpush.msra.mxu0 %v3484
    %4658 = vmatpush.msra.mxu0 %v3481
    %4659 = vmatpush.msra.mxu0 %v3478
    %4660 = vmatpush.msra.mxu0 %v3475
    %4661 = vmatpush.msra.mxu0 %v3472
    %4662 = vmatpush.msra.mxu0 %v3469
    %4663 = vmatpush.msra.mxu0 %v3466
    %4664 = vmatpush.msra.mxu0 %v3463
    %4665 = vmatpush.msra.mxu0 %v3460
    %4666 = vmatpush.msra.mxu0 %v3457
    %4667 = vmatpush.msra.mxu0 %v3454
    %4668 = vmatpush.msra.mxu0 %v3451
    %4669 = vmatpush.msra.mxu0 %v3448
    %4670 = vmatpush.msra.mxu0 %v3445
    %4671 = vmatpush.msra.mxu0 %v3442
    %4672 = vmatmul.f32.gmra.mxu0 %v3210
    %v4673 = vpop.f32.mrf.mxu0
    %v4674 = vadd.f32 %v4645, %v4673
    %4675 = vmatmul.f32.gmra.mxu0 %v3213
    %v4676 = vpop.f32.mrf.mxu0
    %v4677 = vadd.f32 %v4648, %v4676
    %4678 = vmatmul.f32.gmra.mxu0 %v3216
    %v4679 = vpop.f32.mrf.mxu0
    %v4680 = vadd.f32 %v4651, %v4679
    %4681 = vmatmul.f32.gmra.mxu0 %v3219
    %v4682 = vpop.f32.mrf.mxu0
    %v4683 = vadd.f32 %v4654, %v4682
    %4684 = vdwg.mxu0
    %4685 = vmatpush.msra.mxu0 %v3535
    %4686 = vmatpush.msra.mxu0 %v3532
    %4687 = vmatpush.msra.mxu0 %v3529
    %4688 = vmatpush.msra.mxu0 %v3526
    %4689 = vmatpush.msra.mxu0 %v3523
    %4690 = vmatpush.msra.mxu0 %v3520
    %4691 = vmatpush.msra.mxu0 %v3517
    %4692 = vmatpush.msra.mxu0 %v3514
    %4693 = vmatpush.msra.mxu0 %v3511
    %4694 = vmatpush.msra.mxu0 %v3508
    %4695 = vmatpush.msra.mxu0 %v3505
    %4696 = vmatpush.msra.mxu0 %v3502
    %4697 = vmatpush.msra.mxu0 %v3499
    %4698 = vmatpush.msra.mxu0 %v3496
    %4699 = vmatpush.msra.mxu0 %v3493
    %4700 = vmatpush.msra.mxu0 %v3490
    %4701 = vmatmul.f32.gmra.mxu0 %v3239
    %v4702 = vpop.f32.mrf.mxu0
    %v4703 = vadd.f32 %v4674, %v4702
    %4704 = vmatmul.f32.gmra.mxu0 %v3242
    %v4705 = vpop.f32.mrf.mxu0
    %v4706 = vadd.f32 %v4677, %v4705
    %4707 = vmatmul.f32.gmra.mxu0 %v3245
    %v4708 = vpop.f32.mrf.mxu0
    %v4709 = vadd.f32 %v4680, %v4708
    %4710 = vmatmul.f32.gmra.mxu0 %v3248
    %v4711 = vpop.f32.mrf.mxu0
    %v4712 = vadd.f32 %v4683, %v4711
    %4713 = vdwg.mxu0
    %4714 = vmatpush.msra.mxu0 %v3296
    %4715 = vmatpush.msra.mxu0 %v3293
    %4716 = vmatpush.msra.mxu0 %v3290
    %4717 = vmatpush.msra.mxu0 %v3287
    %4718 = vmatpush.msra.mxu0 %v3284
    %4719 = vmatpush.msra.mxu0 %v3281
    %4720 = vmatpush.msra.mxu0 %v3278
    %4721 = vmatpush.msra.mxu0 %v3275
    %4722 = vmatpush.msra.mxu0 %v3272
    %4723 = vmatpush.msra.mxu0 %v3269
    %4724 = vmatpush.msra.mxu0 %v3266
    %4725 = vmatpush.msra.mxu0 %v3263
    %4726 = vmatpush.msra.mxu0 %v3260
    %4727 = vmatpush.msra.mxu0 %v3257
    %4728 = vmatpush.msra.mxu0 %v3254
    %4729 = vmatpush.msra.mxu0 %v3251
    %4730 = vmatmul.f32.gmra.mxu0 %v3094
    %v4731 = vpop.f32.mrf.mxu0
    %v4732 = vadd.f32 %v4355, %v4731
    %4733 = vmatmul.f32.gmra.mxu0 %v3097
    %v4734 = vpop.f32.mrf.mxu0
    %v4735 = vadd.f32 %v4358, %v4734
    %4736 = vmatmul.f32.gmra.mxu0 %v3100
    %v4737 = vpop.f32.mrf.mxu0
    %v4738 = vadd.f32 %v4361, %v4737
    %4739 = vmatmul.f32.gmra.mxu0 %v3103
    %v4740 = vpop.f32.mrf.mxu0
    %v4741 = vadd.f32 %v4364, %v4740
    %4742 = vdwg.mxu0
    %4743 = vmatpush.msra.mxu0 %v3344
    %4744 = vmatpush.msra.mxu0 %v3341
    %4745 = vmatpush.msra.mxu0 %v3338
    %4746 = vmatpush.msra.mxu0 %v3335
    %4747 = vmatpush.msra.mxu0 %v3332
    %4748 = vmatpush.msra.mxu0 %v3329
    %4749 = vmatpush.msra.mxu0 %v3326
    %4750 = vmatpush.msra.mxu0 %v3323
    %4751 = vmatpush.msra.mxu0 %v3320
    %4752 = vmatpush.msra.mxu0 %v3317
    %4753 = vmatpush.msra.mxu0 %v3314
    %4754 = vmatpush.msra.mxu0 %v3311
    %4755 = vmatpush.msra.mxu0 %v3308
    %4756 = vmatpush.msra.mxu0 %v3305
    %4757 = vmatpush.msra.mxu0 %v3302
    %4758 = vmatpush.msra.mxu0 %v3299
    %4759 = vmatmul.f32.gmra.mxu0 %v3123
    %v4760 = vpop.f32.mrf.mxu0
    %v4761 = vadd.f32 %v4732, %v4760
    %4762 = vmatmul.f32.gmra.mxu0 %v3126
    %v4763 = vpop.f32.mrf.mxu0
    %v4764 = vadd.f32 %v4735, %v4763
    %4765 = vmatmul.f32.gmra.mxu0 %v3129
    %v4766 = vpop.f32.mrf.mxu0
    %v4767 = vadd.f32 %v4738, %v4766
    %4768 = vmatmul.f32.gmra.mxu0 %v3132
    %v4769 = vpop.f32.mrf.mxu0
    %v4770 = vadd.f32 %v4741, %v4769
    %4771 = vdwg.mxu0
    %4772 = vmatpush.msra.mxu0 %v3392
    %4773 = vmatpush.msra.mxu0 %v3389
    %4774 = vmatpush.msra.mxu0 %v3386
    %4775 = vmatpush.msra.mxu0 %v3383
    %4776 = vmatpush.msra.mxu0 %v3380
    %4777 = vmatpush.msra.mxu0 %v3377
    %4778 = vmatpush.msra.mxu0 %v3374
    %4779 = vmatpush.msra.mxu0 %v3371
    %4780 = vmatpush.msra.mxu0 %v3368
    %4781 = vmatpush.msra.mxu0 %v3365
    %4782 = vmatpush.msra.mxu0 %v3362
    %4783 = vmatpush.msra.mxu0 %v3359
    %4784 = vmatpush.msra.mxu0 %v3356
    %4785 = vmatpush.msra.mxu0 %v3353
    %4786 = vmatpush.msra.mxu0 %v3350
    %4787 = vmatpush.msra.mxu0 %v3347
    %4788 = vmatmul.f32.gmra.mxu0 %v3152
    %v4789 = vpop.f32.mrf.mxu0
    %v4790 = vadd.f32 %v4761, %v4789
    %4791 = vmatmul.f32.gmra.mxu0 %v3155
    %v4792 = vpop.f32.mrf.mxu0
    %v4793 = vadd.f32 %v4764, %v4792
    %4794 = vmatmul.f32.gmra.mxu0 %v3158
    %v4795 = vpop.f32.mrf.mxu0
    %v4796 = vadd.f32 %v4767, %v4795
    %4797 = vmatmul.f32.gmra.mxu0 %v3161
    %v4798 = vpop.f32.mrf.mxu0
    %v4799 = vadd.f32 %v4770, %v4798
    %4800 = vdwg.mxu0
    %4801 = vmatpush.msra.mxu0 %v3440
    %4802 = vmatpush.msra.mxu0 %v3437
    %4803 = vmatpush.msra.mxu0 %v3434
    %4804 = vmatpush.msra.mxu0 %v3431
    %4805 = vmatpush.msra.mxu0 %v3428
    %4806 = vmatpush.msra.mxu0 %v3425
    %4807 = vmatpush.msra.mxu0 %v3422
    %4808 = vmatpush.msra.mxu0 %v3419
    %4809 = vmatpush.msra.mxu0 %v3416
    %4810 = vmatpush.msra.mxu0 %v3413
    %4811 = vmatpush.msra.mxu0 %v3410
    %4812 = vmatpush.msra.mxu0 %v3407
    %4813 = vmatpush.msra.mxu0 %v3404
    %4814 = vmatpush.msra.mxu0 %v3401
    %4815 = vmatpush.msra.mxu0 %v3398
    %4816 = vmatpush.msra.mxu0 %v3395
    %4817 = vmatmul.f32.gmra.mxu0 %v3181
    %v4818 = vpop.f32.mrf.mxu0
    %v4819 = vadd.f32 %v4790, %v4818
    %4820 = vmatmul.f32.gmra.mxu0 %v3184
    %v4821 = vpop.f32.mrf.mxu0
    %v4822 = vadd.f32 %v4793, %v4821
    %4823 = vmatmul.f32.gmra.mxu0 %v3187
    %v4824 = vpop.f32.mrf.mxu0
    %v4825 = vadd.f32 %v4796, %v4824
    %4826 = vmatmul.f32.gmra.mxu0 %v3190
    %v4827 = vpop.f32.mrf.mxu0
    %v4828 = vadd.f32 %v4799, %v4827
    %4829 = vdwg.mxu0
    %4830 = vmatpush.msra.mxu0 %v3488
    %4831 = vmatpush.msra.mxu0 %v3485
    %4832 = vmatpush.msra.mxu0 %v3482
    %4833 = vmatpush.msra.mxu0 %v3479
    %4834 = vmatpush.msra.mxu0 %v3476
    %4835 = vmatpush.msra.mxu0 %v3473
    %4836 = vmatpush.msra.mxu0 %v3470
    %4837 = vmatpush.msra.mxu0 %v3467
    %4838 = vmatpush.msra.mxu0 %v3464
    %4839 = vmatpush.msra.mxu0 %v3461
    %4840 = vmatpush.msra.mxu0 %v3458
    %4841 = vmatpush.msra.mxu0 %v3455
    %4842 = vmatpush.msra.mxu0 %v3452
    %4843 = vmatpush.msra.mxu0 %v3449
    %4844 = vmatpush.msra.mxu0 %v3446
    %4845 = vmatpush.msra.mxu0 %v3443
    %4846 = vmatmul.f32.gmra.mxu0 %v3210
    %v4847 = vpop.f32.mrf.mxu0
    %v4848 = vadd.f32 %v4819, %v4847
    %4849 = vmatmul.f32.gmra.mxu0 %v3213
    %v4850 = vpop.f32.mrf.mxu0
    %v4851 = vadd.f32 %v4822, %v4850
    %4852 = vmatmul.f32.gmra.mxu0 %v3216
    %v4853 = vpop.f32.mrf.mxu0
    %v4854 = vadd.f32 %v4825, %v4853
    %4855 = vmatmul.f32.gmra.mxu0 %v3219
    %v4856 = vpop.f32.mrf.mxu0
    %v4857 = vadd.f32 %v4828, %v4856
    %4858 = vdwg.mxu0
    %4859 = vmatpush.msra.mxu0 %v3536
    %4860 = vmatpush.msra.mxu0 %v3533
    %4861 = vmatpush.msra.mxu0 %v3530
    %4862 = vmatpush.msra.mxu0 %v3527
    %4863 = vmatpush.msra.mxu0 %v3524
    %4864 = vmatpush.msra.mxu0 %v3521
    %4865 = vmatpush.msra.mxu0 %v3518
    %4866 = vmatpush.msra.mxu0 %v3515
    %4867 = vmatpush.msra.mxu0 %v3512
    %4868 = vmatpush.msra.mxu0 %v3509
    %4869 = vmatpush.msra.mxu0 %v3506
    %4870 = vmatpush.msra.mxu0 %v3503
    %4871 = vmatpush.msra.mxu0 %v3500
    %4872 = vmatpush.msra.mxu0 %v3497
    %4873 = vmatpush.msra.mxu0 %v3494
    %4874 = vmatpush.msra.mxu0 %v3491
    %4875 = vmatmul.f32.gmra.mxu0 %v3239
    %v4876 = vpop.f32.mrf.mxu0
    %v4877 = vadd.f32 %v4848, %v4876
    %4878 = vmatmul.f32.gmra.mxu0 %v3242
    %v4879 = vpop.f32.mrf.mxu0
    %v4880 = vadd.f32 %v4851, %v4879
    %4881 = vmatmul.f32.gmra.mxu0 %v3245
    %v4882 = vpop.f32.mrf.mxu0
    %v4883 = vadd.f32 %v4854, %v4882
    %4884 = vmatmul.f32.gmra.mxu0 %v3248
    %v4885 = vpop.f32.mrf.mxu0
    %v4886 = vadd.f32 %v4857, %v4885
    %4887 = vdwg.mxu0
    %4888 = vmatpush.msra.mxu0 %v3297
    %4889 = vmatpush.msra.mxu0 %v3294
    %4890 = vmatpush.msra.mxu0 %v3291
    %4891 = vmatpush.msra.mxu0 %v3288
    %4892 = vmatpush.msra.mxu0 %v3285
    %4893 = vmatpush.msra.mxu0 %v3282
    %4894 = vmatpush.msra.mxu0 %v3279
    %4895 = vmatpush.msra.mxu0 %v3276
    %4896 = vmatpush.msra.mxu0 %v3273
    %4897 = vmatpush.msra.mxu0 %v3270
    %4898 = vmatpush.msra.mxu0 %v3267
    %4899 = vmatpush.msra.mxu0 %v3264
    %4900 = vmatpush.msra.mxu0 %v3261
    %4901 = vmatpush.msra.mxu0 %v3258
    %4902 = vmatpush.msra.mxu0 %v3255
    %4903 = vmatpush.msra.mxu0 %v3252
    %4904 = vmatmul.f32.gmra.mxu0 %v3094
    %v4905 = vpop.f32.mrf.mxu0
    %v4906 = vadd.f32 %v4529, %v4905
    %4907 = vmatmul.f32.gmra.mxu0 %v3097
    %v4908 = vpop.f32.mrf.mxu0
    %v4909 = vadd.f32 %v4532, %v4908
    %4910 = vmatmul.f32.gmra.mxu0 %v3100
    %v4911 = vpop.f32.mrf.mxu0
    %v4912 = vadd.f32 %v4535, %v4911
    %4913 = vmatmul.f32.gmra.mxu0 %v3103
    %v4914 = vpop.f32.mrf.mxu0
    %v4915 = vadd.f32 %v4538, %v4914
    %4916 = vdwg.mxu0
    %4917 = vmatpush.msra.mxu0 %v3345
    %4918 = vmatpush.msra.mxu0 %v3342
    %4919 = vmatpush.msra.mxu0 %v3339
    %4920 = vmatpush.msra.mxu0 %v3336
    %4921 = vmatpush.msra.mxu0 %v3333
    %4922 = vmatpush.msra.mxu0 %v3330
    %4923 = vmatpush.msra.mxu0 %v3327
    %4924 = vmatpush.msra.mxu0 %v3324
    %4925 = vmatpush.msra.mxu0 %v3321
    %4926 = vmatpush.msra.mxu0 %v3318
    %4927 = vmatpush.msra.mxu0 %v3315
    %4928 = vmatpush.msra.mxu0 %v3312
    %4929 = vmatpush.msra.mxu0 %v3309
    %4930 = vmatpush.msra.mxu0 %v3306
    %4931 = vmatpush.msra.mxu0 %v3303
    %4932 = vmatpush.msra.mxu0 %v3300
    %4933 = vmatmul.f32.gmra.mxu0 %v3123
    %v4934 = vpop.f32.mrf.mxu0
    %v4935 = vadd.f32 %v4906, %v4934
    %4936 = vmatmul.f32.gmra.mxu0 %v3126
    %v4937 = vpop.f32.mrf.mxu0
    %v4938 = vadd.f32 %v4909, %v4937
    %4939 = vmatmul.f32.gmra.mxu0 %v3129
    %v4940 = vpop.f32.mrf.mxu0
    %v4941 = vadd.f32 %v4912, %v4940
    %4942 = vmatmul.f32.gmra.mxu0 %v3132
    %v4943 = vpop.f32.mrf.mxu0
    %v4944 = vadd.f32 %v4915, %v4943
    %4945 = vdwg.mxu0
    %4946 = vmatpush.msra.mxu0 %v3393
    %4947 = vmatpush.msra.mxu0 %v3390
    %4948 = vmatpush.msra.mxu0 %v3387
    %4949 = vmatpush.msra.mxu0 %v3384
    %4950 = vmatpush.msra.mxu0 %v3381
    %4951 = vmatpush.msra.mxu0 %v3378
    %4952 = vmatpush.msra.mxu0 %v3375
    %4953 = vmatpush.msra.mxu0 %v3372
    %4954 = vmatpush.msra.mxu0 %v3369
    %4955 = vmatpush.msra.mxu0 %v3366
    %4956 = vmatpush.msra.mxu0 %v3363
    %4957 = vmatpush.msra.mxu0 %v3360
    %4958 = vmatpush.msra.mxu0 %v3357
    %4959 = vmatpush.msra.mxu0 %v3354
    %4960 = vmatpush.msra.mxu0 %v3351
    %4961 = vmatpush.msra.mxu0 %v3348
    %4962 = vmatmul.f32.gmra.mxu0 %v3152
    %v4963 = vpop.f32.mrf.mxu0
    %v4964 = vadd.f32 %v4935, %v4963
    %4965 = vmatmul.f32.gmra.mxu0 %v3155
    %v4966 = vpop.f32.mrf.mxu0
    %v4967 = vadd.f32 %v4938, %v4966
    %4968 = vmatmul.f32.gmra.mxu0 %v3158
    %v4969 = vpop.f32.mrf.mxu0
    %v4970 = vadd.f32 %v4941, %v4969
    %4971 = vmatmul.f32.gmra.mxu0 %v3161
    %v4972 = vpop.f32.mrf.mxu0
    %v4973 = vadd.f32 %v4944, %v4972
    %4974 = vdwg.mxu0
    %4975 = vmatpush.msra.mxu0 %v3441
    %4976 = vmatpush.msra.mxu0 %v3438
    %4977 = vmatpush.msra.mxu0 %v3435
    %4978 = vmatpush.msra.mxu0 %v3432
    %4979 = vmatpush.msra.mxu0 %v3429
    %4980 = vmatpush.msra.mxu0 %v3426
    %4981 = vmatpush.msra.mxu0 %v3423
    %4982 = vmatpush.msra.mxu0 %v3420
    %4983 = vmatpush.msra.mxu0 %v3417
    %4984 = vmatpush.msra.mxu0 %v3414
    %4985 = vmatpush.msra.mxu0 %v3411
    %4986 = vmatpush.msra.mxu0 %v3408
    %4987 = vmatpush.msra.mxu0 %v3405
    %4988 = vmatpush.msra.mxu0 %v3402
    %4989 = vmatpush.msra.mxu0 %v3399
    %4990 = vmatpush.msra.mxu0 %v3396
    %4991 = vmatmul.f32.gmra.mxu0 %v3181
    %v4992 = vpop.f32.mrf.mxu0
    %v4993 = vadd.f32 %v4964, %v4992
    %4994 = vmatmul.f32.gmra.mxu0 %v3184
    %v4995 = vpop.f32.mrf.mxu0
    %v4996 = vadd.f32 %v4967, %v4995
    %4997 = vmatmul.f32.gmra.mxu0 %v3187
    %v4998 = vpop.f32.mrf.mxu0
    %v4999 = vadd.f32 %v4970, %v4998
    %5000 = vmatmul.f32.gmra.mxu0 %v3190
    %v5001 = vpop.f32.mrf.mxu0
    %v5002 = vadd.f32 %v4973, %v5001
    %5003 = vdwg.mxu0
    %5004 = vmatpush.msra.mxu0 %v3489
    %5005 = vmatpush.msra.mxu0 %v3486
    %5006 = vmatpush.msra.mxu0 %v3483
    %5007 = vmatpush.msra.mxu0 %v3480
    %5008 = vmatpush.msra.mxu0 %v3477
    %5009 = vmatpush.msra.mxu0 %v3474
    %5010 = vmatpush.msra.mxu0 %v3471
    %5011 = vmatpush.msra.mxu0 %v3468
    %5012 = vmatpush.msra.mxu0 %v3465
    %5013 = vmatpush.msra.mxu0 %v3462
    %5014 = vmatpush.msra.mxu0 %v3459
    %5015 = vmatpush.msra.mxu0 %v3456
    %5016 = vmatpush.msra.mxu0 %v3453
    %5017 = vmatpush.msra.mxu0 %v3450
    %5018 = vmatpush.msra.mxu0 %v3447
    %5019 = vmatpush.msra.mxu0 %v3444
    %5020 = vmatmul.f32.gmra.mxu0 %v3210
    %v5021 = vpop.f32.mrf.mxu0
    %v5022 = vadd.f32 %v4993, %v5021
    %5023 = vmatmul.f32.gmra.mxu0 %v3213
    %v5024 = vpop.f32.mrf.mxu0
    %v5025 = vadd.f32 %v4996, %v5024
    %5026 = vmatmul.f32.gmra.mxu0 %v3216
    %v5027 = vpop.f32.mrf.mxu0
    %v5028 = vadd.f32 %v4999, %v5027
    %5029 = vmatmul.f32.gmra.mxu0 %v3219
    %v5030 = vpop.f32.mrf.mxu0
    %v5031 = vadd.f32 %v5002, %v5030
    %5032 = vdwg.mxu0
    %5033 = vmatpush.msra.mxu0 %v3537
    %5034 = vmatpush.msra.mxu0 %v3534
    %5035 = vmatpush.msra.mxu0 %v3531
    %5036 = vmatpush.msra.mxu0 %v3528
    %5037 = vmatpush.msra.mxu0 %v3525
    %5038 = vmatpush.msra.mxu0 %v3522
    %5039 = vmatpush.msra.mxu0 %v3519
    %5040 = vmatpush.msra.mxu0 %v3516
    %5041 = vmatpush.msra.mxu0 %v3513
    %5042 = vmatpush.msra.mxu0 %v3510
    %5043 = vmatpush.msra.mxu0 %v3507
    %5044 = vmatpush.msra.mxu0 %v3504
    %5045 = vmatpush.msra.mxu0 %v3501
    %5046 = vmatpush.msra.mxu0 %v3498
    %5047 = vmatpush.msra.mxu0 %v3495
    %5048 = vmatpush.msra.mxu0 %v3492
    %5049 = vmatmul.f32.gmra.mxu0 %v3239
    %v5050 = vpop.f32.mrf.mxu0
    %v5051 = vadd.f32 %v5022, %v5050
    %5052 = vmatmul.f32.gmra.mxu0 %v3242
    %v5053 = vpop.f32.mrf.mxu0
    %v5054 = vadd.f32 %v5025, %v5053
    %5055 = vmatmul.f32.gmra.mxu0 %v3245
    %v5056 = vpop.f32.mrf.mxu0
    %v5057 = vadd.f32 %v5028, %v5056
    %5058 = vmatmul.f32.gmra.mxu0 %v3248
    %v5059 = vpop.f32.mrf.mxu0
    %v5060 = vadd.f32 %v5031, %v5059
    %5061 = vdwg.mxu0
    %s5062 = scalar_lea.vmem [#allocation13], 64
    %v5063 = vld [vmem:[%s5062] sm:$0xff]
    %v5064 = vld [vmem:[%s5062 + $0x8] sm:$0xff]
    %v5065 = vld [vmem:[%s5062 + $0x10] sm:$0xff]
    %v5066 = vld [vmem:[%s5062 + $0x18] sm:$0x3]
    %v5068 = vsel %vm3045, %v5063, 0
    %v5071 = vsel %vm3045, %v5064, 0
    %v5074 = vsel %vm3045, %v5065, 0
    %v5077 = vsel %vm3045, %v5066, 0
    %5079 = vmatpush.msra.mxu0 0.0
    %5080 = vmatpush.msra.mxu0 0.0
    %5081 = vmatpush.msra.mxu0 0.0
    %5082 = vmatpush.msra.mxu0 0.0
    %5083 = vmatpush.msra.mxu0 0.0
    %5084 = vmatpush.msra.mxu0 0.0
    %5085 = vmatpush.msra.mxu0 0.0
    %5086 = vmatpush.msra.mxu0 0.0
    %5087 = vmatpush.msra.mxu0 0.0
    %5088 = vmatpush.msra.mxu0 %v3059
    %5089 = vmatpush.msra.mxu0 %v3029
    %5090 = vmatpush.msra.mxu0 %v3023
    %5091 = vmatpush.msra.mxu0 %v3017
    %5092 = vmatpush.msra.mxu0 %v3011
    %5093 = vmatpush.msra.mxu0 %v3005
    %5094 = vmatpush.msra.mxu0 %v2999
    %5095 = vmatmul.f32.gmra.mxu0 %v5068
    %v5096 = vpop.f32.mrf.mxu0
    %v5097 = vadd.f32 0.0, %v5096
    %5098 = vmatmul.f32.gmra.mxu0 %v5071
    %v5099 = vpop.f32.mrf.mxu0
    %v5100 = vadd.f32 0.0, %v5099
    %5101 = vmatmul.f32.gmra.mxu0 %v5074
    %v5102 = vpop.f32.mrf.mxu0
    %v5103 = vadd.f32 0.0, %v5102
    %5104 = vmatmul.f32.gmra.mxu0 %v5077
    %v5105 = vpop.f32.mrf.mxu0
    %v5106 = vadd.f32 0.0, %v5105
    %5107 = vdwg.mxu0
    %5108 = vmatpush.msra.mxu0 0.0
    %5109 = vmatpush.msra.mxu0 0.0
    %5110 = vmatpush.msra.mxu0 0.0
    %5111 = vmatpush.msra.mxu0 0.0
    %5112 = vmatpush.msra.mxu0 0.0
    %5113 = vmatpush.msra.mxu0 0.0
    %5114 = vmatpush.msra.mxu0 0.0
    %5115 = vmatpush.msra.mxu0 0.0
    %5116 = vmatpush.msra.mxu0 0.0
    %5117 = vmatpush.msra.mxu0 %v3062
    %5118 = vmatpush.msra.mxu0 %v3030
    %5119 = vmatpush.msra.mxu0 %v3024
    %5120 = vmatpush.msra.mxu0 %v3018
    %5121 = vmatpush.msra.mxu0 %v3012
    %5122 = vmatpush.msra.mxu0 %v3006
    %5123 = vmatpush.msra.mxu0 %v3000
    %5124 = vmatmul.f32.gmra.mxu0 %v5068
    %v5125 = vpop.f32.mrf.mxu0
    %v5126 = vadd.f32 0.0, %v5125
    %5127 = vmatmul.f32.gmra.mxu0 %v5071
    %v5128 = vpop.f32.mrf.mxu0
    %v5129 = vadd.f32 0.0, %v5128
    %5130 = vmatmul.f32.gmra.mxu0 %v5074
    %v5131 = vpop.f32.mrf.mxu0
    %v5132 = vadd.f32 0.0, %v5131
    %5133 = vmatmul.f32.gmra.mxu0 %v5077
    %v5134 = vpop.f32.mrf.mxu0
    %v5135 = vadd.f32 0.0, %v5134
    %5136 = vdwg.mxu0
    %5137 = vmatpush.msra.mxu0 0.0
    %5138 = vmatpush.msra.mxu0 0.0
    %5139 = vmatpush.msra.mxu0 0.0
    %5140 = vmatpush.msra.mxu0 0.0
    %5141 = vmatpush.msra.mxu0 0.0
    %5142 = vmatpush.msra.mxu0 0.0
    %5143 = vmatpush.msra.mxu0 0.0
    %5144 = vmatpush.msra.mxu0 0.0
    %5145 = vmatpush.msra.mxu0 0.0
    %5146 = vmatpush.msra.mxu0 %v3065
    %5147 = vmatpush.msra.mxu0 %v3031
    %5148 = vmatpush.msra.mxu0 %v3025
    %5149 = vmatpush.msra.mxu0 %v3019
    %5150 = vmatpush.msra.mxu0 %v3013
    %5151 = vmatpush.msra.mxu0 %v3007
    %5152 = vmatpush.msra.mxu0 %v3001
    %5153 = vmatmul.f32.gmra.mxu0 %v5068
    %v5154 = vpop.f32.mrf.mxu0
    %v5155 = vadd.f32 0.0, %v5154
    %5156 = vmatmul.f32.gmra.mxu0 %v5071
    %v5157 = vpop.f32.mrf.mxu0
    %v5158 = vadd.f32 0.0, %v5157
    %5159 = vmatmul.f32.gmra.mxu0 %v5074
    %v5160 = vpop.f32.mrf.mxu0
    %v5161 = vadd.f32 0.0, %v5160
    %5162 = vmatmul.f32.gmra.mxu0 %v5077
    %v5163 = vpop.f32.mrf.mxu0
    %v5164 = vadd.f32 0.0, %v5163
    %5165 = vdwg.mxu0
    %5166 = vmatpush.msra.mxu0 0.0
    %5167 = vmatpush.msra.mxu0 0.0
    %5168 = vmatpush.msra.mxu0 0.0
    %5169 = vmatpush.msra.mxu0 0.0
    %5170 = vmatpush.msra.mxu0 0.0
    %5171 = vmatpush.msra.mxu0 0.0
    %5172 = vmatpush.msra.mxu0 0.0
    %5173 = vmatpush.msra.mxu0 0.0
    %5174 = vmatpush.msra.mxu0 0.0
    %5175 = vmatpush.msra.mxu0 %v3068
    %5176 = vmatpush.msra.mxu0 %v3032
    %5177 = vmatpush.msra.mxu0 %v3026
    %5178 = vmatpush.msra.mxu0 %v3020
    %5179 = vmatpush.msra.mxu0 %v3014
    %5180 = vmatpush.msra.mxu0 %v3008
    %5181 = vmatpush.msra.mxu0 %v3002
    %5182 = vmatmul.f32.gmra.mxu0 %v5068
    %v5183 = vpop.f32.mrf.mxu0
    %v5184 = vadd.f32 0.0, %v5183
    %5185 = vmatmul.f32.gmra.mxu0 %v5071
    %v5186 = vpop.f32.mrf.mxu0
    %v5187 = vadd.f32 0.0, %v5186
    %5188 = vmatmul.f32.gmra.mxu0 %v5074
    %v5189 = vpop.f32.mrf.mxu0
    %v5190 = vadd.f32 0.0, %v5189
    %5191 = vmatmul.f32.gmra.mxu0 %v5077
    %v5192 = vpop.f32.mrf.mxu0
    %v5193 = vadd.f32 0.0, %v5192
    %5194 = vdwg.mxu0
    %5195 = vmatpush.msra.mxu0 0.0
    %5196 = vmatpush.msra.mxu0 0.0
    %5197 = vmatpush.msra.mxu0 0.0
    %5198 = vmatpush.msra.mxu0 0.0
    %5199 = vmatpush.msra.mxu0 0.0
    %5200 = vmatpush.msra.mxu0 0.0
    %5201 = vmatpush.msra.mxu0 0.0
    %5202 = vmatpush.msra.mxu0 0.0
    %5203 = vmatpush.msra.mxu0 0.0
    %5204 = vmatpush.msra.mxu0 %v3071
    %5205 = vmatpush.msra.mxu0 %v3033
    %5206 = vmatpush.msra.mxu0 %v3027
    %5207 = vmatpush.msra.mxu0 %v3021
    %5208 = vmatpush.msra.mxu0 %v3015
    %5209 = vmatpush.msra.mxu0 %v3009
    %5210 = vmatpush.msra.mxu0 %v3003
    %5211 = vmatmul.f32.gmra.mxu0 %v5068
    %v5212 = vpop.f32.mrf.mxu0
    %v5213 = vadd.f32 0.0, %v5212
    %5214 = vmatmul.f32.gmra.mxu0 %v5071
    %v5215 = vpop.f32.mrf.mxu0
    %v5216 = vadd.f32 0.0, %v5215
    %5217 = vmatmul.f32.gmra.mxu0 %v5074
    %v5218 = vpop.f32.mrf.mxu0
    %v5219 = vadd.f32 0.0, %v5218
    %5220 = vmatmul.f32.gmra.mxu0 %v5077
    %v5221 = vpop.f32.mrf.mxu0
    %v5222 = vadd.f32 0.0, %v5221
    %5223 = vdwg.mxu0
    %5224 = vmatpush.msra.mxu0 0.0
    %5225 = vmatpush.msra.mxu0 0.0
    %5226 = vmatpush.msra.mxu0 0.0
    %5227 = vmatpush.msra.mxu0 0.0
    %5228 = vmatpush.msra.mxu0 0.0
    %5229 = vmatpush.msra.mxu0 0.0
    %5230 = vmatpush.msra.mxu0 0.0
    %5231 = vmatpush.msra.mxu0 0.0
    %5232 = vmatpush.msra.mxu0 0.0
    %5233 = vmatpush.msra.mxu0 %v3074
    %5234 = vmatpush.msra.mxu0 %v3034
    %5235 = vmatpush.msra.mxu0 %v3028
    %5236 = vmatpush.msra.mxu0 %v3022
    %5237 = vmatpush.msra.mxu0 %v3016
    %5238 = vmatpush.msra.mxu0 %v3010
    %5239 = vmatpush.msra.mxu0 %v3004
    %5240 = vmatmul.f32.gmra.mxu0 %v5068
    %v5241 = vpop.f32.mrf.mxu0
    %v5242 = vadd.f32 0.0, %v5241
    %5243 = vmatmul.f32.gmra.mxu0 %v5071
    %v5244 = vpop.f32.mrf.mxu0
    %v5245 = vadd.f32 0.0, %v5244
    %5246 = vmatmul.f32.gmra.mxu0 %v5074
    %v5247 = vpop.f32.mrf.mxu0
    %v5248 = vadd.f32 0.0, %v5247
    %5249 = vmatmul.f32.gmra.mxu0 %v5077
    %v5250 = vpop.f32.mrf.mxu0
    %v5251 = vadd.f32 0.0, %v5250
    %5252 = vdwg.mxu0
    %s5253 = scalar_lea.vmem [#allocation10], 4608
    %v5254 = vld [vmem:[%s5253] sm:$0xff]
    %v5255 = vld [vmem:[%s5253 + $0x8] sm:$0xff]
    %v5256 = vld [vmem:[%s5253 + $0x10] sm:$0xff]
    %v5257 = vld [vmem:[%s5253 + $0x18] sm:$0xff]
    %v5258 = vld [vmem:[%s5253 + $0x20] sm:$0xff]
    %v5259 = vld [vmem:[%s5253 + $0x28] sm:$0xff]
    %v5260 = vld [vmem:[%s5253 + $0x30] sm:$0xff]
    %v5261 = vld [vmem:[%s5253 + $0x38] sm:$0xff]
    %v5262 = vld [vmem:[%s5253 + $0x40] sm:$0xff]
    %v5263 = vld [vmem:[%s5253 + $0x48] sm:$0xff]
    %v5264 = vld [vmem:[%s5253 + $0x50] sm:$0xff]
    %v5265 = vld [vmem:[%s5253 + $0x58] sm:$0xff]
    %v5266 = vld [vmem:[%s5253 + $0x60] sm:$0xff]
    %v5267 = vld [vmem:[%s5253 + $0x68] sm:$0xff]
    %v5268 = vld [vmem:[%s5253 + $0x70] sm:$0xff]
    %v5269 = vld [vmem:[%s5253 + $0x78] sm:$0xff]
    %v5270 = vld [vmem:[%s5253 + $0x80] sm:$0xff]
    %v5271 = vld [vmem:[%s5253 + $0x88] sm:$0xff]
    %v5272 = vld [vmem:[%s5253 + $0x90] sm:$0xff]
    %v5273 = vld [vmem:[%s5253 + $0x98] sm:$0xff]
    %v5274 = vld [vmem:[%s5253 + $0xa0] sm:$0xff]
    %v5275 = vld [vmem:[%s5253 + $0xa8] sm:$0xff]
    %v5276 = vld [vmem:[%s5253 + $0xb0] sm:$0xff]
    %v5277 = vld [vmem:[%s5253 + $0xb8] sm:$0xff]
    %v5278 = vld [vmem:[%s5253 + $0xc0] sm:$0xff]
    %v5279 = vld [vmem:[%s5253 + $0xc8] sm:$0xff]
    %v5280 = vld [vmem:[%s5253 + $0xd0] sm:$0xff]
    %v5281 = vld [vmem:[%s5253 + $0xd8] sm:$0xff]
    %v5282 = vld [vmem:[%s5253 + $0xe0] sm:$0xff]
    %v5283 = vld [vmem:[%s5253 + $0xe8] sm:$0xff]
    %v5284 = vld [vmem:[%s5253 + $0xf0] sm:$0xff]
    %v5285 = vld [vmem:[%s5253 + $0xf8] sm:$0xff]
    %v5286 = vld [vmem:[%s5253 + $0x100] sm:$0xff]
    %v5287 = vld [vmem:[%s5253 + $0x108] sm:$0xff]
    %v5288 = vld [vmem:[%s5253 + $0x110] sm:$0xff]
    %v5289 = vld [vmem:[%s5253 + $0x118] sm:$0xff]
    %v5290 = vld [vmem:[%s5253 + $0x120] sm:$0xff]
    %v5291 = vld [vmem:[%s5253 + $0x128] sm:$0xff]
    %v5292 = vld [vmem:[%s5253 + $0x130] sm:$0xff]
    %v5293 = vld [vmem:[%s5253 + $0x138] sm:$0xff]
    %v5294 = vld [vmem:[%s5253 + $0x140] sm:$0xff]
    %v5295 = vld [vmem:[%s5253 + $0x148] sm:$0xff]
    %v5296 = vld [vmem:[%s5253 + $0x150] sm:$0xff]
    %v5297 = vld [vmem:[%s5253 + $0x158] sm:$0xff]
    %v5298 = vld [vmem:[%s5253 + $0x160] sm:$0xff]
    %v5299 = vld [vmem:[%s5253 + $0x168] sm:$0xff]
    %v5300 = vld [vmem:[%s5253 + $0x170] sm:$0xff]
    %v5301 = vld [vmem:[%s5253 + $0x178] sm:$0xff]
    %v5302 = vld [vmem:[%s5253 + $0x180] sm:$0xff]
    %v5303 = vld [vmem:[%s5253 + $0x188] sm:$0xff]
    %v5304 = vld [vmem:[%s5253 + $0x190] sm:$0xff]
    %v5305 = vld [vmem:[%s5253 + $0x198] sm:$0xff]
    %v5306 = vld [vmem:[%s5253 + $0x1a0] sm:$0xff]
    %v5307 = vld [vmem:[%s5253 + $0x1a8] sm:$0xff]
    %v5308 = vld [vmem:[%s5253 + $0x1b0] sm:$0xff]
    %v5309 = vld [vmem:[%s5253 + $0x1b8] sm:$0xff]
    %v5310 = vld [vmem:[%s5253 + $0x1c0] sm:$0xff]
    %v5311 = vld [vmem:[%s5253 + $0x1c8] sm:$0xff]
    %v5312 = vld [vmem:[%s5253 + $0x1d0] sm:$0xff]
    %v5313 = vld [vmem:[%s5253 + $0x1d8] sm:$0xff]
    %v5314 = vld [vmem:[%s5253 + $0x1e0] sm:$0xff]
    %v5315 = vld [vmem:[%s5253 + $0x1e8] sm:$0xff]
    %v5316 = vld [vmem:[%s5253 + $0x1f0] sm:$0xff]
    %v5317 = vld [vmem:[%s5253 + $0x1f8] sm:$0xff]
    %v5318 = vld [vmem:[%s5253 + $0x200] sm:$0xff]
    %v5319 = vld [vmem:[%s5253 + $0x208] sm:$0xff]
    %v5320 = vld [vmem:[%s5253 + $0x210] sm:$0xff]
    %v5321 = vld [vmem:[%s5253 + $0x218] sm:$0xff]
    %v5322 = vld [vmem:[%s5253 + $0x220] sm:$0xff]
    %v5323 = vld [vmem:[%s5253 + $0x228] sm:$0xff]
    %v5324 = vld [vmem:[%s5253 + $0x230] sm:$0xff]
    %v5325 = vld [vmem:[%s5253 + $0x238] sm:$0xff]
    %v5326 = vld [vmem:[%s5253 + $0x240] sm:$0xff]
    %v5327 = vld [vmem:[%s5253 + $0x248] sm:$0xff]
    %v5328 = vld [vmem:[%s5253 + $0x250] sm:$0xff]
    %v5329 = vld [vmem:[%s5253 + $0x258] sm:$0xff]
    %v5330 = vld [vmem:[%s5253 + $0x260] sm:$0xff]
    %v5331 = vld [vmem:[%s5253 + $0x268] sm:$0xff]
    %v5332 = vld [vmem:[%s5253 + $0x270] sm:$0xff]
    %v5333 = vld [vmem:[%s5253 + $0x278] sm:$0xff]
    %v5334 = vld [vmem:[%s5253 + $0x280] sm:$0xff]
    %v5335 = vld [vmem:[%s5253 + $0x288] sm:$0xff]
    %v5336 = vld [vmem:[%s5253 + $0x290] sm:$0xff]
    %v5337 = vld [vmem:[%s5253 + $0x298] sm:$0xff]
    %v5338 = vld [vmem:[%s5253 + $0x2a0] sm:$0xff]
    %v5339 = vld [vmem:[%s5253 + $0x2a8] sm:$0xff]
    %v5340 = vld [vmem:[%s5253 + $0x2b0] sm:$0xff]
    %v5341 = vld [vmem:[%s5253 + $0x2b8] sm:$0xff]
    %v5342 = vld [vmem:[%s5253 + $0x2c0] sm:$0xff]
    %v5343 = vld [vmem:[%s5253 + $0x2c8] sm:$0xff]
    %v5344 = vld [vmem:[%s5253 + $0x2d0] sm:$0xff]
    %v5345 = vld [vmem:[%s5253 + $0x2d8] sm:$0xff]
    %v5346 = vld [vmem:[%s5253 + $0x2e0] sm:$0xff]
    %v5347 = vld [vmem:[%s5253 + $0x2e8] sm:$0xff]
    %v5348 = vld [vmem:[%s5253 + $0x2f0] sm:$0xff]
    %v5349 = vld [vmem:[%s5253 + $0x2f8] sm:$0xff]
    %v5350 = vld [vmem:[%s5253 + $0x300] sm:$0xff]
    %v5351 = vld [vmem:[%s5253 + $0x308] sm:$0xff]
    %v5352 = vld [vmem:[%s5253 + $0x310] sm:$0xff]
    %v5353 = vld [vmem:[%s5253 + $0x318] sm:$0xff]
    %v5354 = vld [vmem:[%s5253 + $0x320] sm:$0xff]
    %v5355 = vld [vmem:[%s5253 + $0x328] sm:$0xff]
    %v5356 = vld [vmem:[%s5253 + $0x330] sm:$0xff]
    %v5357 = vld [vmem:[%s5253 + $0x338] sm:$0xff]
    %v5358 = vld [vmem:[%s5253 + $0x340] sm:$0xff]
    %v5359 = vld [vmem:[%s5253 + $0x348] sm:$0xff]
    %v5360 = vld [vmem:[%s5253 + $0x350] sm:$0xff]
    %v5361 = vld [vmem:[%s5253 + $0x358] sm:$0xff]
    %v5362 = vld [vmem:[%s5253 + $0x360] sm:$0xff]
    %v5363 = vld [vmem:[%s5253 + $0x368] sm:$0xff]
    %v5364 = vld [vmem:[%s5253 + $0x370] sm:$0xff]
    %v5365 = vld [vmem:[%s5253 + $0x378] sm:$0xff]
    %v5366 = vld [vmem:[%s5253 + $0x380] sm:$0xff]
    %v5367 = vld [vmem:[%s5253 + $0x388] sm:$0xff]
    %v5368 = vld [vmem:[%s5253 + $0x390] sm:$0xff]
    %v5369 = vld [vmem:[%s5253 + $0x398] sm:$0xff]
    %v5370 = vld [vmem:[%s5253 + $0x3a0] sm:$0xff]
    %v5371 = vld [vmem:[%s5253 + $0x3a8] sm:$0xff]
    %v5372 = vld [vmem:[%s5253 + $0x3b0] sm:$0xff]
    %v5373 = vld [vmem:[%s5253 + $0x3b8] sm:$0xff]
    %v5374 = vld [vmem:[%s5253 + $0x3c0] sm:$0xff]
    %v5375 = vld [vmem:[%s5253 + $0x3c8] sm:$0xff]
    %v5376 = vld [vmem:[%s5253 + $0x3d0] sm:$0xff]
    %v5377 = vld [vmem:[%s5253 + $0x3d8] sm:$0xff]
    %v5378 = vld [vmem:[%s5253 + $0x3e0] sm:$0xff]
    %v5379 = vld [vmem:[%s5253 + $0x3e8] sm:$0xff]
    %v5380 = vld [vmem:[%s5253 + $0x3f0] sm:$0xff]
    %v5381 = vld [vmem:[%s5253 + $0x3f8] sm:$0xff]
    %v5382 = vld [vmem:[%s5253 + $0x400] sm:$0xff]
    %v5383 = vld [vmem:[%s5253 + $0x408] sm:$0xff]
    %v5384 = vld [vmem:[%s5253 + $0x410] sm:$0xff]
    %v5385 = vld [vmem:[%s5253 + $0x418] sm:$0xff]
    %v5386 = vld [vmem:[%s5253 + $0x420] sm:$0xff]
    %v5387 = vld [vmem:[%s5253 + $0x428] sm:$0xff]
    %v5388 = vld [vmem:[%s5253 + $0x430] sm:$0xff]
    %v5389 = vld [vmem:[%s5253 + $0x438] sm:$0xff]
    %v5390 = vld [vmem:[%s5253 + $0x440] sm:$0xff]
    %v5391 = vld [vmem:[%s5253 + $0x448] sm:$0xff]
    %v5392 = vld [vmem:[%s5253 + $0x450] sm:$0xff]
    %v5393 = vld [vmem:[%s5253 + $0x458] sm:$0xff]
    %v5394 = vld [vmem:[%s5253 + $0x460] sm:$0xff]
    %v5395 = vld [vmem:[%s5253 + $0x468] sm:$0xff]
    %v5396 = vld [vmem:[%s5253 + $0x470] sm:$0xff]
    %v5397 = vld [vmem:[%s5253 + $0x478] sm:$0xff]
    %v5398 = vld [vmem:[%s5253 + $0x480] sm:$0xff]
    %v5399 = vld [vmem:[%s5253 + $0x488] sm:$0xff]
    %v5400 = vld [vmem:[%s5253 + $0x490] sm:$0xff]
    %v5401 = vld [vmem:[%s5253 + $0x498] sm:$0xff]
    %v5402 = vld [vmem:[%s5253 + $0x4a0] sm:$0xff]
    %v5403 = vld [vmem:[%s5253 + $0x4a8] sm:$0xff]
    %v5404 = vld [vmem:[%s5253 + $0x4b0] sm:$0xff]
    %v5405 = vld [vmem:[%s5253 + $0x4b8] sm:$0xff]
    %v5406 = vld [vmem:[%s5253 + $0x4c0] sm:$0xff]
    %v5407 = vld [vmem:[%s5253 + $0x4c8] sm:$0xff]
    %v5408 = vld [vmem:[%s5253 + $0x4d0] sm:$0xff]
    %v5409 = vld [vmem:[%s5253 + $0x4d8] sm:$0xff]
    %v5410 = vld [vmem:[%s5253 + $0x4e0] sm:$0xff]
    %v5411 = vld [vmem:[%s5253 + $0x4e8] sm:$0xff]
    %v5412 = vld [vmem:[%s5253 + $0x4f0] sm:$0xff]
    %v5413 = vld [vmem:[%s5253 + $0x4f8] sm:$0xff]
    %v5414 = vld [vmem:[%s5253 + $0x500] sm:$0xff]
    %v5415 = vld [vmem:[%s5253 + $0x508] sm:$0xff]
    %v5416 = vld [vmem:[%s5253 + $0x510] sm:$0xff]
    %v5417 = vld [vmem:[%s5253 + $0x518] sm:$0xff]
    %v5418 = vld [vmem:[%s5253 + $0x520] sm:$0xff]
    %v5419 = vld [vmem:[%s5253 + $0x528] sm:$0xff]
    %v5420 = vld [vmem:[%s5253 + $0x530] sm:$0xff]
    %v5421 = vld [vmem:[%s5253 + $0x538] sm:$0xff]
    %v5422 = vld [vmem:[%s5253 + $0x540] sm:$0xff]
    %v5423 = vld [vmem:[%s5253 + $0x548] sm:$0xff]
    %v5424 = vld [vmem:[%s5253 + $0x550] sm:$0xff]
    %v5425 = vld [vmem:[%s5253 + $0x558] sm:$0xff]
    %v5426 = vld [vmem:[%s5253 + $0x560] sm:$0xff]
    %v5427 = vld [vmem:[%s5253 + $0x568] sm:$0xff]
    %v5428 = vld [vmem:[%s5253 + $0x570] sm:$0xff]
    %v5429 = vld [vmem:[%s5253 + $0x578] sm:$0xff]
    %v5430 = vld [vmem:[%s5253 + $0x580] sm:$0xff]
    %v5431 = vld [vmem:[%s5253 + $0x588] sm:$0xff]
    %v5432 = vld [vmem:[%s5253 + $0x590] sm:$0xff]
    %v5433 = vld [vmem:[%s5253 + $0x598] sm:$0xff]
    %v5434 = vld [vmem:[%s5253 + $0x5a0] sm:$0xff]
    %v5435 = vld [vmem:[%s5253 + $0x5a8] sm:$0xff]
    %v5436 = vld [vmem:[%s5253 + $0x5b0] sm:$0xff]
    %v5437 = vld [vmem:[%s5253 + $0x5b8] sm:$0xff]
    %v5438 = vld [vmem:[%s5253 + $0x5c0] sm:$0xff]
    %v5439 = vld [vmem:[%s5253 + $0x5c8] sm:$0xff]
    %v5440 = vld [vmem:[%s5253 + $0x5d0] sm:$0xff]
    %v5441 = vld [vmem:[%s5253 + $0x5d8] sm:$0xff]
    %v5442 = vld [vmem:[%s5253 + $0x5e0] sm:$0xff]
    %v5443 = vld [vmem:[%s5253 + $0x5e8] sm:$0xff]
    %v5444 = vld [vmem:[%s5253 + $0x5f0] sm:$0xff]
    %v5445 = vld [vmem:[%s5253 + $0x5f8] sm:$0xff]
    %v5446 = vld [vmem:[%s5253 + $0x600] sm:$0xff]
    %v5447 = vld [vmem:[%s5253 + $0x608] sm:$0xff]
    %v5448 = vld [vmem:[%s5253 + $0x610] sm:$0xff]
    %v5449 = vld [vmem:[%s5253 + $0x618] sm:$0xff]
    %v5450 = vld [vmem:[%s5253 + $0x620] sm:$0xff]
    %v5451 = vld [vmem:[%s5253 + $0x628] sm:$0xff]
    %v5452 = vld [vmem:[%s5253 + $0x630] sm:$0xff]
    %v5453 = vld [vmem:[%s5253 + $0x638] sm:$0xff]
    %v5454 = vld [vmem:[%s5253 + $0x640] sm:$0xff]
    %v5455 = vld [vmem:[%s5253 + $0x648] sm:$0xff]
    %v5456 = vld [vmem:[%s5253 + $0x650] sm:$0xff]
    %v5457 = vld [vmem:[%s5253 + $0x658] sm:$0xff]
    %v5458 = vld [vmem:[%s5253 + $0x660] sm:$0xff]
    %v5459 = vld [vmem:[%s5253 + $0x668] sm:$0xff]
    %v5460 = vld [vmem:[%s5253 + $0x670] sm:$0xff]
    %v5461 = vld [vmem:[%s5253 + $0x678] sm:$0xff]
    %v5462 = vld [vmem:[%s5253 + $0x680] sm:$0xff]
    %v5463 = vld [vmem:[%s5253 + $0x688] sm:$0xff]
    %v5464 = vld [vmem:[%s5253 + $0x690] sm:$0xff]
    %v5465 = vld [vmem:[%s5253 + $0x698] sm:$0xff]
    %v5466 = vld [vmem:[%s5253 + $0x6a0] sm:$0xff]
    %v5467 = vld [vmem:[%s5253 + $0x6a8] sm:$0xff]
    %v5468 = vld [vmem:[%s5253 + $0x6b0] sm:$0xff]
    %v5469 = vld [vmem:[%s5253 + $0x6b8] sm:$0xff]
    %v5470 = vld [vmem:[%s5253 + $0x6c0] sm:$0xff]
    %v5471 = vld [vmem:[%s5253 + $0x6c8] sm:$0xff]
    %v5472 = vld [vmem:[%s5253 + $0x6d0] sm:$0xff]
    %v5473 = vld [vmem:[%s5253 + $0x6d8] sm:$0xff]
    %v5474 = vld [vmem:[%s5253 + $0x6e0] sm:$0xff]
    %v5475 = vld [vmem:[%s5253 + $0x6e8] sm:$0xff]
    %v5476 = vld [vmem:[%s5253 + $0x6f0] sm:$0xff]
    %v5477 = vld [vmem:[%s5253 + $0x6f8] sm:$0xff]
    %v5478 = vld [vmem:[%s5253 + $0x700] sm:$0xff]
    %v5479 = vld [vmem:[%s5253 + $0x708] sm:$0xff]
    %v5480 = vld [vmem:[%s5253 + $0x710] sm:$0xff]
    %v5481 = vld [vmem:[%s5253 + $0x718] sm:$0xff]
    %v5482 = vld [vmem:[%s5253 + $0x720] sm:$0xff]
    %v5483 = vld [vmem:[%s5253 + $0x728] sm:$0xff]
    %v5484 = vld [vmem:[%s5253 + $0x730] sm:$0xff]
    %v5485 = vld [vmem:[%s5253 + $0x738] sm:$0xff]
    %v5486 = vld [vmem:[%s5253 + $0x740] sm:$0xff]
    %v5487 = vld [vmem:[%s5253 + $0x748] sm:$0xff]
    %v5488 = vld [vmem:[%s5253 + $0x750] sm:$0xff]
    %v5489 = vld [vmem:[%s5253 + $0x758] sm:$0xff]
    %v5490 = vld [vmem:[%s5253 + $0x760] sm:$0xff]
    %v5491 = vld [vmem:[%s5253 + $0x768] sm:$0xff]
    %v5492 = vld [vmem:[%s5253 + $0x770] sm:$0xff]
    %v5493 = vld [vmem:[%s5253 + $0x778] sm:$0xff]
    %v5494 = vld [vmem:[%s5253 + $0x780] sm:$0xff]
    %v5495 = vld [vmem:[%s5253 + $0x788] sm:$0xff]
    %v5496 = vld [vmem:[%s5253 + $0x790] sm:$0xff]
    %v5497 = vld [vmem:[%s5253 + $0x798] sm:$0xff]
    %v5498 = vld [vmem:[%s5253 + $0x7a0] sm:$0xff]
    %v5499 = vld [vmem:[%s5253 + $0x7a8] sm:$0xff]
    %v5500 = vld [vmem:[%s5253 + $0x7b0] sm:$0xff]
    %v5501 = vld [vmem:[%s5253 + $0x7b8] sm:$0xff]
    %v5502 = vld [vmem:[%s5253 + $0x7c0] sm:$0xff]
    %v5503 = vld [vmem:[%s5253 + $0x7c8] sm:$0xff]
    %v5504 = vld [vmem:[%s5253 + $0x7d0] sm:$0xff]
    %v5505 = vld [vmem:[%s5253 + $0x7d8] sm:$0xff]
    %v5506 = vld [vmem:[%s5253 + $0x7e0] sm:$0xff]
    %v5507 = vld [vmem:[%s5253 + $0x7e8] sm:$0xff]
    %v5508 = vld [vmem:[%s5253 + $0x7f0] sm:$0xff]
    %v5509 = vld [vmem:[%s5253 + $0x7f8] sm:$0xff]
    %v5510 = vld [vmem:[%s5253 + $0x800] sm:$0xff]
    %v5511 = vld [vmem:[%s5253 + $0x808] sm:$0xff]
    %v5512 = vld [vmem:[%s5253 + $0x810] sm:$0xff]
    %v5513 = vld [vmem:[%s5253 + $0x818] sm:$0xff]
    %v5514 = vld [vmem:[%s5253 + $0x820] sm:$0xff]
    %v5515 = vld [vmem:[%s5253 + $0x828] sm:$0xff]
    %v5516 = vld [vmem:[%s5253 + $0x830] sm:$0xff]
    %v5517 = vld [vmem:[%s5253 + $0x838] sm:$0xff]
    %v5518 = vld [vmem:[%s5253 + $0x840] sm:$0xff]
    %v5519 = vld [vmem:[%s5253 + $0x848] sm:$0xff]
    %v5520 = vld [vmem:[%s5253 + $0x850] sm:$0xff]
    %v5521 = vld [vmem:[%s5253 + $0x858] sm:$0xff]
    %v5522 = vld [vmem:[%s5253 + $0x860] sm:$0xff]
    %v5523 = vld [vmem:[%s5253 + $0x868] sm:$0xff]
    %v5524 = vld [vmem:[%s5253 + $0x870] sm:$0xff]
    %v5525 = vld [vmem:[%s5253 + $0x878] sm:$0xff]
    %v5526 = vld [vmem:[%s5253 + $0x880] sm:$0xff]
    %v5527 = vld [vmem:[%s5253 + $0x888] sm:$0xff]
    %v5528 = vld [vmem:[%s5253 + $0x890] sm:$0xff]
    %v5529 = vld [vmem:[%s5253 + $0x898] sm:$0xff]
    %v5530 = vld [vmem:[%s5253 + $0x8a0] sm:$0xff]
    %v5531 = vld [vmem:[%s5253 + $0x8a8] sm:$0xff]
    %v5532 = vld [vmem:[%s5253 + $0x8b0] sm:$0xff]
    %v5533 = vld [vmem:[%s5253 + $0x8b8] sm:$0xff]
    %v5534 = vld [vmem:[%s5253 + $0x8c0] sm:$0xff]
    %v5535 = vld [vmem:[%s5253 + $0x8c8] sm:$0xff]
    %v5536 = vld [vmem:[%s5253 + $0x8d0] sm:$0xff]
    %v5537 = vld [vmem:[%s5253 + $0x8d8] sm:$0xff]
    %v5538 = vld [vmem:[%s5253 + $0x8e0] sm:$0xff]
    %v5539 = vld [vmem:[%s5253 + $0x8e8] sm:$0xff]
    %v5540 = vld [vmem:[%s5253 + $0x8f0] sm:$0xff]
    %v5541 = vld [vmem:[%s5253 + $0x8f8] sm:$0xff]
    %5542 = vmatpush.msra.mxu0 %v5299
    %5543 = vmatpush.msra.mxu0 %v5296
    %5544 = vmatpush.msra.mxu0 %v5293
    %5545 = vmatpush.msra.mxu0 %v5290
    %5546 = vmatpush.msra.mxu0 %v5287
    %5547 = vmatpush.msra.mxu0 %v5284
    %5548 = vmatpush.msra.mxu0 %v5281
    %5549 = vmatpush.msra.mxu0 %v5278
    %5550 = vmatpush.msra.mxu0 %v5275
    %5551 = vmatpush.msra.mxu0 %v5272
    %5552 = vmatpush.msra.mxu0 %v5269
    %5553 = vmatpush.msra.mxu0 %v5266
    %5554 = vmatpush.msra.mxu0 %v5263
    %5555 = vmatpush.msra.mxu0 %v5260
    %5556 = vmatpush.msra.mxu0 %v5257
    %5557 = vmatpush.msra.mxu0 %v5254
    %5558 = vmatmul.f32.gmra.mxu0 %v5097
    %v5559 = vpop.f32.mrf.mxu0
    %v5560 = vadd.f32 0.0, %v5559
    %5561 = vmatmul.f32.gmra.mxu0 %v5100
    %v5562 = vpop.f32.mrf.mxu0
    %v5563 = vadd.f32 0.0, %v5562
    %5564 = vmatmul.f32.gmra.mxu0 %v5103
    %v5565 = vpop.f32.mrf.mxu0
    %v5566 = vadd.f32 0.0, %v5565
    %5567 = vmatmul.f32.gmra.mxu0 %v5106
    %v5568 = vpop.f32.mrf.mxu0
    %v5569 = vadd.f32 0.0, %v5568
    %5570 = vdwg.mxu0
    %5571 = vmatpush.msra.mxu0 %v5347
    %5572 = vmatpush.msra.mxu0 %v5344
    %5573 = vmatpush.msra.mxu0 %v5341
    %5574 = vmatpush.msra.mxu0 %v5338
    %5575 = vmatpush.msra.mxu0 %v5335
    %5576 = vmatpush.msra.mxu0 %v5332
    %5577 = vmatpush.msra.mxu0 %v5329
    %5578 = vmatpush.msra.mxu0 %v5326
    %5579 = vmatpush.msra.mxu0 %v5323
    %5580 = vmatpush.msra.mxu0 %v5320
    %5581 = vmatpush.msra.mxu0 %v5317
    %5582 = vmatpush.msra.mxu0 %v5314
    %5583 = vmatpush.msra.mxu0 %v5311
    %5584 = vmatpush.msra.mxu0 %v5308
    %5585 = vmatpush.msra.mxu0 %v5305
    %5586 = vmatpush.msra.mxu0 %v5302
    %5587 = vmatmul.f32.gmra.mxu0 %v5126
    %v5588 = vpop.f32.mrf.mxu0
    %v5589 = vadd.f32 %v5560, %v5588
    %5590 = vmatmul.f32.gmra.mxu0 %v5129
    %v5591 = vpop.f32.mrf.mxu0
    %v5592 = vadd.f32 %v5563, %v5591
    %5593 = vmatmul.f32.gmra.mxu0 %v5132
    %v5594 = vpop.f32.mrf.mxu0
    %v5595 = vadd.f32 %v5566, %v5594
    %5596 = vmatmul.f32.gmra.mxu0 %v5135
    %v5597 = vpop.f32.mrf.mxu0
    %v5598 = vadd.f32 %v5569, %v5597
    %5599 = vdwg.mxu0
    %5600 = vmatpush.msra.mxu0 %v5395
    %5601 = vmatpush.msra.mxu0 %v5392
    %5602 = vmatpush.msra.mxu0 %v5389
    %5603 = vmatpush.msra.mxu0 %v5386
    %5604 = vmatpush.msra.mxu0 %v5383
    %5605 = vmatpush.msra.mxu0 %v5380
    %5606 = vmatpush.msra.mxu0 %v5377
    %5607 = vmatpush.msra.mxu0 %v5374
    %5608 = vmatpush.msra.mxu0 %v5371
    %5609 = vmatpush.msra.mxu0 %v5368
    %5610 = vmatpush.msra.mxu0 %v5365
    %5611 = vmatpush.msra.mxu0 %v5362
    %5612 = vmatpush.msra.mxu0 %v5359
    %5613 = vmatpush.msra.mxu0 %v5356
    %5614 = vmatpush.msra.mxu0 %v5353
    %5615 = vmatpush.msra.mxu0 %v5350
    %5616 = vmatmul.f32.gmra.mxu0 %v5155
    %v5617 = vpop.f32.mrf.mxu0
    %v5618 = vadd.f32 %v5589, %v5617
    %5619 = vmatmul.f32.gmra.mxu0 %v5158
    %v5620 = vpop.f32.mrf.mxu0
    %v5621 = vadd.f32 %v5592, %v5620
    %5622 = vmatmul.f32.gmra.mxu0 %v5161
    %v5623 = vpop.f32.mrf.mxu0
    %v5624 = vadd.f32 %v5595, %v5623
    %5625 = vmatmul.f32.gmra.mxu0 %v5164
    %v5626 = vpop.f32.mrf.mxu0
    %v5627 = vadd.f32 %v5598, %v5626
    %5628 = vdwg.mxu0
    %5629 = vmatpush.msra.mxu0 %v5443
    %5630 = vmatpush.msra.mxu0 %v5440
    %5631 = vmatpush.msra.mxu0 %v5437
    %5632 = vmatpush.msra.mxu0 %v5434
    %5633 = vmatpush.msra.mxu0 %v5431
    %5634 = vmatpush.msra.mxu0 %v5428
    %5635 = vmatpush.msra.mxu0 %v5425
    %5636 = vmatpush.msra.mxu0 %v5422
    %5637 = vmatpush.msra.mxu0 %v5419
    %5638 = vmatpush.msra.mxu0 %v5416
    %5639 = vmatpush.msra.mxu0 %v5413
    %5640 = vmatpush.msra.mxu0 %v5410
    %5641 = vmatpush.msra.mxu0 %v5407
    %5642 = vmatpush.msra.mxu0 %v5404
    %5643 = vmatpush.msra.mxu0 %v5401
    %5644 = vmatpush.msra.mxu0 %v5398
    %5645 = vmatmul.f32.gmra.mxu0 %v5184
    %v5646 = vpop.f32.mrf.mxu0
    %v5647 = vadd.f32 %v5618, %v5646
    %5648 = vmatmul.f32.gmra.mxu0 %v5187
    %v5649 = vpop.f32.mrf.mxu0
    %v5650 = vadd.f32 %v5621, %v5649
    %5651 = vmatmul.f32.gmra.mxu0 %v5190
    %v5652 = vpop.f32.mrf.mxu0
    %v5653 = vadd.f32 %v5624, %v5652
    %5654 = vmatmul.f32.gmra.mxu0 %v5193
    %v5655 = vpop.f32.mrf.mxu0
    %v5656 = vadd.f32 %v5627, %v5655
    %5657 = vdwg.mxu0
    %5658 = vmatpush.msra.mxu0 %v5491
    %5659 = vmatpush.msra.mxu0 %v5488
    %5660 = vmatpush.msra.mxu0 %v5485
    %5661 = vmatpush.msra.mxu0 %v5482
    %5662 = vmatpush.msra.mxu0 %v5479
    %5663 = vmatpush.msra.mxu0 %v5476
    %5664 = vmatpush.msra.mxu0 %v5473
    %5665 = vmatpush.msra.mxu0 %v5470
    %5666 = vmatpush.msra.mxu0 %v5467
    %5667 = vmatpush.msra.mxu0 %v5464
    %5668 = vmatpush.msra.mxu0 %v5461
    %5669 = vmatpush.msra.mxu0 %v5458
    %5670 = vmatpush.msra.mxu0 %v5455
    %5671 = vmatpush.msra.mxu0 %v5452
    %5672 = vmatpush.msra.mxu0 %v5449
    %5673 = vmatpush.msra.mxu0 %v5446
    %5674 = vmatmul.f32.gmra.mxu0 %v5213
    %v5675 = vpop.f32.mrf.mxu0
    %v5676 = vadd.f32 %v5647, %v5675
    %5677 = vmatmul.f32.gmra.mxu0 %v5216
    %v5678 = vpop.f32.mrf.mxu0
    %v5679 = vadd.f32 %v5650, %v5678
    %5680 = vmatmul.f32.gmra.mxu0 %v5219
    %v5681 = vpop.f32.mrf.mxu0
    %v5682 = vadd.f32 %v5653, %v5681
    %5683 = vmatmul.f32.gmra.mxu0 %v5222
    %v5684 = vpop.f32.mrf.mxu0
    %v5685 = vadd.f32 %v5656, %v5684
    %5686 = vdwg.mxu0
    %5687 = vmatpush.msra.mxu0 %v5539
    %5688 = vmatpush.msra.mxu0 %v5536
    %5689 = vmatpush.msra.mxu0 %v5533
    %5690 = vmatpush.msra.mxu0 %v5530
    %5691 = vmatpush.msra.mxu0 %v5527
    %5692 = vmatpush.msra.mxu0 %v5524
    %5693 = vmatpush.msra.mxu0 %v5521
    %5694 = vmatpush.msra.mxu0 %v5518
    %5695 = vmatpush.msra.mxu0 %v5515
    %5696 = vmatpush.msra.mxu0 %v5512
    %5697 = vmatpush.msra.mxu0 %v5509
    %5698 = vmatpush.msra.mxu0 %v5506
    %5699 = vmatpush.msra.mxu0 %v5503
    %5700 = vmatpush.msra.mxu0 %v5500
    %5701 = vmatpush.msra.mxu0 %v5497
    %5702 = vmatpush.msra.mxu0 %v5494
    %5703 = vmatmul.f32.gmra.mxu0 %v5242
    %v5704 = vpop.f32.mrf.mxu0
    %v5705 = vadd.f32 %v5676, %v5704
    %5706 = vmatmul.f32.gmra.mxu0 %v5245
    %v5707 = vpop.f32.mrf.mxu0
    %v5708 = vadd.f32 %v5679, %v5707
    %5709 = vmatmul.f32.gmra.mxu0 %v5248
    %v5710 = vpop.f32.mrf.mxu0
    %v5711 = vadd.f32 %v5682, %v5710
    %5712 = vmatmul.f32.gmra.mxu0 %v5251
    %v5713 = vpop.f32.mrf.mxu0
    %v5714 = vadd.f32 %v5685, %v5713
    %5715 = vdwg.mxu0
    %5716 = vmatpush.msra.mxu0 %v5300
    %5717 = vmatpush.msra.mxu0 %v5297
    %5718 = vmatpush.msra.mxu0 %v5294
    %5719 = vmatpush.msra.mxu0 %v5291
    %5720 = vmatpush.msra.mxu0 %v5288
    %5721 = vmatpush.msra.mxu0 %v5285
    %5722 = vmatpush.msra.mxu0 %v5282
    %5723 = vmatpush.msra.mxu0 %v5279
    %5724 = vmatpush.msra.mxu0 %v5276
    %5725 = vmatpush.msra.mxu0 %v5273
    %5726 = vmatpush.msra.mxu0 %v5270
    %5727 = vmatpush.msra.mxu0 %v5267
    %5728 = vmatpush.msra.mxu0 %v5264
    %5729 = vmatpush.msra.mxu0 %v5261
    %5730 = vmatpush.msra.mxu0 %v5258
    %5731 = vmatpush.msra.mxu0 %v5255
    %5732 = vmatmul.f32.gmra.mxu0 %v5097
    %v5733 = vpop.f32.mrf.mxu0
    %v5734 = vadd.f32 0.0, %v5733
    %5735 = vmatmul.f32.gmra.mxu0 %v5100
    %v5736 = vpop.f32.mrf.mxu0
    %v5737 = vadd.f32 0.0, %v5736
    %5738 = vmatmul.f32.gmra.mxu0 %v5103
    %v5739 = vpop.f32.mrf.mxu0
    %v5740 = vadd.f32 0.0, %v5739
    %5741 = vmatmul.f32.gmra.mxu0 %v5106
    %v5742 = vpop.f32.mrf.mxu0
    %v5743 = vadd.f32 0.0, %v5742
    %5744 = vdwg.mxu0
    %5745 = vmatpush.msra.mxu0 %v5348
    %5746 = vmatpush.msra.mxu0 %v5345
    %5747 = vmatpush.msra.mxu0 %v5342
    %5748 = vmatpush.msra.mxu0 %v5339
    %5749 = vmatpush.msra.mxu0 %v5336
    %5750 = vmatpush.msra.mxu0 %v5333
    %5751 = vmatpush.msra.mxu0 %v5330
    %5752 = vmatpush.msra.mxu0 %v5327
    %5753 = vmatpush.msra.mxu0 %v5324
    %5754 = vmatpush.msra.mxu0 %v5321
    %5755 = vmatpush.msra.mxu0 %v5318
    %5756 = vmatpush.msra.mxu0 %v5315
    %5757 = vmatpush.msra.mxu0 %v5312
    %5758 = vmatpush.msra.mxu0 %v5309
    %5759 = vmatpush.msra.mxu0 %v5306
    %5760 = vmatpush.msra.mxu0 %v5303
    %5761 = vmatmul.f32.gmra.mxu0 %v5126
    %v5762 = vpop.f32.mrf.mxu0
    %v5763 = vadd.f32 %v5734, %v5762
    %5764 = vmatmul.f32.gmra.mxu0 %v5129
    %v5765 = vpop.f32.mrf.mxu0
    %v5766 = vadd.f32 %v5737, %v5765
    %5767 = vmatmul.f32.gmra.mxu0 %v5132
    %v5768 = vpop.f32.mrf.mxu0
    %v5769 = vadd.f32 %v5740, %v5768
    %5770 = vmatmul.f32.gmra.mxu0 %v5135
    %v5771 = vpop.f32.mrf.mxu0
    %v5772 = vadd.f32 %v5743, %v5771
    %5773 = vdwg.mxu0
    %5774 = vmatpush.msra.mxu0 %v5396
    %5775 = vmatpush.msra.mxu0 %v5393
    %5776 = vmatpush.msra.mxu0 %v5390
    %5777 = vmatpush.msra.mxu0 %v5387
    %5778 = vmatpush.msra.mxu0 %v5384
    %5779 = vmatpush.msra.mxu0 %v5381
    %5780 = vmatpush.msra.mxu0 %v5378
    %5781 = vmatpush.msra.mxu0 %v5375
    %5782 = vmatpush.msra.mxu0 %v5372
    %5783 = vmatpush.msra.mxu0 %v5369
    %5784 = vmatpush.msra.mxu0 %v5366
    %5785 = vmatpush.msra.mxu0 %v5363
    %5786 = vmatpush.msra.mxu0 %v5360
    %5787 = vmatpush.msra.mxu0 %v5357
    %5788 = vmatpush.msra.mxu0 %v5354
    %5789 = vmatpush.msra.mxu0 %v5351
    %5790 = vmatmul.f32.gmra.mxu0 %v5155
    %v5791 = vpop.f32.mrf.mxu0
    %v5792 = vadd.f32 %v5763, %v5791
    %5793 = vmatmul.f32.gmra.mxu0 %v5158
    %v5794 = vpop.f32.mrf.mxu0
    %v5795 = vadd.f32 %v5766, %v5794
    %5796 = vmatmul.f32.gmra.mxu0 %v5161
    %v5797 = vpop.f32.mrf.mxu0
    %v5798 = vadd.f32 %v5769, %v5797
    %5799 = vmatmul.f32.gmra.mxu0 %v5164
    %v5800 = vpop.f32.mrf.mxu0
    %v5801 = vadd.f32 %v5772, %v5800
    %5802 = vdwg.mxu0
    %5803 = vmatpush.msra.mxu0 %v5444
    %5804 = vmatpush.msra.mxu0 %v5441
    %5805 = vmatpush.msra.mxu0 %v5438
    %5806 = vmatpush.msra.mxu0 %v5435
    %5807 = vmatpush.msra.mxu0 %v5432
    %5808 = vmatpush.msra.mxu0 %v5429
    %5809 = vmatpush.msra.mxu0 %v5426
    %5810 = vmatpush.msra.mxu0 %v5423
    %5811 = vmatpush.msra.mxu0 %v5420
    %5812 = vmatpush.msra.mxu0 %v5417
    %5813 = vmatpush.msra.mxu0 %v5414
    %5814 = vmatpush.msra.mxu0 %v5411
    %5815 = vmatpush.msra.mxu0 %v5408
    %5816 = vmatpush.msra.mxu0 %v5405
    %5817 = vmatpush.msra.mxu0 %v5402
    %5818 = vmatpush.msra.mxu0 %v5399
    %5819 = vmatmul.f32.gmra.mxu0 %v5184
    %v5820 = vpop.f32.mrf.mxu0
    %v5821 = vadd.f32 %v5792, %v5820
    %5822 = vmatmul.f32.gmra.mxu0 %v5187
    %v5823 = vpop.f32.mrf.mxu0
    %v5824 = vadd.f32 %v5795, %v5823
    %5825 = vmatmul.f32.gmra.mxu0 %v5190
    %v5826 = vpop.f32.mrf.mxu0
    %v5827 = vadd.f32 %v5798, %v5826
    %5828 = vmatmul.f32.gmra.mxu0 %v5193
    %v5829 = vpop.f32.mrf.mxu0
    %v5830 = vadd.f32 %v5801, %v5829
    %5831 = vdwg.mxu0
    %5832 = vmatpush.msra.mxu0 %v5492
    %5833 = vmatpush.msra.mxu0 %v5489
    %5834 = vmatpush.msra.mxu0 %v5486
    %5835 = vmatpush.msra.mxu0 %v5483
    %5836 = vmatpush.msra.mxu0 %v5480
    %5837 = vmatpush.msra.mxu0 %v5477
    %5838 = vmatpush.msra.mxu0 %v5474
    %5839 = vmatpush.msra.mxu0 %v5471
    %5840 = vmatpush.msra.mxu0 %v5468
    %5841 = vmatpush.msra.mxu0 %v5465
    %5842 = vmatpush.msra.mxu0 %v5462
    %5843 = vmatpush.msra.mxu0 %v5459
    %5844 = vmatpush.msra.mxu0 %v5456
    %5845 = vmatpush.msra.mxu0 %v5453
    %5846 = vmatpush.msra.mxu0 %v5450
    %5847 = vmatpush.msra.mxu0 %v5447
    %5848 = vmatmul.f32.gmra.mxu0 %v5213
    %v5849 = vpop.f32.mrf.mxu0
    %v5850 = vadd.f32 %v5821, %v5849
    %5851 = vmatmul.f32.gmra.mxu0 %v5216
    %v5852 = vpop.f32.mrf.mxu0
    %v5853 = vadd.f32 %v5824, %v5852
    %5854 = vmatmul.f32.gmra.mxu0 %v5219
    %v5855 = vpop.f32.mrf.mxu0
    %v5856 = vadd.f32 %v5827, %v5855
    %5857 = vmatmul.f32.gmra.mxu0 %v5222
    %v5858 = vpop.f32.mrf.mxu0
    %v5859 = vadd.f32 %v5830, %v5858
    %5860 = vdwg.mxu0
    %5861 = vmatpush.msra.mxu0 %v5540
    %5862 = vmatpush.msra.mxu0 %v5537
    %5863 = vmatpush.msra.mxu0 %v5534
    %5864 = vmatpush.msra.mxu0 %v5531
    %5865 = vmatpush.msra.mxu0 %v5528
    %5866 = vmatpush.msra.mxu0 %v5525
    %5867 = vmatpush.msra.mxu0 %v5522
    %5868 = vmatpush.msra.mxu0 %v5519
    %5869 = vmatpush.msra.mxu0 %v5516
    %5870 = vmatpush.msra.mxu0 %v5513
    %5871 = vmatpush.msra.mxu0 %v5510
    %5872 = vmatpush.msra.mxu0 %v5507
    %5873 = vmatpush.msra.mxu0 %v5504
    %5874 = vmatpush.msra.mxu0 %v5501
    %5875 = vmatpush.msra.mxu0 %v5498
    %5876 = vmatpush.msra.mxu0 %v5495
    %5877 = vmatmul.f32.gmra.mxu0 %v5242
    %v5878 = vpop.f32.mrf.mxu0
    %v5879 = vadd.f32 %v5850, %v5878
    %5880 = vmatmul.f32.gmra.mxu0 %v5245
    %v5881 = vpop.f32.mrf.mxu0
    %v5882 = vadd.f32 %v5853, %v5881
    %5883 = vmatmul.f32.gmra.mxu0 %v5248
    %v5884 = vpop.f32.mrf.mxu0
    %v5885 = vadd.f32 %v5856, %v5884
    %5886 = vmatmul.f32.gmra.mxu0 %v5251
    %v5887 = vpop.f32.mrf.mxu0
    %v5888 = vadd.f32 %v5859, %v5887
    %5889 = vdwg.mxu0
    %5890 = vmatpush.msra.mxu0 %v5301
    %5891 = vmatpush.msra.mxu0 %v5298
    %5892 = vmatpush.msra.mxu0 %v5295
    %5893 = vmatpush.msra.mxu0 %v5292
    %5894 = vmatpush.msra.mxu0 %v5289
    %5895 = vmatpush.msra.mxu0 %v5286
    %5896 = vmatpush.msra.mxu0 %v5283
    %5897 = vmatpush.msra.mxu0 %v5280
    %5898 = vmatpush.msra.mxu0 %v5277
    %5899 = vmatpush.msra.mxu0 %v5274
    %5900 = vmatpush.msra.mxu0 %v5271
    %5901 = vmatpush.msra.mxu0 %v5268
    %5902 = vmatpush.msra.mxu0 %v5265
    %5903 = vmatpush.msra.mxu0 %v5262
    %5904 = vmatpush.msra.mxu0 %v5259
    %5905 = vmatpush.msra.mxu0 %v5256
    %5906 = vmatmul.f32.gmra.mxu0 %v5097
    %v5907 = vpop.f32.mrf.mxu0
    %v5908 = vadd.f32 0.0, %v5907
    %5909 = vmatmul.f32.gmra.mxu0 %v5100
    %v5910 = vpop.f32.mrf.mxu0
    %v5911 = vadd.f32 0.0, %v5910
    %5912 = vmatmul.f32.gmra.mxu0 %v5103
    %v5913 = vpop.f32.mrf.mxu0
    %v5914 = vadd.f32 0.0, %v5913
    %5915 = vmatmul.f32.gmra.mxu0 %v5106
    %v5916 = vpop.f32.mrf.mxu0
    %v5917 = vadd.f32 0.0, %v5916
    %5918 = vdwg.mxu0
    %5919 = vmatpush.msra.mxu0 %v5349
    %5920 = vmatpush.msra.mxu0 %v5346
    %5921 = vmatpush.msra.mxu0 %v5343
    %5922 = vmatpush.msra.mxu0 %v5340
    %5923 = vmatpush.msra.mxu0 %v5337
    %5924 = vmatpush.msra.mxu0 %v5334
    %5925 = vmatpush.msra.mxu0 %v5331
    %5926 = vmatpush.msra.mxu0 %v5328
    %5927 = vmatpush.msra.mxu0 %v5325
    %5928 = vmatpush.msra.mxu0 %v5322
    %5929 = vmatpush.msra.mxu0 %v5319
    %5930 = vmatpush.msra.mxu0 %v5316
    %5931 = vmatpush.msra.mxu0 %v5313
    %5932 = vmatpush.msra.mxu0 %v5310
    %5933 = vmatpush.msra.mxu0 %v5307
    %5934 = vmatpush.msra.mxu0 %v5304
    %5935 = vmatmul.f32.gmra.mxu0 %v5126
    %v5936 = vpop.f32.mrf.mxu0
    %v5937 = vadd.f32 %v5908, %v5936
    %5938 = vmatmul.f32.gmra.mxu0 %v5129
    %v5939 = vpop.f32.mrf.mxu0
    %v5940 = vadd.f32 %v5911, %v5939
    %5941 = vmatmul.f32.gmra.mxu0 %v5132
    %v5942 = vpop.f32.mrf.mxu0
    %v5943 = vadd.f32 %v5914, %v5942
    %5944 = vmatmul.f32.gmra.mxu0 %v5135
    %v5945 = vpop.f32.mrf.mxu0
    %v5946 = vadd.f32 %v5917, %v5945
    %5947 = vdwg.mxu0
    %5948 = vmatpush.msra.mxu0 %v5397
    %5949 = vmatpush.msra.mxu0 %v5394
    %5950 = vmatpush.msra.mxu0 %v5391
    %5951 = vmatpush.msra.mxu0 %v5388
    %5952 = vmatpush.msra.mxu0 %v5385
    %5953 = vmatpush.msra.mxu0 %v5382
    %5954 = vmatpush.msra.mxu0 %v5379
    %5955 = vmatpush.msra.mxu0 %v5376
    %5956 = vmatpush.msra.mxu0 %v5373
    %5957 = vmatpush.msra.mxu0 %v5370
    %5958 = vmatpush.msra.mxu0 %v5367
    %5959 = vmatpush.msra.mxu0 %v5364
    %5960 = vmatpush.msra.mxu0 %v5361
    %5961 = vmatpush.msra.mxu0 %v5358
    %5962 = vmatpush.msra.mxu0 %v5355
    %5963 = vmatpush.msra.mxu0 %v5352
    %5964 = vmatmul.f32.gmra.mxu0 %v5155
    %v5965 = vpop.f32.mrf.mxu0
    %v5966 = vadd.f32 %v5937, %v5965
    %5967 = vmatmul.f32.gmra.mxu0 %v5158
    %v5968 = vpop.f32.mrf.mxu0
    %v5969 = vadd.f32 %v5940, %v5968
    %5970 = vmatmul.f32.gmra.mxu0 %v5161
    %v5971 = vpop.f32.mrf.mxu0
    %v5972 = vadd.f32 %v5943, %v5971
    %5973 = vmatmul.f32.gmra.mxu0 %v5164
    %v5974 = vpop.f32.mrf.mxu0
    %v5975 = vadd.f32 %v5946, %v5974
    %5976 = vdwg.mxu0
    %5977 = vmatpush.msra.mxu0 %v5445
    %5978 = vmatpush.msra.mxu0 %v5442
    %5979 = vmatpush.msra.mxu0 %v5439
    %5980 = vmatpush.msra.mxu0 %v5436
    %5981 = vmatpush.msra.mxu0 %v5433
    %5982 = vmatpush.msra.mxu0 %v5430
    %5983 = vmatpush.msra.mxu0 %v5427
    %5984 = vmatpush.msra.mxu0 %v5424
    %5985 = vmatpush.msra.mxu0 %v5421
    %5986 = vmatpush.msra.mxu0 %v5418
    %5987 = vmatpush.msra.mxu0 %v5415
    %5988 = vmatpush.msra.mxu0 %v5412
    %5989 = vmatpush.msra.mxu0 %v5409
    %5990 = vmatpush.msra.mxu0 %v5406
    %5991 = vmatpush.msra.mxu0 %v5403
    %5992 = vmatpush.msra.mxu0 %v5400
    %5993 = vmatmul.f32.gmra.mxu0 %v5184
    %v5994 = vpop.f32.mrf.mxu0
    %v5995 = vadd.f32 %v5966, %v5994
    %5996 = vmatmul.f32.gmra.mxu0 %v5187
    %v5997 = vpop.f32.mrf.mxu0
    %v5998 = vadd.f32 %v5969, %v5997
    %5999 = vmatmul.f32.gmra.mxu0 %v5190
    %v6000 = vpop.f32.mrf.mxu0
    %v6001 = vadd.f32 %v5972, %v6000
    %6002 = vmatmul.f32.gmra.mxu0 %v5193
    %v6003 = vpop.f32.mrf.mxu0
    %v6004 = vadd.f32 %v5975, %v6003
    %6005 = vdwg.mxu0
    %6006 = vmatpush.msra.mxu0 %v5493
    %6007 = vmatpush.msra.mxu0 %v5490
    %6008 = vmatpush.msra.mxu0 %v5487
    %6009 = vmatpush.msra.mxu0 %v5484
    %6010 = vmatpush.msra.mxu0 %v5481
    %6011 = vmatpush.msra.mxu0 %v5478
    %6012 = vmatpush.msra.mxu0 %v5475
    %6013 = vmatpush.msra.mxu0 %v5472
    %6014 = vmatpush.msra.mxu0 %v5469
    %6015 = vmatpush.msra.mxu0 %v5466
    %6016 = vmatpush.msra.mxu0 %v5463
    %6017 = vmatpush.msra.mxu0 %v5460
    %6018 = vmatpush.msra.mxu0 %v5457
    %6019 = vmatpush.msra.mxu0 %v5454
    %6020 = vmatpush.msra.mxu0 %v5451
    %6021 = vmatpush.msra.mxu0 %v5448
    %6022 = vmatmul.f32.gmra.mxu0 %v5213
    %v6023 = vpop.f32.mrf.mxu0
    %v6024 = vadd.f32 %v5995, %v6023
    %6025 = vmatmul.f32.gmra.mxu0 %v5216
    %v6026 = vpop.f32.mrf.mxu0
    %v6027 = vadd.f32 %v5998, %v6026
    %6028 = vmatmul.f32.gmra.mxu0 %v5219
    %v6029 = vpop.f32.mrf.mxu0
    %v6030 = vadd.f32 %v6001, %v6029
    %6031 = vmatmul.f32.gmra.mxu0 %v5222
    %v6032 = vpop.f32.mrf.mxu0
    %v6033 = vadd.f32 %v6004, %v6032
    %6034 = vdwg.mxu0
    %6035 = vmatpush.msra.mxu0 %v5541
    %6036 = vmatpush.msra.mxu0 %v5538
    %6037 = vmatpush.msra.mxu0 %v5535
    %6038 = vmatpush.msra.mxu0 %v5532
    %6039 = vmatpush.msra.mxu0 %v5529
    %6040 = vmatpush.msra.mxu0 %v5526
    %6041 = vmatpush.msra.mxu0 %v5523
    %6042 = vmatpush.msra.mxu0 %v5520
    %6043 = vmatpush.msra.mxu0 %v5517
    %6044 = vmatpush.msra.mxu0 %v5514
    %6045 = vmatpush.msra.mxu0 %v5511
    %6046 = vmatpush.msra.mxu0 %v5508
    %6047 = vmatpush.msra.mxu0 %v5505
    %6048 = vmatpush.msra.mxu0 %v5502
    %6049 = vmatpush.msra.mxu0 %v5499
    %6050 = vmatpush.msra.mxu0 %v5496
    %6051 = vmatmul.f32.gmra.mxu0 %v5242
    %v6052 = vpop.f32.mrf.mxu0
    %v6053 = vadd.f32 %v6024, %v6052
    %6054 = vmatmul.f32.gmra.mxu0 %v5245
    %v6055 = vpop.f32.mrf.mxu0
    %v6056 = vadd.f32 %v6027, %v6055
    %6057 = vmatmul.f32.gmra.mxu0 %v5248
    %v6058 = vpop.f32.mrf.mxu0
    %v6059 = vadd.f32 %v6030, %v6058
    %6060 = vmatmul.f32.gmra.mxu0 %v5251
    %v6061 = vpop.f32.mrf.mxu0
    %v6062 = vadd.f32 %v6033, %v6061
    %6063 = vdwg.mxu0
    %v6064 = vadd.f32 %v4703, %v5705
    %v6065 = vadd.f32 %v4877, %v5879
    %v6066 = vadd.f32 %v5051, %v6053
    %v6067 = vadd.f32 %v4706, %v5708
    %v6068 = vadd.f32 %v4880, %v5882
    %v6069 = vadd.f32 %v5054, %v6056
    %v6070 = vadd.f32 %v4709, %v5711
    %v6071 = vadd.f32 %v4883, %v5885
    %v6072 = vadd.f32 %v5057, %v6059
    %v6073 = vadd.f32 %v4712, %v5714
    %v6074 = vadd.f32 %v4886, %v5888
    %v6075 = vadd.f32 %v5060, %v6062
    %v6076 = vld [vmem:[#allocation11] sm:$0x7]
    %v6078 = vperm.slane %v6076, 0
    %v6079 = vperm.slane %v6076, 1
    %v6080 = vperm.slane %v6076, 2
    %v6084 = vadd.f32 %v6064, %v6078
    %v6085 = vadd.f32 %v6065, %v6079
    %v6086 = vadd.f32 %v6066, %v6080
    %v6087 = vadd.f32 %v6067, %v6078
    %v6088 = vadd.f32 %v6068, %v6079
    %v6089 = vadd.f32 %v6069, %v6080
    %v6090 = vadd.f32 %v6070, %v6078
    %v6091 = vadd.f32 %v6071, %v6079
    %v6092 = vadd.f32 %v6072, %v6080
    %v6093 = vadd.f32 %v6073, %v6078
    %v6094 = vadd.f32 %v6074, %v6079
    %v6095 = vadd.f32 %v6075, %v6080
    %vm6096 = vcmp.gt.f32.partialorder %v6084, 0.0
    %vm6097 = vcmp.gt.f32.partialorder %v6085, 0.0
    %vm6098 = vcmp.gt.f32.partialorder %v6086, 0.0
    %vm6099 = vcmp.gt.f32.partialorder %v6087, 0.0
    %vm6100 = vcmp.gt.f32.partialorder %v6088, 0.0
    %vm6101 = vcmp.gt.f32.partialorder %v6089, 0.0
    %vm6102 = vcmp.gt.f32.partialorder %v6090, 0.0
    %vm6103 = vcmp.gt.f32.partialorder %v6091, 0.0
    %vm6104 = vcmp.gt.f32.partialorder %v6092, 0.0
    %vm6105 = vcmp.gt.f32.partialorder %v6093, 0.0
    %vm6106 = vcmp.gt.f32.partialorder %v6094, 0.0
    %vm6107 = vcmp.gt.f32.partialorder %v6095, 0.0
    %v6108 = vmin.f32 %v6084, 0.0
    %v6109 = vmin.f32 %v6085, 0.0
    %v6110 = vmin.f32 %v6086, 0.0
    %v6111 = vmin.f32 %v6087, 0.0
    %v6112 = vmin.f32 %v6088, 0.0
    %v6113 = vmin.f32 %v6089, 0.0
    %v6114 = vmin.f32 %v6090, 0.0
    %v6115 = vmin.f32 %v6091, 0.0
    %v6116 = vmin.f32 %v6092, 0.0
    %v6117 = vmin.f32 %v6093, 0.0
    %v6118 = vmin.f32 %v6094, 0.0
    %v6119 = vmin.f32 %v6095, 0.0
    %v6120 = vmul.f32 %v6108, 1.442695
    %v6121 = vpow.pop %v6120
    %v6122 = vmul.f32 %v6109, 1.442695
    %v6123 = vpow.pop %v6122
    %v6124 = vmul.f32 %v6110, 1.442695
    %v6125 = vpow.pop %v6124
    %v6126 = vmul.f32 %v6111, 1.442695
    %v6127 = vpow.pop %v6126
    %v6128 = vmul.f32 %v6112, 1.442695
    %v6129 = vpow.pop %v6128
    %v6130 = vmul.f32 %v6113, 1.442695
    %v6131 = vpow.pop %v6130
    %v6132 = vmul.f32 %v6114, 1.442695
    %v6133 = vpow.pop %v6132
    %v6134 = vmul.f32 %v6115, 1.442695
    %v6135 = vpow.pop %v6134
    %v6136 = vmul.f32 %v6116, 1.442695
    %v6137 = vpow.pop %v6136
    %v6138 = vmul.f32 %v6117, 1.442695
    %v6139 = vpow.pop %v6138
    %v6140 = vmul.f32 %v6118, 1.442695
    %v6141 = vpow.pop %v6140
    %v6142 = vmul.f32 %v6119, 1.442695
    %v6143 = vpow.pop %v6142
    %v6144 = vsub.f32 %v6121, 1.0
    %v6145 = vsub.f32 %v6123, 1.0
    %v6146 = vsub.f32 %v6125, 1.0
    %v6147 = vsub.f32 %v6127, 1.0
    %v6148 = vsub.f32 %v6129, 1.0
    %v6149 = vsub.f32 %v6131, 1.0
    %v6150 = vsub.f32 %v6133, 1.0
    %v6151 = vsub.f32 %v6135, 1.0
    %v6152 = vsub.f32 %v6137, 1.0
    %v6153 = vsub.f32 %v6139, 1.0
    %v6154 = vsub.f32 %v6141, 1.0
    %v6155 = vsub.f32 %v6143, 1.0
    %v6156 = vsel %vm6096, %v6084, %v6144
    %v6157 = vsel %vm6097, %v6085, %v6145
    %v6158 = vsel %vm6098, %v6086, %v6146
    %v6159 = vsel %vm6099, %v6087, %v6147
    %v6160 = vsel %vm6100, %v6088, %v6148
    %v6161 = vsel %vm6101, %v6089, %v6149
    %v6162 = vsel %vm6102, %v6090, %v6150
    %v6163 = vsel %vm6103, %v6091, %v6151
    %v6164 = vsel %vm6104, %v6092, %v6152
    %v6165 = vsel %vm6105, %v6093, %v6153
    %v6166 = vsel %vm6106, %v6094, %v6154
    %v6167 = vsel %vm6107, %v6095, %v6155
    %v6168 = vld [vmem:[%s17] sm:$0xff]
    %v6169 = vld [vmem:[%s17 + $0x8] sm:$0xff]
    %v6170 = vld [vmem:[%s17 + $0x10] sm:$0xff]
    %v6171 = vld [vmem:[%s17 + $0x18] sm:$0x3]
    %6173 = vset.pattern.permute.xlu0 0
    %6174 = vperm.xlu0 %6173, %v6168
    %v6175 = vpop.permute.xlu0 %6174
    %6178 = vset.pattern.permute.xlu0 0
    %6179 = vperm.xlu0 %6178, %v6169
    %v6180 = vpop.permute.xlu0 %6179
    %6183 = vset.pattern.permute.xlu0 0
    %6184 = vperm.xlu0 %6183, %v6170
    %v6185 = vpop.permute.xlu0 %6184
    %6188 = vset.pattern.permute.xlu0 0
    %6189 = vperm.xlu0 %6188, %v6171
    %v6190 = vpop.permute.xlu0 %6189
    %v6192 = vmul.f32 %v6156, %v6175
    %v6193 = vmul.f32 %v6157, %v6175
    %v6194 = vmul.f32 %v6158, %v6175
    %v6195 = vmul.f32 %v6159, %v6180
    %v6196 = vmul.f32 %v6160, %v6180
    %v6197 = vmul.f32 %v6161, %v6180
    %v6198 = vmul.f32 %v6162, %v6185
    %v6199 = vmul.f32 %v6163, %v6185
    %v6200 = vmul.f32 %v6164, %v6185
    %v6201 = vmul.f32 %v6165, %v6190
    %v6202 = vmul.f32 %v6166, %v6190
    %v6203 = vmul.f32 %v6167, %v6190
    %6204 = vst [vmem:[#allocation3] sm:$0xff] %v6192
    %6205 = vst [vmem:[#allocation3 + $0x8] sm:$0xff] %v6193
    %6206 = vst [vmem:[#allocation3 + $0x10] sm:$0xff] %v6194
    %6207 = vst [vmem:[#allocation3 + $0x18] sm:$0xff] %v6195
    %6208 = vst [vmem:[#allocation3 + $0x20] sm:$0xff] %v6196
    %6209 = vst [vmem:[#allocation3 + $0x28] sm:$0xff] %v6197
    %6210 = vst [vmem:[#allocation3 + $0x30] sm:$0xff] %v6198
    %6211 = vst [vmem:[#allocation3 + $0x38] sm:$0xff] %v6199
    %6212 = vst [vmem:[#allocation3 + $0x40] sm:$0xff] %v6200
    %6213 = vst [vmem:[#allocation3 + $0x48] sm:$0x3] %v6201
    %6214 = vst [vmem:[#allocation3 + $0x50] sm:$0x3] %v6202
    %6215 = vst [vmem:[#allocation3 + $0x58] sm:$0x3] %v6203
    %v6216 = vld [vmem:[#allocation3] sm:$0xff]
    %v6217 = vld [vmem:[#allocation3 + $0x8] sm:$0xff]
    %v6218 = vld [vmem:[#allocation3 + $0x10] sm:$0xff]
    %v6219 = vld [vmem:[#allocation3 + $0x18] sm:$0xff]
    %v6220 = vld [vmem:[#allocation3 + $0x20] sm:$0xff]
    %v6221 = vld [vmem:[#allocation3 + $0x28] sm:$0xff]
    %v6222 = vld [vmem:[#allocation3 + $0x30] sm:$0xff]
    %v6223 = vld [vmem:[#allocation3 + $0x38] sm:$0xff]
    %v6224 = vld [vmem:[#allocation3 + $0x40] sm:$0xff]
    %v6225 = vld [vmem:[#allocation3 + $0x48] sm:$0x3]
    %v6226 = vld [vmem:[#allocation3 + $0x50] sm:$0x3]
    %v6227 = vld [vmem:[#allocation3 + $0x58] sm:$0x3]
    %v6228 = vld [vmem:[#allocation16] sm:$0xff]
    %v6229 = vld [vmem:[#allocation16 + $0x8] sm:$0x3f]
    %vm6230 = vcmask 211968
    %v6232 = vsel %vm6230, %v6228, 0
    %v6235 = vsel %vm6230, %v6229, 0
    %v6238 = vsel %vm364, %v6225, 0
    %v6241 = vsel %vm364, %v6226, 0
    %v6244 = vsel %vm364, %v6227, 0
    %6246 = vmatpush.msra.mxu0 0.0
    %6247 = vmatpush.msra.mxu0 0.0
    %6248 = vmatpush.msra.mxu0 0.0
    %6249 = vmatpush.msra.mxu0 0.0
    %6250 = vmatpush.msra.mxu0 0.0
    %6251 = vmatpush.msra.mxu0 0.0
    %6252 = vmatpush.msra.mxu0 0.0
    %6253 = vmatpush.msra.mxu0 0.0
    %6254 = vmatpush.msra.mxu0 0.0
    %6255 = vmatpush.msra.mxu0 0.0
    %6256 = vmatpush.msra.mxu0 0.0
    %6257 = vmatpush.msra.mxu0 0.0
    %6258 = vmatpush.msra.mxu0 %v6238
    %6259 = vmatpush.msra.mxu0 %v6222
    %6260 = vmatpush.msra.mxu0 %v6219
    %6261 = vmatpush.msra.mxu0 %v6216
    %6262 = vmatmul.f32.gmra.mxu0 %v6232
    %v6263 = vpop.f32.mrf.mxu0
    %v6264 = vadd.f32 0.0, %v6263
    %6265 = vmatmul.f32.gmra.mxu0 %v6235
    %v6266 = vpop.f32.mrf.mxu0
    %v6267 = vadd.f32 0.0, %v6266
    %6268 = vdwg.mxu0
    %6269 = vmatpush.msra.mxu0 0.0
    %6270 = vmatpush.msra.mxu0 0.0
    %6271 = vmatpush.msra.mxu0 0.0
    %6272 = vmatpush.msra.mxu0 0.0
    %6273 = vmatpush.msra.mxu0 0.0
    %6274 = vmatpush.msra.mxu0 0.0
    %6275 = vmatpush.msra.mxu0 0.0
    %6276 = vmatpush.msra.mxu0 0.0
    %6277 = vmatpush.msra.mxu0 0.0
    %6278 = vmatpush.msra.mxu0 0.0
    %6279 = vmatpush.msra.mxu0 0.0
    %6280 = vmatpush.msra.mxu0 0.0
    %6281 = vmatpush.msra.mxu0 %v6241
    %6282 = vmatpush.msra.mxu0 %v6223
    %6283 = vmatpush.msra.mxu0 %v6220
    %6284 = vmatpush.msra.mxu0 %v6217
    %6285 = vmatmul.f32.gmra.mxu0 %v6232
    %v6286 = vpop.f32.mrf.mxu0
    %v6287 = vadd.f32 0.0, %v6286
    %6288 = vmatmul.f32.gmra.mxu0 %v6235
    %v6289 = vpop.f32.mrf.mxu0
    %v6290 = vadd.f32 0.0, %v6289
    %6291 = vdwg.mxu0
    %6292 = vmatpush.msra.mxu0 0.0
    %6293 = vmatpush.msra.mxu0 0.0
    %6294 = vmatpush.msra.mxu0 0.0
    %6295 = vmatpush.msra.mxu0 0.0
    %6296 = vmatpush.msra.mxu0 0.0
    %6297 = vmatpush.msra.mxu0 0.0
    %6298 = vmatpush.msra.mxu0 0.0
    %6299 = vmatpush.msra.mxu0 0.0
    %6300 = vmatpush.msra.mxu0 0.0
    %6301 = vmatpush.msra.mxu0 0.0
    %6302 = vmatpush.msra.mxu0 0.0
    %6303 = vmatpush.msra.mxu0 0.0
    %6304 = vmatpush.msra.mxu0 %v6244
    %6305 = vmatpush.msra.mxu0 %v6224
    %6306 = vmatpush.msra.mxu0 %v6221
    %6307 = vmatpush.msra.mxu0 %v6218
    %6308 = vmatmul.f32.gmra.mxu0 %v6232
    %v6309 = vpop.f32.mrf.mxu0
    %v6310 = vadd.f32 0.0, %v6309
    %6311 = vmatmul.f32.gmra.mxu0 %v6235
    %v6312 = vpop.f32.mrf.mxu0
    %v6313 = vadd.f32 0.0, %v6312
    %6314 = vdwg.mxu0
    %v6315 = vld [vmem:[%s19] sm:$0xff]
    %v6316 = vld [vmem:[%s19 + $0x8] sm:$0xff]
    %v6317 = vld [vmem:[%s19 + $0x10] sm:$0xff]
    %v6318 = vld [vmem:[%s19 + $0x18] sm:$0xff]
    %v6319 = vld [vmem:[%s19 + $0x20] sm:$0xff]
    %v6320 = vld [vmem:[%s19 + $0x28] sm:$0xff]
    %v6321 = vld [vmem:[%s19 + $0x30] sm:$0xff]
    %v6322 = vld [vmem:[%s19 + $0x38] sm:$0xff]
    %v6323 = vld [vmem:[%s19 + $0x40] sm:$0xff]
    %v6324 = vld [vmem:[%s19 + $0x48] sm:$0xff]
    %v6325 = vld [vmem:[%s19 + $0x50] sm:$0xff]
    %v6326 = vld [vmem:[%s19 + $0x58] sm:$0xff]
    %v6327 = vld [vmem:[%s19 + $0x60] sm:$0xff]
    %v6328 = vld [vmem:[%s19 + $0x68] sm:$0xff]
    %v6329 = vld [vmem:[%s19 + $0x70] sm:$0xff]
    %v6330 = vld [vmem:[%s19 + $0x78] sm:$0xff]
    %v6331 = vld [vmem:[%s19 + $0x80] sm:$0xff]
    %v6332 = vld [vmem:[%s19 + $0x88] sm:$0xff]
    %v6333 = vld [vmem:[%s19 + $0x90] sm:$0xff]
    %v6334 = vld [vmem:[%s19 + $0x98] sm:$0xff]
    %v6335 = vld [vmem:[%s19 + $0xa0] sm:$0xff]
    %v6336 = vld [vmem:[%s19 + $0xa8] sm:$0xff]
    %v6337 = vld [vmem:[%s19 + $0xb0] sm:$0xff]
    %v6338 = vld [vmem:[%s19 + $0xb8] sm:$0xff]
    %v6339 = vld [vmem:[%s19 + $0xc0] sm:$0xff]
    %v6340 = vld [vmem:[%s19 + $0xc8] sm:$0xff]
    %v6341 = vld [vmem:[%s19 + $0xd0] sm:$0xff]
    %v6342 = vld [vmem:[%s19 + $0xd8] sm:$0xff]
    %v6343 = vld [vmem:[%s19 + $0xe0] sm:$0xff]
    %v6344 = vld [vmem:[%s19 + $0xe8] sm:$0xff]
    %v6345 = vld [vmem:[%s19 + $0xf0] sm:$0xff]
    %v6346 = vld [vmem:[%s19 + $0xf8] sm:$0xff]
    %v6347 = vld [vmem:[%s19 + $0x100] sm:$0xff]
    %v6348 = vld [vmem:[%s19 + $0x108] sm:$0xff]
    %v6349 = vld [vmem:[%s19 + $0x110] sm:$0xff]
    %v6350 = vld [vmem:[%s19 + $0x118] sm:$0xff]
    %v6351 = vld [vmem:[%s19 + $0x120] sm:$0xff]
    %v6352 = vld [vmem:[%s19 + $0x128] sm:$0xff]
    %v6353 = vld [vmem:[%s19 + $0x130] sm:$0xff]
    %v6354 = vld [vmem:[%s19 + $0x138] sm:$0xff]
    %v6355 = vld [vmem:[%s19 + $0x140] sm:$0xff]
    %v6356 = vld [vmem:[%s19 + $0x148] sm:$0xff]
    %v6357 = vld [vmem:[%s19 + $0x150] sm:$0xff]
    %v6358 = vld [vmem:[%s19 + $0x158] sm:$0xff]
    %v6359 = vld [vmem:[%s19 + $0x160] sm:$0xff]
    %v6360 = vld [vmem:[%s19 + $0x168] sm:$0xff]
    %v6361 = vld [vmem:[%s19 + $0x170] sm:$0xff]
    %v6362 = vld [vmem:[%s19 + $0x178] sm:$0xff]
    %v6363 = vld [vmem:[%s19 + $0x180] sm:$0xff]
    %v6364 = vld [vmem:[%s19 + $0x188] sm:$0xff]
    %v6365 = vld [vmem:[%s19 + $0x190] sm:$0xff]
    %v6366 = vld [vmem:[%s19 + $0x198] sm:$0xff]
    %v6367 = vld [vmem:[%s19 + $0x1a0] sm:$0xff]
    %v6368 = vld [vmem:[%s19 + $0x1a8] sm:$0xff]
    %v6369 = vld [vmem:[%s19 + $0x1b0] sm:$0xff]
    %v6370 = vld [vmem:[%s19 + $0x1b8] sm:$0xff]
    %v6371 = vld [vmem:[%s19 + $0x1c0] sm:$0xff]
    %v6372 = vld [vmem:[%s19 + $0x1c8] sm:$0xff]
    %v6373 = vld [vmem:[%s19 + $0x1d0] sm:$0xff]
    %v6374 = vld [vmem:[%s19 + $0x1d8] sm:$0xff]
    %v6375 = vld [vmem:[%s19 + $0x1e0] sm:$0xff]
    %v6376 = vld [vmem:[%s19 + $0x1e8] sm:$0xff]
    %v6377 = vld [vmem:[%s19 + $0x1f0] sm:$0xff]
    %v6378 = vld [vmem:[%s19 + $0x1f8] sm:$0xff]
    %v6379 = vld [vmem:[%s19 + $0x200] sm:$0xff]
    %v6380 = vld [vmem:[%s19 + $0x208] sm:$0xff]
    %v6381 = vld [vmem:[%s19 + $0x210] sm:$0xff]
    %v6382 = vld [vmem:[%s19 + $0x218] sm:$0xff]
    %v6383 = vld [vmem:[%s19 + $0x220] sm:$0xff]
    %v6384 = vld [vmem:[%s19 + $0x228] sm:$0xff]
    %v6385 = vld [vmem:[%s19 + $0x230] sm:$0xff]
    %v6386 = vld [vmem:[%s19 + $0x238] sm:$0xff]
    %v6387 = vld [vmem:[%s19 + $0x240] sm:$0xff]
    %v6388 = vld [vmem:[%s19 + $0x248] sm:$0xff]
    %v6389 = vld [vmem:[%s19 + $0x250] sm:$0xff]
    %v6390 = vld [vmem:[%s19 + $0x258] sm:$0xff]
    %v6391 = vld [vmem:[%s19 + $0x260] sm:$0xff]
    %v6392 = vld [vmem:[%s19 + $0x268] sm:$0xff]
    %v6393 = vld [vmem:[%s19 + $0x270] sm:$0xff]
    %v6394 = vld [vmem:[%s19 + $0x278] sm:$0xff]
    %v6395 = vld [vmem:[%s19 + $0x280] sm:$0xff]
    %v6396 = vld [vmem:[%s19 + $0x288] sm:$0xff]
    %v6397 = vld [vmem:[%s19 + $0x290] sm:$0xff]
    %v6398 = vld [vmem:[%s19 + $0x298] sm:$0xff]
    %v6399 = vld [vmem:[%s19 + $0x2a0] sm:$0xff]
    %v6400 = vld [vmem:[%s19 + $0x2a8] sm:$0xff]
    %v6401 = vld [vmem:[%s19 + $0x2b0] sm:$0xff]
    %v6402 = vld [vmem:[%s19 + $0x2b8] sm:$0xff]
    %v6403 = vld [vmem:[%s19 + $0x2c0] sm:$0xff]
    %v6404 = vld [vmem:[%s19 + $0x2c8] sm:$0xff]
    %v6405 = vld [vmem:[%s19 + $0x2d0] sm:$0xff]
    %v6406 = vld [vmem:[%s19 + $0x2d8] sm:$0xff]
    %v6407 = vld [vmem:[%s19 + $0x2e0] sm:$0xff]
    %v6408 = vld [vmem:[%s19 + $0x2e8] sm:$0xff]
    %v6409 = vld [vmem:[%s19 + $0x2f0] sm:$0xff]
    %v6410 = vld [vmem:[%s19 + $0x2f8] sm:$0xff]
    %s6411 = scalar_lea.vmem [#allocation16], 16
    %v6412 = vld [vmem:[%s6411] sm:$0xff]
    %v6413 = vld [vmem:[%s6411 + $0x8] sm:$0x3f]
    %v6415 = vsel %vm6230, %v6412, 0
    %v6418 = vsel %vm6230, %v6413, 0
    %6420 = vmatpush.msra.mxu0 0.0
    %6421 = vmatpush.msra.mxu0 0.0
    %6422 = vmatpush.msra.mxu0 0.0
    %6423 = vmatpush.msra.mxu0 0.0
    %6424 = vmatpush.msra.mxu0 0.0
    %6425 = vmatpush.msra.mxu0 0.0
    %6426 = vmatpush.msra.mxu0 0.0
    %6427 = vmatpush.msra.mxu0 0.0
    %6428 = vmatpush.msra.mxu0 0.0
    %6429 = vmatpush.msra.mxu0 0.0
    %6430 = vmatpush.msra.mxu0 0.0
    %6431 = vmatpush.msra.mxu0 0.0
    %6432 = vmatpush.msra.mxu0 %v6238
    %6433 = vmatpush.msra.mxu0 %v6222
    %6434 = vmatpush.msra.mxu0 %v6219
    %6435 = vmatpush.msra.mxu0 %v6216
    %6436 = vmatmul.f32.gmra.mxu0 %v6415
    %v6437 = vpop.f32.mrf.mxu0
    %v6438 = vadd.f32 0.0, %v6437
    %6439 = vmatmul.f32.gmra.mxu0 %v6418
    %v6440 = vpop.f32.mrf.mxu0
    %v6441 = vadd.f32 0.0, %v6440
    %6442 = vdwg.mxu0
    %6443 = vmatpush.msra.mxu0 0.0
    %6444 = vmatpush.msra.mxu0 0.0
    %6445 = vmatpush.msra.mxu0 0.0
    %6446 = vmatpush.msra.mxu0 0.0
    %6447 = vmatpush.msra.mxu0 0.0
    %6448 = vmatpush.msra.mxu0 0.0
    %6449 = vmatpush.msra.mxu0 0.0
    %6450 = vmatpush.msra.mxu0 0.0
    %6451 = vmatpush.msra.mxu0 0.0
    %6452 = vmatpush.msra.mxu0 0.0
    %6453 = vmatpush.msra.mxu0 0.0
    %6454 = vmatpush.msra.mxu0 0.0
    %6455 = vmatpush.msra.mxu0 %v6241
    %6456 = vmatpush.msra.mxu0 %v6223
    %6457 = vmatpush.msra.mxu0 %v6220
    %6458 = vmatpush.msra.mxu0 %v6217
    %6459 = vmatmul.f32.gmra.mxu0 %v6415
    %v6460 = vpop.f32.mrf.mxu0
    %v6461 = vadd.f32 0.0, %v6460
    %6462 = vmatmul.f32.gmra.mxu0 %v6418
    %v6463 = vpop.f32.mrf.mxu0
    %v6464 = vadd.f32 0.0, %v6463
    %6465 = vdwg.mxu0
    %6466 = vmatpush.msra.mxu0 0.0
    %6467 = vmatpush.msra.mxu0 0.0
    %6468 = vmatpush.msra.mxu0 0.0
    %6469 = vmatpush.msra.mxu0 0.0
    %6470 = vmatpush.msra.mxu0 0.0
    %6471 = vmatpush.msra.mxu0 0.0
    %6472 = vmatpush.msra.mxu0 0.0
    %6473 = vmatpush.msra.mxu0 0.0
    %6474 = vmatpush.msra.mxu0 0.0
    %6475 = vmatpush.msra.mxu0 0.0
    %6476 = vmatpush.msra.mxu0 0.0
    %6477 = vmatpush.msra.mxu0 0.0
    %6478 = vmatpush.msra.mxu0 %v6244
    %6479 = vmatpush.msra.mxu0 %v6224
    %6480 = vmatpush.msra.mxu0 %v6221
    %6481 = vmatpush.msra.mxu0 %v6218
    %6482 = vmatmul.f32.gmra.mxu0 %v6415
    %v6483 = vpop.f32.mrf.mxu0
    %v6484 = vadd.f32 0.0, %v6483
    %6485 = vmatmul.f32.gmra.mxu0 %v6418
    %v6486 = vpop.f32.mrf.mxu0
    %v6487 = vadd.f32 0.0, %v6486
    %6488 = vdwg.mxu0
    %s6489 = scalar_lea.vmem %s19, 768
    %v6490 = vld [vmem:[%s6489] sm:$0xff]
    %v6491 = vld [vmem:[%s6489 + $0x8] sm:$0xff]
    %v6492 = vld [vmem:[%s6489 + $0x10] sm:$0xff]
    %v6493 = vld [vmem:[%s6489 + $0x18] sm:$0xff]
    %v6494 = vld [vmem:[%s6489 + $0x20] sm:$0xff]
    %v6495 = vld [vmem:[%s6489 + $0x28] sm:$0xff]
    %v6496 = vld [vmem:[%s6489 + $0x30] sm:$0xff]
    %v6497 = vld [vmem:[%s6489 + $0x38] sm:$0xff]
    %v6498 = vld [vmem:[%s6489 + $0x40] sm:$0xff]
    %v6499 = vld [vmem:[%s6489 + $0x48] sm:$0xff]
    %v6500 = vld [vmem:[%s6489 + $0x50] sm:$0xff]
    %v6501 = vld [vmem:[%s6489 + $0x58] sm:$0xff]
    %v6502 = vld [vmem:[%s6489 + $0x60] sm:$0xff]
    %v6503 = vld [vmem:[%s6489 + $0x68] sm:$0xff]
    %v6504 = vld [vmem:[%s6489 + $0x70] sm:$0xff]
    %v6505 = vld [vmem:[%s6489 + $0x78] sm:$0xff]
    %v6506 = vld [vmem:[%s6489 + $0x80] sm:$0xff]
    %v6507 = vld [vmem:[%s6489 + $0x88] sm:$0xff]
    %v6508 = vld [vmem:[%s6489 + $0x90] sm:$0xff]
    %v6509 = vld [vmem:[%s6489 + $0x98] sm:$0xff]
    %v6510 = vld [vmem:[%s6489 + $0xa0] sm:$0xff]
    %v6511 = vld [vmem:[%s6489 + $0xa8] sm:$0xff]
    %v6512 = vld [vmem:[%s6489 + $0xb0] sm:$0xff]
    %v6513 = vld [vmem:[%s6489 + $0xb8] sm:$0xff]
    %v6514 = vld [vmem:[%s6489 + $0xc0] sm:$0xff]
    %v6515 = vld [vmem:[%s6489 + $0xc8] sm:$0xff]
    %v6516 = vld [vmem:[%s6489 + $0xd0] sm:$0xff]
    %v6517 = vld [vmem:[%s6489 + $0xd8] sm:$0xff]
    %v6518 = vld [vmem:[%s6489 + $0xe0] sm:$0xff]
    %v6519 = vld [vmem:[%s6489 + $0xe8] sm:$0xff]
    %v6520 = vld [vmem:[%s6489 + $0xf0] sm:$0xff]
    %v6521 = vld [vmem:[%s6489 + $0xf8] sm:$0xff]
    %v6522 = vld [vmem:[%s6489 + $0x100] sm:$0xff]
    %v6523 = vld [vmem:[%s6489 + $0x108] sm:$0xff]
    %v6524 = vld [vmem:[%s6489 + $0x110] sm:$0xff]
    %v6525 = vld [vmem:[%s6489 + $0x118] sm:$0xff]
    %v6526 = vld [vmem:[%s6489 + $0x120] sm:$0xff]
    %v6527 = vld [vmem:[%s6489 + $0x128] sm:$0xff]
    %v6528 = vld [vmem:[%s6489 + $0x130] sm:$0xff]
    %v6529 = vld [vmem:[%s6489 + $0x138] sm:$0xff]
    %v6530 = vld [vmem:[%s6489 + $0x140] sm:$0xff]
    %v6531 = vld [vmem:[%s6489 + $0x148] sm:$0xff]
    %v6532 = vld [vmem:[%s6489 + $0x150] sm:$0xff]
    %v6533 = vld [vmem:[%s6489 + $0x158] sm:$0xff]
    %v6534 = vld [vmem:[%s6489 + $0x160] sm:$0xff]
    %v6535 = vld [vmem:[%s6489 + $0x168] sm:$0xff]
    %v6536 = vld [vmem:[%s6489 + $0x170] sm:$0xff]
    %v6537 = vld [vmem:[%s6489 + $0x178] sm:$0xff]
    %v6538 = vld [vmem:[%s6489 + $0x180] sm:$0xff]
    %v6539 = vld [vmem:[%s6489 + $0x188] sm:$0xff]
    %v6540 = vld [vmem:[%s6489 + $0x190] sm:$0xff]
    %v6541 = vld [vmem:[%s6489 + $0x198] sm:$0xff]
    %v6542 = vld [vmem:[%s6489 + $0x1a0] sm:$0xff]
    %v6543 = vld [vmem:[%s6489 + $0x1a8] sm:$0xff]
    %v6544 = vld [vmem:[%s6489 + $0x1b0] sm:$0xff]
    %v6545 = vld [vmem:[%s6489 + $0x1b8] sm:$0xff]
    %v6546 = vld [vmem:[%s6489 + $0x1c0] sm:$0xff]
    %v6547 = vld [vmem:[%s6489 + $0x1c8] sm:$0xff]
    %v6548 = vld [vmem:[%s6489 + $0x1d0] sm:$0xff]
    %v6549 = vld [vmem:[%s6489 + $0x1d8] sm:$0xff]
    %v6550 = vld [vmem:[%s6489 + $0x1e0] sm:$0xff]
    %v6551 = vld [vmem:[%s6489 + $0x1e8] sm:$0xff]
    %v6552 = vld [vmem:[%s6489 + $0x1f0] sm:$0xff]
    %v6553 = vld [vmem:[%s6489 + $0x1f8] sm:$0xff]
    %v6554 = vld [vmem:[%s6489 + $0x200] sm:$0xff]
    %v6555 = vld [vmem:[%s6489 + $0x208] sm:$0xff]
    %v6556 = vld [vmem:[%s6489 + $0x210] sm:$0xff]
    %v6557 = vld [vmem:[%s6489 + $0x218] sm:$0xff]
    %v6558 = vld [vmem:[%s6489 + $0x220] sm:$0xff]
    %v6559 = vld [vmem:[%s6489 + $0x228] sm:$0xff]
    %v6560 = vld [vmem:[%s6489 + $0x230] sm:$0xff]
    %v6561 = vld [vmem:[%s6489 + $0x238] sm:$0xff]
    %v6562 = vld [vmem:[%s6489 + $0x240] sm:$0xff]
    %v6563 = vld [vmem:[%s6489 + $0x248] sm:$0xff]
    %v6564 = vld [vmem:[%s6489 + $0x250] sm:$0xff]
    %v6565 = vld [vmem:[%s6489 + $0x258] sm:$0xff]
    %v6566 = vld [vmem:[%s6489 + $0x260] sm:$0xff]
    %v6567 = vld [vmem:[%s6489 + $0x268] sm:$0xff]
    %v6568 = vld [vmem:[%s6489 + $0x270] sm:$0xff]
    %v6569 = vld [vmem:[%s6489 + $0x278] sm:$0xff]
    %v6570 = vld [vmem:[%s6489 + $0x280] sm:$0xff]
    %v6571 = vld [vmem:[%s6489 + $0x288] sm:$0xff]
    %v6572 = vld [vmem:[%s6489 + $0x290] sm:$0xff]
    %v6573 = vld [vmem:[%s6489 + $0x298] sm:$0xff]
    %v6574 = vld [vmem:[%s6489 + $0x2a0] sm:$0xff]
    %v6575 = vld [vmem:[%s6489 + $0x2a8] sm:$0xff]
    %v6576 = vld [vmem:[%s6489 + $0x2b0] sm:$0xff]
    %v6577 = vld [vmem:[%s6489 + $0x2b8] sm:$0xff]
    %v6578 = vld [vmem:[%s6489 + $0x2c0] sm:$0xff]
    %v6579 = vld [vmem:[%s6489 + $0x2c8] sm:$0xff]
    %v6580 = vld [vmem:[%s6489 + $0x2d0] sm:$0xff]
    %v6581 = vld [vmem:[%s6489 + $0x2d8] sm:$0xff]
    %v6582 = vld [vmem:[%s6489 + $0x2e0] sm:$0xff]
    %v6583 = vld [vmem:[%s6489 + $0x2e8] sm:$0xff]
    %v6584 = vld [vmem:[%s6489 + $0x2f0] sm:$0xff]
    %v6585 = vld [vmem:[%s6489 + $0x2f8] sm:$0xff]
    %6586 = vmatpush.msra.mxu0 %v6520
    %6587 = vmatpush.msra.mxu0 %v6518
    %6588 = vmatpush.msra.mxu0 %v6516
    %6589 = vmatpush.msra.mxu0 %v6514
    %6590 = vmatpush.msra.mxu0 %v6512
    %6591 = vmatpush.msra.mxu0 %v6510
    %6592 = vmatpush.msra.mxu0 %v6508
    %6593 = vmatpush.msra.mxu0 %v6506
    %6594 = vmatpush.msra.mxu0 %v6504
    %6595 = vmatpush.msra.mxu0 %v6502
    %6596 = vmatpush.msra.mxu0 %v6500
    %6597 = vmatpush.msra.mxu0 %v6498
    %6598 = vmatpush.msra.mxu0 %v6496
    %6599 = vmatpush.msra.mxu0 %v6494
    %6600 = vmatpush.msra.mxu0 %v6492
    %6601 = vmatpush.msra.mxu0 %v6490
    %6602 = vmatmul.f32.gmra.mxu0 %v6438
    %v6603 = vpop.f32.mrf.mxu0
    %v6604 = vadd.f32 0.0, %v6603
    %6605 = vmatmul.f32.gmra.mxu0 %v6441
    %v6606 = vpop.f32.mrf.mxu0
    %v6607 = vadd.f32 0.0, %v6606
    %6608 = vdwg.mxu0
    %6609 = vmatpush.msra.mxu0 %v6552
    %6610 = vmatpush.msra.mxu0 %v6550
    %6611 = vmatpush.msra.mxu0 %v6548
    %6612 = vmatpush.msra.mxu0 %v6546
    %6613 = vmatpush.msra.mxu0 %v6544
    %6614 = vmatpush.msra.mxu0 %v6542
    %6615 = vmatpush.msra.mxu0 %v6540
    %6616 = vmatpush.msra.mxu0 %v6538
    %6617 = vmatpush.msra.mxu0 %v6536
    %6618 = vmatpush.msra.mxu0 %v6534
    %6619 = vmatpush.msra.mxu0 %v6532
    %6620 = vmatpush.msra.mxu0 %v6530
    %6621 = vmatpush.msra.mxu0 %v6528
    %6622 = vmatpush.msra.mxu0 %v6526
    %6623 = vmatpush.msra.mxu0 %v6524
    %6624 = vmatpush.msra.mxu0 %v6522
    %6625 = vmatmul.f32.gmra.mxu0 %v6461
    %v6626 = vpop.f32.mrf.mxu0
    %v6627 = vadd.f32 %v6604, %v6626
    %6628 = vmatmul.f32.gmra.mxu0 %v6464
    %v6629 = vpop.f32.mrf.mxu0
    %v6630 = vadd.f32 %v6607, %v6629
    %6631 = vdwg.mxu0
    %6632 = vmatpush.msra.mxu0 %v6584
    %6633 = vmatpush.msra.mxu0 %v6582
    %6634 = vmatpush.msra.mxu0 %v6580
    %6635 = vmatpush.msra.mxu0 %v6578
    %6636 = vmatpush.msra.mxu0 %v6576
    %6637 = vmatpush.msra.mxu0 %v6574
    %6638 = vmatpush.msra.mxu0 %v6572
    %6639 = vmatpush.msra.mxu0 %v6570
    %6640 = vmatpush.msra.mxu0 %v6568
    %6641 = vmatpush.msra.mxu0 %v6566
    %6642 = vmatpush.msra.mxu0 %v6564
    %6643 = vmatpush.msra.mxu0 %v6562
    %6644 = vmatpush.msra.mxu0 %v6560
    %6645 = vmatpush.msra.mxu0 %v6558
    %6646 = vmatpush.msra.mxu0 %v6556
    %6647 = vmatpush.msra.mxu0 %v6554
    %6648 = vmatmul.f32.gmra.mxu0 %v6484
    %v6649 = vpop.f32.mrf.mxu0
    %v6650 = vadd.f32 %v6627, %v6649
    %6651 = vmatmul.f32.gmra.mxu0 %v6487
    %v6652 = vpop.f32.mrf.mxu0
    %v6653 = vadd.f32 %v6630, %v6652
    %6654 = vdwg.mxu0
    %6655 = vmatpush.msra.mxu0 %v6521
    %6656 = vmatpush.msra.mxu0 %v6519
    %6657 = vmatpush.msra.mxu0 %v6517
    %6658 = vmatpush.msra.mxu0 %v6515
    %6659 = vmatpush.msra.mxu0 %v6513
    %6660 = vmatpush.msra.mxu0 %v6511
    %6661 = vmatpush.msra.mxu0 %v6509
    %6662 = vmatpush.msra.mxu0 %v6507
    %6663 = vmatpush.msra.mxu0 %v6505
    %6664 = vmatpush.msra.mxu0 %v6503
    %6665 = vmatpush.msra.mxu0 %v6501
    %6666 = vmatpush.msra.mxu0 %v6499
    %6667 = vmatpush.msra.mxu0 %v6497
    %6668 = vmatpush.msra.mxu0 %v6495
    %6669 = vmatpush.msra.mxu0 %v6493
    %6670 = vmatpush.msra.mxu0 %v6491
    %6671 = vmatmul.f32.gmra.mxu0 %v6438
    %v6672 = vpop.f32.mrf.mxu0
    %v6673 = vadd.f32 0.0, %v6672
    %6674 = vmatmul.f32.gmra.mxu0 %v6441
    %v6675 = vpop.f32.mrf.mxu0
    %v6676 = vadd.f32 0.0, %v6675
    %6677 = vdwg.mxu0
    %6678 = vmatpush.msra.mxu0 %v6553
    %6679 = vmatpush.msra.mxu0 %v6551
    %6680 = vmatpush.msra.mxu0 %v6549
    %6681 = vmatpush.msra.mxu0 %v6547
    %6682 = vmatpush.msra.mxu0 %v6545
    %6683 = vmatpush.msra.mxu0 %v6543
    %6684 = vmatpush.msra.mxu0 %v6541
    %6685 = vmatpush.msra.mxu0 %v6539
    %6686 = vmatpush.msra.mxu0 %v6537
    %6687 = vmatpush.msra.mxu0 %v6535
    %6688 = vmatpush.msra.mxu0 %v6533
    %6689 = vmatpush.msra.mxu0 %v6531
    %6690 = vmatpush.msra.mxu0 %v6529
    %6691 = vmatpush.msra.mxu0 %v6527
    %6692 = vmatpush.msra.mxu0 %v6525
    %6693 = vmatpush.msra.mxu0 %v6523
    %6694 = vmatmul.f32.gmra.mxu0 %v6461
    %v6695 = vpop.f32.mrf.mxu0
    %v6696 = vadd.f32 %v6673, %v6695
    %6697 = vmatmul.f32.gmra.mxu0 %v6464
    %v6698 = vpop.f32.mrf.mxu0
    %v6699 = vadd.f32 %v6676, %v6698
    %6700 = vdwg.mxu0
    %6701 = vmatpush.msra.mxu0 %v6585
    %6702 = vmatpush.msra.mxu0 %v6583
    %6703 = vmatpush.msra.mxu0 %v6581
    %6704 = vmatpush.msra.mxu0 %v6579
    %6705 = vmatpush.msra.mxu0 %v6577
    %6706 = vmatpush.msra.mxu0 %v6575
    %6707 = vmatpush.msra.mxu0 %v6573
    %6708 = vmatpush.msra.mxu0 %v6571
    %6709 = vmatpush.msra.mxu0 %v6569
    %6710 = vmatpush.msra.mxu0 %v6567
    %6711 = vmatpush.msra.mxu0 %v6565
    %6712 = vmatpush.msra.mxu0 %v6563
    %6713 = vmatpush.msra.mxu0 %v6561
    %6714 = vmatpush.msra.mxu0 %v6559
    %6715 = vmatpush.msra.mxu0 %v6557
    %6716 = vmatpush.msra.mxu0 %v6555
    %6717 = vmatmul.f32.gmra.mxu0 %v6484
    %v6718 = vpop.f32.mrf.mxu0
    %v6719 = vadd.f32 %v6696, %v6718
    %6720 = vmatmul.f32.gmra.mxu0 %v6487
    %v6721 = vpop.f32.mrf.mxu0
    %v6722 = vadd.f32 %v6699, %v6721
    %6723 = vdwg.mxu0
    %6724 = vmatpush.msra.mxu0 %v6345
    %6725 = vmatpush.msra.mxu0 %v6343
    %6726 = vmatpush.msra.mxu0 %v6341
    %6727 = vmatpush.msra.mxu0 %v6339
    %6728 = vmatpush.msra.mxu0 %v6337
    %6729 = vmatpush.msra.mxu0 %v6335
    %6730 = vmatpush.msra.mxu0 %v6333
    %6731 = vmatpush.msra.mxu0 %v6331
    %6732 = vmatpush.msra.mxu0 %v6329
    %6733 = vmatpush.msra.mxu0 %v6327
    %6734 = vmatpush.msra.mxu0 %v6325
    %6735 = vmatpush.msra.mxu0 %v6323
    %6736 = vmatpush.msra.mxu0 %v6321
    %6737 = vmatpush.msra.mxu0 %v6319
    %6738 = vmatpush.msra.mxu0 %v6317
    %6739 = vmatpush.msra.mxu0 %v6315
    %6740 = vmatmul.f32.gmra.mxu0 %v6264
    %v6741 = vpop.f32.mrf.mxu0
    %v6742 = vadd.f32 %v6650, %v6741
    %6743 = vmatmul.f32.gmra.mxu0 %v6267
    %v6744 = vpop.f32.mrf.mxu0
    %v6745 = vadd.f32 %v6653, %v6744
    %6746 = vdwg.mxu0
    %6747 = vmatpush.msra.mxu0 %v6377
    %6748 = vmatpush.msra.mxu0 %v6375
    %6749 = vmatpush.msra.mxu0 %v6373
    %6750 = vmatpush.msra.mxu0 %v6371
    %6751 = vmatpush.msra.mxu0 %v6369
    %6752 = vmatpush.msra.mxu0 %v6367
    %6753 = vmatpush.msra.mxu0 %v6365
    %6754 = vmatpush.msra.mxu0 %v6363
    %6755 = vmatpush.msra.mxu0 %v6361
    %6756 = vmatpush.msra.mxu0 %v6359
    %6757 = vmatpush.msra.mxu0 %v6357
    %6758 = vmatpush.msra.mxu0 %v6355
    %6759 = vmatpush.msra.mxu0 %v6353
    %6760 = vmatpush.msra.mxu0 %v6351
    %6761 = vmatpush.msra.mxu0 %v6349
    %6762 = vmatpush.msra.mxu0 %v6347
    %6763 = vmatmul.f32.gmra.mxu0 %v6287
    %v6764 = vpop.f32.mrf.mxu0
    %v6765 = vadd.f32 %v6742, %v6764
    %6766 = vmatmul.f32.gmra.mxu0 %v6290
    %v6767 = vpop.f32.mrf.mxu0
    %v6768 = vadd.f32 %v6745, %v6767
    %6769 = vdwg.mxu0
    %6770 = vmatpush.msra.mxu0 %v6409
    %6771 = vmatpush.msra.mxu0 %v6407
    %6772 = vmatpush.msra.mxu0 %v6405
    %6773 = vmatpush.msra.mxu0 %v6403
    %6774 = vmatpush.msra.mxu0 %v6401
    %6775 = vmatpush.msra.mxu0 %v6399
    %6776 = vmatpush.msra.mxu0 %v6397
    %6777 = vmatpush.msra.mxu0 %v6395
    %6778 = vmatpush.msra.mxu0 %v6393
    %6779 = vmatpush.msra.mxu0 %v6391
    %6780 = vmatpush.msra.mxu0 %v6389
    %6781 = vmatpush.msra.mxu0 %v6387
    %6782 = vmatpush.msra.mxu0 %v6385
    %6783 = vmatpush.msra.mxu0 %v6383
    %6784 = vmatpush.msra.mxu0 %v6381
    %6785 = vmatpush.msra.mxu0 %v6379
    %6786 = vmatmul.f32.gmra.mxu0 %v6310
    %v6787 = vpop.f32.mrf.mxu0
    %v6788 = vadd.f32 %v6765, %v6787
    %6789 = vmatmul.f32.gmra.mxu0 %v6313
    %v6790 = vpop.f32.mrf.mxu0
    %v6791 = vadd.f32 %v6768, %v6790
    %6792 = vdwg.mxu0
    %6793 = vmatpush.msra.mxu0 %v6346
    %6794 = vmatpush.msra.mxu0 %v6344
    %6795 = vmatpush.msra.mxu0 %v6342
    %6796 = vmatpush.msra.mxu0 %v6340
    %6797 = vmatpush.msra.mxu0 %v6338
    %6798 = vmatpush.msra.mxu0 %v6336
    %6799 = vmatpush.msra.mxu0 %v6334
    %6800 = vmatpush.msra.mxu0 %v6332
    %6801 = vmatpush.msra.mxu0 %v6330
    %6802 = vmatpush.msra.mxu0 %v6328
    %6803 = vmatpush.msra.mxu0 %v6326
    %6804 = vmatpush.msra.mxu0 %v6324
    %6805 = vmatpush.msra.mxu0 %v6322
    %6806 = vmatpush.msra.mxu0 %v6320
    %6807 = vmatpush.msra.mxu0 %v6318
    %6808 = vmatpush.msra.mxu0 %v6316
    %6809 = vmatmul.f32.gmra.mxu0 %v6264
    %v6810 = vpop.f32.mrf.mxu0
    %v6811 = vadd.f32 %v6719, %v6810
    %6812 = vmatmul.f32.gmra.mxu0 %v6267
    %v6813 = vpop.f32.mrf.mxu0
    %v6814 = vadd.f32 %v6722, %v6813
    %6815 = vdwg.mxu0
    %6816 = vmatpush.msra.mxu0 %v6378
    %6817 = vmatpush.msra.mxu0 %v6376
    %6818 = vmatpush.msra.mxu0 %v6374
    %6819 = vmatpush.msra.mxu0 %v6372
    %6820 = vmatpush.msra.mxu0 %v6370
    %6821 = vmatpush.msra.mxu0 %v6368
    %6822 = vmatpush.msra.mxu0 %v6366
    %6823 = vmatpush.msra.mxu0 %v6364
    %6824 = vmatpush.msra.mxu0 %v6362
    %6825 = vmatpush.msra.mxu0 %v6360
    %6826 = vmatpush.msra.mxu0 %v6358
    %6827 = vmatpush.msra.mxu0 %v6356
    %6828 = vmatpush.msra.mxu0 %v6354
    %6829 = vmatpush.msra.mxu0 %v6352
    %6830 = vmatpush.msra.mxu0 %v6350
    %6831 = vmatpush.msra.mxu0 %v6348
    %6832 = vmatmul.f32.gmra.mxu0 %v6287
    %v6833 = vpop.f32.mrf.mxu0
    %v6834 = vadd.f32 %v6811, %v6833
    %6835 = vmatmul.f32.gmra.mxu0 %v6290
    %v6836 = vpop.f32.mrf.mxu0
    %v6837 = vadd.f32 %v6814, %v6836
    %6838 = vdwg.mxu0
    %6839 = vmatpush.msra.mxu0 %v6410
    %6840 = vmatpush.msra.mxu0 %v6408
    %6841 = vmatpush.msra.mxu0 %v6406
    %6842 = vmatpush.msra.mxu0 %v6404
    %6843 = vmatpush.msra.mxu0 %v6402
    %6844 = vmatpush.msra.mxu0 %v6400
    %6845 = vmatpush.msra.mxu0 %v6398
    %6846 = vmatpush.msra.mxu0 %v6396
    %6847 = vmatpush.msra.mxu0 %v6394
    %6848 = vmatpush.msra.mxu0 %v6392
    %6849 = vmatpush.msra.mxu0 %v6390
    %6850 = vmatpush.msra.mxu0 %v6388
    %6851 = vmatpush.msra.mxu0 %v6386
    %6852 = vmatpush.msra.mxu0 %v6384
    %6853 = vmatpush.msra.mxu0 %v6382
    %6854 = vmatpush.msra.mxu0 %v6380
    %6855 = vmatmul.f32.gmra.mxu0 %v6310
    %v6856 = vpop.f32.mrf.mxu0
    %v6857 = vadd.f32 %v6834, %v6856
    %6858 = vmatmul.f32.gmra.mxu0 %v6313
    %v6859 = vpop.f32.mrf.mxu0
    %v6860 = vadd.f32 %v6837, %v6859
    %6861 = vdwg.mxu0
    %s6862 = scalar_lea.vmem [#allocation16], 32
    %v6863 = vld [vmem:[%s6862] sm:$0xff]
    %v6864 = vld [vmem:[%s6862 + $0x8] sm:$0x3f]
    %v6866 = vsel %vm6230, %v6863, 0
    %v6869 = vsel %vm6230, %v6864, 0
    %6871 = vmatpush.msra.mxu0 0.0
    %6872 = vmatpush.msra.mxu0 0.0
    %6873 = vmatpush.msra.mxu0 0.0
    %6874 = vmatpush.msra.mxu0 0.0
    %6875 = vmatpush.msra.mxu0 0.0
    %6876 = vmatpush.msra.mxu0 0.0
    %6877 = vmatpush.msra.mxu0 0.0
    %6878 = vmatpush.msra.mxu0 0.0
    %6879 = vmatpush.msra.mxu0 0.0
    %6880 = vmatpush.msra.mxu0 0.0
    %6881 = vmatpush.msra.mxu0 0.0
    %6882 = vmatpush.msra.mxu0 0.0
    %6883 = vmatpush.msra.mxu0 %v6238
    %6884 = vmatpush.msra.mxu0 %v6222
    %6885 = vmatpush.msra.mxu0 %v6219
    %6886 = vmatpush.msra.mxu0 %v6216
    %6887 = vmatmul.f32.gmra.mxu0 %v6866
    %v6888 = vpop.f32.mrf.mxu0
    %v6889 = vadd.f32 0.0, %v6888
    %6890 = vmatmul.f32.gmra.mxu0 %v6869
    %v6891 = vpop.f32.mrf.mxu0
    %v6892 = vadd.f32 0.0, %v6891
    %6893 = vdwg.mxu0
    %6894 = vmatpush.msra.mxu0 0.0
    %6895 = vmatpush.msra.mxu0 0.0
    %6896 = vmatpush.msra.mxu0 0.0
    %6897 = vmatpush.msra.mxu0 0.0
    %6898 = vmatpush.msra.mxu0 0.0
    %6899 = vmatpush.msra.mxu0 0.0
    %6900 = vmatpush.msra.mxu0 0.0
    %6901 = vmatpush.msra.mxu0 0.0
    %6902 = vmatpush.msra.mxu0 0.0
    %6903 = vmatpush.msra.mxu0 0.0
    %6904 = vmatpush.msra.mxu0 0.0
    %6905 = vmatpush.msra.mxu0 0.0
    %6906 = vmatpush.msra.mxu0 %v6241
    %6907 = vmatpush.msra.mxu0 %v6223
    %6908 = vmatpush.msra.mxu0 %v6220
    %6909 = vmatpush.msra.mxu0 %v6217
    %6910 = vmatmul.f32.gmra.mxu0 %v6866
    %v6911 = vpop.f32.mrf.mxu0
    %v6912 = vadd.f32 0.0, %v6911
    %6913 = vmatmul.f32.gmra.mxu0 %v6869
    %v6914 = vpop.f32.mrf.mxu0
    %v6915 = vadd.f32 0.0, %v6914
    %6916 = vdwg.mxu0
    %6917 = vmatpush.msra.mxu0 0.0
    %6918 = vmatpush.msra.mxu0 0.0
    %6919 = vmatpush.msra.mxu0 0.0
    %6920 = vmatpush.msra.mxu0 0.0
    %6921 = vmatpush.msra.mxu0 0.0
    %6922 = vmatpush.msra.mxu0 0.0
    %6923 = vmatpush.msra.mxu0 0.0
    %6924 = vmatpush.msra.mxu0 0.0
    %6925 = vmatpush.msra.mxu0 0.0
    %6926 = vmatpush.msra.mxu0 0.0
    %6927 = vmatpush.msra.mxu0 0.0
    %6928 = vmatpush.msra.mxu0 0.0
    %6929 = vmatpush.msra.mxu0 %v6244
    %6930 = vmatpush.msra.mxu0 %v6224
    %6931 = vmatpush.msra.mxu0 %v6221
    %6932 = vmatpush.msra.mxu0 %v6218
    %6933 = vmatmul.f32.gmra.mxu0 %v6866
    %v6934 = vpop.f32.mrf.mxu0
    %v6935 = vadd.f32 0.0, %v6934
    %6936 = vmatmul.f32.gmra.mxu0 %v6869
    %v6937 = vpop.f32.mrf.mxu0
    %v6938 = vadd.f32 0.0, %v6937
    %6939 = vdwg.mxu0
    %s6940 = scalar_lea.vmem %s19, 1536
    %v6941 = vld [vmem:[%s6940] sm:$0xff]
    %v6942 = vld [vmem:[%s6940 + $0x8] sm:$0xff]
    %v6943 = vld [vmem:[%s6940 + $0x10] sm:$0xff]
    %v6944 = vld [vmem:[%s6940 + $0x18] sm:$0xff]
    %v6945 = vld [vmem:[%s6940 + $0x20] sm:$0xff]
    %v6946 = vld [vmem:[%s6940 + $0x28] sm:$0xff]
    %v6947 = vld [vmem:[%s6940 + $0x30] sm:$0xff]
    %v6948 = vld [vmem:[%s6940 + $0x38] sm:$0xff]
    %v6949 = vld [vmem:[%s6940 + $0x40] sm:$0xff]
    %v6950 = vld [vmem:[%s6940 + $0x48] sm:$0xff]
    %v6951 = vld [vmem:[%s6940 + $0x50] sm:$0xff]
    %v6952 = vld [vmem:[%s6940 + $0x58] sm:$0xff]
    %v6953 = vld [vmem:[%s6940 + $0x60] sm:$0xff]
    %v6954 = vld [vmem:[%s6940 + $0x68] sm:$0xff]
    %v6955 = vld [vmem:[%s6940 + $0x70] sm:$0xff]
    %v6956 = vld [vmem:[%s6940 + $0x78] sm:$0xff]
    %v6957 = vld [vmem:[%s6940 + $0x80] sm:$0xff]
    %v6958 = vld [vmem:[%s6940 + $0x88] sm:$0xff]
    %v6959 = vld [vmem:[%s6940 + $0x90] sm:$0xff]
    %v6960 = vld [vmem:[%s6940 + $0x98] sm:$0xff]
    %v6961 = vld [vmem:[%s6940 + $0xa0] sm:$0xff]
    %v6962 = vld [vmem:[%s6940 + $0xa8] sm:$0xff]
    %v6963 = vld [vmem:[%s6940 + $0xb0] sm:$0xff]
    %v6964 = vld [vmem:[%s6940 + $0xb8] sm:$0xff]
    %v6965 = vld [vmem:[%s6940 + $0xc0] sm:$0xff]
    %v6966 = vld [vmem:[%s6940 + $0xc8] sm:$0xff]
    %v6967 = vld [vmem:[%s6940 + $0xd0] sm:$0xff]
    %v6968 = vld [vmem:[%s6940 + $0xd8] sm:$0xff]
    %v6969 = vld [vmem:[%s6940 + $0xe0] sm:$0xff]
    %v6970 = vld [vmem:[%s6940 + $0xe8] sm:$0xff]
    %v6971 = vld [vmem:[%s6940 + $0xf0] sm:$0xff]
    %v6972 = vld [vmem:[%s6940 + $0xf8] sm:$0xff]
    %v6973 = vld [vmem:[%s6940 + $0x100] sm:$0xff]
    %v6974 = vld [vmem:[%s6940 + $0x108] sm:$0xff]
    %v6975 = vld [vmem:[%s6940 + $0x110] sm:$0xff]
    %v6976 = vld [vmem:[%s6940 + $0x118] sm:$0xff]
    %v6977 = vld [vmem:[%s6940 + $0x120] sm:$0xff]
    %v6978 = vld [vmem:[%s6940 + $0x128] sm:$0xff]
    %v6979 = vld [vmem:[%s6940 + $0x130] sm:$0xff]
    %v6980 = vld [vmem:[%s6940 + $0x138] sm:$0xff]
    %v6981 = vld [vmem:[%s6940 + $0x140] sm:$0xff]
    %v6982 = vld [vmem:[%s6940 + $0x148] sm:$0xff]
    %v6983 = vld [vmem:[%s6940 + $0x150] sm:$0xff]
    %v6984 = vld [vmem:[%s6940 + $0x158] sm:$0xff]
    %v6985 = vld [vmem:[%s6940 + $0x160] sm:$0xff]
    %v6986 = vld [vmem:[%s6940 + $0x168] sm:$0xff]
    %v6987 = vld [vmem:[%s6940 + $0x170] sm:$0xff]
    %v6988 = vld [vmem:[%s6940 + $0x178] sm:$0xff]
    %v6989 = vld [vmem:[%s6940 + $0x180] sm:$0xff]
    %v6990 = vld [vmem:[%s6940 + $0x188] sm:$0xff]
    %v6991 = vld [vmem:[%s6940 + $0x190] sm:$0xff]
    %v6992 = vld [vmem:[%s6940 + $0x198] sm:$0xff]
    %v6993 = vld [vmem:[%s6940 + $0x1a0] sm:$0xff]
    %v6994 = vld [vmem:[%s6940 + $0x1a8] sm:$0xff]
    %v6995 = vld [vmem:[%s6940 + $0x1b0] sm:$0xff]
    %v6996 = vld [vmem:[%s6940 + $0x1b8] sm:$0xff]
    %v6997 = vld [vmem:[%s6940 + $0x1c0] sm:$0xff]
    %v6998 = vld [vmem:[%s6940 + $0x1c8] sm:$0xff]
    %v6999 = vld [vmem:[%s6940 + $0x1d0] sm:$0xff]
    %v7000 = vld [vmem:[%s6940 + $0x1d8] sm:$0xff]
    %v7001 = vld [vmem:[%s6940 + $0x1e0] sm:$0xff]
    %v7002 = vld [vmem:[%s6940 + $0x1e8] sm:$0xff]
    %v7003 = vld [vmem:[%s6940 + $0x1f0] sm:$0xff]
    %v7004 = vld [vmem:[%s6940 + $0x1f8] sm:$0xff]
    %v7005 = vld [vmem:[%s6940 + $0x200] sm:$0xff]
    %v7006 = vld [vmem:[%s6940 + $0x208] sm:$0xff]
    %v7007 = vld [vmem:[%s6940 + $0x210] sm:$0xff]
    %v7008 = vld [vmem:[%s6940 + $0x218] sm:$0xff]
    %v7009 = vld [vmem:[%s6940 + $0x220] sm:$0xff]
    %v7010 = vld [vmem:[%s6940 + $0x228] sm:$0xff]
    %v7011 = vld [vmem:[%s6940 + $0x230] sm:$0xff]
    %v7012 = vld [vmem:[%s6940 + $0x238] sm:$0xff]
    %v7013 = vld [vmem:[%s6940 + $0x240] sm:$0xff]
    %v7014 = vld [vmem:[%s6940 + $0x248] sm:$0xff]
    %v7015 = vld [vmem:[%s6940 + $0x250] sm:$0xff]
    %v7016 = vld [vmem:[%s6940 + $0x258] sm:$0xff]
    %v7017 = vld [vmem:[%s6940 + $0x260] sm:$0xff]
    %v7018 = vld [vmem:[%s6940 + $0x268] sm:$0xff]
    %v7019 = vld [vmem:[%s6940 + $0x270] sm:$0xff]
    %v7020 = vld [vmem:[%s6940 + $0x278] sm:$0xff]
    %v7021 = vld [vmem:[%s6940 + $0x280] sm:$0xff]
    %v7022 = vld [vmem:[%s6940 + $0x288] sm:$0xff]
    %v7023 = vld [vmem:[%s6940 + $0x290] sm:$0xff]
    %v7024 = vld [vmem:[%s6940 + $0x298] sm:$0xff]
    %v7025 = vld [vmem:[%s6940 + $0x2a0] sm:$0xff]
    %v7026 = vld [vmem:[%s6940 + $0x2a8] sm:$0xff]
    %v7027 = vld [vmem:[%s6940 + $0x2b0] sm:$0xff]
    %v7028 = vld [vmem:[%s6940 + $0x2b8] sm:$0xff]
    %v7029 = vld [vmem:[%s6940 + $0x2c0] sm:$0xff]
    %v7030 = vld [vmem:[%s6940 + $0x2c8] sm:$0xff]
    %v7031 = vld [vmem:[%s6940 + $0x2d0] sm:$0xff]
    %v7032 = vld [vmem:[%s6940 + $0x2d8] sm:$0xff]
    %v7033 = vld [vmem:[%s6940 + $0x2e0] sm:$0xff]
    %v7034 = vld [vmem:[%s6940 + $0x2e8] sm:$0xff]
    %v7035 = vld [vmem:[%s6940 + $0x2f0] sm:$0xff]
    %v7036 = vld [vmem:[%s6940 + $0x2f8] sm:$0xff]
    %7037 = vmatpush.msra.mxu0 %v6971
    %7038 = vmatpush.msra.mxu0 %v6969
    %7039 = vmatpush.msra.mxu0 %v6967
    %7040 = vmatpush.msra.mxu0 %v6965
    %7041 = vmatpush.msra.mxu0 %v6963
    %7042 = vmatpush.msra.mxu0 %v6961
    %7043 = vmatpush.msra.mxu0 %v6959
    %7044 = vmatpush.msra.mxu0 %v6957
    %7045 = vmatpush.msra.mxu0 %v6955
    %7046 = vmatpush.msra.mxu0 %v6953
    %7047 = vmatpush.msra.mxu0 %v6951
    %7048 = vmatpush.msra.mxu0 %v6949
    %7049 = vmatpush.msra.mxu0 %v6947
    %7050 = vmatpush.msra.mxu0 %v6945
    %7051 = vmatpush.msra.mxu0 %v6943
    %7052 = vmatpush.msra.mxu0 %v6941
    %7053 = vmatmul.f32.gmra.mxu0 %v6889
    %v7054 = vpop.f32.mrf.mxu0
    %v7055 = vadd.f32 0.0, %v7054
    %7056 = vmatmul.f32.gmra.mxu0 %v6892
    %v7057 = vpop.f32.mrf.mxu0
    %v7058 = vadd.f32 0.0, %v7057
    %7059 = vdwg.mxu0
    %7060 = vmatpush.msra.mxu0 %v7003
    %7061 = vmatpush.msra.mxu0 %v7001
    %7062 = vmatpush.msra.mxu0 %v6999
    %7063 = vmatpush.msra.mxu0 %v6997
    %7064 = vmatpush.msra.mxu0 %v6995
    %7065 = vmatpush.msra.mxu0 %v6993
    %7066 = vmatpush.msra.mxu0 %v6991
    %7067 = vmatpush.msra.mxu0 %v6989
    %7068 = vmatpush.msra.mxu0 %v6987
    %7069 = vmatpush.msra.mxu0 %v6985
    %7070 = vmatpush.msra.mxu0 %v6983
    %7071 = vmatpush.msra.mxu0 %v6981
    %7072 = vmatpush.msra.mxu0 %v6979
    %7073 = vmatpush.msra.mxu0 %v6977
    %7074 = vmatpush.msra.mxu0 %v6975
    %7075 = vmatpush.msra.mxu0 %v6973
    %7076 = vmatmul.f32.gmra.mxu0 %v6912
    %v7077 = vpop.f32.mrf.mxu0
    %v7078 = vadd.f32 %v7055, %v7077
    %7079 = vmatmul.f32.gmra.mxu0 %v6915
    %v7080 = vpop.f32.mrf.mxu0
    %v7081 = vadd.f32 %v7058, %v7080
    %7082 = vdwg.mxu0
    %7083 = vmatpush.msra.mxu0 %v7035
    %7084 = vmatpush.msra.mxu0 %v7033
    %7085 = vmatpush.msra.mxu0 %v7031
    %7086 = vmatpush.msra.mxu0 %v7029
    %7087 = vmatpush.msra.mxu0 %v7027
    %7088 = vmatpush.msra.mxu0 %v7025
    %7089 = vmatpush.msra.mxu0 %v7023
    %7090 = vmatpush.msra.mxu0 %v7021
    %7091 = vmatpush.msra.mxu0 %v7019
    %7092 = vmatpush.msra.mxu0 %v7017
    %7093 = vmatpush.msra.mxu0 %v7015
    %7094 = vmatpush.msra.mxu0 %v7013
    %7095 = vmatpush.msra.mxu0 %v7011
    %7096 = vmatpush.msra.mxu0 %v7009
    %7097 = vmatpush.msra.mxu0 %v7007
    %7098 = vmatpush.msra.mxu0 %v7005
    %7099 = vmatmul.f32.gmra.mxu0 %v6935
    %v7100 = vpop.f32.mrf.mxu0
    %v7101 = vadd.f32 %v7078, %v7100
    %7102 = vmatmul.f32.gmra.mxu0 %v6938
    %v7103 = vpop.f32.mrf.mxu0
    %v7104 = vadd.f32 %v7081, %v7103
    %7105 = vdwg.mxu0
    %7106 = vmatpush.msra.mxu0 %v6972
    %7107 = vmatpush.msra.mxu0 %v6970
    %7108 = vmatpush.msra.mxu0 %v6968
    %7109 = vmatpush.msra.mxu0 %v6966
    %7110 = vmatpush.msra.mxu0 %v6964
    %7111 = vmatpush.msra.mxu0 %v6962
    %7112 = vmatpush.msra.mxu0 %v6960
    %7113 = vmatpush.msra.mxu0 %v6958
    %7114 = vmatpush.msra.mxu0 %v6956
    %7115 = vmatpush.msra.mxu0 %v6954
    %7116 = vmatpush.msra.mxu0 %v6952
    %7117 = vmatpush.msra.mxu0 %v6950
    %7118 = vmatpush.msra.mxu0 %v6948
    %7119 = vmatpush.msra.mxu0 %v6946
    %7120 = vmatpush.msra.mxu0 %v6944
    %7121 = vmatpush.msra.mxu0 %v6942
    %7122 = vmatmul.f32.gmra.mxu0 %v6889
    %v7123 = vpop.f32.mrf.mxu0
    %v7124 = vadd.f32 0.0, %v7123
    %7125 = vmatmul.f32.gmra.mxu0 %v6892
    %v7126 = vpop.f32.mrf.mxu0
    %v7127 = vadd.f32 0.0, %v7126
    %7128 = vdwg.mxu0
    %7129 = vmatpush.msra.mxu0 %v7004
    %7130 = vmatpush.msra.mxu0 %v7002
    %7131 = vmatpush.msra.mxu0 %v7000
    %7132 = vmatpush.msra.mxu0 %v6998
    %7133 = vmatpush.msra.mxu0 %v6996
    %7134 = vmatpush.msra.mxu0 %v6994
    %7135 = vmatpush.msra.mxu0 %v6992
    %7136 = vmatpush.msra.mxu0 %v6990
    %7137 = vmatpush.msra.mxu0 %v6988
    %7138 = vmatpush.msra.mxu0 %v6986
    %7139 = vmatpush.msra.mxu0 %v6984
    %7140 = vmatpush.msra.mxu0 %v6982
    %7141 = vmatpush.msra.mxu0 %v6980
    %7142 = vmatpush.msra.mxu0 %v6978
    %7143 = vmatpush.msra.mxu0 %v6976
    %7144 = vmatpush.msra.mxu0 %v6974
    %7145 = vmatmul.f32.gmra.mxu0 %v6912
    %v7146 = vpop.f32.mrf.mxu0
    %v7147 = vadd.f32 %v7124, %v7146
    %7148 = vmatmul.f32.gmra.mxu0 %v6915
    %v7149 = vpop.f32.mrf.mxu0
    %v7150 = vadd.f32 %v7127, %v7149
    %7151 = vdwg.mxu0
    %7152 = vmatpush.msra.mxu0 %v7036
    %7153 = vmatpush.msra.mxu0 %v7034
    %7154 = vmatpush.msra.mxu0 %v7032
    %7155 = vmatpush.msra.mxu0 %v7030
    %7156 = vmatpush.msra.mxu0 %v7028
    %7157 = vmatpush.msra.mxu0 %v7026
    %7158 = vmatpush.msra.mxu0 %v7024
    %7159 = vmatpush.msra.mxu0 %v7022
    %7160 = vmatpush.msra.mxu0 %v7020
    %7161 = vmatpush.msra.mxu0 %v7018
    %7162 = vmatpush.msra.mxu0 %v7016
    %7163 = vmatpush.msra.mxu0 %v7014
    %7164 = vmatpush.msra.mxu0 %v7012
    %7165 = vmatpush.msra.mxu0 %v7010
    %7166 = vmatpush.msra.mxu0 %v7008
    %7167 = vmatpush.msra.mxu0 %v7006
    %7168 = vmatmul.f32.gmra.mxu0 %v6935
    %v7169 = vpop.f32.mrf.mxu0
    %v7170 = vadd.f32 %v7147, %v7169
    %7171 = vmatmul.f32.gmra.mxu0 %v6938
    %v7172 = vpop.f32.mrf.mxu0
    %v7173 = vadd.f32 %v7150, %v7172
    %7174 = vdwg.mxu0
    %v7175 = vadd.f32 %v6788, %v7101
    %v7176 = vadd.f32 %v6857, %v7170
    %v7177 = vadd.f32 %v6791, %v7104
    %v7178 = vadd.f32 %v6860, %v7173
    %v7179 = vld [vmem:[#allocation14] sm:$0x3]
    %v7181 = vperm.slane %v7179, 0
    %v7182 = vperm.slane %v7179, 1
    %v7185 = vadd.f32 %v7175, %v7181
    %v7186 = vadd.f32 %v7176, %v7182
    %v7187 = vadd.f32 %v7177, %v7181
    %v7188 = vadd.f32 %v7178, %v7182
    %vm7189 = vcmp.gt.f32.partialorder %v7185, 0.0
    %vm7190 = vcmp.gt.f32.partialorder %v7186, 0.0
    %vm7191 = vcmp.gt.f32.partialorder %v7187, 0.0
    %vm7192 = vcmp.gt.f32.partialorder %v7188, 0.0
    %v7193 = vmin.f32 %v7185, 0.0
    %v7194 = vmin.f32 %v7186, 0.0
    %v7195 = vmin.f32 %v7187, 0.0
    %v7196 = vmin.f32 %v7188, 0.0
    %v7197 = vmul.f32 %v7193, 1.442695
    %v7198 = vpow.pop %v7197
    %v7199 = vmul.f32 %v7194, 1.442695
    %v7200 = vpow.pop %v7199
    %v7201 = vmul.f32 %v7195, 1.442695
    %v7202 = vpow.pop %v7201
    %v7203 = vmul.f32 %v7196, 1.442695
    %v7204 = vpow.pop %v7203
    %v7205 = vsub.f32 %v7198, 1.0
    %v7206 = vsub.f32 %v7200, 1.0
    %v7207 = vsub.f32 %v7202, 1.0
    %v7208 = vsub.f32 %v7204, 1.0
    %v7209 = vsel %vm7189, %v7185, %v7205
    %v7210 = vsel %vm7190, %v7186, %v7206
    %v7211 = vsel %vm7191, %v7187, %v7207
    %v7212 = vsel %vm7192, %v7188, %v7208
    %v7213 = vld [vmem:[%s25] sm:$0xff]
    %v7214 = vld [vmem:[%s25 + $0x8] sm:$0x3f]
    %7216 = vset.pattern.permute.xlu0 0
    %7217 = vperm.xlu0 %7216, %v7213
    %v7218 = vpop.permute.xlu0 %7217
    %7221 = vset.pattern.permute.xlu0 0
    %7222 = vperm.xlu0 %7221, %v7214
    %v7223 = vpop.permute.xlu0 %7222
    %v7225 = vmul.f32 %v7209, %v7218
    %v7226 = vmul.f32 %v7210, %v7218
    %v7227 = vmul.f32 %v7211, %v7223
    %v7228 = vmul.f32 %v7212, %v7223
    %7229 = vst [vmem:[#allocation4] sm:$0xff] %v7225
    %7230 = vst.msk [vmem:[#allocation4 + $0x8] sm:$0xff] %vm841, %v7226
    %7231 = vst [vmem:[#allocation4 + $0x10] sm:$0x3f] %v7227
    %vm7232 = vcmask 521216
    %7233 = vst.msk [vmem:[#allocation4 + $0x18] sm:$0x3f] %vm7232, %v7228
    %v7234 = vld [vmem:[#allocation4] sm:$0xff]
    %v7235 = vld [vmem:[#allocation4 + $0x8] sm:$0xff]
    %v7236 = vld [vmem:[#allocation4 + $0x10] sm:$0x3f]
    %v7237 = vld [vmem:[#allocation4 + $0x18] sm:$0x3f]
    %v7238 = vld [vmem:[%s31] sm:$0x3f]
    %vm7239 = vcmask 113664
    %v7241 = vsel %vm7239, %v7238, 0
    %vm7243 = vcmask 1045504
    %v7245 = vsel %vm7243, %v7236, 0
    %v7248 = vsel %vm7243, %v7237, 0
    %7250 = vmatpush.msra.mxu0 0.0
    %7251 = vmatpush.msra.mxu0 0.0
    %7252 = vmatpush.msra.mxu0 0.0
    %7253 = vmatpush.msra.mxu0 0.0
    %7254 = vmatpush.msra.mxu0 0.0
    %7255 = vmatpush.msra.mxu0 0.0
    %7256 = vmatpush.msra.mxu0 0.0
    %7257 = vmatpush.msra.mxu0 0.0
    %7258 = vmatpush.msra.mxu0 0.0
    %7259 = vmatpush.msra.mxu0 0.0
    %7260 = vmatpush.msra.mxu0 0.0
    %7261 = vmatpush.msra.mxu0 0.0
    %7262 = vmatpush.msra.mxu0 0.0
    %7263 = vmatpush.msra.mxu0 0.0
    %7264 = vmatpush.msra.mxu0 %v7245
    %7265 = vmatpush.msra.mxu0 %v7234
    %7266 = vmatmul.f32.gmra.mxu0 %v7241
    %v7267 = vpop.f32.mrf.mxu0
    %v7268 = vadd.f32 0.0, %v7267
    %7269 = vdwg.mxu0
    %7270 = vmatpush.msra.mxu0 0.0
    %7271 = vmatpush.msra.mxu0 0.0
    %7272 = vmatpush.msra.mxu0 0.0
    %7273 = vmatpush.msra.mxu0 0.0
    %7274 = vmatpush.msra.mxu0 0.0
    %7275 = vmatpush.msra.mxu0 0.0
    %7276 = vmatpush.msra.mxu0 0.0
    %7277 = vmatpush.msra.mxu0 0.0
    %7278 = vmatpush.msra.mxu0 0.0
    %7279 = vmatpush.msra.mxu0 0.0
    %7280 = vmatpush.msra.mxu0 0.0
    %7281 = vmatpush.msra.mxu0 0.0
    %7282 = vmatpush.msra.mxu0 0.0
    %7283 = vmatpush.msra.mxu0 0.0
    %7284 = vmatpush.msra.mxu0 %v7248
    %7285 = vmatpush.msra.mxu0 %v7235
    %7286 = vmatmul.f32.gmra.mxu0 %v7241
    %v7287 = vpop.f32.mrf.mxu0
    %v7288 = vadd.f32 0.0, %v7287
    %7289 = vdwg.mxu0
    %v7290 = vld [vmem:[%s27] sm:$0xff]
    %v7291 = vld [vmem:[%s27 + $0x8] sm:$0xff]
    %v7292 = vld [vmem:[%s27 + $0x10] sm:$0xff]
    %v7293 = vld [vmem:[%s27 + $0x18] sm:$0xff]
    %v7294 = vld [vmem:[%s27 + $0x20] sm:$0xff]
    %v7295 = vld [vmem:[%s27 + $0x28] sm:$0xff]
    %v7296 = vld [vmem:[%s27 + $0x30] sm:$0xff]
    %v7297 = vld [vmem:[%s27 + $0x38] sm:$0xff]
    %v7298 = vld [vmem:[%s27 + $0x40] sm:$0xff]
    %v7299 = vld [vmem:[%s27 + $0x48] sm:$0xff]
    %v7300 = vld [vmem:[%s27 + $0x50] sm:$0xff]
    %v7301 = vld [vmem:[%s27 + $0x58] sm:$0xff]
    %v7302 = vld [vmem:[%s27 + $0x60] sm:$0xff]
    %v7303 = vld [vmem:[%s27 + $0x68] sm:$0xff]
    %v7304 = vld [vmem:[%s27 + $0x70] sm:$0xff]
    %v7305 = vld [vmem:[%s27 + $0x78] sm:$0xff]
    %v7306 = vld [vmem:[%s27 + $0x80] sm:$0xff]
    %v7307 = vld [vmem:[%s27 + $0x88] sm:$0xff]
    %v7308 = vld [vmem:[%s27 + $0x90] sm:$0xff]
    %v7309 = vld [vmem:[%s27 + $0x98] sm:$0xff]
    %v7310 = vld [vmem:[%s27 + $0xa0] sm:$0xff]
    %v7311 = vld [vmem:[%s27 + $0xa8] sm:$0xff]
    %v7312 = vld [vmem:[%s27 + $0xb0] sm:$0xff]
    %v7313 = vld [vmem:[%s27 + $0xb8] sm:$0xff]
    %s7314 = scalar_lea.vmem %s31, 8
    %v7315 = vld [vmem:[%s7314] sm:$0x3f]
    %v7317 = vsel %vm7239, %v7315, 0
    %7319 = vmatpush.msra.mxu0 0.0
    %7320 = vmatpush.msra.mxu0 0.0
    %7321 = vmatpush.msra.mxu0 0.0
    %7322 = vmatpush.msra.mxu0 0.0
    %7323 = vmatpush.msra.mxu0 0.0
    %7324 = vmatpush.msra.mxu0 0.0
    %7325 = vmatpush.msra.mxu0 0.0
    %7326 = vmatpush.msra.mxu0 0.0
    %7327 = vmatpush.msra.mxu0 0.0
    %7328 = vmatpush.msra.mxu0 0.0
    %7329 = vmatpush.msra.mxu0 0.0
    %7330 = vmatpush.msra.mxu0 0.0
    %7331 = vmatpush.msra.mxu0 0.0
    %7332 = vmatpush.msra.mxu0 0.0
    %7333 = vmatpush.msra.mxu0 %v7245
    %7334 = vmatpush.msra.mxu0 %v7234
    %7335 = vmatmul.f32.gmra.mxu0 %v7317
    %v7336 = vpop.f32.mrf.mxu0
    %v7337 = vadd.f32 0.0, %v7336
    %7338 = vdwg.mxu0
    %7339 = vmatpush.msra.mxu0 0.0
    %7340 = vmatpush.msra.mxu0 0.0
    %7341 = vmatpush.msra.mxu0 0.0
    %7342 = vmatpush.msra.mxu0 0.0
    %7343 = vmatpush.msra.mxu0 0.0
    %7344 = vmatpush.msra.mxu0 0.0
    %7345 = vmatpush.msra.mxu0 0.0
    %7346 = vmatpush.msra.mxu0 0.0
    %7347 = vmatpush.msra.mxu0 0.0
    %7348 = vmatpush.msra.mxu0 0.0
    %7349 = vmatpush.msra.mxu0 0.0
    %7350 = vmatpush.msra.mxu0 0.0
    %7351 = vmatpush.msra.mxu0 0.0
    %7352 = vmatpush.msra.mxu0 0.0
    %7353 = vmatpush.msra.mxu0 %v7248
    %7354 = vmatpush.msra.mxu0 %v7235
    %7355 = vmatmul.f32.gmra.mxu0 %v7317
    %v7356 = vpop.f32.mrf.mxu0
    %v7357 = vadd.f32 0.0, %v7356
    %7358 = vdwg.mxu0
    %s7359 = scalar_lea.vmem %s27, 192
    %v7360 = vld [vmem:[%s7359] sm:$0xff]
    %v7361 = vld [vmem:[%s7359 + $0x8] sm:$0xff]
    %v7362 = vld [vmem:[%s7359 + $0x10] sm:$0xff]
    %v7363 = vld [vmem:[%s7359 + $0x18] sm:$0xff]
    %v7364 = vld [vmem:[%s7359 + $0x20] sm:$0xff]
    %v7365 = vld [vmem:[%s7359 + $0x28] sm:$0xff]
    %v7366 = vld [vmem:[%s7359 + $0x30] sm:$0xff]
    %v7367 = vld [vmem:[%s7359 + $0x38] sm:$0xff]
    %v7368 = vld [vmem:[%s7359 + $0x40] sm:$0xff]
    %v7369 = vld [vmem:[%s7359 + $0x48] sm:$0xff]
    %v7370 = vld [vmem:[%s7359 + $0x50] sm:$0xff]
    %v7371 = vld [vmem:[%s7359 + $0x58] sm:$0xff]
    %v7372 = vld [vmem:[%s7359 + $0x60] sm:$0xff]
    %v7373 = vld [vmem:[%s7359 + $0x68] sm:$0xff]
    %v7374 = vld [vmem:[%s7359 + $0x70] sm:$0xff]
    %v7375 = vld [vmem:[%s7359 + $0x78] sm:$0xff]
    %v7376 = vld [vmem:[%s7359 + $0x80] sm:$0xff]
    %v7377 = vld [vmem:[%s7359 + $0x88] sm:$0xff]
    %v7378 = vld [vmem:[%s7359 + $0x90] sm:$0xff]
    %v7379 = vld [vmem:[%s7359 + $0x98] sm:$0xff]
    %v7380 = vld [vmem:[%s7359 + $0xa0] sm:$0xff]
    %v7381 = vld [vmem:[%s7359 + $0xa8] sm:$0xff]
    %v7382 = vld [vmem:[%s7359 + $0xb0] sm:$0xff]
    %v7383 = vld [vmem:[%s7359 + $0xb8] sm:$0xff]
    %v7385 = vsel %vm841, %v7357, 0
    %7387 = vmatpush.msra.mxu0 %v7375
    %7388 = vmatpush.msra.mxu0 %v7374
    %7389 = vmatpush.msra.mxu0 %v7373
    %7390 = vmatpush.msra.mxu0 %v7372
    %7391 = vmatpush.msra.mxu0 %v7371
    %7392 = vmatpush.msra.mxu0 %v7370
    %7393 = vmatpush.msra.mxu0 %v7369
    %7394 = vmatpush.msra.mxu0 %v7368
    %7395 = vmatpush.msra.mxu0 %v7367
    %7396 = vmatpush.msra.mxu0 %v7366
    %7397 = vmatpush.msra.mxu0 %v7365
    %7398 = vmatpush.msra.mxu0 %v7364
    %7399 = vmatpush.msra.mxu0 %v7363
    %7400 = vmatpush.msra.mxu0 %v7362
    %7401 = vmatpush.msra.mxu0 %v7361
    %7402 = vmatpush.msra.mxu0 %v7360
    %7403 = vmatmul.f32.gmra.mxu0 %v7337
    %v7404 = vpop.f32.mrf.mxu0
    %v7405 = vadd.f32 0.0, %v7404
    %7406 = vdwg.mxu0
    %7407 = vmatpush.msra.mxu0 0.0
    %7408 = vmatpush.msra.mxu0 0.0
    %7409 = vmatpush.msra.mxu0 0.0
    %7410 = vmatpush.msra.mxu0 0.0
    %7411 = vmatpush.msra.mxu0 0.0
    %7412 = vmatpush.msra.mxu0 0.0
    %7413 = vmatpush.msra.mxu0 0.0
    %7414 = vmatpush.msra.mxu0 0.0
    %7415 = vmatpush.msra.mxu0 %v7383
    %7416 = vmatpush.msra.mxu0 %v7382
    %7417 = vmatpush.msra.mxu0 %v7381
    %7418 = vmatpush.msra.mxu0 %v7380
    %7419 = vmatpush.msra.mxu0 %v7379
    %7420 = vmatpush.msra.mxu0 %v7378
    %7421 = vmatpush.msra.mxu0 %v7377
    %7422 = vmatpush.msra.mxu0 %v7376
    %7423 = vmatmul.f32.gmra.mxu0 %v7385
    %v7424 = vpop.f32.mrf.mxu0
    %v7425 = vadd.f32 %v7405, %v7424
    %7426 = vdwg.mxu0
    %v7428 = vsel %vm841, %v7288, 0
    %7430 = vmatpush.msra.mxu0 %v7305
    %7431 = vmatpush.msra.mxu0 %v7304
    %7432 = vmatpush.msra.mxu0 %v7303
    %7433 = vmatpush.msra.mxu0 %v7302
    %7434 = vmatpush.msra.mxu0 %v7301
    %7435 = vmatpush.msra.mxu0 %v7300
    %7436 = vmatpush.msra.mxu0 %v7299
    %7437 = vmatpush.msra.mxu0 %v7298
    %7438 = vmatpush.msra.mxu0 %v7297
    %7439 = vmatpush.msra.mxu0 %v7296
    %7440 = vmatpush.msra.mxu0 %v7295
    %7441 = vmatpush.msra.mxu0 %v7294
    %7442 = vmatpush.msra.mxu0 %v7293
    %7443 = vmatpush.msra.mxu0 %v7292
    %7444 = vmatpush.msra.mxu0 %v7291
    %7445 = vmatpush.msra.mxu0 %v7290
    %7446 = vmatmul.f32.gmra.mxu0 %v7268
    %v7447 = vpop.f32.mrf.mxu0
    %v7448 = vadd.f32 %v7425, %v7447
    %7449 = vdwg.mxu0
    %7450 = vmatpush.msra.mxu0 0.0
    %7451 = vmatpush.msra.mxu0 0.0
    %7452 = vmatpush.msra.mxu0 0.0
    %7453 = vmatpush.msra.mxu0 0.0
    %7454 = vmatpush.msra.mxu0 0.0
    %7455 = vmatpush.msra.mxu0 0.0
    %7456 = vmatpush.msra.mxu0 0.0
    %7457 = vmatpush.msra.mxu0 0.0
    %7458 = vmatpush.msra.mxu0 %v7313
    %7459 = vmatpush.msra.mxu0 %v7312
    %7460 = vmatpush.msra.mxu0 %v7311
    %7461 = vmatpush.msra.mxu0 %v7310
    %7462 = vmatpush.msra.mxu0 %v7309
    %7463 = vmatpush.msra.mxu0 %v7308
    %7464 = vmatpush.msra.mxu0 %v7307
    %7465 = vmatpush.msra.mxu0 %v7306
    %7466 = vmatmul.f32.gmra.mxu0 %v7428
    %v7467 = vpop.f32.mrf.mxu0
    %v7468 = vadd.f32 %v7448, %v7467
    %7469 = vdwg.mxu0
    %s7470 = scalar_lea.vmem %s31, 16
    %v7471 = vld [vmem:[%s7470] sm:$0x3f]
    %v7473 = vsel %vm7239, %v7471, 0
    %7475 = vmatpush.msra.mxu0 0.0
    %7476 = vmatpush.msra.mxu0 0.0
    %7477 = vmatpush.msra.mxu0 0.0
    %7478 = vmatpush.msra.mxu0 0.0
    %7479 = vmatpush.msra.mxu0 0.0
    %7480 = vmatpush.msra.mxu0 0.0
    %7481 = vmatpush.msra.mxu0 0.0
    %7482 = vmatpush.msra.mxu0 0.0
    %7483 = vmatpush.msra.mxu0 0.0
    %7484 = vmatpush.msra.mxu0 0.0
    %7485 = vmatpush.msra.mxu0 0.0
    %7486 = vmatpush.msra.mxu0 0.0
    %7487 = vmatpush.msra.mxu0 0.0
    %7488 = vmatpush.msra.mxu0 0.0
    %7489 = vmatpush.msra.mxu0 %v7245
    %7490 = vmatpush.msra.mxu0 %v7234
    %7491 = vmatmul.f32.gmra.mxu0 %v7473
    %v7492 = vpop.f32.mrf.mxu0
    %v7493 = vadd.f32 0.0, %v7492
    %7494 = vdwg.mxu0
    %7495 = vmatpush.msra.mxu0 0.0
    %7496 = vmatpush.msra.mxu0 0.0
    %7497 = vmatpush.msra.mxu0 0.0
    %7498 = vmatpush.msra.mxu0 0.0
    %7499 = vmatpush.msra.mxu0 0.0
    %7500 = vmatpush.msra.mxu0 0.0
    %7501 = vmatpush.msra.mxu0 0.0
    %7502 = vmatpush.msra.mxu0 0.0
    %7503 = vmatpush.msra.mxu0 0.0
    %7504 = vmatpush.msra.mxu0 0.0
    %7505 = vmatpush.msra.mxu0 0.0
    %7506 = vmatpush.msra.mxu0 0.0
    %7507 = vmatpush.msra.mxu0 0.0
    %7508 = vmatpush.msra.mxu0 0.0
    %7509 = vmatpush.msra.mxu0 %v7248
    %7510 = vmatpush.msra.mxu0 %v7235
    %7511 = vmatmul.f32.gmra.mxu0 %v7473
    %v7512 = vpop.f32.mrf.mxu0
    %v7513 = vadd.f32 0.0, %v7512
    %7514 = vdwg.mxu0
    %s7515 = scalar_lea.vmem %s27, 384
    %v7516 = vld [vmem:[%s7515] sm:$0xff]
    %v7517 = vld [vmem:[%s7515 + $0x8] sm:$0xff]
    %v7518 = vld [vmem:[%s7515 + $0x10] sm:$0xff]
    %v7519 = vld [vmem:[%s7515 + $0x18] sm:$0xff]
    %v7520 = vld [vmem:[%s7515 + $0x20] sm:$0xff]
    %v7521 = vld [vmem:[%s7515 + $0x28] sm:$0xff]
    %v7522 = vld [vmem:[%s7515 + $0x30] sm:$0xff]
    %v7523 = vld [vmem:[%s7515 + $0x38] sm:$0xff]
    %v7524 = vld [vmem:[%s7515 + $0x40] sm:$0xff]
    %v7525 = vld [vmem:[%s7515 + $0x48] sm:$0xff]
    %v7526 = vld [vmem:[%s7515 + $0x50] sm:$0xff]
    %v7527 = vld [vmem:[%s7515 + $0x58] sm:$0xff]
    %v7528 = vld [vmem:[%s7515 + $0x60] sm:$0xff]
    %v7529 = vld [vmem:[%s7515 + $0x68] sm:$0xff]
    %v7530 = vld [vmem:[%s7515 + $0x70] sm:$0xff]
    %v7531 = vld [vmem:[%s7515 + $0x78] sm:$0xff]
    %v7532 = vld [vmem:[%s7515 + $0x80] sm:$0xff]
    %v7533 = vld [vmem:[%s7515 + $0x88] sm:$0xff]
    %v7534 = vld [vmem:[%s7515 + $0x90] sm:$0xff]
    %v7535 = vld [vmem:[%s7515 + $0x98] sm:$0xff]
    %v7536 = vld [vmem:[%s7515 + $0xa0] sm:$0xff]
    %v7537 = vld [vmem:[%s7515 + $0xa8] sm:$0xff]
    %v7538 = vld [vmem:[%s7515 + $0xb0] sm:$0xff]
    %v7539 = vld [vmem:[%s7515 + $0xb8] sm:$0xff]
    %v7541 = vsel %vm841, %v7513, 0
    %7543 = vmatpush.msra.mxu0 %v7531
    %7544 = vmatpush.msra.mxu0 %v7530
    %7545 = vmatpush.msra.mxu0 %v7529
    %7546 = vmatpush.msra.mxu0 %v7528
    %7547 = vmatpush.msra.mxu0 %v7527
    %7548 = vmatpush.msra.mxu0 %v7526
    %7549 = vmatpush.msra.mxu0 %v7525
    %7550 = vmatpush.msra.mxu0 %v7524
    %7551 = vmatpush.msra.mxu0 %v7523
    %7552 = vmatpush.msra.mxu0 %v7522
    %7553 = vmatpush.msra.mxu0 %v7521
    %7554 = vmatpush.msra.mxu0 %v7520
    %7555 = vmatpush.msra.mxu0 %v7519
    %7556 = vmatpush.msra.mxu0 %v7518
    %7557 = vmatpush.msra.mxu0 %v7517
    %7558 = vmatpush.msra.mxu0 %v7516
    %7559 = vmatmul.f32.gmra.mxu0 %v7493
    %v7560 = vpop.f32.mrf.mxu0
    %v7561 = vadd.f32 0.0, %v7560
    %7562 = vdwg.mxu0
    %7563 = vmatpush.msra.mxu0 0.0
    %7564 = vmatpush.msra.mxu0 0.0
    %7565 = vmatpush.msra.mxu0 0.0
    %7566 = vmatpush.msra.mxu0 0.0
    %7567 = vmatpush.msra.mxu0 0.0
    %7568 = vmatpush.msra.mxu0 0.0
    %7569 = vmatpush.msra.mxu0 0.0
    %7570 = vmatpush.msra.mxu0 0.0
    %7571 = vmatpush.msra.mxu0 %v7539
    %7572 = vmatpush.msra.mxu0 %v7538
    %7573 = vmatpush.msra.mxu0 %v7537
    %7574 = vmatpush.msra.mxu0 %v7536
    %7575 = vmatpush.msra.mxu0 %v7535
    %7576 = vmatpush.msra.mxu0 %v7534
    %7577 = vmatpush.msra.mxu0 %v7533
    %7578 = vmatpush.msra.mxu0 %v7532
    %7579 = vmatmul.f32.gmra.mxu0 %v7541
    %v7580 = vpop.f32.mrf.mxu0
    %v7581 = vadd.f32 %v7561, %v7580
    %7582 = vdwg.mxu0
    %v7583 = vadd.f32 %v7468, %v7581
    %v7584 = vld [vmem:[%s29] sm:$0x1]
    %v7586 = vperm.slane %v7584, 0
    %v7588 = vadd.f32 %v7583, %v7586
    %vm7589 = vcmp.gt.f32.partialorder %v7588, 0.0
    %v7590 = vmin.f32 %v7588, 0.0
    %v7591 = vmul.f32 %v7590, 1.442695
    %v7592 = vpow.pop %v7591
    %v7593 = vsub.f32 %v7592, 1.0
    %v7594 = vsel %vm7589, %v7588, %v7593
    %v7595 = vld [vmem:[%s33] sm:$0xff]
    %v7596 = vld [vmem:[%s33 + $0x8] sm:$0xff]
    %v7597 = vld [vmem:[%s33 + $0x10] sm:$0xff]
    %v7598 = vld [vmem:[%s33 + $0x18] sm:$0xff]
    %v7599 = vld [vmem:[%s33 + $0x20] sm:$0xff]
    %v7600 = vld [vmem:[%s33 + $0x28] sm:$0xff]
    %v7601 = vld [vmem:[%s33 + $0x30] sm:$0xff]
    %v7602 = vld [vmem:[%s33 + $0x38] sm:$0xff]
    %v7603 = vld [vmem:[%s33 + $0x40] sm:$0xff]
    %v7604 = vld [vmem:[%s33 + $0x48] sm:$0xff]
    %v7605 = vld [vmem:[%s33 + $0x50] sm:$0xff]
    %v7606 = vld [vmem:[%s33 + $0x58] sm:$0xff]
    %v7607 = vld [vmem:[%s33 + $0x60] sm:$0xff]
    %v7608 = vld [vmem:[%s33 + $0x68] sm:$0xff]
    %v7609 = vld [vmem:[%s33 + $0x70] sm:$0xff]
    %v7610 = vld [vmem:[%s33 + $0x78] sm:$0xff]
    %v7611 = vld [vmem:[%s33 + $0x80] sm:$0xff]
    %v7612 = vld [vmem:[%s33 + $0x88] sm:$0xff]
    %v7613 = vld [vmem:[%s33 + $0x90] sm:$0xff]
    %v7614 = vld [vmem:[%s33 + $0x98] sm:$0xff]
    %v7615 = vld [vmem:[%s33 + $0xa0] sm:$0xff]
    %v7616 = vld [vmem:[%s33 + $0xa8] sm:$0xff]
    %v7617 = vld [vmem:[%s33 + $0xb0] sm:$0xff]
    %v7618 = vld [vmem:[%s33 + $0xb8] sm:$0xff]
    %s7619 = scalar_lea.vmem %s33, 192
    %v7620 = vld [vmem:[%s7619] sm:$0xff]
    %v7621 = vld [vmem:[%s7619 + $0x8] sm:$0xff]
    %v7622 = vld [vmem:[%s7619 + $0x10] sm:$0xff]
    %v7623 = vld [vmem:[%s7619 + $0x18] sm:$0xff]
    %v7624 = vld [vmem:[%s7619 + $0x20] sm:$0xff]
    %v7625 = vld [vmem:[%s7619 + $0x28] sm:$0xff]
    %v7626 = vld [vmem:[%s7619 + $0x30] sm:$0xff]
    %v7627 = vld [vmem:[%s7619 + $0x38] sm:$0xff]
    %v7628 = vld [vmem:[%s7619 + $0x40] sm:$0xff]
    %v7629 = vld [vmem:[%s7619 + $0x48] sm:$0xff]
    %v7630 = vld [vmem:[%s7619 + $0x50] sm:$0xff]
    %v7631 = vld [vmem:[%s7619 + $0x58] sm:$0xff]
    %v7632 = vld [vmem:[%s7619 + $0x60] sm:$0xff]
    %v7633 = vld [vmem:[%s7619 + $0x68] sm:$0xff]
    %v7634 = vld [vmem:[%s7619 + $0x70] sm:$0xff]
    %v7635 = vld [vmem:[%s7619 + $0x78] sm:$0xff]
    %v7636 = vld [vmem:[%s7619 + $0x80] sm:$0xff]
    %v7637 = vld [vmem:[%s7619 + $0x88] sm:$0xff]
    %v7638 = vld [vmem:[%s7619 + $0x90] sm:$0xff]
    %v7639 = vld [vmem:[%s7619 + $0x98] sm:$0xff]
    %v7640 = vld [vmem:[%s7619 + $0xa0] sm:$0xff]
    %v7641 = vld [vmem:[%s7619 + $0xa8] sm:$0xff]
    %v7642 = vld [vmem:[%s7619 + $0xb0] sm:$0xff]
    %v7643 = vld [vmem:[%s7619 + $0xb8] sm:$0xff]
    %v7645 = vrot.slane %v7594, 2
    %vm7646 = vcmask 785408
    %v7647 = vsel %vm7646, %v7645, 0
    %7649 = vmatpush.msra.mxu0 0.0
    %7650 = vmatpush.msra.mxu0 0.0
    %7651 = vmatpush.msra.mxu0 0.0
    %7652 = vmatpush.msra.mxu0 0.0
    %7653 = vmatpush.msra.mxu0 %v7642
    %7654 = vmatpush.msra.mxu0 %v7640
    %7655 = vmatpush.msra.mxu0 %v7638
    %7656 = vmatpush.msra.mxu0 %v7636
    %7657 = vmatpush.msra.mxu0 %v7634
    %7658 = vmatpush.msra.mxu0 %v7632
    %7659 = vmatpush.msra.mxu0 %v7630
    %7660 = vmatpush.msra.mxu0 %v7628
    %7661 = vmatpush.msra.mxu0 %v7626
    %7662 = vmatpush.msra.mxu0 %v7624
    %7663 = vmatpush.msra.mxu0 %v7622
    %7664 = vmatpush.msra.mxu0 %v7620
    %7665 = vmatmul.f32.gmra.mxu0 %v7647
    %v7666 = vpop.f32.mrf.mxu0
    %v7667 = vadd.f32 0.0, %v7666
    %7668 = vdwg.mxu0
    %7669 = vmatpush.msra.mxu0 0.0
    %7670 = vmatpush.msra.mxu0 0.0
    %7671 = vmatpush.msra.mxu0 0.0
    %7672 = vmatpush.msra.mxu0 0.0
    %7673 = vmatpush.msra.mxu0 %v7643
    %7674 = vmatpush.msra.mxu0 %v7641
    %7675 = vmatpush.msra.mxu0 %v7639
    %7676 = vmatpush.msra.mxu0 %v7637
    %7677 = vmatpush.msra.mxu0 %v7635
    %7678 = vmatpush.msra.mxu0 %v7633
    %7679 = vmatpush.msra.mxu0 %v7631
    %7680 = vmatpush.msra.mxu0 %v7629
    %7681 = vmatpush.msra.mxu0 %v7627
    %7682 = vmatpush.msra.mxu0 %v7625
    %7683 = vmatpush.msra.mxu0 %v7623
    %7684 = vmatpush.msra.mxu0 %v7621
    %7685 = vmatmul.f32.gmra.mxu0 %v7647
    %v7686 = vpop.f32.mrf.mxu0
    %v7687 = vadd.f32 0.0, %v7686
    %7688 = vdwg.mxu0
    %v7689 = vsel %vm7646, %v7594, 0
    %7691 = vmatpush.msra.mxu0 0.0
    %7692 = vmatpush.msra.mxu0 0.0
    %7693 = vmatpush.msra.mxu0 0.0
    %7694 = vmatpush.msra.mxu0 0.0
    %7695 = vmatpush.msra.mxu0 %v7617
    %7696 = vmatpush.msra.mxu0 %v7615
    %7697 = vmatpush.msra.mxu0 %v7613
    %7698 = vmatpush.msra.mxu0 %v7611
    %7699 = vmatpush.msra.mxu0 %v7609
    %7700 = vmatpush.msra.mxu0 %v7607
    %7701 = vmatpush.msra.mxu0 %v7605
    %7702 = vmatpush.msra.mxu0 %v7603
    %7703 = vmatpush.msra.mxu0 %v7601
    %7704 = vmatpush.msra.mxu0 %v7599
    %7705 = vmatpush.msra.mxu0 %v7597
    %7706 = vmatpush.msra.mxu0 %v7595
    %7707 = vmatmul.f32.gmra.mxu0 %v7689
    %v7708 = vpop.f32.mrf.mxu0
    %v7709 = vadd.f32 %v7667, %v7708
    %7710 = vdwg.mxu0
    %7711 = vmatpush.msra.mxu0 0.0
    %7712 = vmatpush.msra.mxu0 0.0
    %7713 = vmatpush.msra.mxu0 0.0
    %7714 = vmatpush.msra.mxu0 0.0
    %7715 = vmatpush.msra.mxu0 %v7618
    %7716 = vmatpush.msra.mxu0 %v7616
    %7717 = vmatpush.msra.mxu0 %v7614
    %7718 = vmatpush.msra.mxu0 %v7612
    %7719 = vmatpush.msra.mxu0 %v7610
    %7720 = vmatpush.msra.mxu0 %v7608
    %7721 = vmatpush.msra.mxu0 %v7606
    %7722 = vmatpush.msra.mxu0 %v7604
    %7723 = vmatpush.msra.mxu0 %v7602
    %7724 = vmatpush.msra.mxu0 %v7600
    %7725 = vmatpush.msra.mxu0 %v7598
    %7726 = vmatpush.msra.mxu0 %v7596
    %7727 = vmatmul.f32.gmra.mxu0 %v7689
    %v7728 = vpop.f32.mrf.mxu0
    %v7729 = vadd.f32 %v7687, %v7728
    %7730 = vdwg.mxu0
    %s7731 = scalar_lea.vmem %s33, 384
    %v7732 = vld [vmem:[%s7731] sm:$0xff]
    %v7733 = vld [vmem:[%s7731 + $0x8] sm:$0xff]
    %v7734 = vld [vmem:[%s7731 + $0x10] sm:$0xff]
    %v7735 = vld [vmem:[%s7731 + $0x18] sm:$0xff]
    %v7736 = vld [vmem:[%s7731 + $0x20] sm:$0xff]
    %v7737 = vld [vmem:[%s7731 + $0x28] sm:$0xff]
    %v7738 = vld [vmem:[%s7731 + $0x30] sm:$0xff]
    %v7739 = vld [vmem:[%s7731 + $0x38] sm:$0xff]
    %v7740 = vld [vmem:[%s7731 + $0x40] sm:$0xff]
    %v7741 = vld [vmem:[%s7731 + $0x48] sm:$0xff]
    %v7742 = vld [vmem:[%s7731 + $0x50] sm:$0xff]
    %v7743 = vld [vmem:[%s7731 + $0x58] sm:$0xff]
    %v7744 = vld [vmem:[%s7731 + $0x60] sm:$0xff]
    %v7745 = vld [vmem:[%s7731 + $0x68] sm:$0xff]
    %v7746 = vld [vmem:[%s7731 + $0x70] sm:$0xff]
    %v7747 = vld [vmem:[%s7731 + $0x78] sm:$0xff]
    %v7748 = vld [vmem:[%s7731 + $0x80] sm:$0xff]
    %v7749 = vld [vmem:[%s7731 + $0x88] sm:$0xff]
    %v7750 = vld [vmem:[%s7731 + $0x90] sm:$0xff]
    %v7751 = vld [vmem:[%s7731 + $0x98] sm:$0xff]
    %v7752 = vld [vmem:[%s7731 + $0xa0] sm:$0xff]
    %v7753 = vld [vmem:[%s7731 + $0xa8] sm:$0xff]
    %v7754 = vld [vmem:[%s7731 + $0xb0] sm:$0xff]
    %v7755 = vld [vmem:[%s7731 + $0xb8] sm:$0xff]
    %v7756 = vrot.slane %v7594, 4
    %v7757 = vsel %vm7646, %v7756, 0
    %7759 = vmatpush.msra.mxu0 0.0
    %7760 = vmatpush.msra.mxu0 0.0
    %7761 = vmatpush.msra.mxu0 0.0
    %7762 = vmatpush.msra.mxu0 0.0
    %7763 = vmatpush.msra.mxu0 %v7754
    %7764 = vmatpush.msra.mxu0 %v7752
    %7765 = vmatpush.msra.mxu0 %v7750
    %7766 = vmatpush.msra.mxu0 %v7748
    %7767 = vmatpush.msra.mxu0 %v7746
    %7768 = vmatpush.msra.mxu0 %v7744
    %7769 = vmatpush.msra.mxu0 %v7742
    %7770 = vmatpush.msra.mxu0 %v7740
    %7771 = vmatpush.msra.mxu0 %v7738
    %7772 = vmatpush.msra.mxu0 %v7736
    %7773 = vmatpush.msra.mxu0 %v7734
    %7774 = vmatpush.msra.mxu0 %v7732
    %7775 = vmatmul.f32.gmra.mxu0 %v7757
    %v7776 = vpop.f32.mrf.mxu0
    %v7777 = vadd.f32 0.0, %v7776
    %7778 = vdwg.mxu0
    %7779 = vmatpush.msra.mxu0 0.0
    %7780 = vmatpush.msra.mxu0 0.0
    %7781 = vmatpush.msra.mxu0 0.0
    %7782 = vmatpush.msra.mxu0 0.0
    %7783 = vmatpush.msra.mxu0 %v7755
    %7784 = vmatpush.msra.mxu0 %v7753
    %7785 = vmatpush.msra.mxu0 %v7751
    %7786 = vmatpush.msra.mxu0 %v7749
    %7787 = vmatpush.msra.mxu0 %v7747
    %7788 = vmatpush.msra.mxu0 %v7745
    %7789 = vmatpush.msra.mxu0 %v7743
    %7790 = vmatpush.msra.mxu0 %v7741
    %7791 = vmatpush.msra.mxu0 %v7739
    %7792 = vmatpush.msra.mxu0 %v7737
    %7793 = vmatpush.msra.mxu0 %v7735
    %7794 = vmatpush.msra.mxu0 %v7733
    %7795 = vmatmul.f32.gmra.mxu0 %v7757
    %v7796 = vpop.f32.mrf.mxu0
    %v7797 = vadd.f32 0.0, %v7796
    %7798 = vdwg.mxu0
    %v7799 = vadd.f32 %v7709, %v7777
    %v7800 = vadd.f32 %v7729, %v7797
    %v7801 = vld [vmem:[#allocation17] sm:$0x3]
    %v7803 = vperm.slane %v7801, 0
    %v7804 = vperm.slane %v7801, 1
    %v7807 = vadd.f32 %v7799, %v7803
    %v7808 = vadd.f32 %v7800, %v7804
    %vm7809 = vcmp.gt.f32.partialorder %v7807, 0.0
    %vm7810 = vcmp.gt.f32.partialorder %v7808, 0.0
    %v7811 = vmin.f32 %v7807, 0.0
    %v7812 = vmin.f32 %v7808, 0.0
    %v7813 = vmul.f32 %v7811, 1.442695
    %v7814 = vpow.pop %v7813
    %v7815 = vmul.f32 %v7812, 1.442695
    %v7816 = vpow.pop %v7815
    %v7817 = vsub.f32 %v7814, 1.0
    %v7818 = vsub.f32 %v7816, 1.0
    %v7819 = vsel %vm7809, %v7807, %v7817
    %v7820 = vsel %vm7810, %v7808, %v7818
    %v7821 = vld [vmem:[%s37] sm:$0xff]
    %v7822 = vld [vmem:[%s37 + $0x8] sm:$0xff]
    %v7823 = vld [vmem:[%s37 + $0x10] sm:$0xff]
    %v7824 = vld [vmem:[%s37 + $0x18] sm:$0xff]
    %v7825 = vld [vmem:[%s37 + $0x20] sm:$0xff]
    %v7826 = vld [vmem:[%s37 + $0x28] sm:$0xff]
    %v7827 = vld [vmem:[%s37 + $0x30] sm:$0xff]
    %v7828 = vld [vmem:[%s37 + $0x38] sm:$0xff]
    %v7829 = vld [vmem:[%s37 + $0x40] sm:$0xff]
    %v7830 = vld [vmem:[%s37 + $0x48] sm:$0xff]
    %v7831 = vld [vmem:[%s37 + $0x50] sm:$0xff]
    %v7832 = vld [vmem:[%s37 + $0x58] sm:$0xff]
    %v7833 = vld [vmem:[%s37 + $0x60] sm:$0xff]
    %v7834 = vld [vmem:[%s37 + $0x68] sm:$0xff]
    %v7835 = vld [vmem:[%s37 + $0x70] sm:$0xff]
    %v7836 = vld [vmem:[%s37 + $0x78] sm:$0xff]
    %v7837 = vld [vmem:[%s37 + $0x80] sm:$0xff]
    %v7838 = vld [vmem:[%s37 + $0x88] sm:$0xff]
    %v7839 = vld [vmem:[%s37 + $0x90] sm:$0xff]
    %v7840 = vld [vmem:[%s37 + $0x98] sm:$0xff]
    %v7841 = vld [vmem:[%s37 + $0xa0] sm:$0xff]
    %v7842 = vld [vmem:[%s37 + $0xa8] sm:$0xff]
    %v7843 = vld [vmem:[%s37 + $0xb0] sm:$0xff]
    %v7844 = vld [vmem:[%s37 + $0xb8] sm:$0xff]
    %v7845 = vld [vmem:[%s37 + $0xc0] sm:$0xff]
    %v7846 = vld [vmem:[%s37 + $0xc8] sm:$0xff]
    %v7847 = vld [vmem:[%s37 + $0xd0] sm:$0xff]
    %v7848 = vld [vmem:[%s37 + $0xd8] sm:$0xff]
    %v7849 = vld [vmem:[%s37 + $0xe0] sm:$0xff]
    %v7850 = vld [vmem:[%s37 + $0xe8] sm:$0xff]
    %v7851 = vld [vmem:[%s37 + $0xf0] sm:$0xff]
    %v7852 = vld [vmem:[%s37 + $0xf8] sm:$0xff]
    %v7853 = vld [vmem:[#allocation20] sm:$0x1]
    %v7855 = vperm.slane %v7853, 0
    %7857 = vmatpush.msra.mxu0 %v7836
    %7858 = vmatpush.msra.mxu0 %v7835
    %7859 = vmatpush.msra.mxu0 %v7834
    %7860 = vmatpush.msra.mxu0 %v7833
    %7861 = vmatpush.msra.mxu0 %v7832
    %7862 = vmatpush.msra.mxu0 %v7831
    %7863 = vmatpush.msra.mxu0 %v7830
    %7864 = vmatpush.msra.mxu0 %v7829
    %7865 = vmatpush.msra.mxu0 %v7828
    %7866 = vmatpush.msra.mxu0 %v7827
    %7867 = vmatpush.msra.mxu0 %v7826
    %7868 = vmatpush.msra.mxu0 %v7825
    %7869 = vmatpush.msra.mxu0 %v7824
    %7870 = vmatpush.msra.mxu0 %v7823
    %7871 = vmatpush.msra.mxu0 %v7822
    %7872 = vmatpush.msra.mxu0 %v7821
    %7873 = vmatmul.f32.gmra.mxu0 %v7819
    %v7874 = vpop.f32.mrf.mxu0
    %v7875 = vadd.f32 %v7855, %v7874
    %7876 = vdwg.mxu0
    %7877 = vmatpush.msra.mxu0 %v7852
    %7878 = vmatpush.msra.mxu0 %v7851
    %7879 = vmatpush.msra.mxu0 %v7850
    %7880 = vmatpush.msra.mxu0 %v7849
    %7881 = vmatpush.msra.mxu0 %v7848
    %7882 = vmatpush.msra.mxu0 %v7847
    %7883 = vmatpush.msra.mxu0 %v7846
    %7884 = vmatpush.msra.mxu0 %v7845
    %7885 = vmatpush.msra.mxu0 %v7844
    %7886 = vmatpush.msra.mxu0 %v7843
    %7887 = vmatpush.msra.mxu0 %v7842
    %7888 = vmatpush.msra.mxu0 %v7841
    %7889 = vmatpush.msra.mxu0 %v7840
    %7890 = vmatpush.msra.mxu0 %v7839
    %7891 = vmatpush.msra.mxu0 %v7838
    %7892 = vmatpush.msra.mxu0 %v7837
    %7893 = vmatmul.f32.gmra.mxu0 %v7820
    %v7894 = vpop.f32.mrf.mxu0
    %v7895 = vadd.f32 %v7875, %v7894
    %7896 = vdwg.mxu0
    %v7897 = vld [vmem:[%s51] sm:$0x1]
    %v7898 = vld [vmem:[%s53] sm:$0x1]
    %v7899 = vld [vmem:[#allocation19] sm:$0xff]
    %v7900 = vld [vmem:[#allocation19 + $0x8] sm:$0xff]
    %v7901 = vld [vmem:[#allocation19 + $0x10] sm:$0xff]
    %v7902 = vld [vmem:[#allocation19 + $0x18] sm:$0xff]
    %vm7903 = vcmask 261120
    %v7905 = vsel %vm7903, %v7897, 0
    %7907 = vmatpush.msra.mxu0 0.0
    %7908 = vmatpush.msra.mxu0 0.0
    %7909 = vmatpush.msra.mxu0 0.0
    %7910 = vmatpush.msra.mxu0 0.0
    %7911 = vmatpush.msra.mxu0 0.0
    %7912 = vmatpush.msra.mxu0 0.0
    %7913 = vmatpush.msra.mxu0 0.0
    %7914 = vmatpush.msra.mxu0 0.0
    %7915 = vmatpush.msra.mxu0 0.0
    %7916 = vmatpush.msra.mxu0 0.0
    %7917 = vmatpush.msra.mxu0 0.0
    %7918 = vmatpush.msra.mxu0 0.0
    %7919 = vmatpush.msra.mxu0 %v7902
    %7920 = vmatpush.msra.mxu0 %v7901
    %7921 = vmatpush.msra.mxu0 %v7900
    %7922 = vmatpush.msra.mxu0 %v7899
    %7923 = vmatmul.f32.gmra.mxu0 %v7905
    %v7924 = vpop.f32.mrf.mxu0
    %v7925 = vadd.f32 0.0, %v7924
    %7926 = vdwg.mxu0
    %v7927 = vadd.f32 %v7895, %v7925
    %v7928 = vmul.f32 %v7927, 0.5
    %v7929 = vtanh.pop %v7928
    %v7930 = vadd.f32 %v7929, 1.0
    %v7931 = vmul.f32 %v7930, 0.5
    %v7932 = vtanh.pop %v7927
    %v7934 = vperm.slane %v7898, 0
    %7935 = vrot.lane.b32.xlu0 %v7934, 32
    %v7936 = vpop.permute.xlu0 %7935
    %v7938 = vmul.f32 %v7931, %v7936
    %7940 = vrot.lane.b32.xlu0 %v7932, 64
    %v7941 = vpop.permute.xlu0 %7940
    %v7943 = vmul.f32 %v7931, %v7941
    %7945 = vrot.lane.b32.xlu0 %v7943, 32
    %v7946 = vpop.permute.xlu0 %7945
    %v7948 = vadd.f32 %v7938, %v7946
    %v7949 = vtanh.pop %v7948
    %7951 = vrot.lane.b32.xlu0 %v7949, 64
    %v7952 = vpop.permute.xlu0 %7951
    %v7954 = vmul.f32 %v7931, %v7952
    %7956 = vrot.lane.b32.xlu0 %v7954, 32
    %v7957 = vpop.permute.xlu0 %7956
    %v7958 = vsel %vm7903, %v7957, 0
    %7960 = vmatpush.msra.mxu0 0.0
    %7961 = vmatpush.msra.mxu0 0.0
    %7962 = vmatpush.msra.mxu0 0.0
    %7963 = vmatpush.msra.mxu0 0.0
    %7964 = vmatpush.msra.mxu0 0.0
    %7965 = vmatpush.msra.mxu0 0.0
    %7966 = vmatpush.msra.mxu0 0.0
    %7967 = vmatpush.msra.mxu0 0.0
    %7968 = vmatpush.msra.mxu0 0.0
    %7969 = vmatpush.msra.mxu0 0.0
    %7970 = vmatpush.msra.mxu0 0.0
    %7971 = vmatpush.msra.mxu0 0.0
    %7972 = vmatpush.msra.mxu0 %v7902
    %7973 = vmatpush.msra.mxu0 %v7901
    %7974 = vmatpush.msra.mxu0 %v7900
    %7975 = vmatpush.msra.mxu0 %v7899
    %7976 = vmatmul.f32.gmra.mxu0 %v7958
    %v7977 = vpop.f32.mrf.mxu0
    %v7978 = vadd.f32 0.0, %v7977
    %7979 = vdwg.mxu0
    %v7981 = vrot.slane %v7978, 7
    %v7983 = vadd.f32 %v7895, %v7981
    %v7984 = vmul.f32 %v7983, 0.5
    %v7985 = vtanh.pop %v7984
    %v7986 = vadd.f32 %v7985, 1.0
    %v7987 = vmul.f32 %v7986, 0.5
    %v7988 = vtanh.pop %v7983
    %v7990 = vrot.slane %v7948, 7
    %v7992 = vmul.f32 %v7987, %v7990
    %7994 = vrot.lane.b32.xlu0 %v7988, 64
    %v7995 = vpop.permute.xlu0 %7994
    %v7997 = vmul.f32 %v7987, %v7995
    %7999 = vrot.lane.b32.xlu0 %v7997, 32
    %v8000 = vpop.permute.xlu0 %7999
    %v8002 = vadd.f32 %v7992, %v8000
    %v8003 = vtanh.pop %v8002
    %8005 = vrot.lane.b32.xlu0 %v8003, 64
    %v8006 = vpop.permute.xlu0 %8005
    %v8008 = vmul.f32 %v7987, %v8006
    %8010 = vrot.lane.b32.xlu0 %v8008, 32
    %v8011 = vpop.permute.xlu0 %8010
    %vm8013 = vcmask 254977
    %8014 = vst.msk [vmem:[#allocation26 - $0x1] sm:$0x2] %vm8013, %v8011
    %8016 = vrot.lane.b32.xlu0 %v8002, 96
    %v8017 = vpop.permute.xlu0 %8016
    %8019 = vst.msk [vmem:[#allocation27 - $0x1] sm:$0x2] %vm8013, %v8017
    %vm8020 = vcmask 1040384
    %v8021 = vsel %vm8020, %v7954, %v8008
    %v8022 = vld [vmem:[#allocation22] sm:$0xff]
    %v8023 = vld [vmem:[#allocation22 + $0x8] sm:$0xff]
    %v8024 = vld [vmem:[#allocation22 + $0x10] sm:$0xff]
    %v8025 = vld [vmem:[#allocation22 + $0x18] sm:$0xff]
    %v8026 = vld [vmem:[#allocation22 + $0x20] sm:$0xff]
    %v8027 = vld [vmem:[#allocation22 + $0x28] sm:$0xff]
    %v8028 = vld [vmem:[#allocation22 + $0x30] sm:$0xff]
    %v8029 = vld [vmem:[#allocation22 + $0x38] sm:$0xff]
    %v8030 = vld [vmem:[#allocation23] sm:$0x3]
    %v8032 = vperm.slane %v8030, 0
    %v8033 = vperm.slane %v8030, 1
    %8037 = vrot.lane.b32.xlu0 %v8021, 32
    %v8038 = vpop.permute.xlu0 %8037
    %v8039 = vsel %vm7903, %v8038, 0
    %8041 = vmatpush.msra.mxu0 0.0
    %8042 = vmatpush.msra.mxu0 0.0
    %8043 = vmatpush.msra.mxu0 0.0
    %8044 = vmatpush.msra.mxu0 0.0
    %8045 = vmatpush.msra.mxu0 0.0
    %8046 = vmatpush.msra.mxu0 0.0
    %8047 = vmatpush.msra.mxu0 0.0
    %8048 = vmatpush.msra.mxu0 0.0
    %8049 = vmatpush.msra.mxu0 0.0
    %8050 = vmatpush.msra.mxu0 0.0
    %8051 = vmatpush.msra.mxu0 0.0
    %8052 = vmatpush.msra.mxu0 0.0
    %8053 = vmatpush.msra.mxu0 %v8028
    %8054 = vmatpush.msra.mxu0 %v8026
    %8055 = vmatpush.msra.mxu0 %v8024
    %8056 = vmatpush.msra.mxu0 %v8022
    %8057 = vmatmul.f32.gmra.mxu0 %v8039
    %v8058 = vpop.f32.mrf.mxu0
    %v8059 = vadd.f32 %v8032, %v8058
    %8060 = vdwg.mxu0
    %8061 = vmatpush.msra.mxu0 0.0
    %8062 = vmatpush.msra.mxu0 0.0
    %8063 = vmatpush.msra.mxu0 0.0
    %8064 = vmatpush.msra.mxu0 0.0
    %8065 = vmatpush.msra.mxu0 0.0
    %8066 = vmatpush.msra.mxu0 0.0
    %8067 = vmatpush.msra.mxu0 0.0
    %8068 = vmatpush.msra.mxu0 0.0
    %8069 = vmatpush.msra.mxu0 0.0
    %8070 = vmatpush.msra.mxu0 0.0
    %8071 = vmatpush.msra.mxu0 0.0
    %8072 = vmatpush.msra.mxu0 0.0
    %8073 = vmatpush.msra.mxu0 %v8029
    %8074 = vmatpush.msra.mxu0 %v8027
    %8075 = vmatpush.msra.mxu0 %v8025
    %8076 = vmatpush.msra.mxu0 %v8023
    %8077 = vmatmul.f32.gmra.mxu0 %v8039
    %v8078 = vpop.f32.mrf.mxu0
    %v8079 = vadd.f32 %v8033, %v8078
    %8080 = vdwg.mxu0
    %vm8081 = vcmp.gt.f32.partialorder %v8059, 0.0
    %vm8082 = vcmp.gt.f32.partialorder %v8079, 0.0
    %v8083 = vmin.f32 %v8059, 0.0
    %v8084 = vmin.f32 %v8079, 0.0
    %v8085 = vmul.f32 %v8083, 1.442695
    %v8086 = vpow.pop %v8085
    %v8087 = vmul.f32 %v8084, 1.442695
    %v8088 = vpow.pop %v8087
    %v8089 = vsub.f32 %v8086, 1.0
    %v8090 = vsub.f32 %v8088, 1.0
    %v8091 = vsel %vm8081, %v8059, %v8089
    %v8092 = vsel %vm8082, %v8079, %v8090
    %v8093 = vld [vmem:[%s47] sm:$0xff]
    %v8094 = vld [vmem:[%s47 + $0x8] sm:$0xff]
    %v8095 = vld [vmem:[%s47 + $0x10] sm:$0xff]
    %v8096 = vld [vmem:[%s47 + $0x18] sm:$0xff]
    %v8097 = vld [vmem:[%s47 + $0x20] sm:$0xff]
    %v8098 = vld [vmem:[%s47 + $0x28] sm:$0xff]
    %v8099 = vld [vmem:[%s47 + $0x30] sm:$0xff]
    %v8100 = vld [vmem:[%s47 + $0x38] sm:$0xff]
    %v8101 = vld [vmem:[%s47 + $0x40] sm:$0xff]
    %v8102 = vld [vmem:[%s47 + $0x48] sm:$0xff]
    %v8103 = vld [vmem:[%s47 + $0x50] sm:$0xff]
    %v8104 = vld [vmem:[%s47 + $0x58] sm:$0xff]
    %v8105 = vld [vmem:[%s47 + $0x60] sm:$0xff]
    %v8106 = vld [vmem:[%s47 + $0x68] sm:$0xff]
    %v8107 = vld [vmem:[%s47 + $0x70] sm:$0xff]
    %v8108 = vld [vmem:[%s47 + $0x78] sm:$0xff]
    %v8109 = vld [vmem:[%s47 + $0x80] sm:$0xff]
    %v8110 = vld [vmem:[%s47 + $0x88] sm:$0xff]
    %v8111 = vld [vmem:[%s47 + $0x90] sm:$0xff]
    %v8112 = vld [vmem:[%s47 + $0x98] sm:$0xff]
    %v8113 = vld [vmem:[%s47 + $0xa0] sm:$0xff]
    %v8114 = vld [vmem:[%s47 + $0xa8] sm:$0xff]
    %v8115 = vld [vmem:[%s47 + $0xb0] sm:$0xff]
    %v8116 = vld [vmem:[%s47 + $0xb8] sm:$0xff]
    %v8117 = vld [vmem:[%s47 + $0xc0] sm:$0xff]
    %v8118 = vld [vmem:[%s47 + $0xc8] sm:$0xff]
    %v8119 = vld [vmem:[%s47 + $0xd0] sm:$0xff]
    %v8120 = vld [vmem:[%s47 + $0xd8] sm:$0xff]
    %v8121 = vld [vmem:[%s47 + $0xe0] sm:$0xff]
    %v8122 = vld [vmem:[%s47 + $0xe8] sm:$0xff]
    %v8123 = vld [vmem:[%s47 + $0xf0] sm:$0xff]
    %v8124 = vld [vmem:[%s47 + $0xf8] sm:$0xff]
    %v8125 = vld [vmem:[#allocation25] sm:$0x1]
    %v8127 = vperm.slane %v8125, 0
    %8129 = vmatpush.msra.mxu0 %v8108
    %8130 = vmatpush.msra.mxu0 %v8107
    %8131 = vmatpush.msra.mxu0 %v8106
    %8132 = vmatpush.msra.mxu0 %v8105
    %8133 = vmatpush.msra.mxu0 %v8104
    %8134 = vmatpush.msra.mxu0 %v8103
    %8135 = vmatpush.msra.mxu0 %v8102
    %8136 = vmatpush.msra.mxu0 %v8101
    %8137 = vmatpush.msra.mxu0 %v8100
    %8138 = vmatpush.msra.mxu0 %v8099
    %8139 = vmatpush.msra.mxu0 %v8098
    %8140 = vmatpush.msra.mxu0 %v8097
    %8141 = vmatpush.msra.mxu0 %v8096
    %8142 = vmatpush.msra.mxu0 %v8095
    %8143 = vmatpush.msra.mxu0 %v8094
    %8144 = vmatpush.msra.mxu0 %v8093
    %8145 = vmatmul.f32.gmra.mxu0 %v8091
    %v8146 = vpop.f32.mrf.mxu0
    %v8147 = vadd.f32 %v8127, %v8146
    %8148 = vdwg.mxu0
    %8149 = vmatpush.msra.mxu0 %v8124
    %8150 = vmatpush.msra.mxu0 %v8123
    %8151 = vmatpush.msra.mxu0 %v8122
    %8152 = vmatpush.msra.mxu0 %v8121
    %8153 = vmatpush.msra.mxu0 %v8120
    %8154 = vmatpush.msra.mxu0 %v8119
    %8155 = vmatpush.msra.mxu0 %v8118
    %8156 = vmatpush.msra.mxu0 %v8117
    %8157 = vmatpush.msra.mxu0 %v8116
    %8158 = vmatpush.msra.mxu0 %v8115
    %8159 = vmatpush.msra.mxu0 %v8114
    %8160 = vmatpush.msra.mxu0 %v8113
    %8161 = vmatpush.msra.mxu0 %v8112
    %8162 = vmatpush.msra.mxu0 %v8111
    %8163 = vmatpush.msra.mxu0 %v8110
    %8164 = vmatpush.msra.mxu0 %v8109
    %8165 = vmatmul.f32.gmra.mxu0 %v8092
    %v8166 = vpop.f32.mrf.mxu0
    %v8167 = vadd.f32 %v8147, %v8166
    %8168 = vdwg.mxu0
    %vm8169 = vcmask 9216
    %8170 = vst.msk [vmem:[%s55] sm:$0x3] %vm8169, %v8167
    // Predicated region
    $region162: #{critic_lstm_forward.1} parent=1 // pred_check
      _
    $region163: #{critic_lstm_forward.1} parent=1 // pred_check_branch
      %8172 = sbr.rel (0) target = $region165
    $region164: #{critic_lstm_forward.1} parent=1 // pred_region
      _
    $region165: #{critic_lstm_forward.1} parent=1 // pred_fallthru
      _
    // Predicated region
    $region166: #{critic_lstm_forward.1} parent=1 // pred_check
      _
    $region167: #{critic_lstm_forward.1} parent=1 // pred_check_branch
      %8174 = sbr.rel (0) target = $region169
    $region168: #{critic_lstm_forward.1} parent=1 // pred_region
      %8176 = vsyncadd [#allocation7], 0
      %s8178 = sshll.u32 [#allocation26], 4
      %s8179 = int_to_ptr.vmem [resolvable:$true] %s8178
      %s8180 = sshll.u32 %s57, 4
      %s8181 = int_to_ptr.hbm [resolvable:$true] %s8180
      %8183 = dma.vmem_to_hbm [thread:$0]  %s8179, 16, %s8181, [#allocation7]
    $region169: #{critic_lstm_forward.1} parent=1 // pred_fallthru
      _
    // Predicated region
    $region170: #{critic_lstm_forward.1} parent=1 // pred_check
      _
    $region171: #{critic_lstm_forward.1} parent=1 // pred_check_branch
      %8185 = sbr.rel (0) target = $region173
    $region172: #{critic_lstm_forward.1} parent=1 // pred_region
      %8187 = vsyncadd [#allocation28], 0
      %s8189 = sshll.u32 [#allocation27], 4
      %s8190 = int_to_ptr.vmem [resolvable:$true] %s8189
      %s8191 = sshll.u32 %s59, 4
      %s8192 = int_to_ptr.hbm [resolvable:$true] %s8191
      %8194 = dma.vmem_to_hbm [thread:$0]  %s8190, 16, %s8192, [#allocation28]
    $region173: #{critic_lstm_forward.1} parent=1 // pred_fallthru
      _
    // Predicated region
    $region174: #{critic_lstm_forward.1} parent=1 // pred_check
      _
    $region175: #{critic_lstm_forward.1} parent=1 // pred_check_branch
      %8196 = sbr.rel (0) target = $region177
    $region176: #{critic_lstm_forward.1} parent=1 // pred_region
      _
    $region177: #{critic_lstm_forward.1} parent=1 // pred_fallthru
      _
    // Predicated region
    $region178: #{critic_lstm_forward.1} parent=1 // pred_check
      _
    $region179: #{critic_lstm_forward.1} parent=1 // pred_check_branch
      %8198 = sbr.rel (0) target = $region181
    $region180: #{critic_lstm_forward.1} parent=1 // pred_region
      %8200 = dma.done [#allocation7], 16
    $region181: #{critic_lstm_forward.1} parent=1 // pred_fallthru
      _
    // Predicated region
    $region182: #{critic_lstm_forward.1} parent=1 // pred_check
      _
    $region183: #{critic_lstm_forward.1} parent=1 // pred_check_branch
      %8202 = sbr.rel (0) target = $region185
    $region184: #{critic_lstm_forward.1} parent=1 // pred_region
      %8204 = dma.done [#allocation28], 16
    $region185: #{critic_lstm_forward.1} parent=1 // pred_fallthru
      _
    %8205 = vsyncpa [#allocation6], 1
    %8206 = vsyncpa [#allocation9], 1
    %8207 = vsyncpa [#allocation12], 1
    %8208 = vsyncpa [#allocation15], 1
    %8209 = vsyncpa [#allocation18], 1
    %8210 = vsyncpa [#allocation21], 1
    %8211 = vsyncpa [#allocation24], 1
    %8212 = vsyncpa [#allocation7], 1
    %8213 = vsyncpa [#allocation28], 1

</llo_original>
